<compile_context>
chip_gen: v7x
topology: tpu7x:2x2x1
jax: 0.10.0
libtpu: 0.0.40
codegen_flags: <defaults>
</compile_context>

<pallas_src>
import jax
import jax.numpy as jnp
from jax.experimental import pallas as pl
from jax.experimental.pallas import tpu as pltpu

NEG_SLOPE = 0.01     # nn.LeakyReLU(0.01)
IN_DIM = 2048
N1P = 1536           # 1500 padded to a multiple of 128
N2P = 1024           # 1000 padded to a multiple of 128
TILE_N1 = 768        # W1 streamed in (2048, 768) column tiles (1536 / 768 = 2 steps)
FC2_PAD = 128        # fc2 hidden dims 100 / 50 / 1 all padded to 128


def _round_up(v, m):
    return ((v + m - 1) // m) * m


def _leaky_relu(x):
    return jnp.where(x > 0, x, NEG_SLOPE * x)


# ----------------------------- Pallas kernels ------------------------------


def classifier_kernel(x_ref, w1_ref, b1_ref, w2_ref, b2_ref, w3_ref, b3_ref,
                      o_ref, h2_ref):
    # Grid axis 0 tiles W1's (padded) output columns == W2's input rows.
    # Each step: h1_slab = leaky(x @ W1_slab + b1_slab);
    #            h2 += h1_slab @ W2_slab   (f32 accumulator in VMEM scratch).
    # Last step: out = leaky(h2 + b2) @ W3 + b3.
    j = pl.program_id(0)

    @pl.when(j == 0)
    def _():
        h2_ref[...] = jnp.zeros_like(h2_ref)

    h1 = jnp.dot(x_ref[...], w1_ref[...], preferred_element_type=jnp.float32)
    h1 = _leaky_relu(h1 + b1_ref[...]).astype(jnp.bfloat16)
    h2_ref[...] += jnp.dot(h1, w2_ref[...], preferred_element_type=jnp.float32)

    @pl.when(j == pl.num_programs(0) - 1)
    def _():
        h2 = _leaky_relu(h2_ref[...] + b2_ref[...]).astype(jnp.bfloat16)
        out = jnp.dot(h2, w3_ref[...], preferred_element_type=jnp.float32)
        o_ref[...] = (out + b3_ref[...]).astype(o_ref.dtype)


def fc2_kernel(pair_ref, xa_ref, xb_ref, w1a_ref, w1b_ref, b1_ref,
               w2_ref, b2_ref, w3_ref, b3_ref, w4_ref, b4_ref, o_ref):
    # One pair head per grid step.  xa/xb are the two classifier-output row
    # blocks selected by the scalar-prefetched pair table (via the index maps);
    # the concat-then-matmul of the reference becomes two matmuls + add.
    del pair_ref  # only used inside the index maps
    xa = xa_ref[...].astype(jnp.bfloat16)
    xb = xb_ref[...].astype(jnp.bfloat16)
    h = (jnp.dot(xa, w1a_ref[...], preferred_element_type=jnp.float32)
         + jnp.dot(xb, w1b_ref[...], preferred_element_type=jnp.float32)
         + b1_ref[...])
    h = _leaky_relu(h).astype(jnp.bfloat16)
    h = jnp.dot(h, w2_ref[...], preferred_element_type=jnp.float32) + b2_ref[...]
    h = _leaky_relu(h).astype(jnp.bfloat16)
    h = jnp.dot(h, w3_ref[...], preferred_element_type=jnp.float32) + b3_ref[...]
    h = _leaky_relu(h).astype(jnp.bfloat16)
    h = jnp.dot(h, w4_ref[...], preferred_element_type=jnp.float32) + b4_ref[...]
    o_ref[...] = jax.nn.sigmoid(h).astype(o_ref.dtype)


# ------------------------------ call wrappers -------------------------------


def _classifier_vmem_limit(rows, cp):
    # Conservative: assume every input/output block is double-buffered.
    dbl = 2
    block_bytes = (
        rows * IN_DIM * 2 * dbl            # x bf16 (constant index)
        + IN_DIM * TILE_N1 * 2 * dbl       # W1 column tile, bf16
        + TILE_N1 * 4 * dbl                # b1 tile, f32
        + TILE_N1 * N2P * 2 * dbl          # W2 row tile, bf16
        + N2P * 4 * dbl                    # b2, f32
        + N2P * cp * 2 * dbl               # W3, bf16
        + cp * 4 * dbl                     # b3, f32
        + rows * cp * 4 * dbl              # output, f32
        + rows * N2P * 4                   # h2 accumulator scratch, f32
    )
    return block_bytes + 8 * 1024 * 1024   # headroom for compiler internals


def classifier_apply(x, cls_params):
    """x: (rows, 2048) bf16 -> padded logits (rows, CP) f32 (cols >= C are 0)."""
    w1, b1, w2, b2, w3, b3 = cls_params
    rows = x.shape[0]
    cp = w3.shape[1]
    n_tiles = N1P // TILE_N1

    flops = 2 * rows * (IN_DIM * N1P + N1P * N2P + N2P * cp)
    bytes_accessed = (
        (w1.size + w2.size + w3.size) * 2        # bf16 weights
        + (b1.size + b2.size + b3.size) * 4      # f32 biases
        + x.size * 2 + rows * cp * 4)            # bf16 x, f32 out

    grid_spec = pltpu.PrefetchScalarGridSpec(
        num_scalar_prefetch=0,
        grid=(n_tiles,),
        in_specs=[
            pl.BlockSpec((rows, IN_DIM), lambda j: (0, 0)),
            pl.BlockSpec((IN_DIM, TILE_N1), lambda j: (0, j)),
            pl.BlockSpec((1, TILE_N1), lambda j: (0, j)),
            pl.BlockSpec((TILE_N1, N2P), lambda j: (j, 0)),   # W2 as K-reduction
            pl.BlockSpec((1, N2P), lambda j: (0, 0)),
            pl.BlockSpec((N2P, cp), lambda j: (0, 0)),
            pl.BlockSpec((1, cp), lambda j: (0, 0)),
        ],
        out_specs=pl.BlockSpec((rows, cp), lambda j: (0, 0)),
        scratch_shapes=[pltpu.VMEM((rows, N2P), jnp.float32)],
    )
    return pl.pallas_call(
        classifier_kernel,
        out_shape=jax.ShapeDtypeStruct((rows, cp), jnp.float32),
        grid_spec=grid_spec,
        compiler_params=pltpu.CompilerParams(
            dimension_semantics=("arbitrary",),            # reduction axis
            vmem_limit_bytes=_classifier_vmem_limit(rows, cp),
        ),
        cost_estimate=pl.CostEstimate(
            flops=flops, transcendentals=0, bytes_accessed=bytes_accessed),
    )(x, w1, b1, w2, b2, w3, b3)


def fc2_apply_pairs(out_pad, pairs, bp, fc2_params):
    """Fused pair heads.

    out_pad: (n*bp, CP) f32 padded classifier outputs (row block i = input i).
    pairs:   (P, 2) int32 pair-index table (scalar-prefetched to SMEM).
    Returns (P*bp, FC2_PAD) f32; column 0 is the sigmoid score.
    """
    w1a, w1b, b1, w2, b2, w3, b3, w4, b4 = fc2_params
    cp = w1a.shape[0]
    n_pairs = pairs.shape[0]

    flops = 2 * n_pairs * bp * (2 * cp * cp + cp * FC2_PAD + 2 * FC2_PAD * FC2_PAD)
    bytes_accessed = (
        sum(int(w.size) * w.dtype.itemsize for w in fc2_params)
        + 2 * n_pairs * bp * cp * 4 + n_pairs * bp * FC2_PAD * 4)

    grid_spec = pltpu.PrefetchScalarGridSpec(
        num_scalar_prefetch=1,
        grid=(n_pairs,),
        in_specs=[
            pl.BlockSpec((bp, cp), lambda p, pr: (pr[p, 0], 0)),   # left member
            pl.BlockSpec((bp, cp), lambda p, pr: (pr[p, 1], 0)),   # right member
            pl.BlockSpec((cp, cp), lambda p, pr: (0, 0)),          # V1 top half
            pl.BlockSpec((cp, cp), lambda p, pr: (0, 0)),          # V1 bottom half
            pl.BlockSpec((1, cp), lambda p, pr: (0, 0)),
            pl.BlockSpec((cp, FC2_PAD), lambda p, pr: (0, 0)),
            pl.BlockSpec((1, FC2_PAD), lambda p, pr: (0, 0)),
            pl.BlockSpec((FC2_PAD, FC2_PAD), lambda p, pr: (0, 0)),
            pl.BlockSpec((1, FC2_PAD), lambda p, pr: (0, 0)),
            pl.BlockSpec((FC2_PAD, FC2_PAD), lambda p, pr: (0, 0)),
            pl.BlockSpec((1, FC2_PAD), lambda p, pr: (0, 0)),
        ],
        out_specs=pl.BlockSpec((bp, FC2_PAD), lambda p, pr: (p, 0)),
    )
    return pl.pallas_call(
        fc2_kernel,
        out_shape=jax.ShapeDtypeStruct((n_pairs * bp, FC2_PAD), jnp.float32),
        grid_spec=grid_spec,
        compiler_params=pltpu.CompilerParams(
            dimension_semantics=("arbitrary",)),
        cost_estimate=pl.CostEstimate(
            flops=flops, transcendentals=n_pairs * bp * FC2_PAD,
            bytes_accessed=bytes_accessed),
    )(pairs, out_pad, out_pad, w1a, w1b, b1, w2, b2, w3, b3, w4, b4)


# --------------------------- parameter construction -------------------------


def _linear_params(key, fan_in, fan_out):
    # Match PyTorch nn.Linear default init: U(-1/sqrt(fan_in), 1/sqrt(fan_in))
    # for both weight and bias.
    kw, kb = jax.random.split(key)
    k = 1.0 / jnp.sqrt(jnp.float32(fan_in))
    w = jax.random.uniform(kw, (fan_in, fan_out), jnp.float32, -k, k)
    b = jax.random.uniform(kb, (1, fan_out), jnp.float32, -k, k)
    return w, b


def _pad2(a, shape):
    return jnp.pad(a, [(0, t - s) for s, t in zip(a.shape, shape)])


def init_determiner_params(num_classes, key):
    c = num_classes
    cp = _round_up(c, 128)
    keys = jax.random.split(key, 7)

    # classifier: Linear(2048,1500), Linear(1500,1000), Linear(1000,C)
    w1, b1 = _linear_params(keys[0], IN_DIM, 1500)
    w2, b2 = _linear_params(keys[1], 1500, 1000)
    w3, b3 = _linear_params(keys[2], 1000, c)
    classifier = (
        _pad2(w1, (IN_DIM, N1P)).astype(jnp.bfloat16), _pad2(b1, (1, N1P)),
        _pad2(w2, (N1P, N2P)).astype(jnp.bfloat16), _pad2(b2, (1, N2P)),
        _pad2(w3, (N2P, cp)).astype(jnp.bfloat16), _pad2(b3, (1, cp)),
    )

    # fc2: Linear(2C,C), Linear(C,100), Linear(100,50), Linear(50,1)
    v1, c1 = _linear_params(keys[3], 2 * c, c)
    v2, c2 = _linear_params(keys[4], c, 100)
    v3, c3 = _linear_params(keys[5], 100, 50)
    v4, c4 = _linear_params(keys[6], 50, 1)
    # fc2 input is the pair [out_a, out_b]; V1 is split into the rows that
    # multiply out_a (top half) and out_b (bottom half) so no concat is needed.
    fc2 = (
        _pad2(v1[:c], (cp, cp)).astype(jnp.bfloat16),          # V1a
        _pad2(v1[c:], (cp, cp)).astype(jnp.bfloat16),          # V1b
        _pad2(c1, (1, cp)),
        _pad2(v2, (cp, FC2_PAD)).astype(jnp.bfloat16), _pad2(c2, (1, FC2_PAD)),
        _pad2(v3, (FC2_PAD, FC2_PAD)).astype(jnp.bfloat16), _pad2(c3, (1, FC2_PAD)),
        _pad2(v4, (FC2_PAD, FC2_PAD)).astype(jnp.bfloat16), _pad2(c4, (1, FC2_PAD)),
    )
    return {"classifier": classifier, "fc2": fc2, "num_classes": c}


# -------------------------------- forward -----------------------------------


def determiner_forward(inputs, params, training=True):
    c = params["num_classes"]
    cls_p = params["classifier"]
    fc2_p = params["fc2"]

    if not isinstance(inputs, (list, tuple)):
        # Plain tensor path: just the classifier.
        x = inputs.astype(jnp.bfloat16)
        return classifier_apply(x, cls_p)[:, :c]

    n = len(inputs)
    batch = inputs[0].shape[0]
    bp = _round_up(batch, 8)   # row-block size for the fc2 pair selection

    # Single stacked classifier call: weights streamed from HBM only once.
    xs = [xi.astype(jnp.bfloat16) for xi in inputs]
    if bp != batch:
        xs = [jnp.pad(xi, ((0, bp - batch), (0, 0))) for xi in xs]
    x_stack = jnp.concatenate(xs, axis=0)                     # (n*bp, 2048)
    out_pad = classifier_apply(x_stack, cls_p)                # (n*bp, CP)
    outputs = [out_pad[i * bp:i * bp + batch, :c] for i in range(n)]

    if training:
        # `.detach()` in PyTorch -> stop_gradient (forward values identical).
        d = jax.lax.stop_gradient(out_pad)
        pairs = jnp.array([[0, 1], [0, 2], [1, 3]], jnp.int32)
        f = fc2_apply_pairs(d, pairs, bp, fc2_p)              # (3*bp, 128)
        f1 = f[0 * bp:0 * bp + batch, :1]
        f2 = f[1 * bp:1 * bp + batch, :1]
        f3 = f[2 * bp:2 * bp + batch, :1]
        return (outputs[0], outputs[1], outputs[2], outputs[3], f1, f2, f3)
    else:
        pairs = jnp.array([[0, 1]], jnp.int32)
        f = fc2_apply_pairs(out_pad, pairs, bp, fc2_p)        # (bp, 128)
        return f[:batch, :1]


# ----------------------------------- main ------------------------------------

if __name__ == "__main__":
    num_classes = 10
    batch = 8

    key = jax.random.PRNGKey(0)
    pkey, xkey = jax.random.split(key)
    params = init_determiner_params(num_classes, pkey)

    xkeys = jax.random.split(xkey, 4)
    inputs = [jax.random.normal(k, (batch, IN_DIM), jnp.float32) for k in xkeys]

    # Training path: 4 classifier outputs + 3 sigmoid pair scores.
    train_out = determiner_forward(inputs, params, training=True)
    train_out = jax.block_until_ready(train_out)
    assert len(train_out) == 7
    assert train_out[0].shape == (batch, num_classes)
    assert train_out[4].shape == (batch, 1)

    # Eval path: single sigmoid score for the (0, 1) pair.
    eval_out = jax.block_until_ready(
        determiner_forward(inputs, params, training=False))
    assert eval_out.shape == (batch, 1)

    # Plain-tensor path: classifier only.
    single_out = jax.block_until_ready(determiner_forward(inputs[0], params))
    assert single_out.shape == (batch, num_classes)

    print("KERNEL_OK")
</pallas_src>

<mosaic_0001>
module attributes {stable_mosaic.version = 11 : i64} {
  func.func @classifier_kernel(%arg0: i32, %arg1: memref<32x2048xbf16, #tpu.memory_space<vmem>>, %arg2: memref<2048x768xbf16, #tpu.memory_space<vmem>>, %arg3: memref<1x768xf32, #tpu.memory_space<vmem>>, %arg4: memref<768x1024xbf16, #tpu.memory_space<vmem>>, %arg5: memref<1x1024xf32, #tpu.memory_space<vmem>>, %arg6: memref<1024x128xbf16, #tpu.memory_space<vmem>>, %arg7: memref<1x128xf32, #tpu.memory_space<vmem>>, %arg8: memref<32x128xf32, #tpu.memory_space<vmem>>, %arg9: memref<32x1024xf32, #tpu.memory_space<vmem>>) attributes {dimension_semantics = [#tpu.dimension_semantics<arbitrary>], iteration_bounds = array<i64: 2>, scalar_prefetch = 0 : i64, scratch_operands = 1 : i64, tpu.core_type = #tpu.core_type<tc>, window_params = [{pipeline_mode = #tpu.pipeline_mode<synchronous>, transform_indices = @transform_0, window_bounds = array<i64: 32, 2048>}, {transform_indices = @transform_1, window_bounds = array<i64: 2048, 768>}, {transform_indices = @transform_2, window_bounds = array<i64: 1, 768>}, {transform_indices = @transform_3, window_bounds = array<i64: 768, 1024>}, {pipeline_mode = #tpu.pipeline_mode<synchronous>, transform_indices = @transform_4, window_bounds = array<i64: 1, 1024>}, {pipeline_mode = #tpu.pipeline_mode<synchronous>, transform_indices = @transform_5, window_bounds = array<i64: 1024, 128>}, {pipeline_mode = #tpu.pipeline_mode<synchronous>, transform_indices = @transform_6, window_bounds = array<i64: 1, 128>}, {pipeline_mode = #tpu.pipeline_mode<synchronous>, transform_indices = @transform_7, window_bounds = array<i64: 32, 128>}]} {
    %c0_i32 = arith.constant 0 : i32
    %0 = arith.cmpi eq, %arg0, %c0_i32 : i32
    %1 = arith.extui %0 : i1 to i32
    %c0_i32_0 = arith.constant 0 : i32
    %2 = arith.cmpi ne, %1, %c0_i32_0 : i32
    scf.if %2 {
      %cst_16 = arith.constant 0.000000e+00 : f32
      %23 = vector.broadcast %cst_16 : f32 to vector<32x1024xf32>
      %c0_17 = arith.constant 0 : index
      %c0_18 = arith.constant 0 : index
      %24 = vector.load %arg9[%c0_17, %c0_18] : memref<32x1024xf32, #tpu.memory_space<vmem>>, vector<32x1024xf32>
      tpu.vector_store %arg9[%c0_17, %c0_18], %23 {strides = array<i32>} : memref<32x1024xf32, #tpu.memory_space<vmem>>, vector<32x1024xf32>,
    } else {
    }
    %c0 = arith.constant 0 : index
    %c0_1 = arith.constant 0 : index
    %3 = vector.load %arg1[%c0, %c0_1] : memref<32x2048xbf16, #tpu.memory_space<vmem>>, vector<32x2048xbf16>
    %c0_2 = arith.constant 0 : index
    %c0_3 = arith.constant 0 : index
    %4 = vector.load %arg2[%c0_2, %c0_3] : memref<2048x768xbf16, #tpu.memory_space<vmem>>, vector<2048x768xbf16>
    %cst = arith.constant dense<0.000000e+00> : vector<32x768xf32>
    %5 = tpu.matmul %3, %4, %cst {dimension_numbers = #tpu.dot_dimension_numbers<[1], [0], [0], [1], [0, 0, 1, 1], [], []>} : vector<32x2048xbf16>, vector<2048x768xbf16>, vector<32x768xf32> -> vector<32x768xf32>
    %c0_4 = arith.constant 0 : index
    %c0_5 = arith.constant 0 : index
    %6 = vector.load %arg3[%c0_4, %c0_5] : memref<1x768xf32, #tpu.memory_space<vmem>>, vector<1x768xf32>
    %7 = vector.broadcast %6 : vector<1x768xf32> to vector<32x768xf32>
    %8 = arith.addf %5, %7 : vector<32x768xf32>
    %cst_6 = arith.constant 0.000000e+00 : f32
    %9 = vector.broadcast %cst_6 : f32 to vector<32x768xf32>
    %10 = arith.cmpf ogt, %8, %9 : vector<32x768xf32>
    %cst_7 = arith.constant 0.00999999977 : f32
    %11 = vector.broadcast %cst_7 : f32 to vector<32x768xf32>
    %12 = arith.mulf %11, %8 : vector<32x768xf32>
    %13 = arith.select %10, %8, %12 : vector<32x768xi1>, vector<32x768xf32>
    %14 = arith.truncf %13 : vector<32x768xf32> to vector<32x768xbf16>
    %c0_8 = arith.constant 0 : index
    %c0_9 = arith.constant 0 : index
    %15 = vector.load %arg9[%c0_8, %c0_9] : memref<32x1024xf32, #tpu.memory_space<vmem>>, vector<32x1024xf32>
    %c0_10 = arith.constant 0 : index
    %c0_11 = arith.constant 0 : index
    %16 = vector.load %arg4[%c0_10, %c0_11] : memref<768x1024xbf16, #tpu.memory_space<vmem>>, vector<768x1024xbf16>
    %cst_12 = arith.constant dense<0.000000e+00> : vector<32x1024xf32>
    %17 = tpu.matmul %14, %16, %cst_12 {dimension_numbers = #tpu.dot_dimension_numbers<[1], [0], [0], [1], [0, 0, 1, 1], [], []>} : vector<32x768xbf16>, vector<768x1024xbf16>, vector<32x1024xf32> -> vector<32x1024xf32>
    %18 = arith.addf %15, %17 : vector<32x1024xf32>
    %c0_13 = arith.constant 0 : index
    %c0_14 = arith.constant 0 : index
    %19 = vector.load %arg9[%c0_13, %c0_14] : memref<32x1024xf32, #tpu.memory_space<vmem>>, vector<32x1024xf32>
    tpu.vector_store %arg9[%c0_13, %c0_14], %18 {strides = array<i32>} : memref<32x1024xf32, #tpu.memory_space<vmem>>, vector<32x1024xf32>,
    %c1_i32 = arith.constant 1 : i32
    %20 = arith.cmpi eq, %arg0, %c1_i32 : i32
    %21 = arith.extui %20 : i1 to i32
    %c0_i32_15 = arith.constant 0 : i32
    %22 = arith.cmpi ne, %21, %c0_i32_15 : i32
    scf.if %22 {
      %c0_16 = arith.constant 0 : index
      %c0_17 = arith.constant 0 : index
      %23 = vector.load %arg9[%c0_16, %c0_17] : memref<32x1024xf32, #tpu.memory_space<vmem>>, vector<32x1024xf32>
      %c0_18 = arith.constant 0 : index
      %c0_19 = arith.constant 0 : index
      %24 = vector.load %arg5[%c0_18, %c0_19] : memref<1x1024xf32, #tpu.memory_space<vmem>>, vector<1x1024xf32>
      %25 = vector.broadcast %24 : vector<1x1024xf32> to vector<32x1024xf32>
      %26 = arith.addf %23, %25 : vector<32x1024xf32>
      %cst_20 = arith.constant 0.000000e+00 : f32
      %27 = vector.broadcast %cst_20 : f32 to vector<32x1024xf32>
      %28 = arith.cmpf ogt, %26, %27 : vector<32x1024xf32>
      %cst_21 = arith.constant 0.00999999977 : f32
      %29 = vector.broadcast %cst_21 : f32 to vector<32x1024xf32>
      %30 = arith.mulf %29, %26 : vector<32x1024xf32>
      %31 = arith.select %28, %26, %30 : vector<32x1024xi1>, vector<32x1024xf32>
      %32 = arith.truncf %31 : vector<32x1024xf32> to vector<32x1024xbf16>
      %c0_22 = arith.constant 0 : index
      %c0_23 = arith.constant 0 : index
      %33 = vector.load %arg6[%c0_22, %c0_23] : memref<1024x128xbf16, #tpu.memory_space<vmem>>, vector<1024x128xbf16>
      %cst_24 = arith.constant dense<0.000000e+00> : vector<32x128xf32>
      %34 = tpu.matmul %32, %33, %cst_24 {dimension_numbers = #tpu.dot_dimension_numbers<[1], [0], [0], [1], [0, 0, 1, 1], [], []>} : vector<32x1024xbf16>, vector<1024x128xbf16>, vector<32x128xf32> -> vector<32x128xf32>
      %c0_25 = arith.constant 0 : index
      %c0_26 = arith.constant 0 : index
      %35 = vector.load %arg7[%c0_25, %c0_26] : memref<1x128xf32, #tpu.memory_space<vmem>>, vector<1x128xf32>
      %36 = vector.broadcast %35 : vector<1x128xf32> to vector<32x128xf32>
      %37 = arith.addf %34, %36 : vector<32x128xf32>
      %c0_27 = arith.constant 0 : index
      %c0_28 = arith.constant 0 : index
      %38 = vector.load %arg8[%c0_27, %c0_28] : memref<32x128xf32, #tpu.memory_space<vmem>>, vector<32x128xf32>
      tpu.vector_store %arg8[%c0_27, %c0_28], %37 {strides = array<i32>} : memref<32x128xf32, #tpu.memory_space<vmem>>, vector<32x128xf32>,
    } else {
    }
    return
  }
  func.func @transform_0(%arg0: i32) -> (i32, i32) {
    %c0_i32 = arith.constant 0 : i32
    %c0_i32_0 = arith.constant 0 : i32
    %c0_i32_1 = arith.constant 0 : i32
    return %c0_i32, %c0_i32_0 : i32, i32
  }
  func.func @transform_1(%arg0: i32) -> (i32, i32) {
    %c0_i32 = arith.constant 0 : i32
    %c0_i32_0 = arith.constant 0 : i32
    return %c0_i32, %arg0 : i32, i32
  }
  func.func @transform_2(%arg0: i32) -> (i32, i32) {
    %c0_i32 = arith.constant 0 : i32
    %c0_i32_0 = arith.constant 0 : i32
    return %c0_i32, %arg0 : i32, i32
  }
  func.func @transform_3(%arg0: i32) -> (i32, i32) {
    %c0_i32 = arith.constant 0 : i32
    %c0_i32_0 = arith.constant 0 : i32
    return %arg0, %c0_i32 : i32, i32
  }
  func.func @transform_4(%arg0: i32) -> (i32, i32) {
    %c0_i32 = arith.constant 0 : i32
    %c0_i32_0 = arith.constant 0 : i32
    %c0_i32_1 = arith.constant 0 : i32
    return %c0_i32, %c0_i32_0 : i32, i32
  }
  func.func @transform_5(%arg0: i32) -> (i32, i32) {
    %c0_i32 = arith.constant 0 : i32
    %c0_i32_0 = arith.constant 0 : i32
    %c0_i32_1 = arith.constant 0 : i32
    return %c0_i32, %c0_i32_0 : i32, i32
  }
  func.func @transform_6(%arg0: i32) -> (i32, i32) {
    %c0_i32 = arith.constant 0 : i32
    %c0_i32_0 = arith.constant 0 : i32
    %c0_i32_1 = arith.constant 0 : i32
    return %c0_i32, %c0_i32_0 : i32, i32
  }
  func.func @transform_7(%arg0: i32) -> (i32, i32) {
    %c0_i32 = arith.constant 0 : i32
    %c0_i32_0 = arith.constant 0 : i32
    %c0_i32_1 = arith.constant 0 : i32
    return %c0_i32, %c0_i32_0 : i32, i32
  }
}

</mosaic_0001>

<llo_original>
// kernel: tpu_custom_call.1
$region0: #{tpu_custom_call.1}
  #allocation0 [shape = 'u32[]', space=smem, size = 0x4, offset = 0x4, fixed_abs, tag = 'smem constant byte address 0x4 - core index']
  #allocation1 [shape = 'u32[144,128]{1,0:T(1,128)}', space=vmem, size = 0x12000, scoped, tag = 'internal scratch']
  #allocation2 [shape = 'f32[32,1024]{1,0:T(8,128)}', space=vmem, size = 0x20000, scoped, tag = 'scratch operand']
  %s0 = inlined_call_operand.hbm [shape: bf16[32,2048], index: 0, kind: input, shape index: {}]
  %s1 = inlined_call_operand.hbm [shape: bf16[2048,1536], index: 1, kind: input, shape index: {}]
  %s2 = inlined_call_operand.hbm [shape: f32[1,1536], index: 2, kind: input, shape index: {}]
  %s3 = inlined_call_operand.hbm [shape: bf16[1536,1024], index: 3, kind: input, shape index: {}]
  %s4 = inlined_call_operand.hbm [shape: f32[1,1024], index: 4, kind: input, shape index: {}]
  %s5 = inlined_call_operand.hbm [shape: bf16[1024,128], index: 5, kind: input, shape index: {}]
  %s6 = inlined_call_operand.hbm [shape: f32[1,128], index: 6, kind: input, shape index: {}]
  %s7 = inlined_call_operand.hbm [shape: f32[32,128], index: 7, kind: output, shape index: {}]
  %s8 = sld [smem:[#allocation0]]
  $region97: #{tpu_custom_call.1} parent=0
    _
  %s10 = ssub.s32 1, %s8
  %s11 = scalar_select 0, %s10, %s8
  $region1: #{tpu_custom_call.1} parent=0
    #allocation3 [shape = 'u8[131072]{0}', space=vmem, size = 0x20000, scoped, tag = 'input window, operand 0, single buffered']
    #allocation4 [shape = 's32[2]{0}', space=sflag, size = 0x8, scoped, tag = 'scoped memory for tpu_custom_call.1']
    #allocation5 [shape = 's32[2]{0}', space=sflag, size = 0x8, scoped, tag = 'scoped memory for tpu_custom_call.1']
    #allocation6 [shape = 'u8[6291456]{0}', space=vmem, size = 0x600000, scoped, tag = 'input window, operand 1']
    #allocation7 [shape = 's32[2]{0}', space=sflag, size = 0x8, scoped, tag = 'scoped memory for tpu_custom_call.1']
    #allocation8 [shape = 'u8[6144]{0}', space=vmem, size = 0x1800, scoped, tag = 'input window, operand 2']
    #allocation9 [shape = 'u8[3145728]{0}', space=vmem, size = 0x300000, scoped, tag = 'input window, operand 3']
    #allocation10 [shape = 's32[2]{0}', space=sflag, size = 0x8, scoped, tag = 'scoped memory for tpu_custom_call.1']
    #allocation11 [shape = 'u8[4096]{0}', space=vmem, size = 0x1000, scoped, tag = 'input window, operand 4, single buffered']
    #allocation12 [shape = 'u8[262144]{0}', space=vmem, size = 0x40000, scoped, tag = 'input window, operand 5, single buffered']
    #allocation13 [shape = 's32[1]{0}', space=sflag, size = 0x4, scoped, tag = 'scoped memory for tpu_custom_call.1']
    #allocation14 [shape = 'u8[512]{0}', space=vmem, size = 0x400, scoped, tag = 'input window, operand 6, single buffered']
    #allocation15 [shape = 'u8[16384]{0}', space=vmem, size = 0x4000, scoped, tag = 'output window, operand 0, single buffered']
    %12 = vsyncpa [#allocation4], 0
    %13 = vsyncpa [#allocation7], 0
    %s14 = scalar_lea.sflag [#allocation7], 1
    %15 = vsyncpa %s14, 0
    %16 = vsyncpa [#allocation10], 0
    %s17 = scalar_lea.sflag [#allocation10], 1
    %18 = vsyncpa %s17, 0
    %19 = vsyncpa [#allocation13], 0
    %20 = vsyncpa [#allocation5], 0
    loop: start=0, step=1, limit=4
    $region2: #{tpu_custom_call.1} parent=1 // loop_pre_header
      _
    $region3: #{tpu_custom_call.1} parent=1 // loop_header
      %s22 = sphi 0, %s26
      %p23 = scmp.ge.s32.totalorder %s22, 4
      %s30 = sphi 0, %s30
      %s32 = sphi 0, %s30
      %s33 = sphi 0, %s32
      %s47 = sphi 0, %s33
      %s53 = sphi 0, %s55
      %s56 = sphi 0, %s53
      %s57 = sphi 0, %s56
      %s73 = sphi 0, %s57
      %s79 = sphi 0, %s81
      %s82 = sphi 0, %s79
      %s83 = sphi 0, %s82
      %s99 = sphi 0, %s83
      %s105 = sphi 0, %s107
      %s108 = sphi 0, %s105
      %s109 = sphi 0, %s108
      %s125 = sphi 0, %s109
      %s129 = sphi 0, %s129
      %s131 = sphi 0, %s129
      %s132 = sphi 0, %s131
      %s146 = sphi 0, %s132
      %s150 = sphi 0, %s150
      %s152 = sphi 0, %s150
      %s153 = sphi 0, %s152
      %s167 = sphi 0, %s153
      %s171 = sphi 0, %s171
      %s173 = sphi 0, %s171
      %s174 = sphi 0, %s173
      %s188 = sphi 0, %s174
      %s192 = sphi 0, %s192
      %s194 = sphi 0, %s192
      %s195 = sphi 0, %s194
      %s209 = sphi 0, %s195
    $region4: #{tpu_custom_call.1} parent=1 // loop_header_branch
      %25 = sbr.rel (%p23) target = $region8
    $region5: #{tpu_custom_call.1} parent=1 // loop_body
      %s27 = ssub.s32 %s22, 1
      %s28 = ssub.s32 %s22, 2
      %s29 = sadd.s32 %s22, 1
      %s31 = sadd.s32 %s30, 1
      %p34 = scmp.eq.s32.totalorder %s22, 1
      %p35 = scmp.ne.s32.totalorder %s30, %s32
      %p36 = scmp.eq.s32.totalorder %s22, 0
      %p37 = por %p35, %p36
      %p38 = scmp.ne.s32.totalorder %s30, %s32
      %p39 = scmp.eq.s32.totalorder %s27, 1
      %p40 = por %p38, %p39
      %p41 = scmp.ne.s32.totalorder %s32, %s33
      %p42 = scmp.eq.s32.totalorder %s27, 0
      %p43 = por %p41, %p42
      %p44 = scmp.ne.s32.totalorder %s32, %s33
      %p45 = scmp.eq.s32.totalorder %s28, 1
      %p46 = por %p44, %p45
      %p48 = scmp.ne.s32.totalorder %s33, %s47
      %p49 = scmp.eq.s32.totalorder %s28, 0
      %p50 = por %p48, %p49
      %s51 = ssub.s32 %s22, %s29
      %p52 = scmp.eq.s32.totalorder %s51, 0
      %s54 = sadd.s32 %s53, 1
      %s55 = scalar_select %p52, %s53, %s54
      %p58 = pneg %p52
      %p59 = scmp.eq.s32.totalorder %s22, 1
      %p60 = por %p58, %p59
      %p61 = scmp.ne.s32.totalorder %s53, %s56
      %p62 = scmp.eq.s32.totalorder %s22, 0
      %p63 = por %p61, %p62
      %p64 = scmp.ne.s32.totalorder %s53, %s56
      %p65 = scmp.eq.s32.totalorder %s27, 1
      %p66 = por %p64, %p65
      %p67 = scmp.ne.s32.totalorder %s56, %s57
      %p68 = scmp.eq.s32.totalorder %s27, 0
      %p69 = por %p67, %p68
      %p70 = scmp.ne.s32.totalorder %s56, %s57
      %p71 = scmp.eq.s32.totalorder %s28, 1
      %p72 = por %p70, %p71
      %p74 = scmp.ne.s32.totalorder %s57, %s73
      %p75 = scmp.eq.s32.totalorder %s28, 0
      %p76 = por %p74, %p75
      %s77 = ssub.s32 %s22, %s29
      %p78 = scmp.eq.s32.totalorder %s77, 0
      %s80 = sadd.s32 %s79, 1
      %s81 = scalar_select %p78, %s79, %s80
      %p84 = pneg %p78
      %p85 = scmp.eq.s32.totalorder %s22, 1
      %p86 = por %p84, %p85
      %p87 = scmp.ne.s32.totalorder %s79, %s82
      %p88 = scmp.eq.s32.totalorder %s22, 0
      %p89 = por %p87, %p88
      %p90 = scmp.ne.s32.totalorder %s79, %s82
      %p91 = scmp.eq.s32.totalorder %s27, 1
      %p92 = por %p90, %p91
      %p93 = scmp.ne.s32.totalorder %s82, %s83
      %p94 = scmp.eq.s32.totalorder %s27, 0
      %p95 = por %p93, %p94
      %p96 = scmp.ne.s32.totalorder %s82, %s83
      %p97 = scmp.eq.s32.totalorder %s28, 1
      %p98 = por %p96, %p97
      %p100 = scmp.ne.s32.totalorder %s83, %s99
      %p101 = scmp.eq.s32.totalorder %s28, 0
      %p102 = por %p100, %p101
      %s103 = ssub.s32 %s22, %s29
      %p104 = scmp.eq.s32.totalorder %s103, 0
      %s106 = sadd.s32 %s105, 1
      %s107 = scalar_select %p104, %s105, %s106
      %p110 = pneg %p104
      %p111 = scmp.eq.s32.totalorder %s22, 1
      %p112 = por %p110, %p111
      %p113 = scmp.ne.s32.totalorder %s105, %s108
      %p114 = scmp.eq.s32.totalorder %s22, 0
      %p115 = por %p113, %p114
      %p116 = scmp.ne.s32.totalorder %s105, %s108
      %p117 = scmp.eq.s32.totalorder %s27, 1
      %p118 = por %p116, %p117
      %p119 = scmp.ne.s32.totalorder %s108, %s109
      %p120 = scmp.eq.s32.totalorder %s27, 0
      %p121 = por %p119, %p120
      %p122 = scmp.ne.s32.totalorder %s108, %s109
      %p123 = scmp.eq.s32.totalorder %s28, 1
      %p124 = por %p122, %p123
      %p126 = scmp.ne.s32.totalorder %s109, %s125
      %p127 = scmp.eq.s32.totalorder %s28, 0
      %p128 = por %p126, %p127
      %s130 = sadd.s32 %s129, 1
      %p133 = scmp.eq.s32.totalorder %s22, 1
      %p134 = scmp.ne.s32.totalorder %s129, %s131
      %p135 = scmp.eq.s32.totalorder %s22, 0
      %p136 = por %p134, %p135
      %p137 = scmp.ne.s32.totalorder %s129, %s131
      %p138 = scmp.eq.s32.totalorder %s27, 1
      %p139 = por %p137, %p138
      %p140 = scmp.ne.s32.totalorder %s131, %s132
      %p141 = scmp.eq.s32.totalorder %s27, 0
      %p142 = por %p140, %p141
      %p143 = scmp.ne.s32.totalorder %s131, %s132
      %p144 = scmp.eq.s32.totalorder %s28, 1
      %p145 = por %p143, %p144
      %p147 = scmp.ne.s32.totalorder %s132, %s146
      %p148 = scmp.eq.s32.totalorder %s28, 0
      %p149 = por %p147, %p148
      %s151 = sadd.s32 %s150, 1
      %p154 = scmp.eq.s32.totalorder %s22, 1
      %p155 = scmp.ne.s32.totalorder %s150, %s152
      %p156 = scmp.eq.s32.totalorder %s22, 0
      %p157 = por %p155, %p156
      %p158 = scmp.ne.s32.totalorder %s150, %s152
      %p159 = scmp.eq.s32.totalorder %s27, 1
      %p160 = por %p158, %p159
      %p161 = scmp.ne.s32.totalorder %s152, %s153
      %p162 = scmp.eq.s32.totalorder %s27, 0
      %p163 = por %p161, %p162
      %p164 = scmp.ne.s32.totalorder %s152, %s153
      %p165 = scmp.eq.s32.totalorder %s28, 1
      %p166 = por %p164, %p165
      %p168 = scmp.ne.s32.totalorder %s153, %s167
      %p169 = scmp.eq.s32.totalorder %s28, 0
      %p170 = por %p168, %p169
      %s172 = sadd.s32 %s171, 1
      %p175 = scmp.eq.s32.totalorder %s22, 1
      %p176 = scmp.ne.s32.totalorder %s171, %s173
      %p177 = scmp.eq.s32.totalorder %s22, 0
      %p178 = por %p176, %p177
      %p179 = scmp.ne.s32.totalorder %s171, %s173
      %p180 = scmp.eq.s32.totalorder %s27, 1
      %p181 = por %p179, %p180
      %p182 = scmp.ne.s32.totalorder %s173, %s174
      %p183 = scmp.eq.s32.totalorder %s27, 0
      %p184 = por %p182, %p183
      %p185 = scmp.ne.s32.totalorder %s173, %s174
      %p186 = scmp.eq.s32.totalorder %s28, 1
      %p187 = por %p185, %p186
      %p189 = scmp.ne.s32.totalorder %s174, %s188
      %p190 = scmp.eq.s32.totalorder %s28, 0
      %p191 = por %p189, %p190
      %s193 = sadd.s32 %s192, 1
      %p196 = scmp.eq.s32.totalorder %s22, 1
      %p197 = scmp.ne.s32.totalorder %s192, %s194
      %p198 = scmp.eq.s32.totalorder %s22, 0
      %p199 = por %p197, %p198
      %p200 = scmp.ne.s32.totalorder %s192, %s194
      %p201 = scmp.eq.s32.totalorder %s27, 1
      %p202 = por %p200, %p201
      %p203 = scmp.ne.s32.totalorder %s194, %s195
      %p204 = scmp.eq.s32.totalorder %s27, 0
      %p205 = por %p203, %p204
      %p206 = scmp.ne.s32.totalorder %s194, %s195
      %p207 = scmp.eq.s32.totalorder %s28, 1
      %p208 = por %p206, %p207
      %p210 = scmp.ne.s32.totalorder %s195, %s209
      %p211 = scmp.eq.s32.totalorder %s28, 0
      %p212 = por %p210, %p211
      %p213 = scmp.le.s32.totalorder 1, %s22
      %p214 = scmp.lt.s32.totalorder %s22, 3
      %p215 = pnand %p213, %p214
      %p216 = pneg %p215
      // Predicated region
      $region9: #{tpu_custom_call.1} parent=5 // pred_check
        _
      $region10: #{tpu_custom_call.1} parent=5 // pred_check_branch
        %218 = sbr.rel (%p215) target = $region12
      $region11: #{tpu_custom_call.1} parent=5 // pred_region
        %s219 = ssub.s32 %s22, 1
        // Predicated region
        $region13: #{tpu_custom_call.1} parent=11 // pred_check
          %p220 = pneg %p43
        $region14: #{tpu_custom_call.1} parent=11 // pred_check_branch
          %222 = sbr.rel (%p220) target = $region16
        $region15: #{tpu_custom_call.1} parent=11 // pred_region
          %s224 = ssub.s32 4096, 4096
          %225 = vsyncadd [#allocation4], %s224
          %s226 = sshll.u32 [#allocation3], 4
          %s227 = int_to_ptr.vmem [resolvable:$true] %s226
          %232 = dma.hbm_to_vmem [thread:$0]  %s0, 4096, %s227, [#allocation4], 1024, 1024, 64
        $region16: #{tpu_custom_call.1} parent=11 // pred_fallthru
          _
        // Predicated region
        $region17: #{tpu_custom_call.1} parent=11 // pred_check
          %p233 = pneg %p142
        $region18: #{tpu_custom_call.1} parent=11 // pred_check_branch
          %235 = sbr.rel (%p233) target = $region20
        $region19: #{tpu_custom_call.1} parent=11 // pred_region
          %s237 = ssub.s32 128, 128
          %238 = vsyncadd [#allocation10], %s237
          %s240 = sshll.u32 [#allocation11], 4
          %s241 = int_to_ptr.vmem [resolvable:$true] %s240
          %243 = dma.hbm_to_vmem [thread:$0]  %s4, 128, %s241, [#allocation10]
        $region20: #{tpu_custom_call.1} parent=11 // pred_fallthru
          _
        // Predicated region
        $region21: #{tpu_custom_call.1} parent=11 // pred_check
          %p244 = pneg %p163
        $region22: #{tpu_custom_call.1} parent=11 // pred_check_branch
          %246 = sbr.rel (%p244) target = $region24
        $region23: #{tpu_custom_call.1} parent=11 // pred_region
          %s248 = ssub.s32 8192, 8192
          %249 = vsyncadd [#allocation13], %s248
          %s250 = sshll.u32 [#allocation12], 4
          %s251 = int_to_ptr.vmem [resolvable:$true] %s250
          %256 = dma.hbm_to_vmem [thread:$0]  %s5, 8192, %s251, [#allocation13], 64, 64, 4
        $region24: #{tpu_custom_call.1} parent=11 // pred_fallthru
          _
        // Predicated region
        $region25: #{tpu_custom_call.1} parent=11 // pred_check
          %p257 = pneg %p184
        $region26: #{tpu_custom_call.1} parent=11 // pred_check_branch
          %259 = sbr.rel (%p257) target = $region28
        $region27: #{tpu_custom_call.1} parent=11 // pred_region
          %s261 = ssub.s32 16, 16
          %262 = vsyncadd [#allocation13], %s261
          %s264 = sshll.u32 [#allocation14], 4
          %s265 = int_to_ptr.vmem [resolvable:$true] %s264
          %267 = dma.hbm_to_vmem [thread:$0]  %s6, 16, %s265, [#allocation13]
        $region28: #{tpu_custom_call.1} parent=11 // pred_fallthru
          _
      $region12: #{tpu_custom_call.1} parent=5 // pred_fallthru
        _
      %p268 = scmp.lt.s32.totalorder %s22, 2
      // Predicated region
      $region29: #{tpu_custom_call.1} parent=5 // pred_check
        %p269 = pneg %p268
      $region30: #{tpu_custom_call.1} parent=5 // pred_check_branch
        %271 = sbr.rel (%p269) target = $region32
      $region31: #{tpu_custom_call.1} parent=5 // pred_region
        // Predicated region
        $region33: #{tpu_custom_call.1} parent=31 // pred_check
          %p272 = pneg %p63
        $region34: #{tpu_custom_call.1} parent=31 // pred_check_branch
          %274 = sbr.rel (%p272) target = $region36
        $region35: #{tpu_custom_call.1} parent=31 // pred_region
          %s275 = sand.u32 %s22, 1
          %s276 = scalar_lea.sflag [#allocation7], %s275
          %s277 = sand.u32 %s53, 1
          %s278 = smul.addr %s277, 6144
          %s279 = scalar_lea.vmem [#allocation6], %s278
          %s280 = smul.u32 6, %s22
          %s282 = ssub.s32 98304, 98304
          %283 = vsyncadd %s276, %s282
          %s284 = smul.addr %s280, 64
          %s285 = scalar_lea.hbm %s1, %s284
          %s286 = sshll.u32 %s279, 4
          %s287 = int_to_ptr.vmem [resolvable:$true] %s286
          %292 = dma.hbm_to_vmem [thread:$0]  %s285, 98304, %s287, %s276, 768, 384, 24
        $region36: #{tpu_custom_call.1} parent=31 // pred_fallthru
          _
        // Predicated region
        $region37: #{tpu_custom_call.1} parent=31 // pred_check
          %p293 = pneg %p89
        $region38: #{tpu_custom_call.1} parent=31 // pred_check_branch
          %295 = sbr.rel (%p293) target = $region40
        $region39: #{tpu_custom_call.1} parent=31 // pred_region
          %s296 = sand.u32 %s22, 1
          %s297 = scalar_lea.sflag [#allocation7], %s296
          %s298 = sand.u32 %s79, 1
          %s299 = smul.addr %s298, 6
          %s300 = scalar_lea.vmem [#allocation8], %s299
          %s301 = smul.u32 6, %s22
          %s303 = ssub.s32 96, 96
          %304 = vsyncadd %s297, %s303
          %s305 = smul.addr %s301, 16
          %s306 = scalar_lea.hbm %s2, %s305
          %s308 = sshll.u32 %s300, 4
          %s309 = int_to_ptr.vmem [resolvable:$true] %s308
          %311 = dma.hbm_to_vmem [thread:$0]  %s306, 96, %s309, %s297
        $region40: #{tpu_custom_call.1} parent=31 // pred_fallthru
          _
        // Predicated region
        $region41: #{tpu_custom_call.1} parent=31 // pred_check
          %p312 = pneg %p115
        $region42: #{tpu_custom_call.1} parent=31 // pred_check_branch
          %314 = sbr.rel (%p312) target = $region44
        $region43: #{tpu_custom_call.1} parent=31 // pred_region
          %s315 = sand.u32 %s22, 1
          %s316 = scalar_lea.sflag [#allocation10], %s315
          %s317 = sand.u32 %s105, 1
          %s318 = smul.addr %s317, 3072
          %s319 = scalar_lea.vmem [#allocation9], %s318
          %s320 = smul.u32 96, %s22
          %s322 = ssub.s32 49152, 49152
          %323 = vsyncadd %s316, %s322
          %s324 = smul.addr %s320, 8
          %s325 = smul.addr %s324, 64
          %s326 = scalar_lea.hbm %s3, %s325
          %s327 = sshll.u32 %s319, 4
          %s328 = int_to_ptr.vmem [resolvable:$true] %s327
          %333 = dma.hbm_to_vmem [thread:$0]  %s326, 49152, %s328, %s316, 512, 512, 32
        $region44: #{tpu_custom_call.1} parent=31 // pred_fallthru
          _
      $region32: #{tpu_custom_call.1} parent=5 // pred_fallthru
        _
      %p334 = scmp.le.s32.totalorder 1, %s22
      %p335 = scmp.lt.s32.totalorder %s22, 3
      %p336 = pnand %p334, %p335
      %p337 = pneg %p336
      // Predicated region
      $region45: #{tpu_custom_call.1} parent=5 // pred_check
        _
      $region46: #{tpu_custom_call.1} parent=5 // pred_check_branch
        %339 = sbr.rel (%p336) target = $region48
      $region47: #{tpu_custom_call.1} parent=5 // pred_region
        %s340 = ssub.s32 %s22, 1
        // Predicated region
        $region49: #{tpu_custom_call.1} parent=47 // pred_check
          %p341 = pneg %p43
        $region50: #{tpu_custom_call.1} parent=47 // pred_check_branch
          %343 = sbr.rel (%p341) target = $region52
        $region51: #{tpu_custom_call.1} parent=47 // pred_region
          %344 = dma.done [#allocation4], 4096
        $region52: #{tpu_custom_call.1} parent=47 // pred_fallthru
          _
        %s345 = sand.u32 %s27, 1
        %s346 = scalar_lea.sflag [#allocation7], %s345
        %s347 = sand.u32 %s56, 1
        %s348 = smul.addr %s347, 6144
        %s349 = scalar_lea.vmem [#allocation6], %s348
        // Predicated region
        $region53: #{tpu_custom_call.1} parent=47 // pred_check
          %p350 = pneg %p69
        $region54: #{tpu_custom_call.1} parent=47 // pred_check_branch
          %352 = sbr.rel (%p350) target = $region56
        $region55: #{tpu_custom_call.1} parent=47 // pred_region
          %353 = dma.done %s346, 98304
        $region56: #{tpu_custom_call.1} parent=47 // pred_fallthru
          _
        %s354 = sand.u32 %s27, 1
        %s355 = scalar_lea.sflag [#allocation7], %s354
        %s356 = sand.u32 %s82, 1
        %s357 = smul.addr %s356, 6
        %s358 = scalar_lea.vmem [#allocation8], %s357
        // Predicated region
        $region57: #{tpu_custom_call.1} parent=47 // pred_check
          %p359 = pneg %p95
        $region58: #{tpu_custom_call.1} parent=47 // pred_check_branch
          %361 = sbr.rel (%p359) target = $region60
        $region59: #{tpu_custom_call.1} parent=47 // pred_region
          %362 = dma.done %s355, 96
        $region60: #{tpu_custom_call.1} parent=47 // pred_fallthru
          _
        %s363 = sand.u32 %s27, 1
        %s364 = scalar_lea.sflag [#allocation10], %s363
        %s365 = sand.u32 %s108, 1
        %s366 = smul.addr %s365, 3072
        %s367 = scalar_lea.vmem [#allocation9], %s366
        // Predicated region
        $region61: #{tpu_custom_call.1} parent=47 // pred_check
          %p368 = pneg %p121
        $region62: #{tpu_custom_call.1} parent=47 // pred_check_branch
          %370 = sbr.rel (%p368) target = $region64
        $region63: #{tpu_custom_call.1} parent=47 // pred_region
          %371 = dma.done %s364, 49152
        $region64: #{tpu_custom_call.1} parent=47 // pred_fallthru
          _
        // Predicated region
        $region65: #{tpu_custom_call.1} parent=47 // pred_check
          %p372 = pneg %p142
        $region66: #{tpu_custom_call.1} parent=47 // pred_check_branch
          %374 = sbr.rel (%p372) target = $region68
        $region67: #{tpu_custom_call.1} parent=47 // pred_region
          %375 = dma.done [#allocation10], 128
        $region68: #{tpu_custom_call.1} parent=47 // pred_fallthru
          _
        // Predicated region
        $region69: #{tpu_custom_call.1} parent=47 // pred_check
          %p376 = pneg %p163
        $region70: #{tpu_custom_call.1} parent=47 // pred_check_branch
          %378 = sbr.rel (%p376) target = $region72
        $region71: #{tpu_custom_call.1} parent=47 // pred_region
          %379 = dma.done [#allocation13], 8192
        $region72: #{tpu_custom_call.1} parent=47 // pred_fallthru
          _
        // Predicated region
        $region73: #{tpu_custom_call.1} parent=47 // pred_check
          %p380 = pneg %p184
        $region74: #{tpu_custom_call.1} parent=47 // pred_check_branch
          %382 = sbr.rel (%p380) target = $region76
        $region75: #{tpu_custom_call.1} parent=47 // pred_region
          %383 = dma.done [#allocation13], 16
        $region76: #{tpu_custom_call.1} parent=47 // pred_fallthru
          _
        %p384 = pneg %p43
        %p385 = pneg %p40
        %s386 = sand.u32 %s27, 1
        %s387 = scalar_lea.sflag [#allocation7], %s386
        %s388 = sand.u32 %s56, 1
        %s389 = smul.addr %s388, 6144
        %s390 = scalar_lea.vmem [#allocation6], %s389
        %p391 = pneg %p69
        %p392 = pneg %p66
        %s393 = sand.u32 %s27, 1
        %s394 = scalar_lea.sflag [#allocation7], %s393
        %s395 = sand.u32 %s82, 1
        %s396 = smul.addr %s395, 6
        %s397 = scalar_lea.vmem [#allocation8], %s396
        %p398 = pneg %p95
        %p399 = pneg %p92
        %s400 = sand.u32 %s27, 1
        %s401 = scalar_lea.sflag [#allocation10], %s400
        %s402 = sand.u32 %s108, 1
        %s403 = smul.addr %s402, 3072
        %s404 = scalar_lea.vmem [#allocation9], %s403
        %p405 = pneg %p121
        %p406 = pneg %p118
        %p407 = pneg %p142
        %p408 = pneg %p139
        %p409 = pneg %p163
        %p410 = pneg %p160
        %p411 = pneg %p184
        %p412 = pneg %p181
        %p413 = pneg %p205
        %p414 = pneg %p202
        %s415 = smul.u32 6, %s27
        %s416 = smul.u32 6, %s27
        %s417 = smul.u32 96, %s27
        %p419 = scmp.eq.s32.totalorder %s27, 0
        // Predicated region
        $region77: #{tpu_custom_call.1} parent=47 // pred_check
          %p420 = pneg %p419
        $region78: #{tpu_custom_call.1} parent=47 // pred_check_branch
          %422 = sbr.rel (%p420) target = $region80
        $region79: #{tpu_custom_call.1} parent=47 // pred_region
          %423 = vst [vmem:[#allocation2] sm:$0xff] 0.0
          %424 = vst [vmem:[#allocation2 + $0x8] sm:$0xff] 0.0
          %425 = vst [vmem:[#allocation2 + $0x10] sm:$0xff] 0.0
          %426 = vst [vmem:[#allocation2 + $0x18] sm:$0xff] 0.0
          %427 = vst [vmem:[#allocation2 + $0x20] sm:$0xff] 0.0
          %428 = vst [vmem:[#allocation2 + $0x28] sm:$0xff] 0.0
          %429 = vst [vmem:[#allocation2 + $0x30] sm:$0xff] 0.0
          %430 = vst [vmem:[#allocation2 + $0x38] sm:$0xff] 0.0
          %431 = vst [vmem:[#allocation2 + $0x40] sm:$0xff] 0.0
          %432 = vst [vmem:[#allocation2 + $0x48] sm:$0xff] 0.0
          %433 = vst [vmem:[#allocation2 + $0x50] sm:$0xff] 0.0
          %434 = vst [vmem:[#allocation2 + $0x58] sm:$0xff] 0.0
          %435 = vst [vmem:[#allocation2 + $0x60] sm:$0xff] 0.0
          %436 = vst [vmem:[#allocation2 + $0x68] sm:$0xff] 0.0
          %437 = vst [vmem:[#allocation2 + $0x70] sm:$0xff] 0.0
          %438 = vst [vmem:[#allocation2 + $0x78] sm:$0xff] 0.0
          %439 = vst [vmem:[#allocation2 + $0x80] sm:$0xff] 0.0
          %440 = vst [vmem:[#allocation2 + $0x88] sm:$0xff] 0.0
          %441 = vst [vmem:[#allocation2 + $0x90] sm:$0xff] 0.0
          %442 = vst [vmem:[#allocation2 + $0x98] sm:$0xff] 0.0
          %443 = vst [vmem:[#allocation2 + $0xa0] sm:$0xff] 0.0
          %444 = vst [vmem:[#allocation2 + $0xa8] sm:$0xff] 0.0
          %445 = vst [vmem:[#allocation2 + $0xb0] sm:$0xff] 0.0
          %446 = vst [vmem:[#allocation2 + $0xb8] sm:$0xff] 0.0
          %447 = vst [vmem:[#allocation2 + $0xc0] sm:$0xff] 0.0
          %448 = vst [vmem:[#allocation2 + $0xc8] sm:$0xff] 0.0
          %449 = vst [vmem:[#allocation2 + $0xd0] sm:$0xff] 0.0
          %450 = vst [vmem:[#allocation2 + $0xd8] sm:$0xff] 0.0
          %451 = vst [vmem:[#allocation2 + $0xe0] sm:$0xff] 0.0
          %452 = vst [vmem:[#allocation2 + $0xe8] sm:$0xff] 0.0
          %453 = vst [vmem:[#allocation2 + $0xf0] sm:$0xff] 0.0
          %454 = vst [vmem:[#allocation2 + $0xf8] sm:$0xff] 0.0
        $region80: #{tpu_custom_call.1} parent=47 // pred_fallthru
          _
        %v455 = vld [vmem:[#allocation3] sm:$0xff]
        %v456 = vld [vmem:[#allocation3 + $0x8] sm:$0xff]
        %v457 = vld [vmem:[#allocation3 + $0x10] sm:$0xff]
        %v458 = vld [vmem:[#allocation3 + $0x18] sm:$0xff]
        %v459 = vld [vmem:[#allocation3 + $0x20] sm:$0xff]
        %v460 = vld [vmem:[#allocation3 + $0x28] sm:$0xff]
        %v461 = vld [vmem:[#allocation3 + $0x30] sm:$0xff]
        %v462 = vld [vmem:[#allocation3 + $0x38] sm:$0xff]
        %v463 = vld [vmem:[#allocation3 + $0x40] sm:$0xff]
        %v464 = vld [vmem:[#allocation3 + $0x48] sm:$0xff]
        %v465 = vld [vmem:[#allocation3 + $0x50] sm:$0xff]
        %v466 = vld [vmem:[#allocation3 + $0x58] sm:$0xff]
        %v467 = vld [vmem:[#allocation3 + $0x60] sm:$0xff]
        %v468 = vld [vmem:[#allocation3 + $0x68] sm:$0xff]
        %v469 = vld [vmem:[#allocation3 + $0x70] sm:$0xff]
        %v470 = vld [vmem:[#allocation3 + $0x78] sm:$0xff]
        %v471 = vld [vmem:[#allocation3 + $0x80] sm:$0xff]
        %v472 = vld [vmem:[#allocation3 + $0x88] sm:$0xff]
        %v473 = vld [vmem:[#allocation3 + $0x90] sm:$0xff]
        %v474 = vld [vmem:[#allocation3 + $0x98] sm:$0xff]
        %v475 = vld [vmem:[#allocation3 + $0xa0] sm:$0xff]
        %v476 = vld [vmem:[#allocation3 + $0xa8] sm:$0xff]
        %v477 = vld [vmem:[#allocation3 + $0xb0] sm:$0xff]
        %v478 = vld [vmem:[#allocation3 + $0xb8] sm:$0xff]
        %v479 = vld [vmem:[#allocation3 + $0xc0] sm:$0xff]
        %v480 = vld [vmem:[#allocation3 + $0xc8] sm:$0xff]
        %v481 = vld [vmem:[#allocation3 + $0xd0] sm:$0xff]
        %v482 = vld [vmem:[#allocation3 + $0xd8] sm:$0xff]
        %v483 = vld [vmem:[#allocation3 + $0xe0] sm:$0xff]
        %v484 = vld [vmem:[#allocation3 + $0xe8] sm:$0xff]
        %v485 = vld [vmem:[#allocation3 + $0xf0] sm:$0xff]
        %v486 = vld [vmem:[#allocation3 + $0xf8] sm:$0xff]
        %v487 = vld [vmem:[%s349] sm:$0xff]
        %v488 = vld [vmem:[%s349 + $0x8] sm:$0xff]
        %v489 = vld [vmem:[%s349 + $0x10] sm:$0xff]
        %v490 = vld [vmem:[%s349 + $0x18] sm:$0xff]
        %v491 = vld [vmem:[%s349 + $0x20] sm:$0xff]
        %v492 = vld [vmem:[%s349 + $0x28] sm:$0xff]
        %v493 = vld [vmem:[%s349 + $0x30] sm:$0xff]
        %v494 = vld [vmem:[%s349 + $0x38] sm:$0xff]
        %v495 = vld [vmem:[%s349 + $0x40] sm:$0xff]
        %v496 = vld [vmem:[%s349 + $0x48] sm:$0xff]
        %v497 = vld [vmem:[%s349 + $0x50] sm:$0xff]
        %v498 = vld [vmem:[%s349 + $0x58] sm:$0xff]
        %v499 = vld [vmem:[%s349 + $0x60] sm:$0xff]
        %v500 = vld [vmem:[%s349 + $0x68] sm:$0xff]
        %v501 = vld [vmem:[%s349 + $0x70] sm:$0xff]
        %v502 = vld [vmem:[%s349 + $0x78] sm:$0xff]
        %v503 = vld [vmem:[%s349 + $0x80] sm:$0xff]
        %v504 = vld [vmem:[%s349 + $0x88] sm:$0xff]
        %v505 = vld [vmem:[%s349 + $0x90] sm:$0xff]
        %v506 = vld [vmem:[%s349 + $0x98] sm:$0xff]
        %v507 = vld [vmem:[%s349 + $0xa0] sm:$0xff]
        %v508 = vld [vmem:[%s349 + $0xa8] sm:$0xff]
        %v509 = vld [vmem:[%s349 + $0xb0] sm:$0xff]
        %v510 = vld [vmem:[%s349 + $0xb8] sm:$0xff]
        %v511 = vld [vmem:[%s349 + $0xc0] sm:$0xff]
        %v512 = vld [vmem:[%s349 + $0xc8] sm:$0xff]
        %v513 = vld [vmem:[%s349 + $0xd0] sm:$0xff]
        %v514 = vld [vmem:[%s349 + $0xd8] sm:$0xff]
        %v515 = vld [vmem:[%s349 + $0xe0] sm:$0xff]
        %v516 = vld [vmem:[%s349 + $0xe8] sm:$0xff]
        %v517 = vld [vmem:[%s349 + $0xf0] sm:$0xff]
        %v518 = vld [vmem:[%s349 + $0xf8] sm:$0xff]
        %v519 = vld [vmem:[%s349 + $0x100] sm:$0xff]
        %v520 = vld [vmem:[%s349 + $0x108] sm:$0xff]
        %v521 = vld [vmem:[%s349 + $0x110] sm:$0xff]
        %v522 = vld [vmem:[%s349 + $0x118] sm:$0xff]
        %v523 = vld [vmem:[%s349 + $0x120] sm:$0xff]
        %v524 = vld [vmem:[%s349 + $0x128] sm:$0xff]
        %v525 = vld [vmem:[%s349 + $0x130] sm:$0xff]
        %v526 = vld [vmem:[%s349 + $0x138] sm:$0xff]
        %v527 = vld [vmem:[%s349 + $0x140] sm:$0xff]
        %v528 = vld [vmem:[%s349 + $0x148] sm:$0xff]
        %v529 = vld [vmem:[%s349 + $0x150] sm:$0xff]
        %v530 = vld [vmem:[%s349 + $0x158] sm:$0xff]
        %v531 = vld [vmem:[%s349 + $0x160] sm:$0xff]
        %v532 = vld [vmem:[%s349 + $0x168] sm:$0xff]
        %v533 = vld [vmem:[%s349 + $0x170] sm:$0xff]
        %v534 = vld [vmem:[%s349 + $0x178] sm:$0xff]
        %v535 = vld [vmem:[%s349 + $0x180] sm:$0xff]
        %v536 = vld [vmem:[%s349 + $0x188] sm:$0xff]
        %v537 = vld [vmem:[%s349 + $0x190] sm:$0xff]
        %v538 = vld [vmem:[%s349 + $0x198] sm:$0xff]
        %v539 = vld [vmem:[%s349 + $0x1a0] sm:$0xff]
        %v540 = vld [vmem:[%s349 + $0x1a8] sm:$0xff]
        %v541 = vld [vmem:[%s349 + $0x1b0] sm:$0xff]
        %v542 = vld [vmem:[%s349 + $0x1b8] sm:$0xff]
        %v543 = vld [vmem:[%s349 + $0x1c0] sm:$0xff]
        %v544 = vld [vmem:[%s349 + $0x1c8] sm:$0xff]
        %v545 = vld [vmem:[%s349 + $0x1d0] sm:$0xff]
        %v546 = vld [vmem:[%s349 + $0x1d8] sm:$0xff]
        %v547 = vld [vmem:[%s349 + $0x1e0] sm:$0xff]
        %v548 = vld [vmem:[%s349 + $0x1e8] sm:$0xff]
        %v549 = vld [vmem:[%s349 + $0x1f0] sm:$0xff]
        %v550 = vld [vmem:[%s349 + $0x1f8] sm:$0xff]
        %v551 = vld [vmem:[%s349 + $0x200] sm:$0xff]
        %v552 = vld [vmem:[%s349 + $0x208] sm:$0xff]
        %v553 = vld [vmem:[%s349 + $0x210] sm:$0xff]
        %v554 = vld [vmem:[%s349 + $0x218] sm:$0xff]
        %v555 = vld [vmem:[%s349 + $0x220] sm:$0xff]
        %v556 = vld [vmem:[%s349 + $0x228] sm:$0xff]
        %v557 = vld [vmem:[%s349 + $0x230] sm:$0xff]
        %v558 = vld [vmem:[%s349 + $0x238] sm:$0xff]
        %v559 = vld [vmem:[%s349 + $0x240] sm:$0xff]
        %v560 = vld [vmem:[%s349 + $0x248] sm:$0xff]
        %v561 = vld [vmem:[%s349 + $0x250] sm:$0xff]
        %v562 = vld [vmem:[%s349 + $0x258] sm:$0xff]
        %v563 = vld [vmem:[%s349 + $0x260] sm:$0xff]
        %v564 = vld [vmem:[%s349 + $0x268] sm:$0xff]
        %v565 = vld [vmem:[%s349 + $0x270] sm:$0xff]
        %v566 = vld [vmem:[%s349 + $0x278] sm:$0xff]
        %v567 = vld [vmem:[%s349 + $0x280] sm:$0xff]
        %v568 = vld [vmem:[%s349 + $0x288] sm:$0xff]
        %v569 = vld [vmem:[%s349 + $0x290] sm:$0xff]
        %v570 = vld [vmem:[%s349 + $0x298] sm:$0xff]
        %v571 = vld [vmem:[%s349 + $0x2a0] sm:$0xff]
        %v572 = vld [vmem:[%s349 + $0x2a8] sm:$0xff]
        %v573 = vld [vmem:[%s349 + $0x2b0] sm:$0xff]
        %v574 = vld [vmem:[%s349 + $0x2b8] sm:$0xff]
        %v575 = vld [vmem:[%s349 + $0x2c0] sm:$0xff]
        %v576 = vld [vmem:[%s349 + $0x2c8] sm:$0xff]
        %v577 = vld [vmem:[%s349 + $0x2d0] sm:$0xff]
        %v578 = vld [vmem:[%s349 + $0x2d8] sm:$0xff]
        %v579 = vld [vmem:[%s349 + $0x2e0] sm:$0xff]
        %v580 = vld [vmem:[%s349 + $0x2e8] sm:$0xff]
        %v581 = vld [vmem:[%s349 + $0x2f0] sm:$0xff]
        %v582 = vld [vmem:[%s349 + $0x2f8] sm:$0xff]
        %v583 = vld [vmem:[%s349 + $0x300] sm:$0xff]
        %v584 = vld [vmem:[%s349 + $0x308] sm:$0xff]
        %v585 = vld [vmem:[%s349 + $0x310] sm:$0xff]
        %v586 = vld [vmem:[%s349 + $0x318] sm:$0xff]
        %v587 = vld [vmem:[%s349 + $0x320] sm:$0xff]
        %v588 = vld [vmem:[%s349 + $0x328] sm:$0xff]
        %v589 = vld [vmem:[%s349 + $0x330] sm:$0xff]
        %v590 = vld [vmem:[%s349 + $0x338] sm:$0xff]
        %v591 = vld [vmem:[%s349 + $0x340] sm:$0xff]
        %v592 = vld [vmem:[%s349 + $0x348] sm:$0xff]
        %v593 = vld [vmem:[%s349 + $0x350] sm:$0xff]
        %v594 = vld [vmem:[%s349 + $0x358] sm:$0xff]
        %v595 = vld [vmem:[%s349 + $0x360] sm:$0xff]
        %v596 = vld [vmem:[%s349 + $0x368] sm:$0xff]
        %v597 = vld [vmem:[%s349 + $0x370] sm:$0xff]
        %v598 = vld [vmem:[%s349 + $0x378] sm:$0xff]
        %v599 = vld [vmem:[%s349 + $0x380] sm:$0xff]
        %v600 = vld [vmem:[%s349 + $0x388] sm:$0xff]
        %v601 = vld [vmem:[%s349 + $0x390] sm:$0xff]
        %v602 = vld [vmem:[%s349 + $0x398] sm:$0xff]
        %v603 = vld [vmem:[%s349 + $0x3a0] sm:$0xff]
        %v604 = vld [vmem:[%s349 + $0x3a8] sm:$0xff]
        %v605 = vld [vmem:[%s349 + $0x3b0] sm:$0xff]
        %v606 = vld [vmem:[%s349 + $0x3b8] sm:$0xff]
        %v607 = vld [vmem:[%s349 + $0x3c0] sm:$0xff]
        %v608 = vld [vmem:[%s349 + $0x3c8] sm:$0xff]
        %v609 = vld [vmem:[%s349 + $0x3d0] sm:$0xff]
        %v610 = vld [vmem:[%s349 + $0x3d8] sm:$0xff]
        %v611 = vld [vmem:[%s349 + $0x3e0] sm:$0xff]
        %v612 = vld [vmem:[%s349 + $0x3e8] sm:$0xff]
        %v613 = vld [vmem:[%s349 + $0x3f0] sm:$0xff]
        %v614 = vld [vmem:[%s349 + $0x3f8] sm:$0xff]
        %v615 = vld [vmem:[%s349 + $0x400] sm:$0xff]
        %v616 = vld [vmem:[%s349 + $0x408] sm:$0xff]
        %v617 = vld [vmem:[%s349 + $0x410] sm:$0xff]
        %v618 = vld [vmem:[%s349 + $0x418] sm:$0xff]
        %v619 = vld [vmem:[%s349 + $0x420] sm:$0xff]
        %v620 = vld [vmem:[%s349 + $0x428] sm:$0xff]
        %v621 = vld [vmem:[%s349 + $0x430] sm:$0xff]
        %v622 = vld [vmem:[%s349 + $0x438] sm:$0xff]
        %v623 = vld [vmem:[%s349 + $0x440] sm:$0xff]
        %v624 = vld [vmem:[%s349 + $0x448] sm:$0xff]
        %v625 = vld [vmem:[%s349 + $0x450] sm:$0xff]
        %v626 = vld [vmem:[%s349 + $0x458] sm:$0xff]
        %v627 = vld [vmem:[%s349 + $0x460] sm:$0xff]
        %v628 = vld [vmem:[%s349 + $0x468] sm:$0xff]
        %v629 = vld [vmem:[%s349 + $0x470] sm:$0xff]
        %v630 = vld [vmem:[%s349 + $0x478] sm:$0xff]
        %v631 = vld [vmem:[%s349 + $0x480] sm:$0xff]
        %v632 = vld [vmem:[%s349 + $0x488] sm:$0xff]
        %v633 = vld [vmem:[%s349 + $0x490] sm:$0xff]
        %v634 = vld [vmem:[%s349 + $0x498] sm:$0xff]
        %v635 = vld [vmem:[%s349 + $0x4a0] sm:$0xff]
        %v636 = vld [vmem:[%s349 + $0x4a8] sm:$0xff]
        %v637 = vld [vmem:[%s349 + $0x4b0] sm:$0xff]
        %v638 = vld [vmem:[%s349 + $0x4b8] sm:$0xff]
        %v639 = vld [vmem:[%s349 + $0x4c0] sm:$0xff]
        %v640 = vld [vmem:[%s349 + $0x4c8] sm:$0xff]
        %v641 = vld [vmem:[%s349 + $0x4d0] sm:$0xff]
        %v642 = vld [vmem:[%s349 + $0x4d8] sm:$0xff]
        %v643 = vld [vmem:[%s349 + $0x4e0] sm:$0xff]
        %v644 = vld [vmem:[%s349 + $0x4e8] sm:$0xff]
        %v645 = vld [vmem:[%s349 + $0x4f0] sm:$0xff]
        %v646 = vld [vmem:[%s349 + $0x4f8] sm:$0xff]
        %v647 = vld [vmem:[%s349 + $0x500] sm:$0xff]
        %v648 = vld [vmem:[%s349 + $0x508] sm:$0xff]
        %v649 = vld [vmem:[%s349 + $0x510] sm:$0xff]
        %v650 = vld [vmem:[%s349 + $0x518] sm:$0xff]
        %v651 = vld [vmem:[%s349 + $0x520] sm:$0xff]
        %v652 = vld [vmem:[%s349 + $0x528] sm:$0xff]
        %v653 = vld [vmem:[%s349 + $0x530] sm:$0xff]
        %v654 = vld [vmem:[%s349 + $0x538] sm:$0xff]
        %v655 = vld [vmem:[%s349 + $0x540] sm:$0xff]
        %v656 = vld [vmem:[%s349 + $0x548] sm:$0xff]
        %v657 = vld [vmem:[%s349 + $0x550] sm:$0xff]
        %v658 = vld [vmem:[%s349 + $0x558] sm:$0xff]
        %v659 = vld [vmem:[%s349 + $0x560] sm:$0xff]
        %v660 = vld [vmem:[%s349 + $0x568] sm:$0xff]
        %v661 = vld [vmem:[%s349 + $0x570] sm:$0xff]
        %v662 = vld [vmem:[%s349 + $0x578] sm:$0xff]
        %v663 = vld [vmem:[%s349 + $0x580] sm:$0xff]
        %v664 = vld [vmem:[%s349 + $0x588] sm:$0xff]
        %v665 = vld [vmem:[%s349 + $0x590] sm:$0xff]
        %v666 = vld [vmem:[%s349 + $0x598] sm:$0xff]
        %v667 = vld [vmem:[%s349 + $0x5a0] sm:$0xff]
        %v668 = vld [vmem:[%s349 + $0x5a8] sm:$0xff]
        %v669 = vld [vmem:[%s349 + $0x5b0] sm:$0xff]
        %v670 = vld [vmem:[%s349 + $0x5b8] sm:$0xff]
        %v671 = vld [vmem:[%s349 + $0x5c0] sm:$0xff]
        %v672 = vld [vmem:[%s349 + $0x5c8] sm:$0xff]
        %v673 = vld [vmem:[%s349 + $0x5d0] sm:$0xff]
        %v674 = vld [vmem:[%s349 + $0x5d8] sm:$0xff]
        %v675 = vld [vmem:[%s349 + $0x5e0] sm:$0xff]
        %v676 = vld [vmem:[%s349 + $0x5e8] sm:$0xff]
        %v677 = vld [vmem:[%s349 + $0x5f0] sm:$0xff]
        %v678 = vld [vmem:[%s349 + $0x5f8] sm:$0xff]
        %v679 = vld [vmem:[%s349 + $0x600] sm:$0xff]
        %v680 = vld [vmem:[%s349 + $0x608] sm:$0xff]
        %v681 = vld [vmem:[%s349 + $0x610] sm:$0xff]
        %v682 = vld [vmem:[%s349 + $0x618] sm:$0xff]
        %v683 = vld [vmem:[%s349 + $0x620] sm:$0xff]
        %v684 = vld [vmem:[%s349 + $0x628] sm:$0xff]
        %v685 = vld [vmem:[%s349 + $0x630] sm:$0xff]
        %v686 = vld [vmem:[%s349 + $0x638] sm:$0xff]
        %v687 = vld [vmem:[%s349 + $0x640] sm:$0xff]
        %v688 = vld [vmem:[%s349 + $0x648] sm:$0xff]
        %v689 = vld [vmem:[%s349 + $0x650] sm:$0xff]
        %v690 = vld [vmem:[%s349 + $0x658] sm:$0xff]
        %v691 = vld [vmem:[%s349 + $0x660] sm:$0xff]
        %v692 = vld [vmem:[%s349 + $0x668] sm:$0xff]
        %v693 = vld [vmem:[%s349 + $0x670] sm:$0xff]
        %v694 = vld [vmem:[%s349 + $0x678] sm:$0xff]
        %v695 = vld [vmem:[%s349 + $0x680] sm:$0xff]
        %v696 = vld [vmem:[%s349 + $0x688] sm:$0xff]
        %v697 = vld [vmem:[%s349 + $0x690] sm:$0xff]
        %v698 = vld [vmem:[%s349 + $0x698] sm:$0xff]
        %v699 = vld [vmem:[%s349 + $0x6a0] sm:$0xff]
        %v700 = vld [vmem:[%s349 + $0x6a8] sm:$0xff]
        %v701 = vld [vmem:[%s349 + $0x6b0] sm:$0xff]
        %v702 = vld [vmem:[%s349 + $0x6b8] sm:$0xff]
        %v703 = vld [vmem:[%s349 + $0x6c0] sm:$0xff]
        %v704 = vld [vmem:[%s349 + $0x6c8] sm:$0xff]
        %v705 = vld [vmem:[%s349 + $0x6d0] sm:$0xff]
        %v706 = vld [vmem:[%s349 + $0x6d8] sm:$0xff]
        %v707 = vld [vmem:[%s349 + $0x6e0] sm:$0xff]
        %v708 = vld [vmem:[%s349 + $0x6e8] sm:$0xff]
        %v709 = vld [vmem:[%s349 + $0x6f0] sm:$0xff]
        %v710 = vld [vmem:[%s349 + $0x6f8] sm:$0xff]
        %v711 = vld [vmem:[%s349 + $0x700] sm:$0xff]
        %v712 = vld [vmem:[%s349 + $0x708] sm:$0xff]
        %v713 = vld [vmem:[%s349 + $0x710] sm:$0xff]
        %v714 = vld [vmem:[%s349 + $0x718] sm:$0xff]
        %v715 = vld [vmem:[%s349 + $0x720] sm:$0xff]
        %v716 = vld [vmem:[%s349 + $0x728] sm:$0xff]
        %v717 = vld [vmem:[%s349 + $0x730] sm:$0xff]
        %v718 = vld [vmem:[%s349 + $0x738] sm:$0xff]
        %v719 = vld [vmem:[%s349 + $0x740] sm:$0xff]
        %v720 = vld [vmem:[%s349 + $0x748] sm:$0xff]
        %v721 = vld [vmem:[%s349 + $0x750] sm:$0xff]
        %v722 = vld [vmem:[%s349 + $0x758] sm:$0xff]
        %v723 = vld [vmem:[%s349 + $0x760] sm:$0xff]
        %v724 = vld [vmem:[%s349 + $0x768] sm:$0xff]
        %v725 = vld [vmem:[%s349 + $0x770] sm:$0xff]
        %v726 = vld [vmem:[%s349 + $0x778] sm:$0xff]
        %v727 = vld [vmem:[%s349 + $0x780] sm:$0xff]
        %v728 = vld [vmem:[%s349 + $0x788] sm:$0xff]
        %v729 = vld [vmem:[%s349 + $0x790] sm:$0xff]
        %v730 = vld [vmem:[%s349 + $0x798] sm:$0xff]
        %v731 = vld [vmem:[%s349 + $0x7a0] sm:$0xff]
        %v732 = vld [vmem:[%s349 + $0x7a8] sm:$0xff]
        %v733 = vld [vmem:[%s349 + $0x7b0] sm:$0xff]
        %v734 = vld [vmem:[%s349 + $0x7b8] sm:$0xff]
        %v735 = vld [vmem:[%s349 + $0x7c0] sm:$0xff]
        %v736 = vld [vmem:[%s349 + $0x7c8] sm:$0xff]
        %v737 = vld [vmem:[%s349 + $0x7d0] sm:$0xff]
        %v738 = vld [vmem:[%s349 + $0x7d8] sm:$0xff]
        %v739 = vld [vmem:[%s349 + $0x7e0] sm:$0xff]
        %v740 = vld [vmem:[%s349 + $0x7e8] sm:$0xff]
        %v741 = vld [vmem:[%s349 + $0x7f0] sm:$0xff]
        %v742 = vld [vmem:[%s349 + $0x7f8] sm:$0xff]
        %v743 = vld [vmem:[%s349 + $0x800] sm:$0xff]
        %v744 = vld [vmem:[%s349 + $0x808] sm:$0xff]
        %v745 = vld [vmem:[%s349 + $0x810] sm:$0xff]
        %v746 = vld [vmem:[%s349 + $0x818] sm:$0xff]
        %v747 = vld [vmem:[%s349 + $0x820] sm:$0xff]
        %v748 = vld [vmem:[%s349 + $0x828] sm:$0xff]
        %v749 = vld [vmem:[%s349 + $0x830] sm:$0xff]
        %v750 = vld [vmem:[%s349 + $0x838] sm:$0xff]
        %v751 = vld [vmem:[%s349 + $0x840] sm:$0xff]
        %v752 = vld [vmem:[%s349 + $0x848] sm:$0xff]
        %v753 = vld [vmem:[%s349 + $0x850] sm:$0xff]
        %v754 = vld [vmem:[%s349 + $0x858] sm:$0xff]
        %v755 = vld [vmem:[%s349 + $0x860] sm:$0xff]
        %v756 = vld [vmem:[%s349 + $0x868] sm:$0xff]
        %v757 = vld [vmem:[%s349 + $0x870] sm:$0xff]
        %v758 = vld [vmem:[%s349 + $0x878] sm:$0xff]
        %v759 = vld [vmem:[%s349 + $0x880] sm:$0xff]
        %v760 = vld [vmem:[%s349 + $0x888] sm:$0xff]
        %v761 = vld [vmem:[%s349 + $0x890] sm:$0xff]
        %v762 = vld [vmem:[%s349 + $0x898] sm:$0xff]
        %v763 = vld [vmem:[%s349 + $0x8a0] sm:$0xff]
        %v764 = vld [vmem:[%s349 + $0x8a8] sm:$0xff]
        %v765 = vld [vmem:[%s349 + $0x8b0] sm:$0xff]
        %v766 = vld [vmem:[%s349 + $0x8b8] sm:$0xff]
        %v767 = vld [vmem:[%s349 + $0x8c0] sm:$0xff]
        %v768 = vld [vmem:[%s349 + $0x8c8] sm:$0xff]
        %v769 = vld [vmem:[%s349 + $0x8d0] sm:$0xff]
        %v770 = vld [vmem:[%s349 + $0x8d8] sm:$0xff]
        %v771 = vld [vmem:[%s349 + $0x8e0] sm:$0xff]
        %v772 = vld [vmem:[%s349 + $0x8e8] sm:$0xff]
        %v773 = vld [vmem:[%s349 + $0x8f0] sm:$0xff]
        %v774 = vld [vmem:[%s349 + $0x8f8] sm:$0xff]
        %v775 = vld [vmem:[%s349 + $0x900] sm:$0xff]
        %v776 = vld [vmem:[%s349 + $0x908] sm:$0xff]
        %v777 = vld [vmem:[%s349 + $0x910] sm:$0xff]
        %v778 = vld [vmem:[%s349 + $0x918] sm:$0xff]
        %v779 = vld [vmem:[%s349 + $0x920] sm:$0xff]
        %v780 = vld [vmem:[%s349 + $0x928] sm:$0xff]
        %v781 = vld [vmem:[%s349 + $0x930] sm:$0xff]
        %v782 = vld [vmem:[%s349 + $0x938] sm:$0xff]
        %v783 = vld [vmem:[%s349 + $0x940] sm:$0xff]
        %v784 = vld [vmem:[%s349 + $0x948] sm:$0xff]
        %v785 = vld [vmem:[%s349 + $0x950] sm:$0xff]
        %v786 = vld [vmem:[%s349 + $0x958] sm:$0xff]
        %v787 = vld [vmem:[%s349 + $0x960] sm:$0xff]
        %v788 = vld [vmem:[%s349 + $0x968] sm:$0xff]
        %v789 = vld [vmem:[%s349 + $0x970] sm:$0xff]
        %v790 = vld [vmem:[%s349 + $0x978] sm:$0xff]
        %v791 = vld [vmem:[%s349 + $0x980] sm:$0xff]
        %v792 = vld [vmem:[%s349 + $0x988] sm:$0xff]
        %v793 = vld [vmem:[%s349 + $0x990] sm:$0xff]
        %v794 = vld [vmem:[%s349 + $0x998] sm:$0xff]
        %v795 = vld [vmem:[%s349 + $0x9a0] sm:$0xff]
        %v796 = vld [vmem:[%s349 + $0x9a8] sm:$0xff]
        %v797 = vld [vmem:[%s349 + $0x9b0] sm:$0xff]
        %v798 = vld [vmem:[%s349 + $0x9b8] sm:$0xff]
        %v799 = vld [vmem:[%s349 + $0x9c0] sm:$0xff]
        %v800 = vld [vmem:[%s349 + $0x9c8] sm:$0xff]
        %v801 = vld [vmem:[%s349 + $0x9d0] sm:$0xff]
        %v802 = vld [vmem:[%s349 + $0x9d8] sm:$0xff]
        %v803 = vld [vmem:[%s349 + $0x9e0] sm:$0xff]
        %v804 = vld [vmem:[%s349 + $0x9e8] sm:$0xff]
        %v805 = vld [vmem:[%s349 + $0x9f0] sm:$0xff]
        %v806 = vld [vmem:[%s349 + $0x9f8] sm:$0xff]
        %v807 = vld [vmem:[%s349 + $0xa00] sm:$0xff]
        %v808 = vld [vmem:[%s349 + $0xa08] sm:$0xff]
        %v809 = vld [vmem:[%s349 + $0xa10] sm:$0xff]
        %v810 = vld [vmem:[%s349 + $0xa18] sm:$0xff]
        %v811 = vld [vmem:[%s349 + $0xa20] sm:$0xff]
        %v812 = vld [vmem:[%s349 + $0xa28] sm:$0xff]
        %v813 = vld [vmem:[%s349 + $0xa30] sm:$0xff]
        %v814 = vld [vmem:[%s349 + $0xa38] sm:$0xff]
        %v815 = vld [vmem:[%s349 + $0xa40] sm:$0xff]
        %v816 = vld [vmem:[%s349 + $0xa48] sm:$0xff]
        %v817 = vld [vmem:[%s349 + $0xa50] sm:$0xff]
        %v818 = vld [vmem:[%s349 + $0xa58] sm:$0xff]
        %v819 = vld [vmem:[%s349 + $0xa60] sm:$0xff]
        %v820 = vld [vmem:[%s349 + $0xa68] sm:$0xff]
        %v821 = vld [vmem:[%s349 + $0xa70] sm:$0xff]
        %v822 = vld [vmem:[%s349 + $0xa78] sm:$0xff]
        %v823 = vld [vmem:[%s349 + $0xa80] sm:$0xff]
        %v824 = vld [vmem:[%s349 + $0xa88] sm:$0xff]
        %v825 = vld [vmem:[%s349 + $0xa90] sm:$0xff]
        %v826 = vld [vmem:[%s349 + $0xa98] sm:$0xff]
        %v827 = vld [vmem:[%s349 + $0xaa0] sm:$0xff]
        %v828 = vld [vmem:[%s349 + $0xaa8] sm:$0xff]
        %v829 = vld [vmem:[%s349 + $0xab0] sm:$0xff]
        %v830 = vld [vmem:[%s349 + $0xab8] sm:$0xff]
        %v831 = vld [vmem:[%s349 + $0xac0] sm:$0xff]
        %v832 = vld [vmem:[%s349 + $0xac8] sm:$0xff]
        %v833 = vld [vmem:[%s349 + $0xad0] sm:$0xff]
        %v834 = vld [vmem:[%s349 + $0xad8] sm:$0xff]
        %v835 = vld [vmem:[%s349 + $0xae0] sm:$0xff]
        %v836 = vld [vmem:[%s349 + $0xae8] sm:$0xff]
        %v837 = vld [vmem:[%s349 + $0xaf0] sm:$0xff]
        %v838 = vld [vmem:[%s349 + $0xaf8] sm:$0xff]
        %v839 = vld [vmem:[%s349 + $0xb00] sm:$0xff]
        %v840 = vld [vmem:[%s349 + $0xb08] sm:$0xff]
        %v841 = vld [vmem:[%s349 + $0xb10] sm:$0xff]
        %v842 = vld [vmem:[%s349 + $0xb18] sm:$0xff]
        %v843 = vld [vmem:[%s349 + $0xb20] sm:$0xff]
        %v844 = vld [vmem:[%s349 + $0xb28] sm:$0xff]
        %v845 = vld [vmem:[%s349 + $0xb30] sm:$0xff]
        %v846 = vld [vmem:[%s349 + $0xb38] sm:$0xff]
        %v847 = vld [vmem:[%s349 + $0xb40] sm:$0xff]
        %v848 = vld [vmem:[%s349 + $0xb48] sm:$0xff]
        %v849 = vld [vmem:[%s349 + $0xb50] sm:$0xff]
        %v850 = vld [vmem:[%s349 + $0xb58] sm:$0xff]
        %v851 = vld [vmem:[%s349 + $0xb60] sm:$0xff]
        %v852 = vld [vmem:[%s349 + $0xb68] sm:$0xff]
        %v853 = vld [vmem:[%s349 + $0xb70] sm:$0xff]
        %v854 = vld [vmem:[%s349 + $0xb78] sm:$0xff]
        %v855 = vld [vmem:[%s349 + $0xb80] sm:$0xff]
        %v856 = vld [vmem:[%s349 + $0xb88] sm:$0xff]
        %v857 = vld [vmem:[%s349 + $0xb90] sm:$0xff]
        %v858 = vld [vmem:[%s349 + $0xb98] sm:$0xff]
        %v859 = vld [vmem:[%s349 + $0xba0] sm:$0xff]
        %v860 = vld [vmem:[%s349 + $0xba8] sm:$0xff]
        %v861 = vld [vmem:[%s349 + $0xbb0] sm:$0xff]
        %v862 = vld [vmem:[%s349 + $0xbb8] sm:$0xff]
        %v863 = vld [vmem:[%s349 + $0xbc0] sm:$0xff]
        %v864 = vld [vmem:[%s349 + $0xbc8] sm:$0xff]
        %v865 = vld [vmem:[%s349 + $0xbd0] sm:$0xff]
        %v866 = vld [vmem:[%s349 + $0xbd8] sm:$0xff]
        %v867 = vld [vmem:[%s349 + $0xbe0] sm:$0xff]
        %v868 = vld [vmem:[%s349 + $0xbe8] sm:$0xff]
        %v869 = vld [vmem:[%s349 + $0xbf0] sm:$0xff]
        %v870 = vld [vmem:[%s349 + $0xbf8] sm:$0xff]
        %v871 = vld [vmem:[%s349 + $0xc00] sm:$0xff]
        %v872 = vld [vmem:[%s349 + $0xc08] sm:$0xff]
        %v873 = vld [vmem:[%s349 + $0xc10] sm:$0xff]
        %v874 = vld [vmem:[%s349 + $0xc18] sm:$0xff]
        %v875 = vld [vmem:[%s349 + $0xc20] sm:$0xff]
        %v876 = vld [vmem:[%s349 + $0xc28] sm:$0xff]
        %v877 = vld [vmem:[%s349 + $0xc30] sm:$0xff]
        %v878 = vld [vmem:[%s349 + $0xc38] sm:$0xff]
        %v879 = vld [vmem:[%s349 + $0xc40] sm:$0xff]
        %v880 = vld [vmem:[%s349 + $0xc48] sm:$0xff]
        %v881 = vld [vmem:[%s349 + $0xc50] sm:$0xff]
        %v882 = vld [vmem:[%s349 + $0xc58] sm:$0xff]
        %v883 = vld [vmem:[%s349 + $0xc60] sm:$0xff]
        %v884 = vld [vmem:[%s349 + $0xc68] sm:$0xff]
        %v885 = vld [vmem:[%s349 + $0xc70] sm:$0xff]
        %v886 = vld [vmem:[%s349 + $0xc78] sm:$0xff]
        %v887 = vld [vmem:[%s349 + $0xc80] sm:$0xff]
        %v888 = vld [vmem:[%s349 + $0xc88] sm:$0xff]
        %v889 = vld [vmem:[%s349 + $0xc90] sm:$0xff]
        %v890 = vld [vmem:[%s349 + $0xc98] sm:$0xff]
        %v891 = vld [vmem:[%s349 + $0xca0] sm:$0xff]
        %v892 = vld [vmem:[%s349 + $0xca8] sm:$0xff]
        %v893 = vld [vmem:[%s349 + $0xcb0] sm:$0xff]
        %v894 = vld [vmem:[%s349 + $0xcb8] sm:$0xff]
        %v895 = vld [vmem:[%s349 + $0xcc0] sm:$0xff]
        %v896 = vld [vmem:[%s349 + $0xcc8] sm:$0xff]
        %v897 = vld [vmem:[%s349 + $0xcd0] sm:$0xff]
        %v898 = vld [vmem:[%s349 + $0xcd8] sm:$0xff]
        %v899 = vld [vmem:[%s349 + $0xce0] sm:$0xff]
        %v900 = vld [vmem:[%s349 + $0xce8] sm:$0xff]
        %v901 = vld [vmem:[%s349 + $0xcf0] sm:$0xff]
        %v902 = vld [vmem:[%s349 + $0xcf8] sm:$0xff]
        %v903 = vld [vmem:[%s349 + $0xd00] sm:$0xff]
        %v904 = vld [vmem:[%s349 + $0xd08] sm:$0xff]
        %v905 = vld [vmem:[%s349 + $0xd10] sm:$0xff]
        %v906 = vld [vmem:[%s349 + $0xd18] sm:$0xff]
        %v907 = vld [vmem:[%s349 + $0xd20] sm:$0xff]
        %v908 = vld [vmem:[%s349 + $0xd28] sm:$0xff]
        %v909 = vld [vmem:[%s349 + $0xd30] sm:$0xff]
        %v910 = vld [vmem:[%s349 + $0xd38] sm:$0xff]
        %v911 = vld [vmem:[%s349 + $0xd40] sm:$0xff]
        %v912 = vld [vmem:[%s349 + $0xd48] sm:$0xff]
        %v913 = vld [vmem:[%s349 + $0xd50] sm:$0xff]
        %v914 = vld [vmem:[%s349 + $0xd58] sm:$0xff]
        %v915 = vld [vmem:[%s349 + $0xd60] sm:$0xff]
        %v916 = vld [vmem:[%s349 + $0xd68] sm:$0xff]
        %v917 = vld [vmem:[%s349 + $0xd70] sm:$0xff]
        %v918 = vld [vmem:[%s349 + $0xd78] sm:$0xff]
        %v919 = vld [vmem:[%s349 + $0xd80] sm:$0xff]
        %v920 = vld [vmem:[%s349 + $0xd88] sm:$0xff]
        %v921 = vld [vmem:[%s349 + $0xd90] sm:$0xff]
        %v922 = vld [vmem:[%s349 + $0xd98] sm:$0xff]
        %v923 = vld [vmem:[%s349 + $0xda0] sm:$0xff]
        %v924 = vld [vmem:[%s349 + $0xda8] sm:$0xff]
        %v925 = vld [vmem:[%s349 + $0xdb0] sm:$0xff]
        %v926 = vld [vmem:[%s349 + $0xdb8] sm:$0xff]
        %v927 = vld [vmem:[%s349 + $0xdc0] sm:$0xff]
        %v928 = vld [vmem:[%s349 + $0xdc8] sm:$0xff]
        %v929 = vld [vmem:[%s349 + $0xdd0] sm:$0xff]
        %v930 = vld [vmem:[%s349 + $0xdd8] sm:$0xff]
        %v931 = vld [vmem:[%s349 + $0xde0] sm:$0xff]
        %v932 = vld [vmem:[%s349 + $0xde8] sm:$0xff]
        %v933 = vld [vmem:[%s349 + $0xdf0] sm:$0xff]
        %v934 = vld [vmem:[%s349 + $0xdf8] sm:$0xff]
        %v935 = vld [vmem:[%s349 + $0xe00] sm:$0xff]
        %v936 = vld [vmem:[%s349 + $0xe08] sm:$0xff]
        %v937 = vld [vmem:[%s349 + $0xe10] sm:$0xff]
        %v938 = vld [vmem:[%s349 + $0xe18] sm:$0xff]
        %v939 = vld [vmem:[%s349 + $0xe20] sm:$0xff]
        %v940 = vld [vmem:[%s349 + $0xe28] sm:$0xff]
        %v941 = vld [vmem:[%s349 + $0xe30] sm:$0xff]
        %v942 = vld [vmem:[%s349 + $0xe38] sm:$0xff]
        %v943 = vld [vmem:[%s349 + $0xe40] sm:$0xff]
        %v944 = vld [vmem:[%s349 + $0xe48] sm:$0xff]
        %v945 = vld [vmem:[%s349 + $0xe50] sm:$0xff]
        %v946 = vld [vmem:[%s349 + $0xe58] sm:$0xff]
        %v947 = vld [vmem:[%s349 + $0xe60] sm:$0xff]
        %v948 = vld [vmem:[%s349 + $0xe68] sm:$0xff]
        %v949 = vld [vmem:[%s349 + $0xe70] sm:$0xff]
        %v950 = vld [vmem:[%s349 + $0xe78] sm:$0xff]
        %v951 = vld [vmem:[%s349 + $0xe80] sm:$0xff]
        %v952 = vld [vmem:[%s349 + $0xe88] sm:$0xff]
        %v953 = vld [vmem:[%s349 + $0xe90] sm:$0xff]
        %v954 = vld [vmem:[%s349 + $0xe98] sm:$0xff]
        %v955 = vld [vmem:[%s349 + $0xea0] sm:$0xff]
        %v956 = vld [vmem:[%s349 + $0xea8] sm:$0xff]
        %v957 = vld [vmem:[%s349 + $0xeb0] sm:$0xff]
        %v958 = vld [vmem:[%s349 + $0xeb8] sm:$0xff]
        %v959 = vld [vmem:[%s349 + $0xec0] sm:$0xff]
        %v960 = vld [vmem:[%s349 + $0xec8] sm:$0xff]
        %v961 = vld [vmem:[%s349 + $0xed0] sm:$0xff]
        %v962 = vld [vmem:[%s349 + $0xed8] sm:$0xff]
        %v963 = vld [vmem:[%s349 + $0xee0] sm:$0xff]
        %v964 = vld [vmem:[%s349 + $0xee8] sm:$0xff]
        %v965 = vld [vmem:[%s349 + $0xef0] sm:$0xff]
        %v966 = vld [vmem:[%s349 + $0xef8] sm:$0xff]
        %v967 = vld [vmem:[%s349 + $0xf00] sm:$0xff]
        %v968 = vld [vmem:[%s349 + $0xf08] sm:$0xff]
        %v969 = vld [vmem:[%s349 + $0xf10] sm:$0xff]
        %v970 = vld [vmem:[%s349 + $0xf18] sm:$0xff]
        %v971 = vld [vmem:[%s349 + $0xf20] sm:$0xff]
        %v972 = vld [vmem:[%s349 + $0xf28] sm:$0xff]
        %v973 = vld [vmem:[%s349 + $0xf30] sm:$0xff]
        %v974 = vld [vmem:[%s349 + $0xf38] sm:$0xff]
        %v975 = vld [vmem:[%s349 + $0xf40] sm:$0xff]
        %v976 = vld [vmem:[%s349 + $0xf48] sm:$0xff]
        %v977 = vld [vmem:[%s349 + $0xf50] sm:$0xff]
        %v978 = vld [vmem:[%s349 + $0xf58] sm:$0xff]
        %v979 = vld [vmem:[%s349 + $0xf60] sm:$0xff]
        %v980 = vld [vmem:[%s349 + $0xf68] sm:$0xff]
        %v981 = vld [vmem:[%s349 + $0xf70] sm:$0xff]
        %v982 = vld [vmem:[%s349 + $0xf78] sm:$0xff]
        %v983 = vld [vmem:[%s349 + $0xf80] sm:$0xff]
        %v984 = vld [vmem:[%s349 + $0xf88] sm:$0xff]
        %v985 = vld [vmem:[%s349 + $0xf90] sm:$0xff]
        %v986 = vld [vmem:[%s349 + $0xf98] sm:$0xff]
        %v987 = vld [vmem:[%s349 + $0xfa0] sm:$0xff]
        %v988 = vld [vmem:[%s349 + $0xfa8] sm:$0xff]
        %v989 = vld [vmem:[%s349 + $0xfb0] sm:$0xff]
        %v990 = vld [vmem:[%s349 + $0xfb8] sm:$0xff]
        %v991 = vld [vmem:[%s349 + $0xfc0] sm:$0xff]
        %v992 = vld [vmem:[%s349 + $0xfc8] sm:$0xff]
        %v993 = vld [vmem:[%s349 + $0xfd0] sm:$0xff]
        %v994 = vld [vmem:[%s349 + $0xfd8] sm:$0xff]
        %v995 = vld [vmem:[%s349 + $0xfe0] sm:$0xff]
        %v996 = vld [vmem:[%s349 + $0xfe8] sm:$0xff]
        %v997 = vld [vmem:[%s349 + $0xff0] sm:$0xff]
        %v998 = vld [vmem:[%s349 + $0xff8] sm:$0xff]
        %v999 = vld [vmem:[%s349 + $0x1000] sm:$0xff]
        %v1000 = vld [vmem:[%s349 + $0x1008] sm:$0xff]
        %v1001 = vld [vmem:[%s349 + $0x1010] sm:$0xff]
        %v1002 = vld [vmem:[%s349 + $0x1018] sm:$0xff]
        %v1003 = vld [vmem:[%s349 + $0x1020] sm:$0xff]
        %v1004 = vld [vmem:[%s349 + $0x1028] sm:$0xff]
        %v1005 = vld [vmem:[%s349 + $0x1030] sm:$0xff]
        %v1006 = vld [vmem:[%s349 + $0x1038] sm:$0xff]
        %v1007 = vld [vmem:[%s349 + $0x1040] sm:$0xff]
        %v1008 = vld [vmem:[%s349 + $0x1048] sm:$0xff]
        %v1009 = vld [vmem:[%s349 + $0x1050] sm:$0xff]
        %v1010 = vld [vmem:[%s349 + $0x1058] sm:$0xff]
        %v1011 = vld [vmem:[%s349 + $0x1060] sm:$0xff]
        %v1012 = vld [vmem:[%s349 + $0x1068] sm:$0xff]
        %v1013 = vld [vmem:[%s349 + $0x1070] sm:$0xff]
        %v1014 = vld [vmem:[%s349 + $0x1078] sm:$0xff]
        %v1015 = vld [vmem:[%s349 + $0x1080] sm:$0xff]
        %v1016 = vld [vmem:[%s349 + $0x1088] sm:$0xff]
        %v1017 = vld [vmem:[%s349 + $0x1090] sm:$0xff]
        %v1018 = vld [vmem:[%s349 + $0x1098] sm:$0xff]
        %v1019 = vld [vmem:[%s349 + $0x10a0] sm:$0xff]
        %v1020 = vld [vmem:[%s349 + $0x10a8] sm:$0xff]
        %v1021 = vld [vmem:[%s349 + $0x10b0] sm:$0xff]
        %v1022 = vld [vmem:[%s349 + $0x10b8] sm:$0xff]
        %v1023 = vld [vmem:[%s349 + $0x10c0] sm:$0xff]
        %v1024 = vld [vmem:[%s349 + $0x10c8] sm:$0xff]
        %v1025 = vld [vmem:[%s349 + $0x10d0] sm:$0xff]
        %v1026 = vld [vmem:[%s349 + $0x10d8] sm:$0xff]
        %v1027 = vld [vmem:[%s349 + $0x10e0] sm:$0xff]
        %v1028 = vld [vmem:[%s349 + $0x10e8] sm:$0xff]
        %v1029 = vld [vmem:[%s349 + $0x10f0] sm:$0xff]
        %v1030 = vld [vmem:[%s349 + $0x10f8] sm:$0xff]
        %v1031 = vld [vmem:[%s349 + $0x1100] sm:$0xff]
        %v1032 = vld [vmem:[%s349 + $0x1108] sm:$0xff]
        %v1033 = vld [vmem:[%s349 + $0x1110] sm:$0xff]
        %v1034 = vld [vmem:[%s349 + $0x1118] sm:$0xff]
        %v1035 = vld [vmem:[%s349 + $0x1120] sm:$0xff]
        %v1036 = vld [vmem:[%s349 + $0x1128] sm:$0xff]
        %v1037 = vld [vmem:[%s349 + $0x1130] sm:$0xff]
        %v1038 = vld [vmem:[%s349 + $0x1138] sm:$0xff]
        %v1039 = vld [vmem:[%s349 + $0x1140] sm:$0xff]
        %v1040 = vld [vmem:[%s349 + $0x1148] sm:$0xff]
        %v1041 = vld [vmem:[%s349 + $0x1150] sm:$0xff]
        %v1042 = vld [vmem:[%s349 + $0x1158] sm:$0xff]
        %v1043 = vld [vmem:[%s349 + $0x1160] sm:$0xff]
        %v1044 = vld [vmem:[%s349 + $0x1168] sm:$0xff]
        %v1045 = vld [vmem:[%s349 + $0x1170] sm:$0xff]
        %v1046 = vld [vmem:[%s349 + $0x1178] sm:$0xff]
        %v1047 = vld [vmem:[%s349 + $0x1180] sm:$0xff]
        %v1048 = vld [vmem:[%s349 + $0x1188] sm:$0xff]
        %v1049 = vld [vmem:[%s349 + $0x1190] sm:$0xff]
        %v1050 = vld [vmem:[%s349 + $0x1198] sm:$0xff]
        %v1051 = vld [vmem:[%s349 + $0x11a0] sm:$0xff]
        %v1052 = vld [vmem:[%s349 + $0x11a8] sm:$0xff]
        %v1053 = vld [vmem:[%s349 + $0x11b0] sm:$0xff]
        %v1054 = vld [vmem:[%s349 + $0x11b8] sm:$0xff]
        %v1055 = vld [vmem:[%s349 + $0x11c0] sm:$0xff]
        %v1056 = vld [vmem:[%s349 + $0x11c8] sm:$0xff]
        %v1057 = vld [vmem:[%s349 + $0x11d0] sm:$0xff]
        %v1058 = vld [vmem:[%s349 + $0x11d8] sm:$0xff]
        %v1059 = vld [vmem:[%s349 + $0x11e0] sm:$0xff]
        %v1060 = vld [vmem:[%s349 + $0x11e8] sm:$0xff]
        %v1061 = vld [vmem:[%s349 + $0x11f0] sm:$0xff]
        %v1062 = vld [vmem:[%s349 + $0x11f8] sm:$0xff]
        %v1063 = vld [vmem:[%s349 + $0x1200] sm:$0xff]
        %v1064 = vld [vmem:[%s349 + $0x1208] sm:$0xff]
        %v1065 = vld [vmem:[%s349 + $0x1210] sm:$0xff]
        %v1066 = vld [vmem:[%s349 + $0x1218] sm:$0xff]
        %v1067 = vld [vmem:[%s349 + $0x1220] sm:$0xff]
        %v1068 = vld [vmem:[%s349 + $0x1228] sm:$0xff]
        %v1069 = vld [vmem:[%s349 + $0x1230] sm:$0xff]
        %v1070 = vld [vmem:[%s349 + $0x1238] sm:$0xff]
        %v1071 = vld [vmem:[%s349 + $0x1240] sm:$0xff]
        %v1072 = vld [vmem:[%s349 + $0x1248] sm:$0xff]
        %v1073 = vld [vmem:[%s349 + $0x1250] sm:$0xff]
        %v1074 = vld [vmem:[%s349 + $0x1258] sm:$0xff]
        %v1075 = vld [vmem:[%s349 + $0x1260] sm:$0xff]
        %v1076 = vld [vmem:[%s349 + $0x1268] sm:$0xff]
        %v1077 = vld [vmem:[%s349 + $0x1270] sm:$0xff]
        %v1078 = vld [vmem:[%s349 + $0x1278] sm:$0xff]
        %v1079 = vld [vmem:[%s349 + $0x1280] sm:$0xff]
        %v1080 = vld [vmem:[%s349 + $0x1288] sm:$0xff]
        %v1081 = vld [vmem:[%s349 + $0x1290] sm:$0xff]
        %v1082 = vld [vmem:[%s349 + $0x1298] sm:$0xff]
        %v1083 = vld [vmem:[%s349 + $0x12a0] sm:$0xff]
        %v1084 = vld [vmem:[%s349 + $0x12a8] sm:$0xff]
        %v1085 = vld [vmem:[%s349 + $0x12b0] sm:$0xff]
        %v1086 = vld [vmem:[%s349 + $0x12b8] sm:$0xff]
        %v1087 = vld [vmem:[%s349 + $0x12c0] sm:$0xff]
        %v1088 = vld [vmem:[%s349 + $0x12c8] sm:$0xff]
        %v1089 = vld [vmem:[%s349 + $0x12d0] sm:$0xff]
        %v1090 = vld [vmem:[%s349 + $0x12d8] sm:$0xff]
        %v1091 = vld [vmem:[%s349 + $0x12e0] sm:$0xff]
        %v1092 = vld [vmem:[%s349 + $0x12e8] sm:$0xff]
        %v1093 = vld [vmem:[%s349 + $0x12f0] sm:$0xff]
        %v1094 = vld [vmem:[%s349 + $0x12f8] sm:$0xff]
        %v1095 = vld [vmem:[%s349 + $0x1300] sm:$0xff]
        %v1096 = vld [vmem:[%s349 + $0x1308] sm:$0xff]
        %v1097 = vld [vmem:[%s349 + $0x1310] sm:$0xff]
        %v1098 = vld [vmem:[%s349 + $0x1318] sm:$0xff]
        %v1099 = vld [vmem:[%s349 + $0x1320] sm:$0xff]
        %v1100 = vld [vmem:[%s349 + $0x1328] sm:$0xff]
        %v1101 = vld [vmem:[%s349 + $0x1330] sm:$0xff]
        %v1102 = vld [vmem:[%s349 + $0x1338] sm:$0xff]
        %v1103 = vld [vmem:[%s349 + $0x1340] sm:$0xff]
        %v1104 = vld [vmem:[%s349 + $0x1348] sm:$0xff]
        %v1105 = vld [vmem:[%s349 + $0x1350] sm:$0xff]
        %v1106 = vld [vmem:[%s349 + $0x1358] sm:$0xff]
        %v1107 = vld [vmem:[%s349 + $0x1360] sm:$0xff]
        %v1108 = vld [vmem:[%s349 + $0x1368] sm:$0xff]
        %v1109 = vld [vmem:[%s349 + $0x1370] sm:$0xff]
        %v1110 = vld [vmem:[%s349 + $0x1378] sm:$0xff]
        %v1111 = vld [vmem:[%s349 + $0x1380] sm:$0xff]
        %v1112 = vld [vmem:[%s349 + $0x1388] sm:$0xff]
        %v1113 = vld [vmem:[%s349 + $0x1390] sm:$0xff]
        %v1114 = vld [vmem:[%s349 + $0x1398] sm:$0xff]
        %v1115 = vld [vmem:[%s349 + $0x13a0] sm:$0xff]
        %v1116 = vld [vmem:[%s349 + $0x13a8] sm:$0xff]
        %v1117 = vld [vmem:[%s349 + $0x13b0] sm:$0xff]
        %v1118 = vld [vmem:[%s349 + $0x13b8] sm:$0xff]
        %v1119 = vld [vmem:[%s349 + $0x13c0] sm:$0xff]
        %v1120 = vld [vmem:[%s349 + $0x13c8] sm:$0xff]
        %v1121 = vld [vmem:[%s349 + $0x13d0] sm:$0xff]
        %v1122 = vld [vmem:[%s349 + $0x13d8] sm:$0xff]
        %v1123 = vld [vmem:[%s349 + $0x13e0] sm:$0xff]
        %v1124 = vld [vmem:[%s349 + $0x13e8] sm:$0xff]
        %v1125 = vld [vmem:[%s349 + $0x13f0] sm:$0xff]
        %v1126 = vld [vmem:[%s349 + $0x13f8] sm:$0xff]
        %v1127 = vld [vmem:[%s349 + $0x1400] sm:$0xff]
        %v1128 = vld [vmem:[%s349 + $0x1408] sm:$0xff]
        %v1129 = vld [vmem:[%s349 + $0x1410] sm:$0xff]
        %v1130 = vld [vmem:[%s349 + $0x1418] sm:$0xff]
        %v1131 = vld [vmem:[%s349 + $0x1420] sm:$0xff]
        %v1132 = vld [vmem:[%s349 + $0x1428] sm:$0xff]
        %v1133 = vld [vmem:[%s349 + $0x1430] sm:$0xff]
        %v1134 = vld [vmem:[%s349 + $0x1438] sm:$0xff]
        %v1135 = vld [vmem:[%s349 + $0x1440] sm:$0xff]
        %v1136 = vld [vmem:[%s349 + $0x1448] sm:$0xff]
        %v1137 = vld [vmem:[%s349 + $0x1450] sm:$0xff]
        %v1138 = vld [vmem:[%s349 + $0x1458] sm:$0xff]
        %v1139 = vld [vmem:[%s349 + $0x1460] sm:$0xff]
        %v1140 = vld [vmem:[%s349 + $0x1468] sm:$0xff]
        %v1141 = vld [vmem:[%s349 + $0x1470] sm:$0xff]
        %v1142 = vld [vmem:[%s349 + $0x1478] sm:$0xff]
        %v1143 = vld [vmem:[%s349 + $0x1480] sm:$0xff]
        %v1144 = vld [vmem:[%s349 + $0x1488] sm:$0xff]
        %v1145 = vld [vmem:[%s349 + $0x1490] sm:$0xff]
        %v1146 = vld [vmem:[%s349 + $0x1498] sm:$0xff]
        %v1147 = vld [vmem:[%s349 + $0x14a0] sm:$0xff]
        %v1148 = vld [vmem:[%s349 + $0x14a8] sm:$0xff]
        %v1149 = vld [vmem:[%s349 + $0x14b0] sm:$0xff]
        %v1150 = vld [vmem:[%s349 + $0x14b8] sm:$0xff]
        %v1151 = vld [vmem:[%s349 + $0x14c0] sm:$0xff]
        %v1152 = vld [vmem:[%s349 + $0x14c8] sm:$0xff]
        %v1153 = vld [vmem:[%s349 + $0x14d0] sm:$0xff]
        %v1154 = vld [vmem:[%s349 + $0x14d8] sm:$0xff]
        %v1155 = vld [vmem:[%s349 + $0x14e0] sm:$0xff]
        %v1156 = vld [vmem:[%s349 + $0x14e8] sm:$0xff]
        %v1157 = vld [vmem:[%s349 + $0x14f0] sm:$0xff]
        %v1158 = vld [vmem:[%s349 + $0x14f8] sm:$0xff]
        %v1159 = vld [vmem:[%s349 + $0x1500] sm:$0xff]
        %v1160 = vld [vmem:[%s349 + $0x1508] sm:$0xff]
        %v1161 = vld [vmem:[%s349 + $0x1510] sm:$0xff]
        %v1162 = vld [vmem:[%s349 + $0x1518] sm:$0xff]
        %v1163 = vld [vmem:[%s349 + $0x1520] sm:$0xff]
        %v1164 = vld [vmem:[%s349 + $0x1528] sm:$0xff]
        %v1165 = vld [vmem:[%s349 + $0x1530] sm:$0xff]
        %v1166 = vld [vmem:[%s349 + $0x1538] sm:$0xff]
        %v1167 = vld [vmem:[%s349 + $0x1540] sm:$0xff]
        %v1168 = vld [vmem:[%s349 + $0x1548] sm:$0xff]
        %v1169 = vld [vmem:[%s349 + $0x1550] sm:$0xff]
        %v1170 = vld [vmem:[%s349 + $0x1558] sm:$0xff]
        %v1171 = vld [vmem:[%s349 + $0x1560] sm:$0xff]
        %v1172 = vld [vmem:[%s349 + $0x1568] sm:$0xff]
        %v1173 = vld [vmem:[%s349 + $0x1570] sm:$0xff]
        %v1174 = vld [vmem:[%s349 + $0x1578] sm:$0xff]
        %v1175 = vld [vmem:[%s349 + $0x1580] sm:$0xff]
        %v1176 = vld [vmem:[%s349 + $0x1588] sm:$0xff]
        %v1177 = vld [vmem:[%s349 + $0x1590] sm:$0xff]
        %v1178 = vld [vmem:[%s349 + $0x1598] sm:$0xff]
        %v1179 = vld [vmem:[%s349 + $0x15a0] sm:$0xff]
        %v1180 = vld [vmem:[%s349 + $0x15a8] sm:$0xff]
        %v1181 = vld [vmem:[%s349 + $0x15b0] sm:$0xff]
        %v1182 = vld [vmem:[%s349 + $0x15b8] sm:$0xff]
        %v1183 = vld [vmem:[%s349 + $0x15c0] sm:$0xff]
        %v1184 = vld [vmem:[%s349 + $0x15c8] sm:$0xff]
        %v1185 = vld [vmem:[%s349 + $0x15d0] sm:$0xff]
        %v1186 = vld [vmem:[%s349 + $0x15d8] sm:$0xff]
        %v1187 = vld [vmem:[%s349 + $0x15e0] sm:$0xff]
        %v1188 = vld [vmem:[%s349 + $0x15e8] sm:$0xff]
        %v1189 = vld [vmem:[%s349 + $0x15f0] sm:$0xff]
        %v1190 = vld [vmem:[%s349 + $0x15f8] sm:$0xff]
        %v1191 = vld [vmem:[%s349 + $0x1600] sm:$0xff]
        %v1192 = vld [vmem:[%s349 + $0x1608] sm:$0xff]
        %v1193 = vld [vmem:[%s349 + $0x1610] sm:$0xff]
        %v1194 = vld [vmem:[%s349 + $0x1618] sm:$0xff]
        %v1195 = vld [vmem:[%s349 + $0x1620] sm:$0xff]
        %v1196 = vld [vmem:[%s349 + $0x1628] sm:$0xff]
        %v1197 = vld [vmem:[%s349 + $0x1630] sm:$0xff]
        %v1198 = vld [vmem:[%s349 + $0x1638] sm:$0xff]
        %v1199 = vld [vmem:[%s349 + $0x1640] sm:$0xff]
        %v1200 = vld [vmem:[%s349 + $0x1648] sm:$0xff]
        %v1201 = vld [vmem:[%s349 + $0x1650] sm:$0xff]
        %v1202 = vld [vmem:[%s349 + $0x1658] sm:$0xff]
        %v1203 = vld [vmem:[%s349 + $0x1660] sm:$0xff]
        %v1204 = vld [vmem:[%s349 + $0x1668] sm:$0xff]
        %v1205 = vld [vmem:[%s349 + $0x1670] sm:$0xff]
        %v1206 = vld [vmem:[%s349 + $0x1678] sm:$0xff]
        %v1207 = vld [vmem:[%s349 + $0x1680] sm:$0xff]
        %v1208 = vld [vmem:[%s349 + $0x1688] sm:$0xff]
        %v1209 = vld [vmem:[%s349 + $0x1690] sm:$0xff]
        %v1210 = vld [vmem:[%s349 + $0x1698] sm:$0xff]
        %v1211 = vld [vmem:[%s349 + $0x16a0] sm:$0xff]
        %v1212 = vld [vmem:[%s349 + $0x16a8] sm:$0xff]
        %v1213 = vld [vmem:[%s349 + $0x16b0] sm:$0xff]
        %v1214 = vld [vmem:[%s349 + $0x16b8] sm:$0xff]
        %v1215 = vld [vmem:[%s349 + $0x16c0] sm:$0xff]
        %v1216 = vld [vmem:[%s349 + $0x16c8] sm:$0xff]
        %v1217 = vld [vmem:[%s349 + $0x16d0] sm:$0xff]
        %v1218 = vld [vmem:[%s349 + $0x16d8] sm:$0xff]
        %v1219 = vld [vmem:[%s349 + $0x16e0] sm:$0xff]
        %v1220 = vld [vmem:[%s349 + $0x16e8] sm:$0xff]
        %v1221 = vld [vmem:[%s349 + $0x16f0] sm:$0xff]
        %v1222 = vld [vmem:[%s349 + $0x16f8] sm:$0xff]
        %v1223 = vld [vmem:[%s349 + $0x1700] sm:$0xff]
        %v1224 = vld [vmem:[%s349 + $0x1708] sm:$0xff]
        %v1225 = vld [vmem:[%s349 + $0x1710] sm:$0xff]
        %v1226 = vld [vmem:[%s349 + $0x1718] sm:$0xff]
        %v1227 = vld [vmem:[%s349 + $0x1720] sm:$0xff]
        %v1228 = vld [vmem:[%s349 + $0x1728] sm:$0xff]
        %v1229 = vld [vmem:[%s349 + $0x1730] sm:$0xff]
        %v1230 = vld [vmem:[%s349 + $0x1738] sm:$0xff]
        %v1231 = vld [vmem:[%s349 + $0x1740] sm:$0xff]
        %v1232 = vld [vmem:[%s349 + $0x1748] sm:$0xff]
        %v1233 = vld [vmem:[%s349 + $0x1750] sm:$0xff]
        %v1234 = vld [vmem:[%s349 + $0x1758] sm:$0xff]
        %v1235 = vld [vmem:[%s349 + $0x1760] sm:$0xff]
        %v1236 = vld [vmem:[%s349 + $0x1768] sm:$0xff]
        %v1237 = vld [vmem:[%s349 + $0x1770] sm:$0xff]
        %v1238 = vld [vmem:[%s349 + $0x1778] sm:$0xff]
        %v1239 = vld [vmem:[%s349 + $0x1780] sm:$0xff]
        %v1240 = vld [vmem:[%s349 + $0x1788] sm:$0xff]
        %v1241 = vld [vmem:[%s349 + $0x1790] sm:$0xff]
        %v1242 = vld [vmem:[%s349 + $0x1798] sm:$0xff]
        %v1243 = vld [vmem:[%s349 + $0x17a0] sm:$0xff]
        %v1244 = vld [vmem:[%s349 + $0x17a8] sm:$0xff]
        %v1245 = vld [vmem:[%s349 + $0x17b0] sm:$0xff]
        %v1246 = vld [vmem:[%s349 + $0x17b8] sm:$0xff]
        %v1247 = vld [vmem:[%s349 + $0x17c0] sm:$0xff]
        %v1248 = vld [vmem:[%s349 + $0x17c8] sm:$0xff]
        %v1249 = vld [vmem:[%s349 + $0x17d0] sm:$0xff]
        %v1250 = vld [vmem:[%s349 + $0x17d8] sm:$0xff]
        %v1251 = vld [vmem:[%s349 + $0x17e0] sm:$0xff]
        %v1252 = vld [vmem:[%s349 + $0x17e8] sm:$0xff]
        %v1253 = vld [vmem:[%s349 + $0x17f0] sm:$0xff]
        %v1254 = vld [vmem:[%s349 + $0x17f8] sm:$0xff]
        %v1255 = vld [vmem:[%s358] sm:$0x3f]
        %v1257 = vlaneseq
        %v1258 = vshrl.u32 %v1257, 7
        %v1259 = vsub.s32 0, %v1258
        %v1260 = vrot.slane %v1255, %v1259
        %v1261 = vlaneseq
        %v1262 = vshrl.u32 %v1261, 7
        %v1263 = vsub.s32 1, %v1262
        %v1264 = vrot.slane %v1255, %v1263
        %v1265 = vlaneseq
        %v1266 = vshrl.u32 %v1265, 7
        %v1267 = vsub.s32 2, %v1266
        %v1268 = vrot.slane %v1255, %v1267
        %v1269 = vlaneseq
        %v1270 = vshrl.u32 %v1269, 7
        %v1271 = vsub.s32 3, %v1270
        %v1272 = vrot.slane %v1255, %v1271
        %v1273 = vlaneseq
        %v1274 = vshrl.u32 %v1273, 7
        %v1275 = vsub.s32 4, %v1274
        %v1276 = vrot.slane %v1255, %v1275
        %v1277 = vlaneseq
        %v1278 = vshrl.u32 %v1277, 7
        %v1279 = vsub.s32 5, %v1278
        %v1280 = vrot.slane %v1255, %v1279
        %v1319 = vunpack.c.l.b16 %v455
        %v1320 = vunpack.c.h.b16 %v455
        %v1321 = vunpack.c.l.b16 %v456
        %v1322 = vunpack.c.h.b16 %v456
        %v1323 = vunpack.c.l.b16 %v457
        %v1324 = vunpack.c.h.b16 %v457
        %v1325 = vunpack.c.l.b16 %v458
        %v1326 = vunpack.c.h.b16 %v458
        %v1327 = vunpack.c.l.b16 %v459
        %v1328 = vunpack.c.h.b16 %v459
        %v1329 = vunpack.c.l.b16 %v460
        %v1330 = vunpack.c.h.b16 %v460
        %v1331 = vunpack.c.l.b16 %v461
        %v1332 = vunpack.c.h.b16 %v461
        %v1333 = vunpack.c.l.b16 %v462
        %v1334 = vunpack.c.h.b16 %v462
        %v1335 = vunpack.c.l.b16 %v463
        %v1336 = vunpack.c.h.b16 %v463
        %v1337 = vunpack.c.l.b16 %v464
        %v1338 = vunpack.c.h.b16 %v464
        %v1339 = vunpack.c.l.b16 %v465
        %v1340 = vunpack.c.h.b16 %v465
        %v1341 = vunpack.c.l.b16 %v466
        %v1342 = vunpack.c.h.b16 %v466
        %v1343 = vunpack.c.l.b16 %v467
        %v1344 = vunpack.c.h.b16 %v467
        %v1345 = vunpack.c.l.b16 %v468
        %v1346 = vunpack.c.h.b16 %v468
        %v1347 = vunpack.c.l.b16 %v469
        %v1348 = vunpack.c.h.b16 %v469
        %v1349 = vunpack.c.l.b16 %v470
        %v1350 = vunpack.c.h.b16 %v470
        %v1351 = vunpack.c.l.b16 %v471
        %v1352 = vunpack.c.h.b16 %v471
        %v1353 = vunpack.c.l.b16 %v472
        %v1354 = vunpack.c.h.b16 %v472
        %v1355 = vunpack.c.l.b16 %v473
        %v1356 = vunpack.c.h.b16 %v473
        %v1357 = vunpack.c.l.b16 %v474
        %v1358 = vunpack.c.h.b16 %v474
        %v1359 = vunpack.c.l.b16 %v475
        %v1360 = vunpack.c.h.b16 %v475
        %v1361 = vunpack.c.l.b16 %v476
        %v1362 = vunpack.c.h.b16 %v476
        %v1363 = vunpack.c.l.b16 %v477
        %v1364 = vunpack.c.h.b16 %v477
        %v1365 = vunpack.c.l.b16 %v478
        %v1366 = vunpack.c.h.b16 %v478
        %v1367 = vunpack.c.l.b16 %v479
        %v1368 = vunpack.c.h.b16 %v479
        %v1369 = vunpack.c.l.b16 %v480
        %v1370 = vunpack.c.h.b16 %v480
        %v1371 = vunpack.c.l.b16 %v481
        %v1372 = vunpack.c.h.b16 %v481
        %v1373 = vunpack.c.l.b16 %v482
        %v1374 = vunpack.c.h.b16 %v482
        %v1375 = vunpack.c.l.b16 %v483
        %v1376 = vunpack.c.h.b16 %v483
        %v1377 = vunpack.c.l.b16 %v484
        %v1378 = vunpack.c.h.b16 %v484
        %v1379 = vunpack.c.l.b16 %v485
        %v1380 = vunpack.c.h.b16 %v485
        %v1381 = vunpack.c.l.b16 %v486
        %v1382 = vunpack.c.h.b16 %v486
        %v1383 = vpack.c.b16 %v1335, %v1319
        %v1384 = vpack.c.b16 %v1336, %v1320
        %v1385 = vpack.c.b16 %v1337, %v1321
        %v1386 = vpack.c.b16 %v1338, %v1322
        %v1387 = vpack.c.b16 %v1339, %v1323
        %v1388 = vpack.c.b16 %v1340, %v1324
        %v1389 = vpack.c.b16 %v1341, %v1325
        %v1390 = vpack.c.b16 %v1342, %v1326
        %v1391 = vpack.c.b16 %v1343, %v1327
        %v1392 = vpack.c.b16 %v1344, %v1328
        %v1393 = vpack.c.b16 %v1345, %v1329
        %v1394 = vpack.c.b16 %v1346, %v1330
        %v1395 = vpack.c.b16 %v1347, %v1331
        %v1396 = vpack.c.b16 %v1348, %v1332
        %v1397 = vpack.c.b16 %v1349, %v1333
        %v1398 = vpack.c.b16 %v1350, %v1334
        %v1399 = vpack.c.b16 %v1367, %v1351
        %v1400 = vpack.c.b16 %v1368, %v1352
        %v1401 = vpack.c.b16 %v1369, %v1353
        %v1402 = vpack.c.b16 %v1370, %v1354
        %v1403 = vpack.c.b16 %v1371, %v1355
        %v1404 = vpack.c.b16 %v1372, %v1356
        %v1405 = vpack.c.b16 %v1373, %v1357
        %v1406 = vpack.c.b16 %v1374, %v1358
        %v1407 = vpack.c.b16 %v1375, %v1359
        %v1408 = vpack.c.b16 %v1376, %v1360
        %v1409 = vpack.c.b16 %v1377, %v1361
        %v1410 = vpack.c.b16 %v1378, %v1362
        %v1411 = vpack.c.b16 %v1379, %v1363
        %v1412 = vpack.c.b16 %v1380, %v1364
        %v1413 = vpack.c.b16 %v1381, %v1365
        %v1414 = vpack.c.b16 %v1382, %v1366
        %v2215 = vunpack.c.l.b16 %v487
        %v2216 = vunpack.c.h.b16 %v487
        %v2217 = vunpack.c.l.b16 %v488
        %v2218 = vunpack.c.h.b16 %v488
        %v2219 = vunpack.c.l.b16 %v489
        %v2220 = vunpack.c.h.b16 %v489
        %v2221 = vunpack.c.l.b16 %v490
        %v2222 = vunpack.c.h.b16 %v490
        %v2223 = vunpack.c.l.b16 %v491
        %v2224 = vunpack.c.h.b16 %v491
        %v2225 = vunpack.c.l.b16 %v492
        %v2226 = vunpack.c.h.b16 %v492
        %v2227 = vunpack.c.l.b16 %v493
        %v2228 = vunpack.c.h.b16 %v493
        %v2229 = vunpack.c.l.b16 %v494
        %v2230 = vunpack.c.h.b16 %v494
        %v2231 = vunpack.c.l.b16 %v495
        %v2232 = vunpack.c.h.b16 %v495
        %v2233 = vunpack.c.l.b16 %v496
        %v2234 = vunpack.c.h.b16 %v496
        %v2235 = vunpack.c.l.b16 %v497
        %v2236 = vunpack.c.h.b16 %v497
        %v2237 = vunpack.c.l.b16 %v498
        %v2238 = vunpack.c.h.b16 %v498
        %v2239 = vunpack.c.l.b16 %v499
        %v2240 = vunpack.c.h.b16 %v499
        %v2241 = vunpack.c.l.b16 %v500
        %v2242 = vunpack.c.h.b16 %v500
        %v2243 = vunpack.c.l.b16 %v501
        %v2244 = vunpack.c.h.b16 %v501
        %v2245 = vunpack.c.l.b16 %v502
        %v2246 = vunpack.c.h.b16 %v502
        %v2247 = vunpack.c.l.b16 %v503
        %v2248 = vunpack.c.h.b16 %v503
        %v2249 = vunpack.c.l.b16 %v504
        %v2250 = vunpack.c.h.b16 %v504
        %v2251 = vunpack.c.l.b16 %v505
        %v2252 = vunpack.c.h.b16 %v505
        %v2253 = vunpack.c.l.b16 %v506
        %v2254 = vunpack.c.h.b16 %v506
        %v2255 = vunpack.c.l.b16 %v507
        %v2256 = vunpack.c.h.b16 %v507
        %v2257 = vunpack.c.l.b16 %v508
        %v2258 = vunpack.c.h.b16 %v508
        %v2259 = vunpack.c.l.b16 %v509
        %v2260 = vunpack.c.h.b16 %v509
        %v2261 = vunpack.c.l.b16 %v510
        %v2262 = vunpack.c.h.b16 %v510
        %v2263 = vunpack.c.l.b16 %v511
        %v2264 = vunpack.c.h.b16 %v511
        %v2265 = vunpack.c.l.b16 %v512
        %v2266 = vunpack.c.h.b16 %v512
        %v2267 = vunpack.c.l.b16 %v513
        %v2268 = vunpack.c.h.b16 %v513
        %v2269 = vunpack.c.l.b16 %v514
        %v2270 = vunpack.c.h.b16 %v514
        %v2271 = vunpack.c.l.b16 %v515
        %v2272 = vunpack.c.h.b16 %v515
        %v2273 = vunpack.c.l.b16 %v516
        %v2274 = vunpack.c.h.b16 %v516
        %v2275 = vunpack.c.l.b16 %v517
        %v2276 = vunpack.c.h.b16 %v517
        %v2277 = vunpack.c.l.b16 %v518
        %v2278 = vunpack.c.h.b16 %v518
        %v2279 = vunpack.c.l.b16 %v519
        %v2280 = vunpack.c.h.b16 %v519
        %v2281 = vunpack.c.l.b16 %v520
        %v2282 = vunpack.c.h.b16 %v520
        %v2283 = vunpack.c.l.b16 %v521
        %v2284 = vunpack.c.h.b16 %v521
        %v2285 = vunpack.c.l.b16 %v522
        %v2286 = vunpack.c.h.b16 %v522
        %v2287 = vunpack.c.l.b16 %v523
        %v2288 = vunpack.c.h.b16 %v523
        %v2289 = vunpack.c.l.b16 %v524
        %v2290 = vunpack.c.h.b16 %v524
        %v2291 = vunpack.c.l.b16 %v525
        %v2292 = vunpack.c.h.b16 %v525
        %v2293 = vunpack.c.l.b16 %v526
        %v2294 = vunpack.c.h.b16 %v526
        %v2295 = vunpack.c.l.b16 %v527
        %v2296 = vunpack.c.h.b16 %v527
        %v2297 = vunpack.c.l.b16 %v528
        %v2298 = vunpack.c.h.b16 %v528
        %v2299 = vunpack.c.l.b16 %v529
        %v2300 = vunpack.c.h.b16 %v529
        %v2301 = vunpack.c.l.b16 %v530
        %v2302 = vunpack.c.h.b16 %v530
        %v2303 = vunpack.c.l.b16 %v531
        %v2304 = vunpack.c.h.b16 %v531
        %v2305 = vunpack.c.l.b16 %v532
        %v2306 = vunpack.c.h.b16 %v532
        %v2307 = vunpack.c.l.b16 %v533
        %v2308 = vunpack.c.h.b16 %v533
        %v2309 = vunpack.c.l.b16 %v534
        %v2310 = vunpack.c.h.b16 %v534
        %v2311 = vunpack.c.l.b16 %v535
        %v2312 = vunpack.c.h.b16 %v535
        %v2313 = vunpack.c.l.b16 %v536
        %v2314 = vunpack.c.h.b16 %v536
        %v2315 = vunpack.c.l.b16 %v537
        %v2316 = vunpack.c.h.b16 %v537
        %v2317 = vunpack.c.l.b16 %v538
        %v2318 = vunpack.c.h.b16 %v538
        %v2319 = vunpack.c.l.b16 %v539
        %v2320 = vunpack.c.h.b16 %v539
        %v2321 = vunpack.c.l.b16 %v540
        %v2322 = vunpack.c.h.b16 %v540
        %v2323 = vunpack.c.l.b16 %v541
        %v2324 = vunpack.c.h.b16 %v541
        %v2325 = vunpack.c.l.b16 %v542
        %v2326 = vunpack.c.h.b16 %v542
        %v2327 = vunpack.c.l.b16 %v543
        %v2328 = vunpack.c.h.b16 %v543
        %v2329 = vunpack.c.l.b16 %v544
        %v2330 = vunpack.c.h.b16 %v544
        %v2331 = vunpack.c.l.b16 %v545
        %v2332 = vunpack.c.h.b16 %v545
        %v2333 = vunpack.c.l.b16 %v546
        %v2334 = vunpack.c.h.b16 %v546
        %v2335 = vunpack.c.l.b16 %v547
        %v2336 = vunpack.c.h.b16 %v547
        %v2337 = vunpack.c.l.b16 %v548
        %v2338 = vunpack.c.h.b16 %v548
        %v2339 = vunpack.c.l.b16 %v549
        %v2340 = vunpack.c.h.b16 %v549
        %v2341 = vunpack.c.l.b16 %v550
        %v2342 = vunpack.c.h.b16 %v550
        %v2343 = vunpack.c.l.b16 %v551
        %v2344 = vunpack.c.h.b16 %v551
        %v2345 = vunpack.c.l.b16 %v552
        %v2346 = vunpack.c.h.b16 %v552
        %v2347 = vunpack.c.l.b16 %v553
        %v2348 = vunpack.c.h.b16 %v553
        %v2349 = vunpack.c.l.b16 %v554
        %v2350 = vunpack.c.h.b16 %v554
        %v2351 = vunpack.c.l.b16 %v555
        %v2352 = vunpack.c.h.b16 %v555
        %v2353 = vunpack.c.l.b16 %v556
        %v2354 = vunpack.c.h.b16 %v556
        %v2355 = vunpack.c.l.b16 %v557
        %v2356 = vunpack.c.h.b16 %v557
        %v2357 = vunpack.c.l.b16 %v558
        %v2358 = vunpack.c.h.b16 %v558
        %v2359 = vunpack.c.l.b16 %v559
        %v2360 = vunpack.c.h.b16 %v559
        %v2361 = vunpack.c.l.b16 %v560
        %v2362 = vunpack.c.h.b16 %v560
        %v2363 = vunpack.c.l.b16 %v561
        %v2364 = vunpack.c.h.b16 %v561
        %v2365 = vunpack.c.l.b16 %v562
        %v2366 = vunpack.c.h.b16 %v562
        %v2367 = vunpack.c.l.b16 %v563
        %v2368 = vunpack.c.h.b16 %v563
        %v2369 = vunpack.c.l.b16 %v564
        %v2370 = vunpack.c.h.b16 %v564
        %v2371 = vunpack.c.l.b16 %v565
        %v2372 = vunpack.c.h.b16 %v565
        %v2373 = vunpack.c.l.b16 %v566
        %v2374 = vunpack.c.h.b16 %v566
        %v2375 = vunpack.c.l.b16 %v567
        %v2376 = vunpack.c.h.b16 %v567
        %v2377 = vunpack.c.l.b16 %v568
        %v2378 = vunpack.c.h.b16 %v568
        %v2379 = vunpack.c.l.b16 %v569
        %v2380 = vunpack.c.h.b16 %v569
        %v2381 = vunpack.c.l.b16 %v570
        %v2382 = vunpack.c.h.b16 %v570
        %v2383 = vunpack.c.l.b16 %v571
        %v2384 = vunpack.c.h.b16 %v571
        %v2385 = vunpack.c.l.b16 %v572
        %v2386 = vunpack.c.h.b16 %v572
        %v2387 = vunpack.c.l.b16 %v573
        %v2388 = vunpack.c.h.b16 %v573
        %v2389 = vunpack.c.l.b16 %v574
        %v2390 = vunpack.c.h.b16 %v574
        %v2391 = vunpack.c.l.b16 %v575
        %v2392 = vunpack.c.h.b16 %v575
        %v2393 = vunpack.c.l.b16 %v576
        %v2394 = vunpack.c.h.b16 %v576
        %v2395 = vunpack.c.l.b16 %v577
        %v2396 = vunpack.c.h.b16 %v577
        %v2397 = vunpack.c.l.b16 %v578
        %v2398 = vunpack.c.h.b16 %v578
        %v2399 = vunpack.c.l.b16 %v579
        %v2400 = vunpack.c.h.b16 %v579
        %v2401 = vunpack.c.l.b16 %v580
        %v2402 = vunpack.c.h.b16 %v580
        %v2403 = vunpack.c.l.b16 %v581
        %v2404 = vunpack.c.h.b16 %v581
        %v2405 = vunpack.c.l.b16 %v582
        %v2406 = vunpack.c.h.b16 %v582
        %v2407 = vunpack.c.l.b16 %v583
        %v2408 = vunpack.c.h.b16 %v583
        %v2409 = vunpack.c.l.b16 %v584
        %v2410 = vunpack.c.h.b16 %v584
        %v2411 = vunpack.c.l.b16 %v585
        %v2412 = vunpack.c.h.b16 %v585
        %v2413 = vunpack.c.l.b16 %v586
        %v2414 = vunpack.c.h.b16 %v586
        %v2415 = vunpack.c.l.b16 %v587
        %v2416 = vunpack.c.h.b16 %v587
        %v2417 = vunpack.c.l.b16 %v588
        %v2418 = vunpack.c.h.b16 %v588
        %v2419 = vunpack.c.l.b16 %v589
        %v2420 = vunpack.c.h.b16 %v589
        %v2421 = vunpack.c.l.b16 %v590
        %v2422 = vunpack.c.h.b16 %v590
        %v2423 = vunpack.c.l.b16 %v591
        %v2424 = vunpack.c.h.b16 %v591
        %v2425 = vunpack.c.l.b16 %v592
        %v2426 = vunpack.c.h.b16 %v592
        %v2427 = vunpack.c.l.b16 %v593
        %v2428 = vunpack.c.h.b16 %v593
        %v2429 = vunpack.c.l.b16 %v594
        %v2430 = vunpack.c.h.b16 %v594
        %v2431 = vunpack.c.l.b16 %v595
        %v2432 = vunpack.c.h.b16 %v595
        %v2433 = vunpack.c.l.b16 %v596
        %v2434 = vunpack.c.h.b16 %v596
        %v2435 = vunpack.c.l.b16 %v597
        %v2436 = vunpack.c.h.b16 %v597
        %v2437 = vunpack.c.l.b16 %v598
        %v2438 = vunpack.c.h.b16 %v598
        %v2439 = vunpack.c.l.b16 %v599
        %v2440 = vunpack.c.h.b16 %v599
        %v2441 = vunpack.c.l.b16 %v600
        %v2442 = vunpack.c.h.b16 %v600
        %v2443 = vunpack.c.l.b16 %v601
        %v2444 = vunpack.c.h.b16 %v601
        %v2445 = vunpack.c.l.b16 %v602
        %v2446 = vunpack.c.h.b16 %v602
        %v2447 = vunpack.c.l.b16 %v603
        %v2448 = vunpack.c.h.b16 %v603
        %v2449 = vunpack.c.l.b16 %v604
        %v2450 = vunpack.c.h.b16 %v604
        %v2451 = vunpack.c.l.b16 %v605
        %v2452 = vunpack.c.h.b16 %v605
        %v2453 = vunpack.c.l.b16 %v606
        %v2454 = vunpack.c.h.b16 %v606
        %v2455 = vunpack.c.l.b16 %v607
        %v2456 = vunpack.c.h.b16 %v607
        %v2457 = vunpack.c.l.b16 %v608
        %v2458 = vunpack.c.h.b16 %v608
        %v2459 = vunpack.c.l.b16 %v609
        %v2460 = vunpack.c.h.b16 %v609
        %v2461 = vunpack.c.l.b16 %v610
        %v2462 = vunpack.c.h.b16 %v610
        %v2463 = vunpack.c.l.b16 %v611
        %v2464 = vunpack.c.h.b16 %v611
        %v2465 = vunpack.c.l.b16 %v612
        %v2466 = vunpack.c.h.b16 %v612
        %v2467 = vunpack.c.l.b16 %v613
        %v2468 = vunpack.c.h.b16 %v613
        %v2469 = vunpack.c.l.b16 %v614
        %v2470 = vunpack.c.h.b16 %v614
        %v2471 = vunpack.c.l.b16 %v615
        %v2472 = vunpack.c.h.b16 %v615
        %v2473 = vunpack.c.l.b16 %v616
        %v2474 = vunpack.c.h.b16 %v616
        %v2475 = vunpack.c.l.b16 %v617
        %v2476 = vunpack.c.h.b16 %v617
        %v2477 = vunpack.c.l.b16 %v618
        %v2478 = vunpack.c.h.b16 %v618
        %v2479 = vunpack.c.l.b16 %v619
        %v2480 = vunpack.c.h.b16 %v619
        %v2481 = vunpack.c.l.b16 %v620
        %v2482 = vunpack.c.h.b16 %v620
        %v2483 = vunpack.c.l.b16 %v621
        %v2484 = vunpack.c.h.b16 %v621
        %v2485 = vunpack.c.l.b16 %v622
        %v2486 = vunpack.c.h.b16 %v622
        %v2487 = vunpack.c.l.b16 %v623
        %v2488 = vunpack.c.h.b16 %v623
        %v2489 = vunpack.c.l.b16 %v624
        %v2490 = vunpack.c.h.b16 %v624
        %v2491 = vunpack.c.l.b16 %v625
        %v2492 = vunpack.c.h.b16 %v625
        %v2493 = vunpack.c.l.b16 %v626
        %v2494 = vunpack.c.h.b16 %v626
        %v2495 = vunpack.c.l.b16 %v627
        %v2496 = vunpack.c.h.b16 %v627
        %v2497 = vunpack.c.l.b16 %v628
        %v2498 = vunpack.c.h.b16 %v628
        %v2499 = vunpack.c.l.b16 %v629
        %v2500 = vunpack.c.h.b16 %v629
        %v2501 = vunpack.c.l.b16 %v630
        %v2502 = vunpack.c.h.b16 %v630
        %v2503 = vunpack.c.l.b16 %v631
        %v2504 = vunpack.c.h.b16 %v631
        %v2505 = vunpack.c.l.b16 %v632
        %v2506 = vunpack.c.h.b16 %v632
        %v2507 = vunpack.c.l.b16 %v633
        %v2508 = vunpack.c.h.b16 %v633
        %v2509 = vunpack.c.l.b16 %v634
        %v2510 = vunpack.c.h.b16 %v634
        %v2511 = vunpack.c.l.b16 %v635
        %v2512 = vunpack.c.h.b16 %v635
        %v2513 = vunpack.c.l.b16 %v636
        %v2514 = vunpack.c.h.b16 %v636
        %v2515 = vunpack.c.l.b16 %v637
        %v2516 = vunpack.c.h.b16 %v637
        %v2517 = vunpack.c.l.b16 %v638
        %v2518 = vunpack.c.h.b16 %v638
        %v2519 = vunpack.c.l.b16 %v639
        %v2520 = vunpack.c.h.b16 %v639
        %v2521 = vunpack.c.l.b16 %v640
        %v2522 = vunpack.c.h.b16 %v640
        %v2523 = vunpack.c.l.b16 %v641
        %v2524 = vunpack.c.h.b16 %v641
        %v2525 = vunpack.c.l.b16 %v642
        %v2526 = vunpack.c.h.b16 %v642
        %v2527 = vunpack.c.l.b16 %v643
        %v2528 = vunpack.c.h.b16 %v643
        %v2529 = vunpack.c.l.b16 %v644
        %v2530 = vunpack.c.h.b16 %v644
        %v2531 = vunpack.c.l.b16 %v645
        %v2532 = vunpack.c.h.b16 %v645
        %v2533 = vunpack.c.l.b16 %v646
        %v2534 = vunpack.c.h.b16 %v646
        %v2535 = vunpack.c.l.b16 %v647
        %v2536 = vunpack.c.h.b16 %v647
        %v2537 = vunpack.c.l.b16 %v648
        %v2538 = vunpack.c.h.b16 %v648
        %v2539 = vunpack.c.l.b16 %v649
        %v2540 = vunpack.c.h.b16 %v649
        %v2541 = vunpack.c.l.b16 %v650
        %v2542 = vunpack.c.h.b16 %v650
        %v2543 = vunpack.c.l.b16 %v651
        %v2544 = vunpack.c.h.b16 %v651
        %v2545 = vunpack.c.l.b16 %v652
        %v2546 = vunpack.c.h.b16 %v652
        %v2547 = vunpack.c.l.b16 %v653
        %v2548 = vunpack.c.h.b16 %v653
        %v2549 = vunpack.c.l.b16 %v654
        %v2550 = vunpack.c.h.b16 %v654
        %v2551 = vunpack.c.l.b16 %v655
        %v2552 = vunpack.c.h.b16 %v655
        %v2553 = vunpack.c.l.b16 %v656
        %v2554 = vunpack.c.h.b16 %v656
        %v2555 = vunpack.c.l.b16 %v657
        %v2556 = vunpack.c.h.b16 %v657
        %v2557 = vunpack.c.l.b16 %v658
        %v2558 = vunpack.c.h.b16 %v658
        %v2559 = vunpack.c.l.b16 %v659
        %v2560 = vunpack.c.h.b16 %v659
        %v2561 = vunpack.c.l.b16 %v660
        %v2562 = vunpack.c.h.b16 %v660
        %v2563 = vunpack.c.l.b16 %v661
        %v2564 = vunpack.c.h.b16 %v661
        %v2565 = vunpack.c.l.b16 %v662
        %v2566 = vunpack.c.h.b16 %v662
        %v2567 = vunpack.c.l.b16 %v663
        %v2568 = vunpack.c.h.b16 %v663
        %v2569 = vunpack.c.l.b16 %v664
        %v2570 = vunpack.c.h.b16 %v664
        %v2571 = vunpack.c.l.b16 %v665
        %v2572 = vunpack.c.h.b16 %v665
        %v2573 = vunpack.c.l.b16 %v666
        %v2574 = vunpack.c.h.b16 %v666
        %v2575 = vunpack.c.l.b16 %v667
        %v2576 = vunpack.c.h.b16 %v667
        %v2577 = vunpack.c.l.b16 %v668
        %v2578 = vunpack.c.h.b16 %v668
        %v2579 = vunpack.c.l.b16 %v669
        %v2580 = vunpack.c.h.b16 %v669
        %v2581 = vunpack.c.l.b16 %v670
        %v2582 = vunpack.c.h.b16 %v670
        %v2583 = vunpack.c.l.b16 %v671
        %v2584 = vunpack.c.h.b16 %v671
        %v2585 = vunpack.c.l.b16 %v672
        %v2586 = vunpack.c.h.b16 %v672
        %v2587 = vunpack.c.l.b16 %v673
        %v2588 = vunpack.c.h.b16 %v673
        %v2589 = vunpack.c.l.b16 %v674
        %v2590 = vunpack.c.h.b16 %v674
        %v2591 = vunpack.c.l.b16 %v675
        %v2592 = vunpack.c.h.b16 %v675
        %v2593 = vunpack.c.l.b16 %v676
        %v2594 = vunpack.c.h.b16 %v676
        %v2595 = vunpack.c.l.b16 %v677
        %v2596 = vunpack.c.h.b16 %v677
        %v2597 = vunpack.c.l.b16 %v678
        %v2598 = vunpack.c.h.b16 %v678
        %v2599 = vunpack.c.l.b16 %v679
        %v2600 = vunpack.c.h.b16 %v679
        %v2601 = vunpack.c.l.b16 %v680
        %v2602 = vunpack.c.h.b16 %v680
        %v2603 = vunpack.c.l.b16 %v681
        %v2604 = vunpack.c.h.b16 %v681
        %v2605 = vunpack.c.l.b16 %v682
        %v2606 = vunpack.c.h.b16 %v682
        %v2607 = vunpack.c.l.b16 %v683
        %v2608 = vunpack.c.h.b16 %v683
        %v2609 = vunpack.c.l.b16 %v684
        %v2610 = vunpack.c.h.b16 %v684
        %v2611 = vunpack.c.l.b16 %v685
        %v2612 = vunpack.c.h.b16 %v685
        %v2613 = vunpack.c.l.b16 %v686
        %v2614 = vunpack.c.h.b16 %v686
        %v2615 = vunpack.c.l.b16 %v687
        %v2616 = vunpack.c.h.b16 %v687
        %v2617 = vunpack.c.l.b16 %v688
        %v2618 = vunpack.c.h.b16 %v688
        %v2619 = vunpack.c.l.b16 %v689
        %v2620 = vunpack.c.h.b16 %v689
        %v2621 = vunpack.c.l.b16 %v690
        %v2622 = vunpack.c.h.b16 %v690
        %v2623 = vunpack.c.l.b16 %v691
        %v2624 = vunpack.c.h.b16 %v691
        %v2625 = vunpack.c.l.b16 %v692
        %v2626 = vunpack.c.h.b16 %v692
        %v2627 = vunpack.c.l.b16 %v693
        %v2628 = vunpack.c.h.b16 %v693
        %v2629 = vunpack.c.l.b16 %v694
        %v2630 = vunpack.c.h.b16 %v694
        %v2631 = vunpack.c.l.b16 %v695
        %v2632 = vunpack.c.h.b16 %v695
        %v2633 = vunpack.c.l.b16 %v696
        %v2634 = vunpack.c.h.b16 %v696
        %v2635 = vunpack.c.l.b16 %v697
        %v2636 = vunpack.c.h.b16 %v697
        %v2637 = vunpack.c.l.b16 %v698
        %v2638 = vunpack.c.h.b16 %v698
        %v2639 = vunpack.c.l.b16 %v699
        %v2640 = vunpack.c.h.b16 %v699
        %v2641 = vunpack.c.l.b16 %v700
        %v2642 = vunpack.c.h.b16 %v700
        %v2643 = vunpack.c.l.b16 %v701
        %v2644 = vunpack.c.h.b16 %v701
        %v2645 = vunpack.c.l.b16 %v702
        %v2646 = vunpack.c.h.b16 %v702
        %v2647 = vunpack.c.l.b16 %v703
        %v2648 = vunpack.c.h.b16 %v703
        %v2649 = vunpack.c.l.b16 %v704
        %v2650 = vunpack.c.h.b16 %v704
        %v2651 = vunpack.c.l.b16 %v705
        %v2652 = vunpack.c.h.b16 %v705
        %v2653 = vunpack.c.l.b16 %v706
        %v2654 = vunpack.c.h.b16 %v706
        %v2655 = vunpack.c.l.b16 %v707
        %v2656 = vunpack.c.h.b16 %v707
        %v2657 = vunpack.c.l.b16 %v708
        %v2658 = vunpack.c.h.b16 %v708
        %v2659 = vunpack.c.l.b16 %v709
        %v2660 = vunpack.c.h.b16 %v709
        %v2661 = vunpack.c.l.b16 %v710
        %v2662 = vunpack.c.h.b16 %v710
        %v2663 = vunpack.c.l.b16 %v711
        %v2664 = vunpack.c.h.b16 %v711
        %v2665 = vunpack.c.l.b16 %v712
        %v2666 = vunpack.c.h.b16 %v712
        %v2667 = vunpack.c.l.b16 %v713
        %v2668 = vunpack.c.h.b16 %v713
        %v2669 = vunpack.c.l.b16 %v714
        %v2670 = vunpack.c.h.b16 %v714
        %v2671 = vunpack.c.l.b16 %v715
        %v2672 = vunpack.c.h.b16 %v715
        %v2673 = vunpack.c.l.b16 %v716
        %v2674 = vunpack.c.h.b16 %v716
        %v2675 = vunpack.c.l.b16 %v717
        %v2676 = vunpack.c.h.b16 %v717
        %v2677 = vunpack.c.l.b16 %v718
        %v2678 = vunpack.c.h.b16 %v718
        %v2679 = vunpack.c.l.b16 %v719
        %v2680 = vunpack.c.h.b16 %v719
        %v2681 = vunpack.c.l.b16 %v720
        %v2682 = vunpack.c.h.b16 %v720
        %v2683 = vunpack.c.l.b16 %v721
        %v2684 = vunpack.c.h.b16 %v721
        %v2685 = vunpack.c.l.b16 %v722
        %v2686 = vunpack.c.h.b16 %v722
        %v2687 = vunpack.c.l.b16 %v723
        %v2688 = vunpack.c.h.b16 %v723
        %v2689 = vunpack.c.l.b16 %v724
        %v2690 = vunpack.c.h.b16 %v724
        %v2691 = vunpack.c.l.b16 %v725
        %v2692 = vunpack.c.h.b16 %v725
        %v2693 = vunpack.c.l.b16 %v726
        %v2694 = vunpack.c.h.b16 %v726
        %v2695 = vunpack.c.l.b16 %v727
        %v2696 = vunpack.c.h.b16 %v727
        %v2697 = vunpack.c.l.b16 %v728
        %v2698 = vunpack.c.h.b16 %v728
        %v2699 = vunpack.c.l.b16 %v729
        %v2700 = vunpack.c.h.b16 %v729
        %v2701 = vunpack.c.l.b16 %v730
        %v2702 = vunpack.c.h.b16 %v730
        %v2703 = vunpack.c.l.b16 %v731
        %v2704 = vunpack.c.h.b16 %v731
        %v2705 = vunpack.c.l.b16 %v732
        %v2706 = vunpack.c.h.b16 %v732
        %v2707 = vunpack.c.l.b16 %v733
        %v2708 = vunpack.c.h.b16 %v733
        %v2709 = vunpack.c.l.b16 %v734
        %v2710 = vunpack.c.h.b16 %v734
        %v2711 = vunpack.c.l.b16 %v735
        %v2712 = vunpack.c.h.b16 %v735
        %v2713 = vunpack.c.l.b16 %v736
        %v2714 = vunpack.c.h.b16 %v736
        %v2715 = vunpack.c.l.b16 %v737
        %v2716 = vunpack.c.h.b16 %v737
        %v2717 = vunpack.c.l.b16 %v738
        %v2718 = vunpack.c.h.b16 %v738
        %v2719 = vunpack.c.l.b16 %v739
        %v2720 = vunpack.c.h.b16 %v739
        %v2721 = vunpack.c.l.b16 %v740
        %v2722 = vunpack.c.h.b16 %v740
        %v2723 = vunpack.c.l.b16 %v741
        %v2724 = vunpack.c.h.b16 %v741
        %v2725 = vunpack.c.l.b16 %v742
        %v2726 = vunpack.c.h.b16 %v742
        %v2727 = vunpack.c.l.b16 %v743
        %v2728 = vunpack.c.h.b16 %v743
        %v2729 = vunpack.c.l.b16 %v744
        %v2730 = vunpack.c.h.b16 %v744
        %v2731 = vunpack.c.l.b16 %v745
        %v2732 = vunpack.c.h.b16 %v745
        %v2733 = vunpack.c.l.b16 %v746
        %v2734 = vunpack.c.h.b16 %v746
        %v2735 = vunpack.c.l.b16 %v747
        %v2736 = vunpack.c.h.b16 %v747
        %v2737 = vunpack.c.l.b16 %v748
        %v2738 = vunpack.c.h.b16 %v748
        %v2739 = vunpack.c.l.b16 %v749
        %v2740 = vunpack.c.h.b16 %v749
        %v2741 = vunpack.c.l.b16 %v750
        %v2742 = vunpack.c.h.b16 %v750
        %v2743 = vunpack.c.l.b16 %v751
        %v2744 = vunpack.c.h.b16 %v751
        %v2745 = vunpack.c.l.b16 %v752
        %v2746 = vunpack.c.h.b16 %v752
        %v2747 = vunpack.c.l.b16 %v753
        %v2748 = vunpack.c.h.b16 %v753
        %v2749 = vunpack.c.l.b16 %v754
        %v2750 = vunpack.c.h.b16 %v754
        %v2751 = vunpack.c.l.b16 %v755
        %v2752 = vunpack.c.h.b16 %v755
        %v2753 = vunpack.c.l.b16 %v756
        %v2754 = vunpack.c.h.b16 %v756
        %v2755 = vunpack.c.l.b16 %v757
        %v2756 = vunpack.c.h.b16 %v757
        %v2757 = vunpack.c.l.b16 %v758
        %v2758 = vunpack.c.h.b16 %v758
        %v2759 = vunpack.c.l.b16 %v759
        %v2760 = vunpack.c.h.b16 %v759
        %v2761 = vunpack.c.l.b16 %v760
        %v2762 = vunpack.c.h.b16 %v760
        %v2763 = vunpack.c.l.b16 %v761
        %v2764 = vunpack.c.h.b16 %v761
        %v2765 = vunpack.c.l.b16 %v762
        %v2766 = vunpack.c.h.b16 %v762
        %v2767 = vunpack.c.l.b16 %v763
        %v2768 = vunpack.c.h.b16 %v763
        %v2769 = vunpack.c.l.b16 %v764
        %v2770 = vunpack.c.h.b16 %v764
        %v2771 = vunpack.c.l.b16 %v765
        %v2772 = vunpack.c.h.b16 %v765
        %v2773 = vunpack.c.l.b16 %v766
        %v2774 = vunpack.c.h.b16 %v766
        %v2775 = vunpack.c.l.b16 %v767
        %v2776 = vunpack.c.h.b16 %v767
        %v2777 = vunpack.c.l.b16 %v768
        %v2778 = vunpack.c.h.b16 %v768
        %v2779 = vunpack.c.l.b16 %v769
        %v2780 = vunpack.c.h.b16 %v769
        %v2781 = vunpack.c.l.b16 %v770
        %v2782 = vunpack.c.h.b16 %v770
        %v2783 = vunpack.c.l.b16 %v771
        %v2784 = vunpack.c.h.b16 %v771
        %v2785 = vunpack.c.l.b16 %v772
        %v2786 = vunpack.c.h.b16 %v772
        %v2787 = vunpack.c.l.b16 %v773
        %v2788 = vunpack.c.h.b16 %v773
        %v2789 = vunpack.c.l.b16 %v774
        %v2790 = vunpack.c.h.b16 %v774
        %v2791 = vunpack.c.l.b16 %v775
        %v2792 = vunpack.c.h.b16 %v775
        %v2793 = vunpack.c.l.b16 %v776
        %v2794 = vunpack.c.h.b16 %v776
        %v2795 = vunpack.c.l.b16 %v777
        %v2796 = vunpack.c.h.b16 %v777
        %v2797 = vunpack.c.l.b16 %v778
        %v2798 = vunpack.c.h.b16 %v778
        %v2799 = vunpack.c.l.b16 %v779
        %v2800 = vunpack.c.h.b16 %v779
        %v2801 = vunpack.c.l.b16 %v780
        %v2802 = vunpack.c.h.b16 %v780
        %v2803 = vunpack.c.l.b16 %v781
        %v2804 = vunpack.c.h.b16 %v781
        %v2805 = vunpack.c.l.b16 %v782
        %v2806 = vunpack.c.h.b16 %v782
        %v2807 = vunpack.c.l.b16 %v783
        %v2808 = vunpack.c.h.b16 %v783
        %v2809 = vunpack.c.l.b16 %v784
        %v2810 = vunpack.c.h.b16 %v784
        %v2811 = vunpack.c.l.b16 %v785
        %v2812 = vunpack.c.h.b16 %v785
        %v2813 = vunpack.c.l.b16 %v786
        %v2814 = vunpack.c.h.b16 %v786
        %v2815 = vunpack.c.l.b16 %v787
        %v2816 = vunpack.c.h.b16 %v787
        %v2817 = vunpack.c.l.b16 %v788
        %v2818 = vunpack.c.h.b16 %v788
        %v2819 = vunpack.c.l.b16 %v789
        %v2820 = vunpack.c.h.b16 %v789
        %v2821 = vunpack.c.l.b16 %v790
        %v2822 = vunpack.c.h.b16 %v790
        %v2823 = vunpack.c.l.b16 %v791
        %v2824 = vunpack.c.h.b16 %v791
        %v2825 = vunpack.c.l.b16 %v792
        %v2826 = vunpack.c.h.b16 %v792
        %v2827 = vunpack.c.l.b16 %v793
        %v2828 = vunpack.c.h.b16 %v793
        %v2829 = vunpack.c.l.b16 %v794
        %v2830 = vunpack.c.h.b16 %v794
        %v2831 = vunpack.c.l.b16 %v795
        %v2832 = vunpack.c.h.b16 %v795
        %v2833 = vunpack.c.l.b16 %v796
        %v2834 = vunpack.c.h.b16 %v796
        %v2835 = vunpack.c.l.b16 %v797
        %v2836 = vunpack.c.h.b16 %v797
        %v2837 = vunpack.c.l.b16 %v798
        %v2838 = vunpack.c.h.b16 %v798
        %v2839 = vunpack.c.l.b16 %v799
        %v2840 = vunpack.c.h.b16 %v799
        %v2841 = vunpack.c.l.b16 %v800
        %v2842 = vunpack.c.h.b16 %v800
        %v2843 = vunpack.c.l.b16 %v801
        %v2844 = vunpack.c.h.b16 %v801
        %v2845 = vunpack.c.l.b16 %v802
        %v2846 = vunpack.c.h.b16 %v802
        %v2847 = vunpack.c.l.b16 %v803
        %v2848 = vunpack.c.h.b16 %v803
        %v2849 = vunpack.c.l.b16 %v804
        %v2850 = vunpack.c.h.b16 %v804
        %v2851 = vunpack.c.l.b16 %v805
        %v2852 = vunpack.c.h.b16 %v805
        %v2853 = vunpack.c.l.b16 %v806
        %v2854 = vunpack.c.h.b16 %v806
        %v2855 = vunpack.c.l.b16 %v807
        %v2856 = vunpack.c.h.b16 %v807
        %v2857 = vunpack.c.l.b16 %v808
        %v2858 = vunpack.c.h.b16 %v808
        %v2859 = vunpack.c.l.b16 %v809
        %v2860 = vunpack.c.h.b16 %v809
        %v2861 = vunpack.c.l.b16 %v810
        %v2862 = vunpack.c.h.b16 %v810
        %v2863 = vunpack.c.l.b16 %v811
        %v2864 = vunpack.c.h.b16 %v811
        %v2865 = vunpack.c.l.b16 %v812
        %v2866 = vunpack.c.h.b16 %v812
        %v2867 = vunpack.c.l.b16 %v813
        %v2868 = vunpack.c.h.b16 %v813
        %v2869 = vunpack.c.l.b16 %v814
        %v2870 = vunpack.c.h.b16 %v814
        %v2871 = vunpack.c.l.b16 %v815
        %v2872 = vunpack.c.h.b16 %v815
        %v2873 = vunpack.c.l.b16 %v816
        %v2874 = vunpack.c.h.b16 %v816
        %v2875 = vunpack.c.l.b16 %v817
        %v2876 = vunpack.c.h.b16 %v817
        %v2877 = vunpack.c.l.b16 %v818
        %v2878 = vunpack.c.h.b16 %v818
        %v2879 = vunpack.c.l.b16 %v819
        %v2880 = vunpack.c.h.b16 %v819
        %v2881 = vunpack.c.l.b16 %v820
        %v2882 = vunpack.c.h.b16 %v820
        %v2883 = vunpack.c.l.b16 %v821
        %v2884 = vunpack.c.h.b16 %v821
        %v2885 = vunpack.c.l.b16 %v822
        %v2886 = vunpack.c.h.b16 %v822
        %v2887 = vunpack.c.l.b16 %v823
        %v2888 = vunpack.c.h.b16 %v823
        %v2889 = vunpack.c.l.b16 %v824
        %v2890 = vunpack.c.h.b16 %v824
        %v2891 = vunpack.c.l.b16 %v825
        %v2892 = vunpack.c.h.b16 %v825
        %v2893 = vunpack.c.l.b16 %v826
        %v2894 = vunpack.c.h.b16 %v826
        %v2895 = vunpack.c.l.b16 %v827
        %v2896 = vunpack.c.h.b16 %v827
        %v2897 = vunpack.c.l.b16 %v828
        %v2898 = vunpack.c.h.b16 %v828
        %v2899 = vunpack.c.l.b16 %v829
        %v2900 = vunpack.c.h.b16 %v829
        %v2901 = vunpack.c.l.b16 %v830
        %v2902 = vunpack.c.h.b16 %v830
        %v2903 = vunpack.c.l.b16 %v831
        %v2904 = vunpack.c.h.b16 %v831
        %v2905 = vunpack.c.l.b16 %v832
        %v2906 = vunpack.c.h.b16 %v832
        %v2907 = vunpack.c.l.b16 %v833
        %v2908 = vunpack.c.h.b16 %v833
        %v2909 = vunpack.c.l.b16 %v834
        %v2910 = vunpack.c.h.b16 %v834
        %v2911 = vunpack.c.l.b16 %v835
        %v2912 = vunpack.c.h.b16 %v835
        %v2913 = vunpack.c.l.b16 %v836
        %v2914 = vunpack.c.h.b16 %v836
        %v2915 = vunpack.c.l.b16 %v837
        %v2916 = vunpack.c.h.b16 %v837
        %v2917 = vunpack.c.l.b16 %v838
        %v2918 = vunpack.c.h.b16 %v838
        %v2919 = vunpack.c.l.b16 %v839
        %v2920 = vunpack.c.h.b16 %v839
        %v2921 = vunpack.c.l.b16 %v840
        %v2922 = vunpack.c.h.b16 %v840
        %v2923 = vunpack.c.l.b16 %v841
        %v2924 = vunpack.c.h.b16 %v841
        %v2925 = vunpack.c.l.b16 %v842
        %v2926 = vunpack.c.h.b16 %v842
        %v2927 = vunpack.c.l.b16 %v843
        %v2928 = vunpack.c.h.b16 %v843
        %v2929 = vunpack.c.l.b16 %v844
        %v2930 = vunpack.c.h.b16 %v844
        %v2931 = vunpack.c.l.b16 %v845
        %v2932 = vunpack.c.h.b16 %v845
        %v2933 = vunpack.c.l.b16 %v846
        %v2934 = vunpack.c.h.b16 %v846
        %v2935 = vunpack.c.l.b16 %v847
        %v2936 = vunpack.c.h.b16 %v847
        %v2937 = vunpack.c.l.b16 %v848
        %v2938 = vunpack.c.h.b16 %v848
        %v2939 = vunpack.c.l.b16 %v849
        %v2940 = vunpack.c.h.b16 %v849
        %v2941 = vunpack.c.l.b16 %v850
        %v2942 = vunpack.c.h.b16 %v850
        %v2943 = vunpack.c.l.b16 %v851
        %v2944 = vunpack.c.h.b16 %v851
        %v2945 = vunpack.c.l.b16 %v852
        %v2946 = vunpack.c.h.b16 %v852
        %v2947 = vunpack.c.l.b16 %v853
        %v2948 = vunpack.c.h.b16 %v853
        %v2949 = vunpack.c.l.b16 %v854
        %v2950 = vunpack.c.h.b16 %v854
        %v2951 = vunpack.c.l.b16 %v855
        %v2952 = vunpack.c.h.b16 %v855
        %v2953 = vunpack.c.l.b16 %v856
        %v2954 = vunpack.c.h.b16 %v856
        %v2955 = vunpack.c.l.b16 %v857
        %v2956 = vunpack.c.h.b16 %v857
        %v2957 = vunpack.c.l.b16 %v858
        %v2958 = vunpack.c.h.b16 %v858
        %v2959 = vunpack.c.l.b16 %v859
        %v2960 = vunpack.c.h.b16 %v859
        %v2961 = vunpack.c.l.b16 %v860
        %v2962 = vunpack.c.h.b16 %v860
        %v2963 = vunpack.c.l.b16 %v861
        %v2964 = vunpack.c.h.b16 %v861
        %v2965 = vunpack.c.l.b16 %v862
        %v2966 = vunpack.c.h.b16 %v862
        %v2967 = vunpack.c.l.b16 %v863
        %v2968 = vunpack.c.h.b16 %v863
        %v2969 = vunpack.c.l.b16 %v864
        %v2970 = vunpack.c.h.b16 %v864
        %v2971 = vunpack.c.l.b16 %v865
        %v2972 = vunpack.c.h.b16 %v865
        %v2973 = vunpack.c.l.b16 %v866
        %v2974 = vunpack.c.h.b16 %v866
        %v2975 = vunpack.c.l.b16 %v867
        %v2976 = vunpack.c.h.b16 %v867
        %v2977 = vunpack.c.l.b16 %v868
        %v2978 = vunpack.c.h.b16 %v868
        %v2979 = vunpack.c.l.b16 %v869
        %v2980 = vunpack.c.h.b16 %v869
        %v2981 = vunpack.c.l.b16 %v870
        %v2982 = vunpack.c.h.b16 %v870
        %v2983 = vunpack.c.l.b16 %v871
        %v2984 = vunpack.c.h.b16 %v871
        %v2985 = vunpack.c.l.b16 %v872
        %v2986 = vunpack.c.h.b16 %v872
        %v2987 = vunpack.c.l.b16 %v873
        %v2988 = vunpack.c.h.b16 %v873
        %v2989 = vunpack.c.l.b16 %v874
        %v2990 = vunpack.c.h.b16 %v874
        %v2991 = vunpack.c.l.b16 %v875
        %v2992 = vunpack.c.h.b16 %v875
        %v2993 = vunpack.c.l.b16 %v876
        %v2994 = vunpack.c.h.b16 %v876
        %v2995 = vunpack.c.l.b16 %v877
        %v2996 = vunpack.c.h.b16 %v877
        %v2997 = vunpack.c.l.b16 %v878
        %v2998 = vunpack.c.h.b16 %v878
        %v2999 = vunpack.c.l.b16 %v879
        %v3000 = vunpack.c.h.b16 %v879
        %v3001 = vunpack.c.l.b16 %v880
        %v3002 = vunpack.c.h.b16 %v880
        %v3003 = vunpack.c.l.b16 %v881
        %v3004 = vunpack.c.h.b16 %v881
        %v3005 = vunpack.c.l.b16 %v882
        %v3006 = vunpack.c.h.b16 %v882
        %v3007 = vunpack.c.l.b16 %v883
        %v3008 = vunpack.c.h.b16 %v883
        %v3009 = vunpack.c.l.b16 %v884
        %v3010 = vunpack.c.h.b16 %v884
        %v3011 = vunpack.c.l.b16 %v885
        %v3012 = vunpack.c.h.b16 %v885
        %v3013 = vunpack.c.l.b16 %v886
        %v3014 = vunpack.c.h.b16 %v886
        %v3015 = vunpack.c.l.b16 %v887
        %v3016 = vunpack.c.h.b16 %v887
        %v3017 = vunpack.c.l.b16 %v888
        %v3018 = vunpack.c.h.b16 %v888
        %v3019 = vunpack.c.l.b16 %v889
        %v3020 = vunpack.c.h.b16 %v889
        %v3021 = vunpack.c.l.b16 %v890
        %v3022 = vunpack.c.h.b16 %v890
        %v3023 = vunpack.c.l.b16 %v891
        %v3024 = vunpack.c.h.b16 %v891
        %v3025 = vunpack.c.l.b16 %v892
        %v3026 = vunpack.c.h.b16 %v892
        %v3027 = vunpack.c.l.b16 %v893
        %v3028 = vunpack.c.h.b16 %v893
        %v3029 = vunpack.c.l.b16 %v894
        %v3030 = vunpack.c.h.b16 %v894
        %v3031 = vunpack.c.l.b16 %v895
        %v3032 = vunpack.c.h.b16 %v895
        %v3033 = vunpack.c.l.b16 %v896
        %v3034 = vunpack.c.h.b16 %v896
        %v3035 = vunpack.c.l.b16 %v897
        %v3036 = vunpack.c.h.b16 %v897
        %v3037 = vunpack.c.l.b16 %v898
        %v3038 = vunpack.c.h.b16 %v898
        %v3039 = vunpack.c.l.b16 %v899
        %v3040 = vunpack.c.h.b16 %v899
        %v3041 = vunpack.c.l.b16 %v900
        %v3042 = vunpack.c.h.b16 %v900
        %v3043 = vunpack.c.l.b16 %v901
        %v3044 = vunpack.c.h.b16 %v901
        %v3045 = vunpack.c.l.b16 %v902
        %v3046 = vunpack.c.h.b16 %v902
        %v3047 = vunpack.c.l.b16 %v903
        %v3048 = vunpack.c.h.b16 %v903
        %v3049 = vunpack.c.l.b16 %v904
        %v3050 = vunpack.c.h.b16 %v904
        %v3051 = vunpack.c.l.b16 %v905
        %v3052 = vunpack.c.h.b16 %v905
        %v3053 = vunpack.c.l.b16 %v906
        %v3054 = vunpack.c.h.b16 %v906
        %v3055 = vunpack.c.l.b16 %v907
        %v3056 = vunpack.c.h.b16 %v907
        %v3057 = vunpack.c.l.b16 %v908
        %v3058 = vunpack.c.h.b16 %v908
        %v3059 = vunpack.c.l.b16 %v909
        %v3060 = vunpack.c.h.b16 %v909
        %v3061 = vunpack.c.l.b16 %v910
        %v3062 = vunpack.c.h.b16 %v910
        %v3063 = vunpack.c.l.b16 %v911
        %v3064 = vunpack.c.h.b16 %v911
        %v3065 = vunpack.c.l.b16 %v912
        %v3066 = vunpack.c.h.b16 %v912
        %v3067 = vunpack.c.l.b16 %v913
        %v3068 = vunpack.c.h.b16 %v913
        %v3069 = vunpack.c.l.b16 %v914
        %v3070 = vunpack.c.h.b16 %v914
        %v3071 = vunpack.c.l.b16 %v915
        %v3072 = vunpack.c.h.b16 %v915
        %v3073 = vunpack.c.l.b16 %v916
        %v3074 = vunpack.c.h.b16 %v916
        %v3075 = vunpack.c.l.b16 %v917
        %v3076 = vunpack.c.h.b16 %v917
        %v3077 = vunpack.c.l.b16 %v918
        %v3078 = vunpack.c.h.b16 %v918
        %v3079 = vunpack.c.l.b16 %v919
        %v3080 = vunpack.c.h.b16 %v919
        %v3081 = vunpack.c.l.b16 %v920
        %v3082 = vunpack.c.h.b16 %v920
        %v3083 = vunpack.c.l.b16 %v921
        %v3084 = vunpack.c.h.b16 %v921
        %v3085 = vunpack.c.l.b16 %v922
        %v3086 = vunpack.c.h.b16 %v922
        %v3087 = vunpack.c.l.b16 %v923
        %v3088 = vunpack.c.h.b16 %v923
        %v3089 = vunpack.c.l.b16 %v924
        %v3090 = vunpack.c.h.b16 %v924
        %v3091 = vunpack.c.l.b16 %v925
        %v3092 = vunpack.c.h.b16 %v925
        %v3093 = vunpack.c.l.b16 %v926
        %v3094 = vunpack.c.h.b16 %v926
        %v3095 = vunpack.c.l.b16 %v927
        %v3096 = vunpack.c.h.b16 %v927
        %v3097 = vunpack.c.l.b16 %v928
        %v3098 = vunpack.c.h.b16 %v928
        %v3099 = vunpack.c.l.b16 %v929
        %v3100 = vunpack.c.h.b16 %v929
        %v3101 = vunpack.c.l.b16 %v930
        %v3102 = vunpack.c.h.b16 %v930
        %v3103 = vunpack.c.l.b16 %v931
        %v3104 = vunpack.c.h.b16 %v931
        %v3105 = vunpack.c.l.b16 %v932
        %v3106 = vunpack.c.h.b16 %v932
        %v3107 = vunpack.c.l.b16 %v933
        %v3108 = vunpack.c.h.b16 %v933
        %v3109 = vunpack.c.l.b16 %v934
        %v3110 = vunpack.c.h.b16 %v934
        %v3111 = vunpack.c.l.b16 %v935
        %v3112 = vunpack.c.h.b16 %v935
        %v3113 = vunpack.c.l.b16 %v936
        %v3114 = vunpack.c.h.b16 %v936
        %v3115 = vunpack.c.l.b16 %v937
        %v3116 = vunpack.c.h.b16 %v937
        %v3117 = vunpack.c.l.b16 %v938
        %v3118 = vunpack.c.h.b16 %v938
        %v3119 = vunpack.c.l.b16 %v939
        %v3120 = vunpack.c.h.b16 %v939
        %v3121 = vunpack.c.l.b16 %v940
        %v3122 = vunpack.c.h.b16 %v940
        %v3123 = vunpack.c.l.b16 %v941
        %v3124 = vunpack.c.h.b16 %v941
        %v3125 = vunpack.c.l.b16 %v942
        %v3126 = vunpack.c.h.b16 %v942
        %v3127 = vunpack.c.l.b16 %v943
        %v3128 = vunpack.c.h.b16 %v943
        %v3129 = vunpack.c.l.b16 %v944
        %v3130 = vunpack.c.h.b16 %v944
        %v3131 = vunpack.c.l.b16 %v945
        %v3132 = vunpack.c.h.b16 %v945
        %v3133 = vunpack.c.l.b16 %v946
        %v3134 = vunpack.c.h.b16 %v946
        %v3135 = vunpack.c.l.b16 %v947
        %v3136 = vunpack.c.h.b16 %v947
        %v3137 = vunpack.c.l.b16 %v948
        %v3138 = vunpack.c.h.b16 %v948
        %v3139 = vunpack.c.l.b16 %v949
        %v3140 = vunpack.c.h.b16 %v949
        %v3141 = vunpack.c.l.b16 %v950
        %v3142 = vunpack.c.h.b16 %v950
        %v3143 = vunpack.c.l.b16 %v951
        %v3144 = vunpack.c.h.b16 %v951
        %v3145 = vunpack.c.l.b16 %v952
        %v3146 = vunpack.c.h.b16 %v952
        %v3147 = vunpack.c.l.b16 %v953
        %v3148 = vunpack.c.h.b16 %v953
        %v3149 = vunpack.c.l.b16 %v954
        %v3150 = vunpack.c.h.b16 %v954
        %v3151 = vunpack.c.l.b16 %v955
        %v3152 = vunpack.c.h.b16 %v955
        %v3153 = vunpack.c.l.b16 %v956
        %v3154 = vunpack.c.h.b16 %v956
        %v3155 = vunpack.c.l.b16 %v957
        %v3156 = vunpack.c.h.b16 %v957
        %v3157 = vunpack.c.l.b16 %v958
        %v3158 = vunpack.c.h.b16 %v958
        %v3159 = vunpack.c.l.b16 %v959
        %v3160 = vunpack.c.h.b16 %v959
        %v3161 = vunpack.c.l.b16 %v960
        %v3162 = vunpack.c.h.b16 %v960
        %v3163 = vunpack.c.l.b16 %v961
        %v3164 = vunpack.c.h.b16 %v961
        %v3165 = vunpack.c.l.b16 %v962
        %v3166 = vunpack.c.h.b16 %v962
        %v3167 = vunpack.c.l.b16 %v963
        %v3168 = vunpack.c.h.b16 %v963
        %v3169 = vunpack.c.l.b16 %v964
        %v3170 = vunpack.c.h.b16 %v964
        %v3171 = vunpack.c.l.b16 %v965
        %v3172 = vunpack.c.h.b16 %v965
        %v3173 = vunpack.c.l.b16 %v966
        %v3174 = vunpack.c.h.b16 %v966
        %v3175 = vunpack.c.l.b16 %v967
        %v3176 = vunpack.c.h.b16 %v967
        %v3177 = vunpack.c.l.b16 %v968
        %v3178 = vunpack.c.h.b16 %v968
        %v3179 = vunpack.c.l.b16 %v969
        %v3180 = vunpack.c.h.b16 %v969
        %v3181 = vunpack.c.l.b16 %v970
        %v3182 = vunpack.c.h.b16 %v970
        %v3183 = vunpack.c.l.b16 %v971
        %v3184 = vunpack.c.h.b16 %v971
        %v3185 = vunpack.c.l.b16 %v972
        %v3186 = vunpack.c.h.b16 %v972
        %v3187 = vunpack.c.l.b16 %v973
        %v3188 = vunpack.c.h.b16 %v973
        %v3189 = vunpack.c.l.b16 %v974
        %v3190 = vunpack.c.h.b16 %v974
        %v3191 = vunpack.c.l.b16 %v975
        %v3192 = vunpack.c.h.b16 %v975
        %v3193 = vunpack.c.l.b16 %v976
        %v3194 = vunpack.c.h.b16 %v976
        %v3195 = vunpack.c.l.b16 %v977
        %v3196 = vunpack.c.h.b16 %v977
        %v3197 = vunpack.c.l.b16 %v978
        %v3198 = vunpack.c.h.b16 %v978
        %v3199 = vunpack.c.l.b16 %v979
        %v3200 = vunpack.c.h.b16 %v979
        %v3201 = vunpack.c.l.b16 %v980
        %v3202 = vunpack.c.h.b16 %v980
        %v3203 = vunpack.c.l.b16 %v981
        %v3204 = vunpack.c.h.b16 %v981
        %v3205 = vunpack.c.l.b16 %v982
        %v3206 = vunpack.c.h.b16 %v982
        %v3207 = vunpack.c.l.b16 %v983
        %v3208 = vunpack.c.h.b16 %v983
        %v3209 = vunpack.c.l.b16 %v984
        %v3210 = vunpack.c.h.b16 %v984
        %v3211 = vunpack.c.l.b16 %v985
        %v3212 = vunpack.c.h.b16 %v985
        %v3213 = vunpack.c.l.b16 %v986
        %v3214 = vunpack.c.h.b16 %v986
        %v3215 = vunpack.c.l.b16 %v987
        %v3216 = vunpack.c.h.b16 %v987
        %v3217 = vunpack.c.l.b16 %v988
        %v3218 = vunpack.c.h.b16 %v988
        %v3219 = vunpack.c.l.b16 %v989
        %v3220 = vunpack.c.h.b16 %v989
        %v3221 = vunpack.c.l.b16 %v990
        %v3222 = vunpack.c.h.b16 %v990
        %v3223 = vunpack.c.l.b16 %v991
        %v3224 = vunpack.c.h.b16 %v991
        %v3225 = vunpack.c.l.b16 %v992
        %v3226 = vunpack.c.h.b16 %v992
        %v3227 = vunpack.c.l.b16 %v993
        %v3228 = vunpack.c.h.b16 %v993
        %v3229 = vunpack.c.l.b16 %v994
        %v3230 = vunpack.c.h.b16 %v994
        %v3231 = vunpack.c.l.b16 %v995
        %v3232 = vunpack.c.h.b16 %v995
        %v3233 = vunpack.c.l.b16 %v996
        %v3234 = vunpack.c.h.b16 %v996
        %v3235 = vunpack.c.l.b16 %v997
        %v3236 = vunpack.c.h.b16 %v997
        %v3237 = vunpack.c.l.b16 %v998
        %v3238 = vunpack.c.h.b16 %v998
        %v3239 = vunpack.c.l.b16 %v999
        %v3240 = vunpack.c.h.b16 %v999
        %v3241 = vunpack.c.l.b16 %v1000
        %v3242 = vunpack.c.h.b16 %v1000
        %v3243 = vunpack.c.l.b16 %v1001
        %v3244 = vunpack.c.h.b16 %v1001
        %v3245 = vunpack.c.l.b16 %v1002
        %v3246 = vunpack.c.h.b16 %v1002
        %v3247 = vunpack.c.l.b16 %v1003
        %v3248 = vunpack.c.h.b16 %v1003
        %v3249 = vunpack.c.l.b16 %v1004
        %v3250 = vunpack.c.h.b16 %v1004
        %v3251 = vunpack.c.l.b16 %v1005
        %v3252 = vunpack.c.h.b16 %v1005
        %v3253 = vunpack.c.l.b16 %v1006
        %v3254 = vunpack.c.h.b16 %v1006
        %v3255 = vunpack.c.l.b16 %v1007
        %v3256 = vunpack.c.h.b16 %v1007
        %v3257 = vunpack.c.l.b16 %v1008
        %v3258 = vunpack.c.h.b16 %v1008
        %v3259 = vunpack.c.l.b16 %v1009
        %v3260 = vunpack.c.h.b16 %v1009
        %v3261 = vunpack.c.l.b16 %v1010
        %v3262 = vunpack.c.h.b16 %v1010
        %v3263 = vunpack.c.l.b16 %v1011
        %v3264 = vunpack.c.h.b16 %v1011
        %v3265 = vunpack.c.l.b16 %v1012
        %v3266 = vunpack.c.h.b16 %v1012
        %v3267 = vunpack.c.l.b16 %v1013
        %v3268 = vunpack.c.h.b16 %v1013
        %v3269 = vunpack.c.l.b16 %v1014
        %v3270 = vunpack.c.h.b16 %v1014
        %v3271 = vunpack.c.l.b16 %v1015
        %v3272 = vunpack.c.h.b16 %v1015
        %v3273 = vunpack.c.l.b16 %v1016
        %v3274 = vunpack.c.h.b16 %v1016
        %v3275 = vunpack.c.l.b16 %v1017
        %v3276 = vunpack.c.h.b16 %v1017
        %v3277 = vunpack.c.l.b16 %v1018
        %v3278 = vunpack.c.h.b16 %v1018
        %v3279 = vunpack.c.l.b16 %v1019
        %v3280 = vunpack.c.h.b16 %v1019
        %v3281 = vunpack.c.l.b16 %v1020
        %v3282 = vunpack.c.h.b16 %v1020
        %v3283 = vunpack.c.l.b16 %v1021
        %v3284 = vunpack.c.h.b16 %v1021
        %v3285 = vunpack.c.l.b16 %v1022
        %v3286 = vunpack.c.h.b16 %v1022
        %v3287 = vunpack.c.l.b16 %v1023
        %v3288 = vunpack.c.h.b16 %v1023
        %v3289 = vunpack.c.l.b16 %v1024
        %v3290 = vunpack.c.h.b16 %v1024
        %v3291 = vunpack.c.l.b16 %v1025
        %v3292 = vunpack.c.h.b16 %v1025
        %v3293 = vunpack.c.l.b16 %v1026
        %v3294 = vunpack.c.h.b16 %v1026
        %v3295 = vunpack.c.l.b16 %v1027
        %v3296 = vunpack.c.h.b16 %v1027
        %v3297 = vunpack.c.l.b16 %v1028
        %v3298 = vunpack.c.h.b16 %v1028
        %v3299 = vunpack.c.l.b16 %v1029
        %v3300 = vunpack.c.h.b16 %v1029
        %v3301 = vunpack.c.l.b16 %v1030
        %v3302 = vunpack.c.h.b16 %v1030
        %v3303 = vunpack.c.l.b16 %v1031
        %v3304 = vunpack.c.h.b16 %v1031
        %v3305 = vunpack.c.l.b16 %v1032
        %v3306 = vunpack.c.h.b16 %v1032
        %v3307 = vunpack.c.l.b16 %v1033
        %v3308 = vunpack.c.h.b16 %v1033
        %v3309 = vunpack.c.l.b16 %v1034
        %v3310 = vunpack.c.h.b16 %v1034
        %v3311 = vunpack.c.l.b16 %v1035
        %v3312 = vunpack.c.h.b16 %v1035
        %v3313 = vunpack.c.l.b16 %v1036
        %v3314 = vunpack.c.h.b16 %v1036
        %v3315 = vunpack.c.l.b16 %v1037
        %v3316 = vunpack.c.h.b16 %v1037
        %v3317 = vunpack.c.l.b16 %v1038
        %v3318 = vunpack.c.h.b16 %v1038
        %v3319 = vunpack.c.l.b16 %v1039
        %v3320 = vunpack.c.h.b16 %v1039
        %v3321 = vunpack.c.l.b16 %v1040
        %v3322 = vunpack.c.h.b16 %v1040
        %v3323 = vunpack.c.l.b16 %v1041
        %v3324 = vunpack.c.h.b16 %v1041
        %v3325 = vunpack.c.l.b16 %v1042
        %v3326 = vunpack.c.h.b16 %v1042
        %v3327 = vunpack.c.l.b16 %v1043
        %v3328 = vunpack.c.h.b16 %v1043
        %v3329 = vunpack.c.l.b16 %v1044
        %v3330 = vunpack.c.h.b16 %v1044
        %v3331 = vunpack.c.l.b16 %v1045
        %v3332 = vunpack.c.h.b16 %v1045
        %v3333 = vunpack.c.l.b16 %v1046
        %v3334 = vunpack.c.h.b16 %v1046
        %v3335 = vunpack.c.l.b16 %v1047
        %v3336 = vunpack.c.h.b16 %v1047
        %v3337 = vunpack.c.l.b16 %v1048
        %v3338 = vunpack.c.h.b16 %v1048
        %v3339 = vunpack.c.l.b16 %v1049
        %v3340 = vunpack.c.h.b16 %v1049
        %v3341 = vunpack.c.l.b16 %v1050
        %v3342 = vunpack.c.h.b16 %v1050
        %v3343 = vunpack.c.l.b16 %v1051
        %v3344 = vunpack.c.h.b16 %v1051
        %v3345 = vunpack.c.l.b16 %v1052
        %v3346 = vunpack.c.h.b16 %v1052
        %v3347 = vunpack.c.l.b16 %v1053
        %v3348 = vunpack.c.h.b16 %v1053
        %v3349 = vunpack.c.l.b16 %v1054
        %v3350 = vunpack.c.h.b16 %v1054
        %v3351 = vunpack.c.l.b16 %v1055
        %v3352 = vunpack.c.h.b16 %v1055
        %v3353 = vunpack.c.l.b16 %v1056
        %v3354 = vunpack.c.h.b16 %v1056
        %v3355 = vunpack.c.l.b16 %v1057
        %v3356 = vunpack.c.h.b16 %v1057
        %v3357 = vunpack.c.l.b16 %v1058
        %v3358 = vunpack.c.h.b16 %v1058
        %v3359 = vunpack.c.l.b16 %v1059
        %v3360 = vunpack.c.h.b16 %v1059
        %v3361 = vunpack.c.l.b16 %v1060
        %v3362 = vunpack.c.h.b16 %v1060
        %v3363 = vunpack.c.l.b16 %v1061
        %v3364 = vunpack.c.h.b16 %v1061
        %v3365 = vunpack.c.l.b16 %v1062
        %v3366 = vunpack.c.h.b16 %v1062
        %v3367 = vunpack.c.l.b16 %v1063
        %v3368 = vunpack.c.h.b16 %v1063
        %v3369 = vunpack.c.l.b16 %v1064
        %v3370 = vunpack.c.h.b16 %v1064
        %v3371 = vunpack.c.l.b16 %v1065
        %v3372 = vunpack.c.h.b16 %v1065
        %v3373 = vunpack.c.l.b16 %v1066
        %v3374 = vunpack.c.h.b16 %v1066
        %v3375 = vunpack.c.l.b16 %v1067
        %v3376 = vunpack.c.h.b16 %v1067
        %v3377 = vunpack.c.l.b16 %v1068
        %v3378 = vunpack.c.h.b16 %v1068
        %v3379 = vunpack.c.l.b16 %v1069
        %v3380 = vunpack.c.h.b16 %v1069
        %v3381 = vunpack.c.l.b16 %v1070
        %v3382 = vunpack.c.h.b16 %v1070
        %v3383 = vunpack.c.l.b16 %v1071
        %v3384 = vunpack.c.h.b16 %v1071
        %v3385 = vunpack.c.l.b16 %v1072
        %v3386 = vunpack.c.h.b16 %v1072
        %v3387 = vunpack.c.l.b16 %v1073
        %v3388 = vunpack.c.h.b16 %v1073
        %v3389 = vunpack.c.l.b16 %v1074
        %v3390 = vunpack.c.h.b16 %v1074
        %v3391 = vunpack.c.l.b16 %v1075
        %v3392 = vunpack.c.h.b16 %v1075
        %v3393 = vunpack.c.l.b16 %v1076
        %v3394 = vunpack.c.h.b16 %v1076
        %v3395 = vunpack.c.l.b16 %v1077
        %v3396 = vunpack.c.h.b16 %v1077
        %v3397 = vunpack.c.l.b16 %v1078
        %v3398 = vunpack.c.h.b16 %v1078
        %v3399 = vunpack.c.l.b16 %v1079
        %v3400 = vunpack.c.h.b16 %v1079
        %v3401 = vunpack.c.l.b16 %v1080
        %v3402 = vunpack.c.h.b16 %v1080
        %v3403 = vunpack.c.l.b16 %v1081
        %v3404 = vunpack.c.h.b16 %v1081
        %v3405 = vunpack.c.l.b16 %v1082
        %v3406 = vunpack.c.h.b16 %v1082
        %v3407 = vunpack.c.l.b16 %v1083
        %v3408 = vunpack.c.h.b16 %v1083
        %v3409 = vunpack.c.l.b16 %v1084
        %v3410 = vunpack.c.h.b16 %v1084
        %v3411 = vunpack.c.l.b16 %v1085
        %v3412 = vunpack.c.h.b16 %v1085
        %v3413 = vunpack.c.l.b16 %v1086
        %v3414 = vunpack.c.h.b16 %v1086
        %v3415 = vunpack.c.l.b16 %v1087
        %v3416 = vunpack.c.h.b16 %v1087
        %v3417 = vunpack.c.l.b16 %v1088
        %v3418 = vunpack.c.h.b16 %v1088
        %v3419 = vunpack.c.l.b16 %v1089
        %v3420 = vunpack.c.h.b16 %v1089
        %v3421 = vunpack.c.l.b16 %v1090
        %v3422 = vunpack.c.h.b16 %v1090
        %v3423 = vunpack.c.l.b16 %v1091
        %v3424 = vunpack.c.h.b16 %v1091
        %v3425 = vunpack.c.l.b16 %v1092
        %v3426 = vunpack.c.h.b16 %v1092
        %v3427 = vunpack.c.l.b16 %v1093
        %v3428 = vunpack.c.h.b16 %v1093
        %v3429 = vunpack.c.l.b16 %v1094
        %v3430 = vunpack.c.h.b16 %v1094
        %v3431 = vunpack.c.l.b16 %v1095
        %v3432 = vunpack.c.h.b16 %v1095
        %v3433 = vunpack.c.l.b16 %v1096
        %v3434 = vunpack.c.h.b16 %v1096
        %v3435 = vunpack.c.l.b16 %v1097
        %v3436 = vunpack.c.h.b16 %v1097
        %v3437 = vunpack.c.l.b16 %v1098
        %v3438 = vunpack.c.h.b16 %v1098
        %v3439 = vunpack.c.l.b16 %v1099
        %v3440 = vunpack.c.h.b16 %v1099
        %v3441 = vunpack.c.l.b16 %v1100
        %v3442 = vunpack.c.h.b16 %v1100
        %v3443 = vunpack.c.l.b16 %v1101
        %v3444 = vunpack.c.h.b16 %v1101
        %v3445 = vunpack.c.l.b16 %v1102
        %v3446 = vunpack.c.h.b16 %v1102
        %v3447 = vunpack.c.l.b16 %v1103
        %v3448 = vunpack.c.h.b16 %v1103
        %v3449 = vunpack.c.l.b16 %v1104
        %v3450 = vunpack.c.h.b16 %v1104
        %v3451 = vunpack.c.l.b16 %v1105
        %v3452 = vunpack.c.h.b16 %v1105
        %v3453 = vunpack.c.l.b16 %v1106
        %v3454 = vunpack.c.h.b16 %v1106
        %v3455 = vunpack.c.l.b16 %v1107
        %v3456 = vunpack.c.h.b16 %v1107
        %v3457 = vunpack.c.l.b16 %v1108
        %v3458 = vunpack.c.h.b16 %v1108
        %v3459 = vunpack.c.l.b16 %v1109
        %v3460 = vunpack.c.h.b16 %v1109
        %v3461 = vunpack.c.l.b16 %v1110
        %v3462 = vunpack.c.h.b16 %v1110
        %v3463 = vunpack.c.l.b16 %v1111
        %v3464 = vunpack.c.h.b16 %v1111
        %v3465 = vunpack.c.l.b16 %v1112
        %v3466 = vunpack.c.h.b16 %v1112
        %v3467 = vunpack.c.l.b16 %v1113
        %v3468 = vunpack.c.h.b16 %v1113
        %v3469 = vunpack.c.l.b16 %v1114
        %v3470 = vunpack.c.h.b16 %v1114
        %v3471 = vunpack.c.l.b16 %v1115
        %v3472 = vunpack.c.h.b16 %v1115
        %v3473 = vunpack.c.l.b16 %v1116
        %v3474 = vunpack.c.h.b16 %v1116
        %v3475 = vunpack.c.l.b16 %v1117
        %v3476 = vunpack.c.h.b16 %v1117
        %v3477 = vunpack.c.l.b16 %v1118
        %v3478 = vunpack.c.h.b16 %v1118
        %v3479 = vunpack.c.l.b16 %v1119
        %v3480 = vunpack.c.h.b16 %v1119
        %v3481 = vunpack.c.l.b16 %v1120
        %v3482 = vunpack.c.h.b16 %v1120
        %v3483 = vunpack.c.l.b16 %v1121
        %v3484 = vunpack.c.h.b16 %v1121
        %v3485 = vunpack.c.l.b16 %v1122
        %v3486 = vunpack.c.h.b16 %v1122
        %v3487 = vunpack.c.l.b16 %v1123
        %v3488 = vunpack.c.h.b16 %v1123
        %v3489 = vunpack.c.l.b16 %v1124
        %v3490 = vunpack.c.h.b16 %v1124
        %v3491 = vunpack.c.l.b16 %v1125
        %v3492 = vunpack.c.h.b16 %v1125
        %v3493 = vunpack.c.l.b16 %v1126
        %v3494 = vunpack.c.h.b16 %v1126
        %v3495 = vunpack.c.l.b16 %v1127
        %v3496 = vunpack.c.h.b16 %v1127
        %v3497 = vunpack.c.l.b16 %v1128
        %v3498 = vunpack.c.h.b16 %v1128
        %v3499 = vunpack.c.l.b16 %v1129
        %v3500 = vunpack.c.h.b16 %v1129
        %v3501 = vunpack.c.l.b16 %v1130
        %v3502 = vunpack.c.h.b16 %v1130
        %v3503 = vunpack.c.l.b16 %v1131
        %v3504 = vunpack.c.h.b16 %v1131
        %v3505 = vunpack.c.l.b16 %v1132
        %v3506 = vunpack.c.h.b16 %v1132
        %v3507 = vunpack.c.l.b16 %v1133
        %v3508 = vunpack.c.h.b16 %v1133
        %v3509 = vunpack.c.l.b16 %v1134
        %v3510 = vunpack.c.h.b16 %v1134
        %v3511 = vunpack.c.l.b16 %v1135
        %v3512 = vunpack.c.h.b16 %v1135
        %v3513 = vunpack.c.l.b16 %v1136
        %v3514 = vunpack.c.h.b16 %v1136
        %v3515 = vunpack.c.l.b16 %v1137
        %v3516 = vunpack.c.h.b16 %v1137
        %v3517 = vunpack.c.l.b16 %v1138
        %v3518 = vunpack.c.h.b16 %v1138
        %v3519 = vunpack.c.l.b16 %v1139
        %v3520 = vunpack.c.h.b16 %v1139
        %v3521 = vunpack.c.l.b16 %v1140
        %v3522 = vunpack.c.h.b16 %v1140
        %v3523 = vunpack.c.l.b16 %v1141
        %v3524 = vunpack.c.h.b16 %v1141
        %v3525 = vunpack.c.l.b16 %v1142
        %v3526 = vunpack.c.h.b16 %v1142
        %v3527 = vunpack.c.l.b16 %v1143
        %v3528 = vunpack.c.h.b16 %v1143
        %v3529 = vunpack.c.l.b16 %v1144
        %v3530 = vunpack.c.h.b16 %v1144
        %v3531 = vunpack.c.l.b16 %v1145
        %v3532 = vunpack.c.h.b16 %v1145
        %v3533 = vunpack.c.l.b16 %v1146
        %v3534 = vunpack.c.h.b16 %v1146
        %v3535 = vunpack.c.l.b16 %v1147
        %v3536 = vunpack.c.h.b16 %v1147
        %v3537 = vunpack.c.l.b16 %v1148
        %v3538 = vunpack.c.h.b16 %v1148
        %v3539 = vunpack.c.l.b16 %v1149
        %v3540 = vunpack.c.h.b16 %v1149
        %v3541 = vunpack.c.l.b16 %v1150
        %v3542 = vunpack.c.h.b16 %v1150
        %v3543 = vunpack.c.l.b16 %v1151
        %v3544 = vunpack.c.h.b16 %v1151
        %v3545 = vunpack.c.l.b16 %v1152
        %v3546 = vunpack.c.h.b16 %v1152
        %v3547 = vunpack.c.l.b16 %v1153
        %v3548 = vunpack.c.h.b16 %v1153
        %v3549 = vunpack.c.l.b16 %v1154
        %v3550 = vunpack.c.h.b16 %v1154
        %v3551 = vunpack.c.l.b16 %v1155
        %v3552 = vunpack.c.h.b16 %v1155
        %v3553 = vunpack.c.l.b16 %v1156
        %v3554 = vunpack.c.h.b16 %v1156
        %v3555 = vunpack.c.l.b16 %v1157
        %v3556 = vunpack.c.h.b16 %v1157
        %v3557 = vunpack.c.l.b16 %v1158
        %v3558 = vunpack.c.h.b16 %v1158
        %v3559 = vunpack.c.l.b16 %v1159
        %v3560 = vunpack.c.h.b16 %v1159
        %v3561 = vunpack.c.l.b16 %v1160
        %v3562 = vunpack.c.h.b16 %v1160
        %v3563 = vunpack.c.l.b16 %v1161
        %v3564 = vunpack.c.h.b16 %v1161
        %v3565 = vunpack.c.l.b16 %v1162
        %v3566 = vunpack.c.h.b16 %v1162
        %v3567 = vunpack.c.l.b16 %v1163
        %v3568 = vunpack.c.h.b16 %v1163
        %v3569 = vunpack.c.l.b16 %v1164
        %v3570 = vunpack.c.h.b16 %v1164
        %v3571 = vunpack.c.l.b16 %v1165
        %v3572 = vunpack.c.h.b16 %v1165
        %v3573 = vunpack.c.l.b16 %v1166
        %v3574 = vunpack.c.h.b16 %v1166
        %v3575 = vunpack.c.l.b16 %v1167
        %v3576 = vunpack.c.h.b16 %v1167
        %v3577 = vunpack.c.l.b16 %v1168
        %v3578 = vunpack.c.h.b16 %v1168
        %v3579 = vunpack.c.l.b16 %v1169
        %v3580 = vunpack.c.h.b16 %v1169
        %v3581 = vunpack.c.l.b16 %v1170
        %v3582 = vunpack.c.h.b16 %v1170
        %v3583 = vunpack.c.l.b16 %v1171
        %v3584 = vunpack.c.h.b16 %v1171
        %v3585 = vunpack.c.l.b16 %v1172
        %v3586 = vunpack.c.h.b16 %v1172
        %v3587 = vunpack.c.l.b16 %v1173
        %v3588 = vunpack.c.h.b16 %v1173
        %v3589 = vunpack.c.l.b16 %v1174
        %v3590 = vunpack.c.h.b16 %v1174
        %v3591 = vunpack.c.l.b16 %v1175
        %v3592 = vunpack.c.h.b16 %v1175
        %v3593 = vunpack.c.l.b16 %v1176
        %v3594 = vunpack.c.h.b16 %v1176
        %v3595 = vunpack.c.l.b16 %v1177
        %v3596 = vunpack.c.h.b16 %v1177
        %v3597 = vunpack.c.l.b16 %v1178
        %v3598 = vunpack.c.h.b16 %v1178
        %v3599 = vunpack.c.l.b16 %v1179
        %v3600 = vunpack.c.h.b16 %v1179
        %v3601 = vunpack.c.l.b16 %v1180
        %v3602 = vunpack.c.h.b16 %v1180
        %v3603 = vunpack.c.l.b16 %v1181
        %v3604 = vunpack.c.h.b16 %v1181
        %v3605 = vunpack.c.l.b16 %v1182
        %v3606 = vunpack.c.h.b16 %v1182
        %v3607 = vunpack.c.l.b16 %v1183
        %v3608 = vunpack.c.h.b16 %v1183
        %v3609 = vunpack.c.l.b16 %v1184
        %v3610 = vunpack.c.h.b16 %v1184
        %v3611 = vunpack.c.l.b16 %v1185
        %v3612 = vunpack.c.h.b16 %v1185
        %v3613 = vunpack.c.l.b16 %v1186
        %v3614 = vunpack.c.h.b16 %v1186
        %v3615 = vunpack.c.l.b16 %v1187
        %v3616 = vunpack.c.h.b16 %v1187
        %v3617 = vunpack.c.l.b16 %v1188
        %v3618 = vunpack.c.h.b16 %v1188
        %v3619 = vunpack.c.l.b16 %v1189
        %v3620 = vunpack.c.h.b16 %v1189
        %v3621 = vunpack.c.l.b16 %v1190
        %v3622 = vunpack.c.h.b16 %v1190
        %v3623 = vunpack.c.l.b16 %v1191
        %v3624 = vunpack.c.h.b16 %v1191
        %v3625 = vunpack.c.l.b16 %v1192
        %v3626 = vunpack.c.h.b16 %v1192
        %v3627 = vunpack.c.l.b16 %v1193
        %v3628 = vunpack.c.h.b16 %v1193
        %v3629 = vunpack.c.l.b16 %v1194
        %v3630 = vunpack.c.h.b16 %v1194
        %v3631 = vunpack.c.l.b16 %v1195
        %v3632 = vunpack.c.h.b16 %v1195
        %v3633 = vunpack.c.l.b16 %v1196
        %v3634 = vunpack.c.h.b16 %v1196
        %v3635 = vunpack.c.l.b16 %v1197
        %v3636 = vunpack.c.h.b16 %v1197
        %v3637 = vunpack.c.l.b16 %v1198
        %v3638 = vunpack.c.h.b16 %v1198
        %v3639 = vunpack.c.l.b16 %v1199
        %v3640 = vunpack.c.h.b16 %v1199
        %v3641 = vunpack.c.l.b16 %v1200
        %v3642 = vunpack.c.h.b16 %v1200
        %v3643 = vunpack.c.l.b16 %v1201
        %v3644 = vunpack.c.h.b16 %v1201
        %v3645 = vunpack.c.l.b16 %v1202
        %v3646 = vunpack.c.h.b16 %v1202
        %v3647 = vunpack.c.l.b16 %v1203
        %v3648 = vunpack.c.h.b16 %v1203
        %v3649 = vunpack.c.l.b16 %v1204
        %v3650 = vunpack.c.h.b16 %v1204
        %v3651 = vunpack.c.l.b16 %v1205
        %v3652 = vunpack.c.h.b16 %v1205
        %v3653 = vunpack.c.l.b16 %v1206
        %v3654 = vunpack.c.h.b16 %v1206
        %v3655 = vunpack.c.l.b16 %v1207
        %v3656 = vunpack.c.h.b16 %v1207
        %v3657 = vunpack.c.l.b16 %v1208
        %v3658 = vunpack.c.h.b16 %v1208
        %v3659 = vunpack.c.l.b16 %v1209
        %v3660 = vunpack.c.h.b16 %v1209
        %v3661 = vunpack.c.l.b16 %v1210
        %v3662 = vunpack.c.h.b16 %v1210
        %v3663 = vunpack.c.l.b16 %v1211
        %v3664 = vunpack.c.h.b16 %v1211
        %v3665 = vunpack.c.l.b16 %v1212
        %v3666 = vunpack.c.h.b16 %v1212
        %v3667 = vunpack.c.l.b16 %v1213
        %v3668 = vunpack.c.h.b16 %v1213
        %v3669 = vunpack.c.l.b16 %v1214
        %v3670 = vunpack.c.h.b16 %v1214
        %v3671 = vunpack.c.l.b16 %v1215
        %v3672 = vunpack.c.h.b16 %v1215
        %v3673 = vunpack.c.l.b16 %v1216
        %v3674 = vunpack.c.h.b16 %v1216
        %v3675 = vunpack.c.l.b16 %v1217
        %v3676 = vunpack.c.h.b16 %v1217
        %v3677 = vunpack.c.l.b16 %v1218
        %v3678 = vunpack.c.h.b16 %v1218
        %v3679 = vunpack.c.l.b16 %v1219
        %v3680 = vunpack.c.h.b16 %v1219
        %v3681 = vunpack.c.l.b16 %v1220
        %v3682 = vunpack.c.h.b16 %v1220
        %v3683 = vunpack.c.l.b16 %v1221
        %v3684 = vunpack.c.h.b16 %v1221
        %v3685 = vunpack.c.l.b16 %v1222
        %v3686 = vunpack.c.h.b16 %v1222
        %v3687 = vunpack.c.l.b16 %v1223
        %v3688 = vunpack.c.h.b16 %v1223
        %v3689 = vunpack.c.l.b16 %v1224
        %v3690 = vunpack.c.h.b16 %v1224
        %v3691 = vunpack.c.l.b16 %v1225
        %v3692 = vunpack.c.h.b16 %v1225
        %v3693 = vunpack.c.l.b16 %v1226
        %v3694 = vunpack.c.h.b16 %v1226
        %v3695 = vunpack.c.l.b16 %v1227
        %v3696 = vunpack.c.h.b16 %v1227
        %v3697 = vunpack.c.l.b16 %v1228
        %v3698 = vunpack.c.h.b16 %v1228
        %v3699 = vunpack.c.l.b16 %v1229
        %v3700 = vunpack.c.h.b16 %v1229
        %v3701 = vunpack.c.l.b16 %v1230
        %v3702 = vunpack.c.h.b16 %v1230
        %v3703 = vunpack.c.l.b16 %v1231
        %v3704 = vunpack.c.h.b16 %v1231
        %v3705 = vunpack.c.l.b16 %v1232
        %v3706 = vunpack.c.h.b16 %v1232
        %v3707 = vunpack.c.l.b16 %v1233
        %v3708 = vunpack.c.h.b16 %v1233
        %v3709 = vunpack.c.l.b16 %v1234
        %v3710 = vunpack.c.h.b16 %v1234
        %v3711 = vunpack.c.l.b16 %v1235
        %v3712 = vunpack.c.h.b16 %v1235
        %v3713 = vunpack.c.l.b16 %v1236
        %v3714 = vunpack.c.h.b16 %v1236
        %v3715 = vunpack.c.l.b16 %v1237
        %v3716 = vunpack.c.h.b16 %v1237
        %v3717 = vunpack.c.l.b16 %v1238
        %v3718 = vunpack.c.h.b16 %v1238
        %v3719 = vunpack.c.l.b16 %v1239
        %v3720 = vunpack.c.h.b16 %v1239
        %v3721 = vunpack.c.l.b16 %v1240
        %v3722 = vunpack.c.h.b16 %v1240
        %v3723 = vunpack.c.l.b16 %v1241
        %v3724 = vunpack.c.h.b16 %v1241
        %v3725 = vunpack.c.l.b16 %v1242
        %v3726 = vunpack.c.h.b16 %v1242
        %v3727 = vunpack.c.l.b16 %v1243
        %v3728 = vunpack.c.h.b16 %v1243
        %v3729 = vunpack.c.l.b16 %v1244
        %v3730 = vunpack.c.h.b16 %v1244
        %v3731 = vunpack.c.l.b16 %v1245
        %v3732 = vunpack.c.h.b16 %v1245
        %v3733 = vunpack.c.l.b16 %v1246
        %v3734 = vunpack.c.h.b16 %v1246
        %v3735 = vunpack.c.l.b16 %v1247
        %v3736 = vunpack.c.h.b16 %v1247
        %v3737 = vunpack.c.l.b16 %v1248
        %v3738 = vunpack.c.h.b16 %v1248
        %v3739 = vunpack.c.l.b16 %v1249
        %v3740 = vunpack.c.h.b16 %v1249
        %v3741 = vunpack.c.l.b16 %v1250
        %v3742 = vunpack.c.h.b16 %v1250
        %v3743 = vunpack.c.l.b16 %v1251
        %v3744 = vunpack.c.h.b16 %v1251
        %v3745 = vunpack.c.l.b16 %v1252
        %v3746 = vunpack.c.h.b16 %v1252
        %v3747 = vunpack.c.l.b16 %v1253
        %v3748 = vunpack.c.h.b16 %v1253
        %v3749 = vunpack.c.l.b16 %v1254
        %v3750 = vunpack.c.h.b16 %v1254
        %v3751 = vpack.c.b16 %v2221, %v2215
        %v3752 = vpack.c.b16 %v2222, %v2216
        %v3753 = vpack.c.b16 %v2223, %v2217
        %v3754 = vpack.c.b16 %v2224, %v2218
        %v3755 = vpack.c.b16 %v2225, %v2219
        %v3756 = vpack.c.b16 %v2226, %v2220
        %v3757 = vpack.c.b16 %v2233, %v2227
        %v3758 = vpack.c.b16 %v2234, %v2228
        %v3759 = vpack.c.b16 %v2235, %v2229
        %v3760 = vpack.c.b16 %v2236, %v2230
        %v3761 = vpack.c.b16 %v2237, %v2231
        %v3762 = vpack.c.b16 %v2238, %v2232
        %v3763 = vpack.c.b16 %v2245, %v2239
        %v3764 = vpack.c.b16 %v2246, %v2240
        %v3765 = vpack.c.b16 %v2247, %v2241
        %v3766 = vpack.c.b16 %v2248, %v2242
        %v3767 = vpack.c.b16 %v2249, %v2243
        %v3768 = vpack.c.b16 %v2250, %v2244
        %v3769 = vpack.c.b16 %v2257, %v2251
        %v3770 = vpack.c.b16 %v2258, %v2252
        %v3771 = vpack.c.b16 %v2259, %v2253
        %v3772 = vpack.c.b16 %v2260, %v2254
        %v3773 = vpack.c.b16 %v2261, %v2255
        %v3774 = vpack.c.b16 %v2262, %v2256
        %v3775 = vpack.c.b16 %v2269, %v2263
        %v3776 = vpack.c.b16 %v2270, %v2264
        %v3777 = vpack.c.b16 %v2271, %v2265
        %v3778 = vpack.c.b16 %v2272, %v2266
        %v3779 = vpack.c.b16 %v2273, %v2267
        %v3780 = vpack.c.b16 %v2274, %v2268
        %v3781 = vpack.c.b16 %v2281, %v2275
        %v3782 = vpack.c.b16 %v2282, %v2276
        %v3783 = vpack.c.b16 %v2283, %v2277
        %v3784 = vpack.c.b16 %v2284, %v2278
        %v3785 = vpack.c.b16 %v2285, %v2279
        %v3786 = vpack.c.b16 %v2286, %v2280
        %v3787 = vpack.c.b16 %v2293, %v2287
        %v3788 = vpack.c.b16 %v2294, %v2288
        %v3789 = vpack.c.b16 %v2295, %v2289
        %v3790 = vpack.c.b16 %v2296, %v2290
        %v3791 = vpack.c.b16 %v2297, %v2291
        %v3792 = vpack.c.b16 %v2298, %v2292
        %v3793 = vpack.c.b16 %v2305, %v2299
        %v3794 = vpack.c.b16 %v2306, %v2300
        %v3795 = vpack.c.b16 %v2307, %v2301
        %v3796 = vpack.c.b16 %v2308, %v2302
        %v3797 = vpack.c.b16 %v2309, %v2303
        %v3798 = vpack.c.b16 %v2310, %v2304
        %v3799 = vpack.c.b16 %v2317, %v2311
        %v3800 = vpack.c.b16 %v2318, %v2312
        %v3801 = vpack.c.b16 %v2319, %v2313
        %v3802 = vpack.c.b16 %v2320, %v2314
        %v3803 = vpack.c.b16 %v2321, %v2315
        %v3804 = vpack.c.b16 %v2322, %v2316
        %v3805 = vpack.c.b16 %v2329, %v2323
        %v3806 = vpack.c.b16 %v2330, %v2324
        %v3807 = vpack.c.b16 %v2331, %v2325
        %v3808 = vpack.c.b16 %v2332, %v2326
        %v3809 = vpack.c.b16 %v2333, %v2327
        %v3810 = vpack.c.b16 %v2334, %v2328
        %v3811 = vpack.c.b16 %v2341, %v2335
        %v3812 = vpack.c.b16 %v2342, %v2336
        %v3813 = vpack.c.b16 %v2343, %v2337
        %v3814 = vpack.c.b16 %v2344, %v2338
        %v3815 = vpack.c.b16 %v2345, %v2339
        %v3816 = vpack.c.b16 %v2346, %v2340
        %v3817 = vpack.c.b16 %v2353, %v2347
        %v3818 = vpack.c.b16 %v2354, %v2348
        %v3819 = vpack.c.b16 %v2355, %v2349
        %v3820 = vpack.c.b16 %v2356, %v2350
        %v3821 = vpack.c.b16 %v2357, %v2351
        %v3822 = vpack.c.b16 %v2358, %v2352
        %v3823 = vpack.c.b16 %v2365, %v2359
        %v3824 = vpack.c.b16 %v2366, %v2360
        %v3825 = vpack.c.b16 %v2367, %v2361
        %v3826 = vpack.c.b16 %v2368, %v2362
        %v3827 = vpack.c.b16 %v2369, %v2363
        %v3828 = vpack.c.b16 %v2370, %v2364
        %v3829 = vpack.c.b16 %v2377, %v2371
        %v3830 = vpack.c.b16 %v2378, %v2372
        %v3831 = vpack.c.b16 %v2379, %v2373
        %v3832 = vpack.c.b16 %v2380, %v2374
        %v3833 = vpack.c.b16 %v2381, %v2375
        %v3834 = vpack.c.b16 %v2382, %v2376
        %v3835 = vpack.c.b16 %v2389, %v2383
        %v3836 = vpack.c.b16 %v2390, %v2384
        %v3837 = vpack.c.b16 %v2391, %v2385
        %v3838 = vpack.c.b16 %v2392, %v2386
        %v3839 = vpack.c.b16 %v2393, %v2387
        %v3840 = vpack.c.b16 %v2394, %v2388
        %v3841 = vpack.c.b16 %v2401, %v2395
        %v3842 = vpack.c.b16 %v2402, %v2396
        %v3843 = vpack.c.b16 %v2403, %v2397
        %v3844 = vpack.c.b16 %v2404, %v2398
        %v3845 = vpack.c.b16 %v2405, %v2399
        %v3846 = vpack.c.b16 %v2406, %v2400
        %v3847 = vpack.c.b16 %v2413, %v2407
        %v3848 = vpack.c.b16 %v2414, %v2408
        %v3849 = vpack.c.b16 %v2415, %v2409
        %v3850 = vpack.c.b16 %v2416, %v2410
        %v3851 = vpack.c.b16 %v2417, %v2411
        %v3852 = vpack.c.b16 %v2418, %v2412
        %v3853 = vpack.c.b16 %v2425, %v2419
        %v3854 = vpack.c.b16 %v2426, %v2420
        %v3855 = vpack.c.b16 %v2427, %v2421
        %v3856 = vpack.c.b16 %v2428, %v2422
        %v3857 = vpack.c.b16 %v2429, %v2423
        %v3858 = vpack.c.b16 %v2430, %v2424
        %v3859 = vpack.c.b16 %v2437, %v2431
        %v3860 = vpack.c.b16 %v2438, %v2432
        %v3861 = vpack.c.b16 %v2439, %v2433
        %v3862 = vpack.c.b16 %v2440, %v2434
        %v3863 = vpack.c.b16 %v2441, %v2435
        %v3864 = vpack.c.b16 %v2442, %v2436
        %v3865 = vpack.c.b16 %v2449, %v2443
        %v3866 = vpack.c.b16 %v2450, %v2444
        %v3867 = vpack.c.b16 %v2451, %v2445
        %v3868 = vpack.c.b16 %v2452, %v2446
        %v3869 = vpack.c.b16 %v2453, %v2447
        %v3870 = vpack.c.b16 %v2454, %v2448
        %v3871 = vpack.c.b16 %v2461, %v2455
        %v3872 = vpack.c.b16 %v2462, %v2456
        %v3873 = vpack.c.b16 %v2463, %v2457
        %v3874 = vpack.c.b16 %v2464, %v2458
        %v3875 = vpack.c.b16 %v2465, %v2459
        %v3876 = vpack.c.b16 %v2466, %v2460
        %v3877 = vpack.c.b16 %v2473, %v2467
        %v3878 = vpack.c.b16 %v2474, %v2468
        %v3879 = vpack.c.b16 %v2475, %v2469
        %v3880 = vpack.c.b16 %v2476, %v2470
        %v3881 = vpack.c.b16 %v2477, %v2471
        %v3882 = vpack.c.b16 %v2478, %v2472
        %v3883 = vpack.c.b16 %v2485, %v2479
        %v3884 = vpack.c.b16 %v2486, %v2480
        %v3885 = vpack.c.b16 %v2487, %v2481
        %v3886 = vpack.c.b16 %v2488, %v2482
        %v3887 = vpack.c.b16 %v2489, %v2483
        %v3888 = vpack.c.b16 %v2490, %v2484
        %v3889 = vpack.c.b16 %v2497, %v2491
        %v3890 = vpack.c.b16 %v2498, %v2492
        %v3891 = vpack.c.b16 %v2499, %v2493
        %v3892 = vpack.c.b16 %v2500, %v2494
        %v3893 = vpack.c.b16 %v2501, %v2495
        %v3894 = vpack.c.b16 %v2502, %v2496
        %v3895 = vpack.c.b16 %v2509, %v2503
        %v3896 = vpack.c.b16 %v2510, %v2504
        %v3897 = vpack.c.b16 %v2511, %v2505
        %v3898 = vpack.c.b16 %v2512, %v2506
        %v3899 = vpack.c.b16 %v2513, %v2507
        %v3900 = vpack.c.b16 %v2514, %v2508
        %v3901 = vpack.c.b16 %v2521, %v2515
        %v3902 = vpack.c.b16 %v2522, %v2516
        %v3903 = vpack.c.b16 %v2523, %v2517
        %v3904 = vpack.c.b16 %v2524, %v2518
        %v3905 = vpack.c.b16 %v2525, %v2519
        %v3906 = vpack.c.b16 %v2526, %v2520
        %v3907 = vpack.c.b16 %v2533, %v2527
        %v3908 = vpack.c.b16 %v2534, %v2528
        %v3909 = vpack.c.b16 %v2535, %v2529
        %v3910 = vpack.c.b16 %v2536, %v2530
        %v3911 = vpack.c.b16 %v2537, %v2531
        %v3912 = vpack.c.b16 %v2538, %v2532
        %v3913 = vpack.c.b16 %v2545, %v2539
        %v3914 = vpack.c.b16 %v2546, %v2540
        %v3915 = vpack.c.b16 %v2547, %v2541
        %v3916 = vpack.c.b16 %v2548, %v2542
        %v3917 = vpack.c.b16 %v2549, %v2543
        %v3918 = vpack.c.b16 %v2550, %v2544
        %v3919 = vpack.c.b16 %v2557, %v2551
        %v3920 = vpack.c.b16 %v2558, %v2552
        %v3921 = vpack.c.b16 %v2559, %v2553
        %v3922 = vpack.c.b16 %v2560, %v2554
        %v3923 = vpack.c.b16 %v2561, %v2555
        %v3924 = vpack.c.b16 %v2562, %v2556
        %v3925 = vpack.c.b16 %v2569, %v2563
        %v3926 = vpack.c.b16 %v2570, %v2564
        %v3927 = vpack.c.b16 %v2571, %v2565
        %v3928 = vpack.c.b16 %v2572, %v2566
        %v3929 = vpack.c.b16 %v2573, %v2567
        %v3930 = vpack.c.b16 %v2574, %v2568
        %v3931 = vpack.c.b16 %v2581, %v2575
        %v3932 = vpack.c.b16 %v2582, %v2576
        %v3933 = vpack.c.b16 %v2583, %v2577
        %v3934 = vpack.c.b16 %v2584, %v2578
        %v3935 = vpack.c.b16 %v2585, %v2579
        %v3936 = vpack.c.b16 %v2586, %v2580
        %v3937 = vpack.c.b16 %v2593, %v2587
        %v3938 = vpack.c.b16 %v2594, %v2588
        %v3939 = vpack.c.b16 %v2595, %v2589
        %v3940 = vpack.c.b16 %v2596, %v2590
        %v3941 = vpack.c.b16 %v2597, %v2591
        %v3942 = vpack.c.b16 %v2598, %v2592
        %v3943 = vpack.c.b16 %v2605, %v2599
        %v3944 = vpack.c.b16 %v2606, %v2600
        %v3945 = vpack.c.b16 %v2607, %v2601
        %v3946 = vpack.c.b16 %v2608, %v2602
        %v3947 = vpack.c.b16 %v2609, %v2603
        %v3948 = vpack.c.b16 %v2610, %v2604
        %v3949 = vpack.c.b16 %v2617, %v2611
        %v3950 = vpack.c.b16 %v2618, %v2612
        %v3951 = vpack.c.b16 %v2619, %v2613
        %v3952 = vpack.c.b16 %v2620, %v2614
        %v3953 = vpack.c.b16 %v2621, %v2615
        %v3954 = vpack.c.b16 %v2622, %v2616
        %v3955 = vpack.c.b16 %v2629, %v2623
        %v3956 = vpack.c.b16 %v2630, %v2624
        %v3957 = vpack.c.b16 %v2631, %v2625
        %v3958 = vpack.c.b16 %v2632, %v2626
        %v3959 = vpack.c.b16 %v2633, %v2627
        %v3960 = vpack.c.b16 %v2634, %v2628
        %v3961 = vpack.c.b16 %v2641, %v2635
        %v3962 = vpack.c.b16 %v2642, %v2636
        %v3963 = vpack.c.b16 %v2643, %v2637
        %v3964 = vpack.c.b16 %v2644, %v2638
        %v3965 = vpack.c.b16 %v2645, %v2639
        %v3966 = vpack.c.b16 %v2646, %v2640
        %v3967 = vpack.c.b16 %v2653, %v2647
        %v3968 = vpack.c.b16 %v2654, %v2648
        %v3969 = vpack.c.b16 %v2655, %v2649
        %v3970 = vpack.c.b16 %v2656, %v2650
        %v3971 = vpack.c.b16 %v2657, %v2651
        %v3972 = vpack.c.b16 %v2658, %v2652
        %v3973 = vpack.c.b16 %v2665, %v2659
        %v3974 = vpack.c.b16 %v2666, %v2660
        %v3975 = vpack.c.b16 %v2667, %v2661
        %v3976 = vpack.c.b16 %v2668, %v2662
        %v3977 = vpack.c.b16 %v2669, %v2663
        %v3978 = vpack.c.b16 %v2670, %v2664
        %v3979 = vpack.c.b16 %v2677, %v2671
        %v3980 = vpack.c.b16 %v2678, %v2672
        %v3981 = vpack.c.b16 %v2679, %v2673
        %v3982 = vpack.c.b16 %v2680, %v2674
        %v3983 = vpack.c.b16 %v2681, %v2675
        %v3984 = vpack.c.b16 %v2682, %v2676
        %v3985 = vpack.c.b16 %v2689, %v2683
        %v3986 = vpack.c.b16 %v2690, %v2684
        %v3987 = vpack.c.b16 %v2691, %v2685
        %v3988 = vpack.c.b16 %v2692, %v2686
        %v3989 = vpack.c.b16 %v2693, %v2687
        %v3990 = vpack.c.b16 %v2694, %v2688
        %v3991 = vpack.c.b16 %v2701, %v2695
        %v3992 = vpack.c.b16 %v2702, %v2696
        %v3993 = vpack.c.b16 %v2703, %v2697
        %v3994 = vpack.c.b16 %v2704, %v2698
        %v3995 = vpack.c.b16 %v2705, %v2699
        %v3996 = vpack.c.b16 %v2706, %v2700
        %v3997 = vpack.c.b16 %v2713, %v2707
        %v3998 = vpack.c.b16 %v2714, %v2708
        %v3999 = vpack.c.b16 %v2715, %v2709
        %v4000 = vpack.c.b16 %v2716, %v2710
        %v4001 = vpack.c.b16 %v2717, %v2711
        %v4002 = vpack.c.b16 %v2718, %v2712
        %v4003 = vpack.c.b16 %v2725, %v2719
        %v4004 = vpack.c.b16 %v2726, %v2720
        %v4005 = vpack.c.b16 %v2727, %v2721
        %v4006 = vpack.c.b16 %v2728, %v2722
        %v4007 = vpack.c.b16 %v2729, %v2723
        %v4008 = vpack.c.b16 %v2730, %v2724
        %v4009 = vpack.c.b16 %v2737, %v2731
        %v4010 = vpack.c.b16 %v2738, %v2732
        %v4011 = vpack.c.b16 %v2739, %v2733
        %v4012 = vpack.c.b16 %v2740, %v2734
        %v4013 = vpack.c.b16 %v2741, %v2735
        %v4014 = vpack.c.b16 %v2742, %v2736
        %v4015 = vpack.c.b16 %v2749, %v2743
        %v4016 = vpack.c.b16 %v2750, %v2744
        %v4017 = vpack.c.b16 %v2751, %v2745
        %v4018 = vpack.c.b16 %v2752, %v2746
        %v4019 = vpack.c.b16 %v2753, %v2747
        %v4020 = vpack.c.b16 %v2754, %v2748
        %v4021 = vpack.c.b16 %v2761, %v2755
        %v4022 = vpack.c.b16 %v2762, %v2756
        %v4023 = vpack.c.b16 %v2763, %v2757
        %v4024 = vpack.c.b16 %v2764, %v2758
        %v4025 = vpack.c.b16 %v2765, %v2759
        %v4026 = vpack.c.b16 %v2766, %v2760
        %v4027 = vpack.c.b16 %v2773, %v2767
        %v4028 = vpack.c.b16 %v2774, %v2768
        %v4029 = vpack.c.b16 %v2775, %v2769
        %v4030 = vpack.c.b16 %v2776, %v2770
        %v4031 = vpack.c.b16 %v2777, %v2771
        %v4032 = vpack.c.b16 %v2778, %v2772
        %v4033 = vpack.c.b16 %v2785, %v2779
        %v4034 = vpack.c.b16 %v2786, %v2780
        %v4035 = vpack.c.b16 %v2787, %v2781
        %v4036 = vpack.c.b16 %v2788, %v2782
        %v4037 = vpack.c.b16 %v2789, %v2783
        %v4038 = vpack.c.b16 %v2790, %v2784
        %v4039 = vpack.c.b16 %v2797, %v2791
        %v4040 = vpack.c.b16 %v2798, %v2792
        %v4041 = vpack.c.b16 %v2799, %v2793
        %v4042 = vpack.c.b16 %v2800, %v2794
        %v4043 = vpack.c.b16 %v2801, %v2795
        %v4044 = vpack.c.b16 %v2802, %v2796
        %v4045 = vpack.c.b16 %v2809, %v2803
        %v4046 = vpack.c.b16 %v2810, %v2804
        %v4047 = vpack.c.b16 %v2811, %v2805
        %v4048 = vpack.c.b16 %v2812, %v2806
        %v4049 = vpack.c.b16 %v2813, %v2807
        %v4050 = vpack.c.b16 %v2814, %v2808
        %v4051 = vpack.c.b16 %v2821, %v2815
        %v4052 = vpack.c.b16 %v2822, %v2816
        %v4053 = vpack.c.b16 %v2823, %v2817
        %v4054 = vpack.c.b16 %v2824, %v2818
        %v4055 = vpack.c.b16 %v2825, %v2819
        %v4056 = vpack.c.b16 %v2826, %v2820
        %v4057 = vpack.c.b16 %v2833, %v2827
        %v4058 = vpack.c.b16 %v2834, %v2828
        %v4059 = vpack.c.b16 %v2835, %v2829
        %v4060 = vpack.c.b16 %v2836, %v2830
        %v4061 = vpack.c.b16 %v2837, %v2831
        %v4062 = vpack.c.b16 %v2838, %v2832
        %v4063 = vpack.c.b16 %v2845, %v2839
        %v4064 = vpack.c.b16 %v2846, %v2840
        %v4065 = vpack.c.b16 %v2847, %v2841
        %v4066 = vpack.c.b16 %v2848, %v2842
        %v4067 = vpack.c.b16 %v2849, %v2843
        %v4068 = vpack.c.b16 %v2850, %v2844
        %v4069 = vpack.c.b16 %v2857, %v2851
        %v4070 = vpack.c.b16 %v2858, %v2852
        %v4071 = vpack.c.b16 %v2859, %v2853
        %v4072 = vpack.c.b16 %v2860, %v2854
        %v4073 = vpack.c.b16 %v2861, %v2855
        %v4074 = vpack.c.b16 %v2862, %v2856
        %v4075 = vpack.c.b16 %v2869, %v2863
        %v4076 = vpack.c.b16 %v2870, %v2864
        %v4077 = vpack.c.b16 %v2871, %v2865
        %v4078 = vpack.c.b16 %v2872, %v2866
        %v4079 = vpack.c.b16 %v2873, %v2867
        %v4080 = vpack.c.b16 %v2874, %v2868
        %v4081 = vpack.c.b16 %v2881, %v2875
        %v4082 = vpack.c.b16 %v2882, %v2876
        %v4083 = vpack.c.b16 %v2883, %v2877
        %v4084 = vpack.c.b16 %v2884, %v2878
        %v4085 = vpack.c.b16 %v2885, %v2879
        %v4086 = vpack.c.b16 %v2886, %v2880
        %v4087 = vpack.c.b16 %v2893, %v2887
        %v4088 = vpack.c.b16 %v2894, %v2888
        %v4089 = vpack.c.b16 %v2895, %v2889
        %v4090 = vpack.c.b16 %v2896, %v2890
        %v4091 = vpack.c.b16 %v2897, %v2891
        %v4092 = vpack.c.b16 %v2898, %v2892
        %v4093 = vpack.c.b16 %v2905, %v2899
        %v4094 = vpack.c.b16 %v2906, %v2900
        %v4095 = vpack.c.b16 %v2907, %v2901
        %v4096 = vpack.c.b16 %v2908, %v2902
        %v4097 = vpack.c.b16 %v2909, %v2903
        %v4098 = vpack.c.b16 %v2910, %v2904
        %v4099 = vpack.c.b16 %v2917, %v2911
        %v4100 = vpack.c.b16 %v2918, %v2912
        %v4101 = vpack.c.b16 %v2919, %v2913
        %v4102 = vpack.c.b16 %v2920, %v2914
        %v4103 = vpack.c.b16 %v2921, %v2915
        %v4104 = vpack.c.b16 %v2922, %v2916
        %v4105 = vpack.c.b16 %v2929, %v2923
        %v4106 = vpack.c.b16 %v2930, %v2924
        %v4107 = vpack.c.b16 %v2931, %v2925
        %v4108 = vpack.c.b16 %v2932, %v2926
        %v4109 = vpack.c.b16 %v2933, %v2927
        %v4110 = vpack.c.b16 %v2934, %v2928
        %v4111 = vpack.c.b16 %v2941, %v2935
        %v4112 = vpack.c.b16 %v2942, %v2936
        %v4113 = vpack.c.b16 %v2943, %v2937
        %v4114 = vpack.c.b16 %v2944, %v2938
        %v4115 = vpack.c.b16 %v2945, %v2939
        %v4116 = vpack.c.b16 %v2946, %v2940
        %v4117 = vpack.c.b16 %v2953, %v2947
        %v4118 = vpack.c.b16 %v2954, %v2948
        %v4119 = vpack.c.b16 %v2955, %v2949
        %v4120 = vpack.c.b16 %v2956, %v2950
        %v4121 = vpack.c.b16 %v2957, %v2951
        %v4122 = vpack.c.b16 %v2958, %v2952
        %v4123 = vpack.c.b16 %v2965, %v2959
        %v4124 = vpack.c.b16 %v2966, %v2960
        %v4125 = vpack.c.b16 %v2967, %v2961
        %v4126 = vpack.c.b16 %v2968, %v2962
        %v4127 = vpack.c.b16 %v2969, %v2963
        %v4128 = vpack.c.b16 %v2970, %v2964
        %v4129 = vpack.c.b16 %v2977, %v2971
        %v4130 = vpack.c.b16 %v2978, %v2972
        %v4131 = vpack.c.b16 %v2979, %v2973
        %v4132 = vpack.c.b16 %v2980, %v2974
        %v4133 = vpack.c.b16 %v2981, %v2975
        %v4134 = vpack.c.b16 %v2982, %v2976
        %v4135 = vpack.c.b16 %v2989, %v2983
        %v4136 = vpack.c.b16 %v2990, %v2984
        %v4137 = vpack.c.b16 %v2991, %v2985
        %v4138 = vpack.c.b16 %v2992, %v2986
        %v4139 = vpack.c.b16 %v2993, %v2987
        %v4140 = vpack.c.b16 %v2994, %v2988
        %v4141 = vpack.c.b16 %v3001, %v2995
        %v4142 = vpack.c.b16 %v3002, %v2996
        %v4143 = vpack.c.b16 %v3003, %v2997
        %v4144 = vpack.c.b16 %v3004, %v2998
        %v4145 = vpack.c.b16 %v3005, %v2999
        %v4146 = vpack.c.b16 %v3006, %v3000
        %v4147 = vpack.c.b16 %v3013, %v3007
        %v4148 = vpack.c.b16 %v3014, %v3008
        %v4149 = vpack.c.b16 %v3015, %v3009
        %v4150 = vpack.c.b16 %v3016, %v3010
        %v4151 = vpack.c.b16 %v3017, %v3011
        %v4152 = vpack.c.b16 %v3018, %v3012
        %v4153 = vpack.c.b16 %v3025, %v3019
        %v4154 = vpack.c.b16 %v3026, %v3020
        %v4155 = vpack.c.b16 %v3027, %v3021
        %v4156 = vpack.c.b16 %v3028, %v3022
        %v4157 = vpack.c.b16 %v3029, %v3023
        %v4158 = vpack.c.b16 %v3030, %v3024
        %v4159 = vpack.c.b16 %v3037, %v3031
        %v4160 = vpack.c.b16 %v3038, %v3032
        %v4161 = vpack.c.b16 %v3039, %v3033
        %v4162 = vpack.c.b16 %v3040, %v3034
        %v4163 = vpack.c.b16 %v3041, %v3035
        %v4164 = vpack.c.b16 %v3042, %v3036
        %v4165 = vpack.c.b16 %v3049, %v3043
        %v4166 = vpack.c.b16 %v3050, %v3044
        %v4167 = vpack.c.b16 %v3051, %v3045
        %v4168 = vpack.c.b16 %v3052, %v3046
        %v4169 = vpack.c.b16 %v3053, %v3047
        %v4170 = vpack.c.b16 %v3054, %v3048
        %v4171 = vpack.c.b16 %v3061, %v3055
        %v4172 = vpack.c.b16 %v3062, %v3056
        %v4173 = vpack.c.b16 %v3063, %v3057
        %v4174 = vpack.c.b16 %v3064, %v3058
        %v4175 = vpack.c.b16 %v3065, %v3059
        %v4176 = vpack.c.b16 %v3066, %v3060
        %v4177 = vpack.c.b16 %v3073, %v3067
        %v4178 = vpack.c.b16 %v3074, %v3068
        %v4179 = vpack.c.b16 %v3075, %v3069
        %v4180 = vpack.c.b16 %v3076, %v3070
        %v4181 = vpack.c.b16 %v3077, %v3071
        %v4182 = vpack.c.b16 %v3078, %v3072
        %v4183 = vpack.c.b16 %v3085, %v3079
        %v4184 = vpack.c.b16 %v3086, %v3080
        %v4185 = vpack.c.b16 %v3087, %v3081
        %v4186 = vpack.c.b16 %v3088, %v3082
        %v4187 = vpack.c.b16 %v3089, %v3083
        %v4188 = vpack.c.b16 %v3090, %v3084
        %v4189 = vpack.c.b16 %v3097, %v3091
        %v4190 = vpack.c.b16 %v3098, %v3092
        %v4191 = vpack.c.b16 %v3099, %v3093
        %v4192 = vpack.c.b16 %v3100, %v3094
        %v4193 = vpack.c.b16 %v3101, %v3095
        %v4194 = vpack.c.b16 %v3102, %v3096
        %v4195 = vpack.c.b16 %v3109, %v3103
        %v4196 = vpack.c.b16 %v3110, %v3104
        %v4197 = vpack.c.b16 %v3111, %v3105
        %v4198 = vpack.c.b16 %v3112, %v3106
        %v4199 = vpack.c.b16 %v3113, %v3107
        %v4200 = vpack.c.b16 %v3114, %v3108
        %v4201 = vpack.c.b16 %v3121, %v3115
        %v4202 = vpack.c.b16 %v3122, %v3116
        %v4203 = vpack.c.b16 %v3123, %v3117
        %v4204 = vpack.c.b16 %v3124, %v3118
        %v4205 = vpack.c.b16 %v3125, %v3119
        %v4206 = vpack.c.b16 %v3126, %v3120
        %v4207 = vpack.c.b16 %v3133, %v3127
        %v4208 = vpack.c.b16 %v3134, %v3128
        %v4209 = vpack.c.b16 %v3135, %v3129
        %v4210 = vpack.c.b16 %v3136, %v3130
        %v4211 = vpack.c.b16 %v3137, %v3131
        %v4212 = vpack.c.b16 %v3138, %v3132
        %v4213 = vpack.c.b16 %v3145, %v3139
        %v4214 = vpack.c.b16 %v3146, %v3140
        %v4215 = vpack.c.b16 %v3147, %v3141
        %v4216 = vpack.c.b16 %v3148, %v3142
        %v4217 = vpack.c.b16 %v3149, %v3143
        %v4218 = vpack.c.b16 %v3150, %v3144
        %v4219 = vpack.c.b16 %v3157, %v3151
        %v4220 = vpack.c.b16 %v3158, %v3152
        %v4221 = vpack.c.b16 %v3159, %v3153
        %v4222 = vpack.c.b16 %v3160, %v3154
        %v4223 = vpack.c.b16 %v3161, %v3155
        %v4224 = vpack.c.b16 %v3162, %v3156
        %v4225 = vpack.c.b16 %v3169, %v3163
        %v4226 = vpack.c.b16 %v3170, %v3164
        %v4227 = vpack.c.b16 %v3171, %v3165
        %v4228 = vpack.c.b16 %v3172, %v3166
        %v4229 = vpack.c.b16 %v3173, %v3167
        %v4230 = vpack.c.b16 %v3174, %v3168
        %v4231 = vpack.c.b16 %v3181, %v3175
        %v4232 = vpack.c.b16 %v3182, %v3176
        %v4233 = vpack.c.b16 %v3183, %v3177
        %v4234 = vpack.c.b16 %v3184, %v3178
        %v4235 = vpack.c.b16 %v3185, %v3179
        %v4236 = vpack.c.b16 %v3186, %v3180
        %v4237 = vpack.c.b16 %v3193, %v3187
        %v4238 = vpack.c.b16 %v3194, %v3188
        %v4239 = vpack.c.b16 %v3195, %v3189
        %v4240 = vpack.c.b16 %v3196, %v3190
        %v4241 = vpack.c.b16 %v3197, %v3191
        %v4242 = vpack.c.b16 %v3198, %v3192
        %v4243 = vpack.c.b16 %v3205, %v3199
        %v4244 = vpack.c.b16 %v3206, %v3200
        %v4245 = vpack.c.b16 %v3207, %v3201
        %v4246 = vpack.c.b16 %v3208, %v3202
        %v4247 = vpack.c.b16 %v3209, %v3203
        %v4248 = vpack.c.b16 %v3210, %v3204
        %v4249 = vpack.c.b16 %v3217, %v3211
        %v4250 = vpack.c.b16 %v3218, %v3212
        %v4251 = vpack.c.b16 %v3219, %v3213
        %v4252 = vpack.c.b16 %v3220, %v3214
        %v4253 = vpack.c.b16 %v3221, %v3215
        %v4254 = vpack.c.b16 %v3222, %v3216
        %v4255 = vpack.c.b16 %v3229, %v3223
        %v4256 = vpack.c.b16 %v3230, %v3224
        %v4257 = vpack.c.b16 %v3231, %v3225
        %v4258 = vpack.c.b16 %v3232, %v3226
        %v4259 = vpack.c.b16 %v3233, %v3227
        %v4260 = vpack.c.b16 %v3234, %v3228
        %v4261 = vpack.c.b16 %v3241, %v3235
        %v4262 = vpack.c.b16 %v3242, %v3236
        %v4263 = vpack.c.b16 %v3243, %v3237
        %v4264 = vpack.c.b16 %v3244, %v3238
        %v4265 = vpack.c.b16 %v3245, %v3239
        %v4266 = vpack.c.b16 %v3246, %v3240
        %v4267 = vpack.c.b16 %v3253, %v3247
        %v4268 = vpack.c.b16 %v3254, %v3248
        %v4269 = vpack.c.b16 %v3255, %v3249
        %v4270 = vpack.c.b16 %v3256, %v3250
        %v4271 = vpack.c.b16 %v3257, %v3251
        %v4272 = vpack.c.b16 %v3258, %v3252
        %v4273 = vpack.c.b16 %v3265, %v3259
        %v4274 = vpack.c.b16 %v3266, %v3260
        %v4275 = vpack.c.b16 %v3267, %v3261
        %v4276 = vpack.c.b16 %v3268, %v3262
        %v4277 = vpack.c.b16 %v3269, %v3263
        %v4278 = vpack.c.b16 %v3270, %v3264
        %v4279 = vpack.c.b16 %v3277, %v3271
        %v4280 = vpack.c.b16 %v3278, %v3272
        %v4281 = vpack.c.b16 %v3279, %v3273
        %v4282 = vpack.c.b16 %v3280, %v3274
        %v4283 = vpack.c.b16 %v3281, %v3275
        %v4284 = vpack.c.b16 %v3282, %v3276
        %v4285 = vpack.c.b16 %v3289, %v3283
        %v4286 = vpack.c.b16 %v3290, %v3284
        %v4287 = vpack.c.b16 %v3291, %v3285
        %v4288 = vpack.c.b16 %v3292, %v3286
        %v4289 = vpack.c.b16 %v3293, %v3287
        %v4290 = vpack.c.b16 %v3294, %v3288
        %v4291 = vpack.c.b16 %v3301, %v3295
        %v4292 = vpack.c.b16 %v3302, %v3296
        %v4293 = vpack.c.b16 %v3303, %v3297
        %v4294 = vpack.c.b16 %v3304, %v3298
        %v4295 = vpack.c.b16 %v3305, %v3299
        %v4296 = vpack.c.b16 %v3306, %v3300
        %v4297 = vpack.c.b16 %v3313, %v3307
        %v4298 = vpack.c.b16 %v3314, %v3308
        %v4299 = vpack.c.b16 %v3315, %v3309
        %v4300 = vpack.c.b16 %v3316, %v3310
        %v4301 = vpack.c.b16 %v3317, %v3311
        %v4302 = vpack.c.b16 %v3318, %v3312
        %v4303 = vpack.c.b16 %v3325, %v3319
        %v4304 = vpack.c.b16 %v3326, %v3320
        %v4305 = vpack.c.b16 %v3327, %v3321
        %v4306 = vpack.c.b16 %v3328, %v3322
        %v4307 = vpack.c.b16 %v3329, %v3323
        %v4308 = vpack.c.b16 %v3330, %v3324
        %v4309 = vpack.c.b16 %v3337, %v3331
        %v4310 = vpack.c.b16 %v3338, %v3332
        %v4311 = vpack.c.b16 %v3339, %v3333
        %v4312 = vpack.c.b16 %v3340, %v3334
        %v4313 = vpack.c.b16 %v3341, %v3335
        %v4314 = vpack.c.b16 %v3342, %v3336
        %v4315 = vpack.c.b16 %v3349, %v3343
        %v4316 = vpack.c.b16 %v3350, %v3344
        %v4317 = vpack.c.b16 %v3351, %v3345
        %v4318 = vpack.c.b16 %v3352, %v3346
        %v4319 = vpack.c.b16 %v3353, %v3347
        %v4320 = vpack.c.b16 %v3354, %v3348
        %v4321 = vpack.c.b16 %v3361, %v3355
        %v4322 = vpack.c.b16 %v3362, %v3356
        %v4323 = vpack.c.b16 %v3363, %v3357
        %v4324 = vpack.c.b16 %v3364, %v3358
        %v4325 = vpack.c.b16 %v3365, %v3359
        %v4326 = vpack.c.b16 %v3366, %v3360
        %v4327 = vpack.c.b16 %v3373, %v3367
        %v4328 = vpack.c.b16 %v3374, %v3368
        %v4329 = vpack.c.b16 %v3375, %v3369
        %v4330 = vpack.c.b16 %v3376, %v3370
        %v4331 = vpack.c.b16 %v3377, %v3371
        %v4332 = vpack.c.b16 %v3378, %v3372
        %v4333 = vpack.c.b16 %v3385, %v3379
        %v4334 = vpack.c.b16 %v3386, %v3380
        %v4335 = vpack.c.b16 %v3387, %v3381
        %v4336 = vpack.c.b16 %v3388, %v3382
        %v4337 = vpack.c.b16 %v3389, %v3383
        %v4338 = vpack.c.b16 %v3390, %v3384
        %v4339 = vpack.c.b16 %v3397, %v3391
        %v4340 = vpack.c.b16 %v3398, %v3392
        %v4341 = vpack.c.b16 %v3399, %v3393
        %v4342 = vpack.c.b16 %v3400, %v3394
        %v4343 = vpack.c.b16 %v3401, %v3395
        %v4344 = vpack.c.b16 %v3402, %v3396
        %v4345 = vpack.c.b16 %v3409, %v3403
        %v4346 = vpack.c.b16 %v3410, %v3404
        %v4347 = vpack.c.b16 %v3411, %v3405
        %v4348 = vpack.c.b16 %v3412, %v3406
        %v4349 = vpack.c.b16 %v3413, %v3407
        %v4350 = vpack.c.b16 %v3414, %v3408
        %v4351 = vpack.c.b16 %v3421, %v3415
        %v4352 = vpack.c.b16 %v3422, %v3416
        %v4353 = vpack.c.b16 %v3423, %v3417
        %v4354 = vpack.c.b16 %v3424, %v3418
        %v4355 = vpack.c.b16 %v3425, %v3419
        %v4356 = vpack.c.b16 %v3426, %v3420
        %v4357 = vpack.c.b16 %v3433, %v3427
        %v4358 = vpack.c.b16 %v3434, %v3428
        %v4359 = vpack.c.b16 %v3435, %v3429
        %v4360 = vpack.c.b16 %v3436, %v3430
        %v4361 = vpack.c.b16 %v3437, %v3431
        %v4362 = vpack.c.b16 %v3438, %v3432
        %v4363 = vpack.c.b16 %v3445, %v3439
        %v4364 = vpack.c.b16 %v3446, %v3440
        %v4365 = vpack.c.b16 %v3447, %v3441
        %v4366 = vpack.c.b16 %v3448, %v3442
        %v4367 = vpack.c.b16 %v3449, %v3443
        %v4368 = vpack.c.b16 %v3450, %v3444
        %v4369 = vpack.c.b16 %v3457, %v3451
        %v4370 = vpack.c.b16 %v3458, %v3452
        %v4371 = vpack.c.b16 %v3459, %v3453
        %v4372 = vpack.c.b16 %v3460, %v3454
        %v4373 = vpack.c.b16 %v3461, %v3455
        %v4374 = vpack.c.b16 %v3462, %v3456
        %v4375 = vpack.c.b16 %v3469, %v3463
        %v4376 = vpack.c.b16 %v3470, %v3464
        %v4377 = vpack.c.b16 %v3471, %v3465
        %v4378 = vpack.c.b16 %v3472, %v3466
        %v4379 = vpack.c.b16 %v3473, %v3467
        %v4380 = vpack.c.b16 %v3474, %v3468
        %v4381 = vpack.c.b16 %v3481, %v3475
        %v4382 = vpack.c.b16 %v3482, %v3476
        %v4383 = vpack.c.b16 %v3483, %v3477
        %v4384 = vpack.c.b16 %v3484, %v3478
        %v4385 = vpack.c.b16 %v3485, %v3479
        %v4386 = vpack.c.b16 %v3486, %v3480
        %v4387 = vpack.c.b16 %v3493, %v3487
        %v4388 = vpack.c.b16 %v3494, %v3488
        %v4389 = vpack.c.b16 %v3495, %v3489
        %v4390 = vpack.c.b16 %v3496, %v3490
        %v4391 = vpack.c.b16 %v3497, %v3491
        %v4392 = vpack.c.b16 %v3498, %v3492
        %v4393 = vpack.c.b16 %v3505, %v3499
        %v4394 = vpack.c.b16 %v3506, %v3500
        %v4395 = vpack.c.b16 %v3507, %v3501
        %v4396 = vpack.c.b16 %v3508, %v3502
        %v4397 = vpack.c.b16 %v3509, %v3503
        %v4398 = vpack.c.b16 %v3510, %v3504
        %v4399 = vpack.c.b16 %v3517, %v3511
        %v4400 = vpack.c.b16 %v3518, %v3512
        %v4401 = vpack.c.b16 %v3519, %v3513
        %v4402 = vpack.c.b16 %v3520, %v3514
        %v4403 = vpack.c.b16 %v3521, %v3515
        %v4404 = vpack.c.b16 %v3522, %v3516
        %v4405 = vpack.c.b16 %v3529, %v3523
        %v4406 = vpack.c.b16 %v3530, %v3524
        %v4407 = vpack.c.b16 %v3531, %v3525
        %v4408 = vpack.c.b16 %v3532, %v3526
        %v4409 = vpack.c.b16 %v3533, %v3527
        %v4410 = vpack.c.b16 %v3534, %v3528
        %v4411 = vpack.c.b16 %v3541, %v3535
        %v4412 = vpack.c.b16 %v3542, %v3536
        %v4413 = vpack.c.b16 %v3543, %v3537
        %v4414 = vpack.c.b16 %v3544, %v3538
        %v4415 = vpack.c.b16 %v3545, %v3539
        %v4416 = vpack.c.b16 %v3546, %v3540
        %v4417 = vpack.c.b16 %v3553, %v3547
        %v4418 = vpack.c.b16 %v3554, %v3548
        %v4419 = vpack.c.b16 %v3555, %v3549
        %v4420 = vpack.c.b16 %v3556, %v3550
        %v4421 = vpack.c.b16 %v3557, %v3551
        %v4422 = vpack.c.b16 %v3558, %v3552
        %v4423 = vpack.c.b16 %v3565, %v3559
        %v4424 = vpack.c.b16 %v3566, %v3560
        %v4425 = vpack.c.b16 %v3567, %v3561
        %v4426 = vpack.c.b16 %v3568, %v3562
        %v4427 = vpack.c.b16 %v3569, %v3563
        %v4428 = vpack.c.b16 %v3570, %v3564
        %v4429 = vpack.c.b16 %v3577, %v3571
        %v4430 = vpack.c.b16 %v3578, %v3572
        %v4431 = vpack.c.b16 %v3579, %v3573
        %v4432 = vpack.c.b16 %v3580, %v3574
        %v4433 = vpack.c.b16 %v3581, %v3575
        %v4434 = vpack.c.b16 %v3582, %v3576
        %v4435 = vpack.c.b16 %v3589, %v3583
        %v4436 = vpack.c.b16 %v3590, %v3584
        %v4437 = vpack.c.b16 %v3591, %v3585
        %v4438 = vpack.c.b16 %v3592, %v3586
        %v4439 = vpack.c.b16 %v3593, %v3587
        %v4440 = vpack.c.b16 %v3594, %v3588
        %v4441 = vpack.c.b16 %v3601, %v3595
        %v4442 = vpack.c.b16 %v3602, %v3596
        %v4443 = vpack.c.b16 %v3603, %v3597
        %v4444 = vpack.c.b16 %v3604, %v3598
        %v4445 = vpack.c.b16 %v3605, %v3599
        %v4446 = vpack.c.b16 %v3606, %v3600
        %v4447 = vpack.c.b16 %v3613, %v3607
        %v4448 = vpack.c.b16 %v3614, %v3608
        %v4449 = vpack.c.b16 %v3615, %v3609
        %v4450 = vpack.c.b16 %v3616, %v3610
        %v4451 = vpack.c.b16 %v3617, %v3611
        %v4452 = vpack.c.b16 %v3618, %v3612
        %v4453 = vpack.c.b16 %v3625, %v3619
        %v4454 = vpack.c.b16 %v3626, %v3620
        %v4455 = vpack.c.b16 %v3627, %v3621
        %v4456 = vpack.c.b16 %v3628, %v3622
        %v4457 = vpack.c.b16 %v3629, %v3623
        %v4458 = vpack.c.b16 %v3630, %v3624
        %v4459 = vpack.c.b16 %v3637, %v3631
        %v4460 = vpack.c.b16 %v3638, %v3632
        %v4461 = vpack.c.b16 %v3639, %v3633
        %v4462 = vpack.c.b16 %v3640, %v3634
        %v4463 = vpack.c.b16 %v3641, %v3635
        %v4464 = vpack.c.b16 %v3642, %v3636
        %v4465 = vpack.c.b16 %v3649, %v3643
        %v4466 = vpack.c.b16 %v3650, %v3644
        %v4467 = vpack.c.b16 %v3651, %v3645
        %v4468 = vpack.c.b16 %v3652, %v3646
        %v4469 = vpack.c.b16 %v3653, %v3647
        %v4470 = vpack.c.b16 %v3654, %v3648
        %v4471 = vpack.c.b16 %v3661, %v3655
        %v4472 = vpack.c.b16 %v3662, %v3656
        %v4473 = vpack.c.b16 %v3663, %v3657
        %v4474 = vpack.c.b16 %v3664, %v3658
        %v4475 = vpack.c.b16 %v3665, %v3659
        %v4476 = vpack.c.b16 %v3666, %v3660
        %v4477 = vpack.c.b16 %v3673, %v3667
        %v4478 = vpack.c.b16 %v3674, %v3668
        %v4479 = vpack.c.b16 %v3675, %v3669
        %v4480 = vpack.c.b16 %v3676, %v3670
        %v4481 = vpack.c.b16 %v3677, %v3671
        %v4482 = vpack.c.b16 %v3678, %v3672
        %v4483 = vpack.c.b16 %v3685, %v3679
        %v4484 = vpack.c.b16 %v3686, %v3680
        %v4485 = vpack.c.b16 %v3687, %v3681
        %v4486 = vpack.c.b16 %v3688, %v3682
        %v4487 = vpack.c.b16 %v3689, %v3683
        %v4488 = vpack.c.b16 %v3690, %v3684
        %v4489 = vpack.c.b16 %v3697, %v3691
        %v4490 = vpack.c.b16 %v3698, %v3692
        %v4491 = vpack.c.b16 %v3699, %v3693
        %v4492 = vpack.c.b16 %v3700, %v3694
        %v4493 = vpack.c.b16 %v3701, %v3695
        %v4494 = vpack.c.b16 %v3702, %v3696
        %v4495 = vpack.c.b16 %v3709, %v3703
        %v4496 = vpack.c.b16 %v3710, %v3704
        %v4497 = vpack.c.b16 %v3711, %v3705
        %v4498 = vpack.c.b16 %v3712, %v3706
        %v4499 = vpack.c.b16 %v3713, %v3707
        %v4500 = vpack.c.b16 %v3714, %v3708
        %v4501 = vpack.c.b16 %v3721, %v3715
        %v4502 = vpack.c.b16 %v3722, %v3716
        %v4503 = vpack.c.b16 %v3723, %v3717
        %v4504 = vpack.c.b16 %v3724, %v3718
        %v4505 = vpack.c.b16 %v3725, %v3719
        %v4506 = vpack.c.b16 %v3726, %v3720
        %v4507 = vpack.c.b16 %v3733, %v3727
        %v4508 = vpack.c.b16 %v3734, %v3728
        %v4509 = vpack.c.b16 %v3735, %v3729
        %v4510 = vpack.c.b16 %v3736, %v3730
        %v4511 = vpack.c.b16 %v3737, %v3731
        %v4512 = vpack.c.b16 %v3738, %v3732
        %v4513 = vpack.c.b16 %v3745, %v3739
        %v4514 = vpack.c.b16 %v3746, %v3740
        %v4515 = vpack.c.b16 %v3747, %v3741
        %v4516 = vpack.c.b16 %v3748, %v3742
        %v4517 = vpack.c.b16 %v3749, %v3743
        %v4518 = vpack.c.b16 %v3750, %v3744
        %5287 = vmatprep.subr.bf16.mxu0 %v3752
        %5288 = vmatpush1.bf16.msra.mxu0 %v3751
        %5289 = vmatprep.subr.bf16.mxu0 %v3758
        %5290 = vmatpush1.bf16.msra.mxu0 %v3757
        %5291 = vmatprep.subr.bf16.mxu0 %v3764
        %5292 = vmatpush1.bf16.msra.mxu0 %v3763
        %5293 = vmatprep.subr.bf16.mxu0 %v3770
        %5294 = vmatpush1.bf16.msra.mxu0 %v3769
        %5295 = vmatprep.subr.bf16.mxu0 %v3776
        %5296 = vmatpush1.bf16.msra.mxu0 %v3775
        %5297 = vmatprep.subr.bf16.mxu0 %v3782
        %5298 = vmatpush1.bf16.msra.mxu0 %v3781
        %5299 = vmatprep.subr.bf16.mxu0 %v3788
        %5300 = vmatpush1.bf16.msra.mxu0 %v3787
        %5301 = vmatprep.subr.bf16.mxu0 %v3794
        %5302 = vmatpush1.bf16.msra.mxu0 %v3793
        %5303 = vmatprep.subr.bf16.mxu0 %v3800
        %5304 = vmatpush1.bf16.msra.mxu0 %v3799
        %5305 = vmatprep.subr.bf16.mxu0 %v3806
        %5306 = vmatpush1.bf16.msra.mxu0 %v3805
        %5307 = vmatprep.subr.bf16.mxu0 %v3812
        %5308 = vmatpush1.bf16.msra.mxu0 %v3811
        %5309 = vmatprep.subr.bf16.mxu0 %v3818
        %5310 = vmatpush1.bf16.msra.mxu0 %v3817
        %5311 = vmatprep.subr.bf16.mxu0 %v3824
        %5312 = vmatpush1.bf16.msra.mxu0 %v3823
        %5313 = vmatprep.subr.bf16.mxu0 %v3830
        %5314 = vmatpush1.bf16.msra.mxu0 %v3829
        %5315 = vmatprep.subr.bf16.mxu0 %v3836
        %5316 = vmatpush1.bf16.msra.mxu0 %v3835
        %5317 = vmatprep.subr.bf16.mxu0 %v3842
        %5318 = vmatpush1.bf16.msra.mxu0 %v3841
        %5319 = vmatprep.mubr.bf16.mxu0 %v1384
        %5320 = vmatmul.mubr.bf16.gmra.mrb[0].mxu0 %v1383
        %v5321 = vpop.f32.mrb[0].mxu0
        %v5322 = vadd.f32 %v1260, %v5321
        %v5323 = vpop.f32.mrb[0].mxu0
        %v5324 = vadd.f32 %v1264, %v5323
        %v5325 = vpop.f32.mrb[0].mxu0
        %v5326 = vadd.f32 %v1260, %v5325
        %v5327 = vpop.f32.mrb[0].mxu0
        %v5328 = vadd.f32 %v1264, %v5327
        %5329 = vmatprep.mubr.bf16.mxu0 %v1400
        %5330 = vmatmul.mubr.bf16.gmra.mrb[0].mxu0 %v1399
        %v5331 = vpop.f32.mrb[0].mxu0
        %v5332 = vadd.f32 %v1260, %v5331
        %v5333 = vpop.f32.mrb[0].mxu0
        %v5334 = vadd.f32 %v1264, %v5333
        %v5335 = vpop.f32.mrb[0].mxu0
        %v5336 = vadd.f32 %v1260, %v5335
        %v5337 = vpop.f32.mrb[0].mxu0
        %v5338 = vadd.f32 %v1264, %v5337
        %5339 = vdwg.mxu0
        %5340 = vmatprep.subr.bf16.mxu0 %v3848
        %5341 = vmatpush1.bf16.msra.mxu0 %v3847
        %5342 = vmatprep.subr.bf16.mxu0 %v3854
        %5343 = vmatpush1.bf16.msra.mxu0 %v3853
        %5344 = vmatprep.subr.bf16.mxu0 %v3860
        %5345 = vmatpush1.bf16.msra.mxu0 %v3859
        %5346 = vmatprep.subr.bf16.mxu0 %v3866
        %5347 = vmatpush1.bf16.msra.mxu0 %v3865
        %5348 = vmatprep.subr.bf16.mxu0 %v3872
        %5349 = vmatpush1.bf16.msra.mxu0 %v3871
        %5350 = vmatprep.subr.bf16.mxu0 %v3878
        %5351 = vmatpush1.bf16.msra.mxu0 %v3877
        %5352 = vmatprep.subr.bf16.mxu0 %v3884
        %5353 = vmatpush1.bf16.msra.mxu0 %v3883
        %5354 = vmatprep.subr.bf16.mxu0 %v3890
        %5355 = vmatpush1.bf16.msra.mxu0 %v3889
        %5356 = vmatprep.subr.bf16.mxu0 %v3896
        %5357 = vmatpush1.bf16.msra.mxu0 %v3895
        %5358 = vmatprep.subr.bf16.mxu0 %v3902
        %5359 = vmatpush1.bf16.msra.mxu0 %v3901
        %5360 = vmatprep.subr.bf16.mxu0 %v3908
        %5361 = vmatpush1.bf16.msra.mxu0 %v3907
        %5362 = vmatprep.subr.bf16.mxu0 %v3914
        %5363 = vmatpush1.bf16.msra.mxu0 %v3913
        %5364 = vmatprep.subr.bf16.mxu0 %v3920
        %5365 = vmatpush1.bf16.msra.mxu0 %v3919
        %5366 = vmatprep.subr.bf16.mxu0 %v3926
        %5367 = vmatpush1.bf16.msra.mxu0 %v3925
        %5368 = vmatprep.subr.bf16.mxu0 %v3932
        %5369 = vmatpush1.bf16.msra.mxu0 %v3931
        %5370 = vmatprep.subr.bf16.mxu0 %v3938
        %5371 = vmatpush1.bf16.msra.mxu0 %v3937
        %5372 = vmatprep.mubr.bf16.mxu0 %v1386
        %5373 = vmatmul.mubr.bf16.gmra.mrb[0].mxu0 %v1385
        %v5374 = vpop.f32.mrb[0].mxu0
        %v5375 = vadd.f32 %v5322, %v5374
        %v5376 = vpop.f32.mrb[0].mxu0
        %v5377 = vadd.f32 %v5324, %v5376
        %v5378 = vpop.f32.mrb[0].mxu0
        %v5379 = vadd.f32 %v5326, %v5378
        %v5380 = vpop.f32.mrb[0].mxu0
        %v5381 = vadd.f32 %v5328, %v5380
        %5382 = vmatprep.mubr.bf16.mxu0 %v1402
        %5383 = vmatmul.mubr.bf16.gmra.mrb[0].mxu0 %v1401
        %v5384 = vpop.f32.mrb[0].mxu0
        %v5385 = vadd.f32 %v5332, %v5384
        %v5386 = vpop.f32.mrb[0].mxu0
        %v5387 = vadd.f32 %v5334, %v5386
        %v5388 = vpop.f32.mrb[0].mxu0
        %v5389 = vadd.f32 %v5336, %v5388
        %v5390 = vpop.f32.mrb[0].mxu0
        %v5391 = vadd.f32 %v5338, %v5390
        %5392 = vdwg.mxu0
        %5393 = vmatprep.subr.bf16.mxu0 %v3944
        %5394 = vmatpush1.bf16.msra.mxu0 %v3943
        %5395 = vmatprep.subr.bf16.mxu0 %v3950
        %5396 = vmatpush1.bf16.msra.mxu0 %v3949
        %5397 = vmatprep.subr.bf16.mxu0 %v3956
        %5398 = vmatpush1.bf16.msra.mxu0 %v3955
        %5399 = vmatprep.subr.bf16.mxu0 %v3962
        %5400 = vmatpush1.bf16.msra.mxu0 %v3961
        %5401 = vmatprep.subr.bf16.mxu0 %v3968
        %5402 = vmatpush1.bf16.msra.mxu0 %v3967
        %5403 = vmatprep.subr.bf16.mxu0 %v3974
        %5404 = vmatpush1.bf16.msra.mxu0 %v3973
        %5405 = vmatprep.subr.bf16.mxu0 %v3980
        %5406 = vmatpush1.bf16.msra.mxu0 %v3979
        %5407 = vmatprep.subr.bf16.mxu0 %v3986
        %5408 = vmatpush1.bf16.msra.mxu0 %v3985
        %5409 = vmatprep.subr.bf16.mxu0 %v3992
        %5410 = vmatpush1.bf16.msra.mxu0 %v3991
        %5411 = vmatprep.subr.bf16.mxu0 %v3998
        %5412 = vmatpush1.bf16.msra.mxu0 %v3997
        %5413 = vmatprep.subr.bf16.mxu0 %v4004
        %5414 = vmatpush1.bf16.msra.mxu0 %v4003
        %5415 = vmatprep.subr.bf16.mxu0 %v4010
        %5416 = vmatpush1.bf16.msra.mxu0 %v4009
        %5417 = vmatprep.subr.bf16.mxu0 %v4016
        %5418 = vmatpush1.bf16.msra.mxu0 %v4015
        %5419 = vmatprep.subr.bf16.mxu0 %v4022
        %5420 = vmatpush1.bf16.msra.mxu0 %v4021
        %5421 = vmatprep.subr.bf16.mxu0 %v4028
        %5422 = vmatpush1.bf16.msra.mxu0 %v4027
        %5423 = vmatprep.subr.bf16.mxu0 %v4034
        %5424 = vmatpush1.bf16.msra.mxu0 %v4033
        %5425 = vmatprep.mubr.bf16.mxu0 %v1388
        %5426 = vmatmul.mubr.bf16.gmra.mrb[0].mxu0 %v1387
        %v5427 = vpop.f32.mrb[0].mxu0
        %v5428 = vadd.f32 %v5375, %v5427
        %v5429 = vpop.f32.mrb[0].mxu0
        %v5430 = vadd.f32 %v5377, %v5429
        %v5431 = vpop.f32.mrb[0].mxu0
        %v5432 = vadd.f32 %v5379, %v5431
        %v5433 = vpop.f32.mrb[0].mxu0
        %v5434 = vadd.f32 %v5381, %v5433
        %5435 = vmatprep.mubr.bf16.mxu0 %v1404
        %5436 = vmatmul.mubr.bf16.gmra.mrb[0].mxu0 %v1403
        %v5437 = vpop.f32.mrb[0].mxu0
        %v5438 = vadd.f32 %v5385, %v5437
        %v5439 = vpop.f32.mrb[0].mxu0
        %v5440 = vadd.f32 %v5387, %v5439
        %v5441 = vpop.f32.mrb[0].mxu0
        %v5442 = vadd.f32 %v5389, %v5441
        %v5443 = vpop.f32.mrb[0].mxu0
        %v5444 = vadd.f32 %v5391, %v5443
        %5445 = vdwg.mxu0
        %5446 = vmatprep.subr.bf16.mxu0 %v4040
        %5447 = vmatpush1.bf16.msra.mxu0 %v4039
        %5448 = vmatprep.subr.bf16.mxu0 %v4046
        %5449 = vmatpush1.bf16.msra.mxu0 %v4045
        %5450 = vmatprep.subr.bf16.mxu0 %v4052
        %5451 = vmatpush1.bf16.msra.mxu0 %v4051
        %5452 = vmatprep.subr.bf16.mxu0 %v4058
        %5453 = vmatpush1.bf16.msra.mxu0 %v4057
        %5454 = vmatprep.subr.bf16.mxu0 %v4064
        %5455 = vmatpush1.bf16.msra.mxu0 %v4063
        %5456 = vmatprep.subr.bf16.mxu0 %v4070
        %5457 = vmatpush1.bf16.msra.mxu0 %v4069
        %5458 = vmatprep.subr.bf16.mxu0 %v4076
        %5459 = vmatpush1.bf16.msra.mxu0 %v4075
        %5460 = vmatprep.subr.bf16.mxu0 %v4082
        %5461 = vmatpush1.bf16.msra.mxu0 %v4081
        %5462 = vmatprep.subr.bf16.mxu0 %v4088
        %5463 = vmatpush1.bf16.msra.mxu0 %v4087
        %5464 = vmatprep.subr.bf16.mxu0 %v4094
        %5465 = vmatpush1.bf16.msra.mxu0 %v4093
        %5466 = vmatprep.subr.bf16.mxu0 %v4100
        %5467 = vmatpush1.bf16.msra.mxu0 %v4099
        %5468 = vmatprep.subr.bf16.mxu0 %v4106
        %5469 = vmatpush1.bf16.msra.mxu0 %v4105
        %5470 = vmatprep.subr.bf16.mxu0 %v4112
        %5471 = vmatpush1.bf16.msra.mxu0 %v4111
        %5472 = vmatprep.subr.bf16.mxu0 %v4118
        %5473 = vmatpush1.bf16.msra.mxu0 %v4117
        %5474 = vmatprep.subr.bf16.mxu0 %v4124
        %5475 = vmatpush1.bf16.msra.mxu0 %v4123
        %5476 = vmatprep.subr.bf16.mxu0 %v4130
        %5477 = vmatpush1.bf16.msra.mxu0 %v4129
        %5478 = vmatprep.mubr.bf16.mxu0 %v1390
        %5479 = vmatmul.mubr.bf16.gmra.mrb[0].mxu0 %v1389
        %v5480 = vpop.f32.mrb[0].mxu0
        %v5481 = vadd.f32 %v5428, %v5480
        %v5482 = vpop.f32.mrb[0].mxu0
        %v5483 = vadd.f32 %v5430, %v5482
        %v5484 = vpop.f32.mrb[0].mxu0
        %v5485 = vadd.f32 %v5432, %v5484
        %v5486 = vpop.f32.mrb[0].mxu0
        %v5487 = vadd.f32 %v5434, %v5486
        %5488 = vmatprep.mubr.bf16.mxu0 %v1406
        %5489 = vmatmul.mubr.bf16.gmra.mrb[0].mxu0 %v1405
        %v5490 = vpop.f32.mrb[0].mxu0
        %v5491 = vadd.f32 %v5438, %v5490
        %v5492 = vpop.f32.mrb[0].mxu0
        %v5493 = vadd.f32 %v5440, %v5492
        %v5494 = vpop.f32.mrb[0].mxu0
        %v5495 = vadd.f32 %v5442, %v5494
        %v5496 = vpop.f32.mrb[0].mxu0
        %v5497 = vadd.f32 %v5444, %v5496
        %5498 = vdwg.mxu0
        %5499 = vmatprep.subr.bf16.mxu0 %v4136
        %5500 = vmatpush1.bf16.msra.mxu0 %v4135
        %5501 = vmatprep.subr.bf16.mxu0 %v4142
        %5502 = vmatpush1.bf16.msra.mxu0 %v4141
        %5503 = vmatprep.subr.bf16.mxu0 %v4148
        %5504 = vmatpush1.bf16.msra.mxu0 %v4147
        %5505 = vmatprep.subr.bf16.mxu0 %v4154
        %5506 = vmatpush1.bf16.msra.mxu0 %v4153
        %5507 = vmatprep.subr.bf16.mxu0 %v4160
        %5508 = vmatpush1.bf16.msra.mxu0 %v4159
        %5509 = vmatprep.subr.bf16.mxu0 %v4166
        %5510 = vmatpush1.bf16.msra.mxu0 %v4165
        %5511 = vmatprep.subr.bf16.mxu0 %v4172
        %5512 = vmatpush1.bf16.msra.mxu0 %v4171
        %5513 = vmatprep.subr.bf16.mxu0 %v4178
        %5514 = vmatpush1.bf16.msra.mxu0 %v4177
        %5515 = vmatprep.subr.bf16.mxu0 %v4184
        %5516 = vmatpush1.bf16.msra.mxu0 %v4183
        %5517 = vmatprep.subr.bf16.mxu0 %v4190
        %5518 = vmatpush1.bf16.msra.mxu0 %v4189
        %5519 = vmatprep.subr.bf16.mxu0 %v4196
        %5520 = vmatpush1.bf16.msra.mxu0 %v4195
        %5521 = vmatprep.subr.bf16.mxu0 %v4202
        %5522 = vmatpush1.bf16.msra.mxu0 %v4201
        %5523 = vmatprep.subr.bf16.mxu0 %v4208
        %5524 = vmatpush1.bf16.msra.mxu0 %v4207
        %5525 = vmatprep.subr.bf16.mxu0 %v4214
        %5526 = vmatpush1.bf16.msra.mxu0 %v4213
        %5527 = vmatprep.subr.bf16.mxu0 %v4220
        %5528 = vmatpush1.bf16.msra.mxu0 %v4219
        %5529 = vmatprep.subr.bf16.mxu0 %v4226
        %5530 = vmatpush1.bf16.msra.mxu0 %v4225
        %5531 = vmatprep.mubr.bf16.mxu0 %v1392
        %5532 = vmatmul.mubr.bf16.gmra.mrb[0].mxu0 %v1391
        %v5533 = vpop.f32.mrb[0].mxu0
        %v5534 = vadd.f32 %v5481, %v5533
        %v5535 = vpop.f32.mrb[0].mxu0
        %v5536 = vadd.f32 %v5483, %v5535
        %v5537 = vpop.f32.mrb[0].mxu0
        %v5538 = vadd.f32 %v5485, %v5537
        %v5539 = vpop.f32.mrb[0].mxu0
        %v5540 = vadd.f32 %v5487, %v5539
        %5541 = vmatprep.mubr.bf16.mxu0 %v1408
        %5542 = vmatmul.mubr.bf16.gmra.mrb[0].mxu0 %v1407
        %v5543 = vpop.f32.mrb[0].mxu0
        %v5544 = vadd.f32 %v5491, %v5543
        %v5545 = vpop.f32.mrb[0].mxu0
        %v5546 = vadd.f32 %v5493, %v5545
        %v5547 = vpop.f32.mrb[0].mxu0
        %v5548 = vadd.f32 %v5495, %v5547
        %v5549 = vpop.f32.mrb[0].mxu0
        %v5550 = vadd.f32 %v5497, %v5549
        %5551 = vdwg.mxu0
        %5552 = vmatprep.subr.bf16.mxu0 %v4232
        %5553 = vmatpush1.bf16.msra.mxu0 %v4231
        %5554 = vmatprep.subr.bf16.mxu0 %v4238
        %5555 = vmatpush1.bf16.msra.mxu0 %v4237
        %5556 = vmatprep.subr.bf16.mxu0 %v4244
        %5557 = vmatpush1.bf16.msra.mxu0 %v4243
        %5558 = vmatprep.subr.bf16.mxu0 %v4250
        %5559 = vmatpush1.bf16.msra.mxu0 %v4249
        %5560 = vmatprep.subr.bf16.mxu0 %v4256
        %5561 = vmatpush1.bf16.msra.mxu0 %v4255
        %5562 = vmatprep.subr.bf16.mxu0 %v4262
        %5563 = vmatpush1.bf16.msra.mxu0 %v4261
        %5564 = vmatprep.subr.bf16.mxu0 %v4268
        %5565 = vmatpush1.bf16.msra.mxu0 %v4267
        %5566 = vmatprep.subr.bf16.mxu0 %v4274
        %5567 = vmatpush1.bf16.msra.mxu0 %v4273
        %5568 = vmatprep.subr.bf16.mxu0 %v4280
        %5569 = vmatpush1.bf16.msra.mxu0 %v4279
        %5570 = vmatprep.subr.bf16.mxu0 %v4286
        %5571 = vmatpush1.bf16.msra.mxu0 %v4285
        %5572 = vmatprep.subr.bf16.mxu0 %v4292
        %5573 = vmatpush1.bf16.msra.mxu0 %v4291
        %5574 = vmatprep.subr.bf16.mxu0 %v4298
        %5575 = vmatpush1.bf16.msra.mxu0 %v4297
        %5576 = vmatprep.subr.bf16.mxu0 %v4304
        %5577 = vmatpush1.bf16.msra.mxu0 %v4303
        %5578 = vmatprep.subr.bf16.mxu0 %v4310
        %5579 = vmatpush1.bf16.msra.mxu0 %v4309
        %5580 = vmatprep.subr.bf16.mxu0 %v4316
        %5581 = vmatpush1.bf16.msra.mxu0 %v4315
        %5582 = vmatprep.subr.bf16.mxu0 %v4322
        %5583 = vmatpush1.bf16.msra.mxu0 %v4321
        %5584 = vmatprep.mubr.bf16.mxu0 %v1394
        %5585 = vmatmul.mubr.bf16.gmra.mrb[0].mxu0 %v1393
        %v5586 = vpop.f32.mrb[0].mxu0
        %v5587 = vadd.f32 %v5534, %v5586
        %v5588 = vpop.f32.mrb[0].mxu0
        %v5589 = vadd.f32 %v5536, %v5588
        %v5590 = vpop.f32.mrb[0].mxu0
        %v5591 = vadd.f32 %v5538, %v5590
        %v5592 = vpop.f32.mrb[0].mxu0
        %v5593 = vadd.f32 %v5540, %v5592
        %5594 = vmatprep.mubr.bf16.mxu0 %v1410
        %5595 = vmatmul.mubr.bf16.gmra.mrb[0].mxu0 %v1409
        %v5596 = vpop.f32.mrb[0].mxu0
        %v5597 = vadd.f32 %v5544, %v5596
        %v5598 = vpop.f32.mrb[0].mxu0
        %v5599 = vadd.f32 %v5546, %v5598
        %v5600 = vpop.f32.mrb[0].mxu0
        %v5601 = vadd.f32 %v5548, %v5600
        %v5602 = vpop.f32.mrb[0].mxu0
        %v5603 = vadd.f32 %v5550, %v5602
        %5604 = vdwg.mxu0
        %5605 = vmatprep.subr.bf16.mxu0 %v4328
        %5606 = vmatpush1.bf16.msra.mxu0 %v4327
        %5607 = vmatprep.subr.bf16.mxu0 %v4334
        %5608 = vmatpush1.bf16.msra.mxu0 %v4333
        %5609 = vmatprep.subr.bf16.mxu0 %v4340
        %5610 = vmatpush1.bf16.msra.mxu0 %v4339
        %5611 = vmatprep.subr.bf16.mxu0 %v4346
        %5612 = vmatpush1.bf16.msra.mxu0 %v4345
        %5613 = vmatprep.subr.bf16.mxu0 %v4352
        %5614 = vmatpush1.bf16.msra.mxu0 %v4351
        %5615 = vmatprep.subr.bf16.mxu0 %v4358
        %5616 = vmatpush1.bf16.msra.mxu0 %v4357
        %5617 = vmatprep.subr.bf16.mxu0 %v4364
        %5618 = vmatpush1.bf16.msra.mxu0 %v4363
        %5619 = vmatprep.subr.bf16.mxu0 %v4370
        %5620 = vmatpush1.bf16.msra.mxu0 %v4369
        %5621 = vmatprep.subr.bf16.mxu0 %v4376
        %5622 = vmatpush1.bf16.msra.mxu0 %v4375
        %5623 = vmatprep.subr.bf16.mxu0 %v4382
        %5624 = vmatpush1.bf16.msra.mxu0 %v4381
        %5625 = vmatprep.subr.bf16.mxu0 %v4388
        %5626 = vmatpush1.bf16.msra.mxu0 %v4387
        %5627 = vmatprep.subr.bf16.mxu0 %v4394
        %5628 = vmatpush1.bf16.msra.mxu0 %v4393
        %5629 = vmatprep.subr.bf16.mxu0 %v4400
        %5630 = vmatpush1.bf16.msra.mxu0 %v4399
        %5631 = vmatprep.subr.bf16.mxu0 %v4406
        %5632 = vmatpush1.bf16.msra.mxu0 %v4405
        %5633 = vmatprep.subr.bf16.mxu0 %v4412
        %5634 = vmatpush1.bf16.msra.mxu0 %v4411
        %5635 = vmatprep.subr.bf16.mxu0 %v4418
        %5636 = vmatpush1.bf16.msra.mxu0 %v4417
        %5637 = vmatprep.mubr.bf16.mxu0 %v1396
        %5638 = vmatmul.mubr.bf16.gmra.mrb[0].mxu0 %v1395
        %v5639 = vpop.f32.mrb[0].mxu0
        %v5640 = vadd.f32 %v5587, %v5639
        %v5641 = vpop.f32.mrb[0].mxu0
        %v5642 = vadd.f32 %v5589, %v5641
        %v5643 = vpop.f32.mrb[0].mxu0
        %v5644 = vadd.f32 %v5591, %v5643
        %v5645 = vpop.f32.mrb[0].mxu0
        %v5646 = vadd.f32 %v5593, %v5645
        %5647 = vmatprep.mubr.bf16.mxu0 %v1412
        %5648 = vmatmul.mubr.bf16.gmra.mrb[0].mxu0 %v1411
        %v5649 = vpop.f32.mrb[0].mxu0
        %v5650 = vadd.f32 %v5597, %v5649
        %v5651 = vpop.f32.mrb[0].mxu0
        %v5652 = vadd.f32 %v5599, %v5651
        %v5653 = vpop.f32.mrb[0].mxu0
        %v5654 = vadd.f32 %v5601, %v5653
        %v5655 = vpop.f32.mrb[0].mxu0
        %v5656 = vadd.f32 %v5603, %v5655
        %5657 = vdwg.mxu0
        %5658 = vmatprep.subr.bf16.mxu0 %v4424
        %5659 = vmatpush1.bf16.msra.mxu0 %v4423
        %5660 = vmatprep.subr.bf16.mxu0 %v4430
        %5661 = vmatpush1.bf16.msra.mxu0 %v4429
        %5662 = vmatprep.subr.bf16.mxu0 %v4436
        %5663 = vmatpush1.bf16.msra.mxu0 %v4435
        %5664 = vmatprep.subr.bf16.mxu0 %v4442
        %5665 = vmatpush1.bf16.msra.mxu0 %v4441
        %5666 = vmatprep.subr.bf16.mxu0 %v4448
        %5667 = vmatpush1.bf16.msra.mxu0 %v4447
        %5668 = vmatprep.subr.bf16.mxu0 %v4454
        %5669 = vmatpush1.bf16.msra.mxu0 %v4453
        %5670 = vmatprep.subr.bf16.mxu0 %v4460
        %5671 = vmatpush1.bf16.msra.mxu0 %v4459
        %5672 = vmatprep.subr.bf16.mxu0 %v4466
        %5673 = vmatpush1.bf16.msra.mxu0 %v4465
        %5674 = vmatprep.subr.bf16.mxu0 %v4472
        %5675 = vmatpush1.bf16.msra.mxu0 %v4471
        %5676 = vmatprep.subr.bf16.mxu0 %v4478
        %5677 = vmatpush1.bf16.msra.mxu0 %v4477
        %5678 = vmatprep.subr.bf16.mxu0 %v4484
        %5679 = vmatpush1.bf16.msra.mxu0 %v4483
        %5680 = vmatprep.subr.bf16.mxu0 %v4490
        %5681 = vmatpush1.bf16.msra.mxu0 %v4489
        %5682 = vmatprep.subr.bf16.mxu0 %v4496
        %5683 = vmatpush1.bf16.msra.mxu0 %v4495
        %5684 = vmatprep.subr.bf16.mxu0 %v4502
        %5685 = vmatpush1.bf16.msra.mxu0 %v4501
        %5686 = vmatprep.subr.bf16.mxu0 %v4508
        %5687 = vmatpush1.bf16.msra.mxu0 %v4507
        %5688 = vmatprep.subr.bf16.mxu0 %v4514
        %5689 = vmatpush1.bf16.msra.mxu0 %v4513
        %5690 = vmatprep.mubr.bf16.mxu0 %v1398
        %5691 = vmatmul.mubr.bf16.gmra.mrb[0].mxu0 %v1397
        %v5692 = vpop.f32.mrb[0].mxu0
        %v5693 = vadd.f32 %v5640, %v5692
        %v5694 = vpop.f32.mrb[0].mxu0
        %v5695 = vadd.f32 %v5642, %v5694
        %v5696 = vpop.f32.mrb[0].mxu0
        %v5697 = vadd.f32 %v5644, %v5696
        %v5698 = vpop.f32.mrb[0].mxu0
        %v5699 = vadd.f32 %v5646, %v5698
        %5700 = vmatprep.mubr.bf16.mxu0 %v1414
        %5701 = vmatmul.mubr.bf16.gmra.mrb[0].mxu0 %v1413
        %v5702 = vpop.f32.mrb[0].mxu0
        %v5703 = vadd.f32 %v5650, %v5702
        %v5704 = vpop.f32.mrb[0].mxu0
        %v5705 = vadd.f32 %v5652, %v5704
        %v5706 = vpop.f32.mrb[0].mxu0
        %v5707 = vadd.f32 %v5654, %v5706
        %v5708 = vpop.f32.mrb[0].mxu0
        %v5709 = vadd.f32 %v5656, %v5708
        %5710 = vdwg.mxu0
        %5711 = vmatprep.subr.bf16.mxu0 %v3754
        %5712 = vmatpush1.bf16.msra.mxu0 %v3753
        %5713 = vmatprep.subr.bf16.mxu0 %v3760
        %5714 = vmatpush1.bf16.msra.mxu0 %v3759
        %5715 = vmatprep.subr.bf16.mxu0 %v3766
        %5716 = vmatpush1.bf16.msra.mxu0 %v3765
        %5717 = vmatprep.subr.bf16.mxu0 %v3772
        %5718 = vmatpush1.bf16.msra.mxu0 %v3771
        %5719 = vmatprep.subr.bf16.mxu0 %v3778
        %5720 = vmatpush1.bf16.msra.mxu0 %v3777
        %5721 = vmatprep.subr.bf16.mxu0 %v3784
        %5722 = vmatpush1.bf16.msra.mxu0 %v3783
        %5723 = vmatprep.subr.bf16.mxu0 %v3790
        %5724 = vmatpush1.bf16.msra.mxu0 %v3789
        %5725 = vmatprep.subr.bf16.mxu0 %v3796
        %5726 = vmatpush1.bf16.msra.mxu0 %v3795
        %5727 = vmatprep.subr.bf16.mxu0 %v3802
        %5728 = vmatpush1.bf16.msra.mxu0 %v3801
        %5729 = vmatprep.subr.bf16.mxu0 %v3808
        %5730 = vmatpush1.bf16.msra.mxu0 %v3807
        %5731 = vmatprep.subr.bf16.mxu0 %v3814
        %5732 = vmatpush1.bf16.msra.mxu0 %v3813
        %5733 = vmatprep.subr.bf16.mxu0 %v3820
        %5734 = vmatpush1.bf16.msra.mxu0 %v3819
        %5735 = vmatprep.subr.bf16.mxu0 %v3826
        %5736 = vmatpush1.bf16.msra.mxu0 %v3825
        %5737 = vmatprep.subr.bf16.mxu0 %v3832
        %5738 = vmatpush1.bf16.msra.mxu0 %v3831
        %5739 = vmatprep.subr.bf16.mxu0 %v3838
        %5740 = vmatpush1.bf16.msra.mxu0 %v3837
        %5741 = vmatprep.subr.bf16.mxu0 %v3844
        %5742 = vmatpush1.bf16.msra.mxu0 %v3843
        %5743 = vmatprep.mubr.bf16.mxu0 %v1384
        %5744 = vmatmul.mubr.bf16.gmra.mrb[0].mxu0 %v1383
        %v5745 = vpop.f32.mrb[0].mxu0
        %v5746 = vadd.f32 %v1268, %v5745
        %v5747 = vpop.f32.mrb[0].mxu0
        %v5748 = vadd.f32 %v1272, %v5747
        %v5749 = vpop.f32.mrb[0].mxu0
        %v5750 = vadd.f32 %v1268, %v5749
        %v5751 = vpop.f32.mrb[0].mxu0
        %v5752 = vadd.f32 %v1272, %v5751
        %5753 = vmatprep.mubr.bf16.mxu0 %v1400
        %5754 = vmatmul.mubr.bf16.gmra.mrb[0].mxu0 %v1399
        %v5755 = vpop.f32.mrb[0].mxu0
        %v5756 = vadd.f32 %v1268, %v5755
        %v5757 = vpop.f32.mrb[0].mxu0
        %v5758 = vadd.f32 %v1272, %v5757
        %v5759 = vpop.f32.mrb[0].mxu0
        %v5760 = vadd.f32 %v1268, %v5759
        %v5761 = vpop.f32.mrb[0].mxu0
        %v5762 = vadd.f32 %v1272, %v5761
        %5763 = vdwg.mxu0
        %5764 = vmatprep.subr.bf16.mxu0 %v3850
        %5765 = vmatpush1.bf16.msra.mxu0 %v3849
        %5766 = vmatprep.subr.bf16.mxu0 %v3856
        %5767 = vmatpush1.bf16.msra.mxu0 %v3855
        %5768 = vmatprep.subr.bf16.mxu0 %v3862
        %5769 = vmatpush1.bf16.msra.mxu0 %v3861
        %5770 = vmatprep.subr.bf16.mxu0 %v3868
        %5771 = vmatpush1.bf16.msra.mxu0 %v3867
        %5772 = vmatprep.subr.bf16.mxu0 %v3874
        %5773 = vmatpush1.bf16.msra.mxu0 %v3873
        %5774 = vmatprep.subr.bf16.mxu0 %v3880
        %5775 = vmatpush1.bf16.msra.mxu0 %v3879
        %5776 = vmatprep.subr.bf16.mxu0 %v3886
        %5777 = vmatpush1.bf16.msra.mxu0 %v3885
        %5778 = vmatprep.subr.bf16.mxu0 %v3892
        %5779 = vmatpush1.bf16.msra.mxu0 %v3891
        %5780 = vmatprep.subr.bf16.mxu0 %v3898
        %5781 = vmatpush1.bf16.msra.mxu0 %v3897
        %5782 = vmatprep.subr.bf16.mxu0 %v3904
        %5783 = vmatpush1.bf16.msra.mxu0 %v3903
        %5784 = vmatprep.subr.bf16.mxu0 %v3910
        %5785 = vmatpush1.bf16.msra.mxu0 %v3909
        %5786 = vmatprep.subr.bf16.mxu0 %v3916
        %5787 = vmatpush1.bf16.msra.mxu0 %v3915
        %5788 = vmatprep.subr.bf16.mxu0 %v3922
        %5789 = vmatpush1.bf16.msra.mxu0 %v3921
        %5790 = vmatprep.subr.bf16.mxu0 %v3928
        %5791 = vmatpush1.bf16.msra.mxu0 %v3927
        %5792 = vmatprep.subr.bf16.mxu0 %v3934
        %5793 = vmatpush1.bf16.msra.mxu0 %v3933
        %5794 = vmatprep.subr.bf16.mxu0 %v3940
        %5795 = vmatpush1.bf16.msra.mxu0 %v3939
        %5796 = vmatprep.mubr.bf16.mxu0 %v1386
        %5797 = vmatmul.mubr.bf16.gmra.mrb[0].mxu0 %v1385
        %v5798 = vpop.f32.mrb[0].mxu0
        %v5799 = vadd.f32 %v5746, %v5798
        %v5800 = vpop.f32.mrb[0].mxu0
        %v5801 = vadd.f32 %v5748, %v5800
        %v5802 = vpop.f32.mrb[0].mxu0
        %v5803 = vadd.f32 %v5750, %v5802
        %v5804 = vpop.f32.mrb[0].mxu0
        %v5805 = vadd.f32 %v5752, %v5804
        %5806 = vmatprep.mubr.bf16.mxu0 %v1402
        %5807 = vmatmul.mubr.bf16.gmra.mrb[0].mxu0 %v1401
        %v5808 = vpop.f32.mrb[0].mxu0
        %v5809 = vadd.f32 %v5756, %v5808
        %v5810 = vpop.f32.mrb[0].mxu0
        %v5811 = vadd.f32 %v5758, %v5810
        %v5812 = vpop.f32.mrb[0].mxu0
        %v5813 = vadd.f32 %v5760, %v5812
        %v5814 = vpop.f32.mrb[0].mxu0
        %v5815 = vadd.f32 %v5762, %v5814
        %5816 = vdwg.mxu0
        %5817 = vmatprep.subr.bf16.mxu0 %v3946
        %5818 = vmatpush1.bf16.msra.mxu0 %v3945
        %5819 = vmatprep.subr.bf16.mxu0 %v3952
        %5820 = vmatpush1.bf16.msra.mxu0 %v3951
        %5821 = vmatprep.subr.bf16.mxu0 %v3958
        %5822 = vmatpush1.bf16.msra.mxu0 %v3957
        %5823 = vmatprep.subr.bf16.mxu0 %v3964
        %5824 = vmatpush1.bf16.msra.mxu0 %v3963
        %5825 = vmatprep.subr.bf16.mxu0 %v3970
        %5826 = vmatpush1.bf16.msra.mxu0 %v3969
        %5827 = vmatprep.subr.bf16.mxu0 %v3976
        %5828 = vmatpush1.bf16.msra.mxu0 %v3975
        %5829 = vmatprep.subr.bf16.mxu0 %v3982
        %5830 = vmatpush1.bf16.msra.mxu0 %v3981
        %5831 = vmatprep.subr.bf16.mxu0 %v3988
        %5832 = vmatpush1.bf16.msra.mxu0 %v3987
        %5833 = vmatprep.subr.bf16.mxu0 %v3994
        %5834 = vmatpush1.bf16.msra.mxu0 %v3993
        %5835 = vmatprep.subr.bf16.mxu0 %v4000
        %5836 = vmatpush1.bf16.msra.mxu0 %v3999
        %5837 = vmatprep.subr.bf16.mxu0 %v4006
        %5838 = vmatpush1.bf16.msra.mxu0 %v4005
        %5839 = vmatprep.subr.bf16.mxu0 %v4012
        %5840 = vmatpush1.bf16.msra.mxu0 %v4011
        %5841 = vmatprep.subr.bf16.mxu0 %v4018
        %5842 = vmatpush1.bf16.msra.mxu0 %v4017
        %5843 = vmatprep.subr.bf16.mxu0 %v4024
        %5844 = vmatpush1.bf16.msra.mxu0 %v4023
        %5845 = vmatprep.subr.bf16.mxu0 %v4030
        %5846 = vmatpush1.bf16.msra.mxu0 %v4029
        %5847 = vmatprep.subr.bf16.mxu0 %v4036
        %5848 = vmatpush1.bf16.msra.mxu0 %v4035
        %5849 = vmatprep.mubr.bf16.mxu0 %v1388
        %5850 = vmatmul.mubr.bf16.gmra.mrb[0].mxu0 %v1387
        %v5851 = vpop.f32.mrb[0].mxu0
        %v5852 = vadd.f32 %v5799, %v5851
        %v5853 = vpop.f32.mrb[0].mxu0
        %v5854 = vadd.f32 %v5801, %v5853
        %v5855 = vpop.f32.mrb[0].mxu0
        %v5856 = vadd.f32 %v5803, %v5855
        %v5857 = vpop.f32.mrb[0].mxu0
        %v5858 = vadd.f32 %v5805, %v5857
        %5859 = vmatprep.mubr.bf16.mxu0 %v1404
        %5860 = vmatmul.mubr.bf16.gmra.mrb[0].mxu0 %v1403
        %v5861 = vpop.f32.mrb[0].mxu0
        %v5862 = vadd.f32 %v5809, %v5861
        %v5863 = vpop.f32.mrb[0].mxu0
        %v5864 = vadd.f32 %v5811, %v5863
        %v5865 = vpop.f32.mrb[0].mxu0
        %v5866 = vadd.f32 %v5813, %v5865
        %v5867 = vpop.f32.mrb[0].mxu0
        %v5868 = vadd.f32 %v5815, %v5867
        %5869 = vdwg.mxu0
        %5870 = vmatprep.subr.bf16.mxu0 %v4042
        %5871 = vmatpush1.bf16.msra.mxu0 %v4041
        %5872 = vmatprep.subr.bf16.mxu0 %v4048
        %5873 = vmatpush1.bf16.msra.mxu0 %v4047
        %5874 = vmatprep.subr.bf16.mxu0 %v4054
        %5875 = vmatpush1.bf16.msra.mxu0 %v4053
        %5876 = vmatprep.subr.bf16.mxu0 %v4060
        %5877 = vmatpush1.bf16.msra.mxu0 %v4059
        %5878 = vmatprep.subr.bf16.mxu0 %v4066
        %5879 = vmatpush1.bf16.msra.mxu0 %v4065
        %5880 = vmatprep.subr.bf16.mxu0 %v4072
        %5881 = vmatpush1.bf16.msra.mxu0 %v4071
        %5882 = vmatprep.subr.bf16.mxu0 %v4078
        %5883 = vmatpush1.bf16.msra.mxu0 %v4077
        %5884 = vmatprep.subr.bf16.mxu0 %v4084
        %5885 = vmatpush1.bf16.msra.mxu0 %v4083
        %5886 = vmatprep.subr.bf16.mxu0 %v4090
        %5887 = vmatpush1.bf16.msra.mxu0 %v4089
        %5888 = vmatprep.subr.bf16.mxu0 %v4096
        %5889 = vmatpush1.bf16.msra.mxu0 %v4095
        %5890 = vmatprep.subr.bf16.mxu0 %v4102
        %5891 = vmatpush1.bf16.msra.mxu0 %v4101
        %5892 = vmatprep.subr.bf16.mxu0 %v4108
        %5893 = vmatpush1.bf16.msra.mxu0 %v4107
        %5894 = vmatprep.subr.bf16.mxu0 %v4114
        %5895 = vmatpush1.bf16.msra.mxu0 %v4113
        %5896 = vmatprep.subr.bf16.mxu0 %v4120
        %5897 = vmatpush1.bf16.msra.mxu0 %v4119
        %5898 = vmatprep.subr.bf16.mxu0 %v4126
        %5899 = vmatpush1.bf16.msra.mxu0 %v4125
        %5900 = vmatprep.subr.bf16.mxu0 %v4132
        %5901 = vmatpush1.bf16.msra.mxu0 %v4131
        %5902 = vmatprep.mubr.bf16.mxu0 %v1390
        %5903 = vmatmul.mubr.bf16.gmra.mrb[0].mxu0 %v1389
        %v5904 = vpop.f32.mrb[0].mxu0
        %v5905 = vadd.f32 %v5852, %v5904
        %v5906 = vpop.f32.mrb[0].mxu0
        %v5907 = vadd.f32 %v5854, %v5906
        %v5908 = vpop.f32.mrb[0].mxu0
        %v5909 = vadd.f32 %v5856, %v5908
        %v5910 = vpop.f32.mrb[0].mxu0
        %v5911 = vadd.f32 %v5858, %v5910
        %5912 = vmatprep.mubr.bf16.mxu0 %v1406
        %5913 = vmatmul.mubr.bf16.gmra.mrb[0].mxu0 %v1405
        %v5914 = vpop.f32.mrb[0].mxu0
        %v5915 = vadd.f32 %v5862, %v5914
        %v5916 = vpop.f32.mrb[0].mxu0
        %v5917 = vadd.f32 %v5864, %v5916
        %v5918 = vpop.f32.mrb[0].mxu0
        %v5919 = vadd.f32 %v5866, %v5918
        %v5920 = vpop.f32.mrb[0].mxu0
        %v5921 = vadd.f32 %v5868, %v5920
        %5922 = vdwg.mxu0
        %5923 = vmatprep.subr.bf16.mxu0 %v4138
        %5924 = vmatpush1.bf16.msra.mxu0 %v4137
        %5925 = vmatprep.subr.bf16.mxu0 %v4144
        %5926 = vmatpush1.bf16.msra.mxu0 %v4143
        %5927 = vmatprep.subr.bf16.mxu0 %v4150
        %5928 = vmatpush1.bf16.msra.mxu0 %v4149
        %5929 = vmatprep.subr.bf16.mxu0 %v4156
        %5930 = vmatpush1.bf16.msra.mxu0 %v4155
        %5931 = vmatprep.subr.bf16.mxu0 %v4162
        %5932 = vmatpush1.bf16.msra.mxu0 %v4161
        %5933 = vmatprep.subr.bf16.mxu0 %v4168
        %5934 = vmatpush1.bf16.msra.mxu0 %v4167
        %5935 = vmatprep.subr.bf16.mxu0 %v4174
        %5936 = vmatpush1.bf16.msra.mxu0 %v4173
        %5937 = vmatprep.subr.bf16.mxu0 %v4180
        %5938 = vmatpush1.bf16.msra.mxu0 %v4179
        %5939 = vmatprep.subr.bf16.mxu0 %v4186
        %5940 = vmatpush1.bf16.msra.mxu0 %v4185
        %5941 = vmatprep.subr.bf16.mxu0 %v4192
        %5942 = vmatpush1.bf16.msra.mxu0 %v4191
        %5943 = vmatprep.subr.bf16.mxu0 %v4198
        %5944 = vmatpush1.bf16.msra.mxu0 %v4197
        %5945 = vmatprep.subr.bf16.mxu0 %v4204
        %5946 = vmatpush1.bf16.msra.mxu0 %v4203
        %5947 = vmatprep.subr.bf16.mxu0 %v4210
        %5948 = vmatpush1.bf16.msra.mxu0 %v4209
        %5949 = vmatprep.subr.bf16.mxu0 %v4216
        %5950 = vmatpush1.bf16.msra.mxu0 %v4215
        %5951 = vmatprep.subr.bf16.mxu0 %v4222
        %5952 = vmatpush1.bf16.msra.mxu0 %v4221
        %5953 = vmatprep.subr.bf16.mxu0 %v4228
        %5954 = vmatpush1.bf16.msra.mxu0 %v4227
        %5955 = vmatprep.mubr.bf16.mxu0 %v1392
        %5956 = vmatmul.mubr.bf16.gmra.mrb[0].mxu0 %v1391
        %v5957 = vpop.f32.mrb[0].mxu0
        %v5958 = vadd.f32 %v5905, %v5957
        %v5959 = vpop.f32.mrb[0].mxu0
        %v5960 = vadd.f32 %v5907, %v5959
        %v5961 = vpop.f32.mrb[0].mxu0
        %v5962 = vadd.f32 %v5909, %v5961
        %v5963 = vpop.f32.mrb[0].mxu0
        %v5964 = vadd.f32 %v5911, %v5963
        %5965 = vmatprep.mubr.bf16.mxu0 %v1408
        %5966 = vmatmul.mubr.bf16.gmra.mrb[0].mxu0 %v1407
        %v5967 = vpop.f32.mrb[0].mxu0
        %v5968 = vadd.f32 %v5915, %v5967
        %v5969 = vpop.f32.mrb[0].mxu0
        %v5970 = vadd.f32 %v5917, %v5969
        %v5971 = vpop.f32.mrb[0].mxu0
        %v5972 = vadd.f32 %v5919, %v5971
        %v5973 = vpop.f32.mrb[0].mxu0
        %v5974 = vadd.f32 %v5921, %v5973
        %5975 = vdwg.mxu0
        %5976 = vmatprep.subr.bf16.mxu0 %v4234
        %5977 = vmatpush1.bf16.msra.mxu0 %v4233
        %5978 = vmatprep.subr.bf16.mxu0 %v4240
        %5979 = vmatpush1.bf16.msra.mxu0 %v4239
        %5980 = vmatprep.subr.bf16.mxu0 %v4246
        %5981 = vmatpush1.bf16.msra.mxu0 %v4245
        %5982 = vmatprep.subr.bf16.mxu0 %v4252
        %5983 = vmatpush1.bf16.msra.mxu0 %v4251
        %5984 = vmatprep.subr.bf16.mxu0 %v4258
        %5985 = vmatpush1.bf16.msra.mxu0 %v4257
        %5986 = vmatprep.subr.bf16.mxu0 %v4264
        %5987 = vmatpush1.bf16.msra.mxu0 %v4263
        %5988 = vmatprep.subr.bf16.mxu0 %v4270
        %5989 = vmatpush1.bf16.msra.mxu0 %v4269
        %5990 = vmatprep.subr.bf16.mxu0 %v4276
        %5991 = vmatpush1.bf16.msra.mxu0 %v4275
        %5992 = vmatprep.subr.bf16.mxu0 %v4282
        %5993 = vmatpush1.bf16.msra.mxu0 %v4281
        %5994 = vmatprep.subr.bf16.mxu0 %v4288
        %5995 = vmatpush1.bf16.msra.mxu0 %v4287
        %5996 = vmatprep.subr.bf16.mxu0 %v4294
        %5997 = vmatpush1.bf16.msra.mxu0 %v4293
        %5998 = vmatprep.subr.bf16.mxu0 %v4300
        %5999 = vmatpush1.bf16.msra.mxu0 %v4299
        %6000 = vmatprep.subr.bf16.mxu0 %v4306
        %6001 = vmatpush1.bf16.msra.mxu0 %v4305
        %6002 = vmatprep.subr.bf16.mxu0 %v4312
        %6003 = vmatpush1.bf16.msra.mxu0 %v4311
        %6004 = vmatprep.subr.bf16.mxu0 %v4318
        %6005 = vmatpush1.bf16.msra.mxu0 %v4317
        %6006 = vmatprep.subr.bf16.mxu0 %v4324
        %6007 = vmatpush1.bf16.msra.mxu0 %v4323
        %6008 = vmatprep.mubr.bf16.mxu0 %v1394
        %6009 = vmatmul.mubr.bf16.gmra.mrb[0].mxu0 %v1393
        %v6010 = vpop.f32.mrb[0].mxu0
        %v6011 = vadd.f32 %v5958, %v6010
        %v6012 = vpop.f32.mrb[0].mxu0
        %v6013 = vadd.f32 %v5960, %v6012
        %v6014 = vpop.f32.mrb[0].mxu0
        %v6015 = vadd.f32 %v5962, %v6014
        %v6016 = vpop.f32.mrb[0].mxu0
        %v6017 = vadd.f32 %v5964, %v6016
        %6018 = vmatprep.mubr.bf16.mxu0 %v1410
        %6019 = vmatmul.mubr.bf16.gmra.mrb[0].mxu0 %v1409
        %v6020 = vpop.f32.mrb[0].mxu0
        %v6021 = vadd.f32 %v5968, %v6020
        %v6022 = vpop.f32.mrb[0].mxu0
        %v6023 = vadd.f32 %v5970, %v6022
        %v6024 = vpop.f32.mrb[0].mxu0
        %v6025 = vadd.f32 %v5972, %v6024
        %v6026 = vpop.f32.mrb[0].mxu0
        %v6027 = vadd.f32 %v5974, %v6026
        %6028 = vdwg.mxu0
        %6029 = vmatprep.subr.bf16.mxu0 %v4330
        %6030 = vmatpush1.bf16.msra.mxu0 %v4329
        %6031 = vmatprep.subr.bf16.mxu0 %v4336
        %6032 = vmatpush1.bf16.msra.mxu0 %v4335
        %6033 = vmatprep.subr.bf16.mxu0 %v4342
        %6034 = vmatpush1.bf16.msra.mxu0 %v4341
        %6035 = vmatprep.subr.bf16.mxu0 %v4348
        %6036 = vmatpush1.bf16.msra.mxu0 %v4347
        %6037 = vmatprep.subr.bf16.mxu0 %v4354
        %6038 = vmatpush1.bf16.msra.mxu0 %v4353
        %6039 = vmatprep.subr.bf16.mxu0 %v4360
        %6040 = vmatpush1.bf16.msra.mxu0 %v4359
        %6041 = vmatprep.subr.bf16.mxu0 %v4366
        %6042 = vmatpush1.bf16.msra.mxu0 %v4365
        %6043 = vmatprep.subr.bf16.mxu0 %v4372
        %6044 = vmatpush1.bf16.msra.mxu0 %v4371
        %6045 = vmatprep.subr.bf16.mxu0 %v4378
        %6046 = vmatpush1.bf16.msra.mxu0 %v4377
        %6047 = vmatprep.subr.bf16.mxu0 %v4384
        %6048 = vmatpush1.bf16.msra.mxu0 %v4383
        %6049 = vmatprep.subr.bf16.mxu0 %v4390
        %6050 = vmatpush1.bf16.msra.mxu0 %v4389
        %6051 = vmatprep.subr.bf16.mxu0 %v4396
        %6052 = vmatpush1.bf16.msra.mxu0 %v4395
        %6053 = vmatprep.subr.bf16.mxu0 %v4402
        %6054 = vmatpush1.bf16.msra.mxu0 %v4401
        %6055 = vmatprep.subr.bf16.mxu0 %v4408
        %6056 = vmatpush1.bf16.msra.mxu0 %v4407
        %6057 = vmatprep.subr.bf16.mxu0 %v4414
        %6058 = vmatpush1.bf16.msra.mxu0 %v4413
        %6059 = vmatprep.subr.bf16.mxu0 %v4420
        %6060 = vmatpush1.bf16.msra.mxu0 %v4419
        %6061 = vmatprep.mubr.bf16.mxu0 %v1396
        %6062 = vmatmul.mubr.bf16.gmra.mrb[0].mxu0 %v1395
        %v6063 = vpop.f32.mrb[0].mxu0
        %v6064 = vadd.f32 %v6011, %v6063
        %v6065 = vpop.f32.mrb[0].mxu0
        %v6066 = vadd.f32 %v6013, %v6065
        %v6067 = vpop.f32.mrb[0].mxu0
        %v6068 = vadd.f32 %v6015, %v6067
        %v6069 = vpop.f32.mrb[0].mxu0
        %v6070 = vadd.f32 %v6017, %v6069
        %6071 = vmatprep.mubr.bf16.mxu0 %v1412
        %6072 = vmatmul.mubr.bf16.gmra.mrb[0].mxu0 %v1411
        %v6073 = vpop.f32.mrb[0].mxu0
        %v6074 = vadd.f32 %v6021, %v6073
        %v6075 = vpop.f32.mrb[0].mxu0
        %v6076 = vadd.f32 %v6023, %v6075
        %v6077 = vpop.f32.mrb[0].mxu0
        %v6078 = vadd.f32 %v6025, %v6077
        %v6079 = vpop.f32.mrb[0].mxu0
        %v6080 = vadd.f32 %v6027, %v6079
        %6081 = vdwg.mxu0
        %6082 = vmatprep.subr.bf16.mxu0 %v4426
        %6083 = vmatpush1.bf16.msra.mxu0 %v4425
        %6084 = vmatprep.subr.bf16.mxu0 %v4432
        %6085 = vmatpush1.bf16.msra.mxu0 %v4431
        %6086 = vmatprep.subr.bf16.mxu0 %v4438
        %6087 = vmatpush1.bf16.msra.mxu0 %v4437
        %6088 = vmatprep.subr.bf16.mxu0 %v4444
        %6089 = vmatpush1.bf16.msra.mxu0 %v4443
        %6090 = vmatprep.subr.bf16.mxu0 %v4450
        %6091 = vmatpush1.bf16.msra.mxu0 %v4449
        %6092 = vmatprep.subr.bf16.mxu0 %v4456
        %6093 = vmatpush1.bf16.msra.mxu0 %v4455
        %6094 = vmatprep.subr.bf16.mxu0 %v4462
        %6095 = vmatpush1.bf16.msra.mxu0 %v4461
        %6096 = vmatprep.subr.bf16.mxu0 %v4468
        %6097 = vmatpush1.bf16.msra.mxu0 %v4467
        %6098 = vmatprep.subr.bf16.mxu0 %v4474
        %6099 = vmatpush1.bf16.msra.mxu0 %v4473
        %6100 = vmatprep.subr.bf16.mxu0 %v4480
        %6101 = vmatpush1.bf16.msra.mxu0 %v4479
        %6102 = vmatprep.subr.bf16.mxu0 %v4486
        %6103 = vmatpush1.bf16.msra.mxu0 %v4485
        %6104 = vmatprep.subr.bf16.mxu0 %v4492
        %6105 = vmatpush1.bf16.msra.mxu0 %v4491
        %6106 = vmatprep.subr.bf16.mxu0 %v4498
        %6107 = vmatpush1.bf16.msra.mxu0 %v4497
        %6108 = vmatprep.subr.bf16.mxu0 %v4504
        %6109 = vmatpush1.bf16.msra.mxu0 %v4503
        %6110 = vmatprep.subr.bf16.mxu0 %v4510
        %6111 = vmatpush1.bf16.msra.mxu0 %v4509
        %6112 = vmatprep.subr.bf16.mxu0 %v4516
        %6113 = vmatpush1.bf16.msra.mxu0 %v4515
        %6114 = vmatprep.mubr.bf16.mxu0 %v1398
        %6115 = vmatmul.mubr.bf16.gmra.mrb[0].mxu0 %v1397
        %v6116 = vpop.f32.mrb[0].mxu0
        %v6117 = vadd.f32 %v6064, %v6116
        %v6118 = vpop.f32.mrb[0].mxu0
        %v6119 = vadd.f32 %v6066, %v6118
        %v6120 = vpop.f32.mrb[0].mxu0
        %v6121 = vadd.f32 %v6068, %v6120
        %v6122 = vpop.f32.mrb[0].mxu0
        %v6123 = vadd.f32 %v6070, %v6122
        %6124 = vmatprep.mubr.bf16.mxu0 %v1414
        %6125 = vmatmul.mubr.bf16.gmra.mrb[0].mxu0 %v1413
        %v6126 = vpop.f32.mrb[0].mxu0
        %v6127 = vadd.f32 %v6074, %v6126
        %v6128 = vpop.f32.mrb[0].mxu0
        %v6129 = vadd.f32 %v6076, %v6128
        %v6130 = vpop.f32.mrb[0].mxu0
        %v6131 = vadd.f32 %v6078, %v6130
        %v6132 = vpop.f32.mrb[0].mxu0
        %v6133 = vadd.f32 %v6080, %v6132
        %6134 = vdwg.mxu0
        %6135 = vmatprep.subr.bf16.mxu0 %v3756
        %6136 = vmatpush1.bf16.msra.mxu0 %v3755
        %6137 = vmatprep.subr.bf16.mxu0 %v3762
        %6138 = vmatpush1.bf16.msra.mxu0 %v3761
        %6139 = vmatprep.subr.bf16.mxu0 %v3768
        %6140 = vmatpush1.bf16.msra.mxu0 %v3767
        %6141 = vmatprep.subr.bf16.mxu0 %v3774
        %6142 = vmatpush1.bf16.msra.mxu0 %v3773
        %6143 = vmatprep.subr.bf16.mxu0 %v3780
        %6144 = vmatpush1.bf16.msra.mxu0 %v3779
        %6145 = vmatprep.subr.bf16.mxu0 %v3786
        %6146 = vmatpush1.bf16.msra.mxu0 %v3785
        %6147 = vmatprep.subr.bf16.mxu0 %v3792
        %6148 = vmatpush1.bf16.msra.mxu0 %v3791
        %6149 = vmatprep.subr.bf16.mxu0 %v3798
        %6150 = vmatpush1.bf16.msra.mxu0 %v3797
        %6151 = vmatprep.subr.bf16.mxu0 %v3804
        %6152 = vmatpush1.bf16.msra.mxu0 %v3803
        %6153 = vmatprep.subr.bf16.mxu0 %v3810
        %6154 = vmatpush1.bf16.msra.mxu0 %v3809
        %6155 = vmatprep.subr.bf16.mxu0 %v3816
        %6156 = vmatpush1.bf16.msra.mxu0 %v3815
        %6157 = vmatprep.subr.bf16.mxu0 %v3822
        %6158 = vmatpush1.bf16.msra.mxu0 %v3821
        %6159 = vmatprep.subr.bf16.mxu0 %v3828
        %6160 = vmatpush1.bf16.msra.mxu0 %v3827
        %6161 = vmatprep.subr.bf16.mxu0 %v3834
        %6162 = vmatpush1.bf16.msra.mxu0 %v3833
        %6163 = vmatprep.subr.bf16.mxu0 %v3840
        %6164 = vmatpush1.bf16.msra.mxu0 %v3839
        %6165 = vmatprep.subr.bf16.mxu0 %v3846
        %6166 = vmatpush1.bf16.msra.mxu0 %v3845
        %6167 = vmatprep.mubr.bf16.mxu0 %v1384
        %6168 = vmatmul.mubr.bf16.gmra.mrb[0].mxu0 %v1383
        %v6169 = vpop.f32.mrb[0].mxu0
        %v6170 = vadd.f32 %v1276, %v6169
        %v6171 = vpop.f32.mrb[0].mxu0
        %v6172 = vadd.f32 %v1280, %v6171
        %v6173 = vpop.f32.mrb[0].mxu0
        %v6174 = vadd.f32 %v1276, %v6173
        %v6175 = vpop.f32.mrb[0].mxu0
        %v6176 = vadd.f32 %v1280, %v6175
        %6177 = vmatprep.mubr.bf16.mxu0 %v1400
        %6178 = vmatmul.mubr.bf16.gmra.mrb[0].mxu0 %v1399
        %v6179 = vpop.f32.mrb[0].mxu0
        %v6180 = vadd.f32 %v1276, %v6179
        %v6181 = vpop.f32.mrb[0].mxu0
        %v6182 = vadd.f32 %v1280, %v6181
        %v6183 = vpop.f32.mrb[0].mxu0
        %v6184 = vadd.f32 %v1276, %v6183
        %v6185 = vpop.f32.mrb[0].mxu0
        %v6186 = vadd.f32 %v1280, %v6185
        %6187 = vdwg.mxu0
        %6188 = vmatprep.subr.bf16.mxu0 %v3852
        %6189 = vmatpush1.bf16.msra.mxu0 %v3851
        %6190 = vmatprep.subr.bf16.mxu0 %v3858
        %6191 = vmatpush1.bf16.msra.mxu0 %v3857
        %6192 = vmatprep.subr.bf16.mxu0 %v3864
        %6193 = vmatpush1.bf16.msra.mxu0 %v3863
        %6194 = vmatprep.subr.bf16.mxu0 %v3870
        %6195 = vmatpush1.bf16.msra.mxu0 %v3869
        %6196 = vmatprep.subr.bf16.mxu0 %v3876
        %6197 = vmatpush1.bf16.msra.mxu0 %v3875
        %6198 = vmatprep.subr.bf16.mxu0 %v3882
        %6199 = vmatpush1.bf16.msra.mxu0 %v3881
        %6200 = vmatprep.subr.bf16.mxu0 %v3888
        %6201 = vmatpush1.bf16.msra.mxu0 %v3887
        %6202 = vmatprep.subr.bf16.mxu0 %v3894
        %6203 = vmatpush1.bf16.msra.mxu0 %v3893
        %6204 = vmatprep.subr.bf16.mxu0 %v3900
        %6205 = vmatpush1.bf16.msra.mxu0 %v3899
        %6206 = vmatprep.subr.bf16.mxu0 %v3906
        %6207 = vmatpush1.bf16.msra.mxu0 %v3905
        %6208 = vmatprep.subr.bf16.mxu0 %v3912
        %6209 = vmatpush1.bf16.msra.mxu0 %v3911
        %6210 = vmatprep.subr.bf16.mxu0 %v3918
        %6211 = vmatpush1.bf16.msra.mxu0 %v3917
        %6212 = vmatprep.subr.bf16.mxu0 %v3924
        %6213 = vmatpush1.bf16.msra.mxu0 %v3923
        %6214 = vmatprep.subr.bf16.mxu0 %v3930
        %6215 = vmatpush1.bf16.msra.mxu0 %v3929
        %6216 = vmatprep.subr.bf16.mxu0 %v3936
        %6217 = vmatpush1.bf16.msra.mxu0 %v3935
        %6218 = vmatprep.subr.bf16.mxu0 %v3942
        %6219 = vmatpush1.bf16.msra.mxu0 %v3941
        %6220 = vmatprep.mubr.bf16.mxu0 %v1386
        %6221 = vmatmul.mubr.bf16.gmra.mrb[0].mxu0 %v1385
        %v6222 = vpop.f32.mrb[0].mxu0
        %v6223 = vadd.f32 %v6170, %v6222
        %v6224 = vpop.f32.mrb[0].mxu0
        %v6225 = vadd.f32 %v6172, %v6224
        %v6226 = vpop.f32.mrb[0].mxu0
        %v6227 = vadd.f32 %v6174, %v6226
        %v6228 = vpop.f32.mrb[0].mxu0
        %v6229 = vadd.f32 %v6176, %v6228
        %6230 = vmatprep.mubr.bf16.mxu0 %v1402
        %6231 = vmatmul.mubr.bf16.gmra.mrb[0].mxu0 %v1401
        %v6232 = vpop.f32.mrb[0].mxu0
        %v6233 = vadd.f32 %v6180, %v6232
        %v6234 = vpop.f32.mrb[0].mxu0
        %v6235 = vadd.f32 %v6182, %v6234
        %v6236 = vpop.f32.mrb[0].mxu0
        %v6237 = vadd.f32 %v6184, %v6236
        %v6238 = vpop.f32.mrb[0].mxu0
        %v6239 = vadd.f32 %v6186, %v6238
        %6240 = vdwg.mxu0
        %6241 = vmatprep.subr.bf16.mxu0 %v3948
        %6242 = vmatpush1.bf16.msra.mxu0 %v3947
        %6243 = vmatprep.subr.bf16.mxu0 %v3954
        %6244 = vmatpush1.bf16.msra.mxu0 %v3953
        %6245 = vmatprep.subr.bf16.mxu0 %v3960
        %6246 = vmatpush1.bf16.msra.mxu0 %v3959
        %6247 = vmatprep.subr.bf16.mxu0 %v3966
        %6248 = vmatpush1.bf16.msra.mxu0 %v3965
        %6249 = vmatprep.subr.bf16.mxu0 %v3972
        %6250 = vmatpush1.bf16.msra.mxu0 %v3971
        %6251 = vmatprep.subr.bf16.mxu0 %v3978
        %6252 = vmatpush1.bf16.msra.mxu0 %v3977
        %6253 = vmatprep.subr.bf16.mxu0 %v3984
        %6254 = vmatpush1.bf16.msra.mxu0 %v3983
        %6255 = vmatprep.subr.bf16.mxu0 %v3990
        %6256 = vmatpush1.bf16.msra.mxu0 %v3989
        %6257 = vmatprep.subr.bf16.mxu0 %v3996
        %6258 = vmatpush1.bf16.msra.mxu0 %v3995
        %6259 = vmatprep.subr.bf16.mxu0 %v4002
        %6260 = vmatpush1.bf16.msra.mxu0 %v4001
        %6261 = vmatprep.subr.bf16.mxu0 %v4008
        %6262 = vmatpush1.bf16.msra.mxu0 %v4007
        %6263 = vmatprep.subr.bf16.mxu0 %v4014
        %6264 = vmatpush1.bf16.msra.mxu0 %v4013
        %6265 = vmatprep.subr.bf16.mxu0 %v4020
        %6266 = vmatpush1.bf16.msra.mxu0 %v4019
        %6267 = vmatprep.subr.bf16.mxu0 %v4026
        %6268 = vmatpush1.bf16.msra.mxu0 %v4025
        %6269 = vmatprep.subr.bf16.mxu0 %v4032
        %6270 = vmatpush1.bf16.msra.mxu0 %v4031
        %6271 = vmatprep.subr.bf16.mxu0 %v4038
        %6272 = vmatpush1.bf16.msra.mxu0 %v4037
        %6273 = vmatprep.mubr.bf16.mxu0 %v1388
        %6274 = vmatmul.mubr.bf16.gmra.mrb[0].mxu0 %v1387
        %v6275 = vpop.f32.mrb[0].mxu0
        %v6276 = vadd.f32 %v6223, %v6275
        %v6277 = vpop.f32.mrb[0].mxu0
        %v6278 = vadd.f32 %v6225, %v6277
        %v6279 = vpop.f32.mrb[0].mxu0
        %v6280 = vadd.f32 %v6227, %v6279
        %v6281 = vpop.f32.mrb[0].mxu0
        %v6282 = vadd.f32 %v6229, %v6281
        %6283 = vmatprep.mubr.bf16.mxu0 %v1404
        %6284 = vmatmul.mubr.bf16.gmra.mrb[0].mxu0 %v1403
        %v6285 = vpop.f32.mrb[0].mxu0
        %v6286 = vadd.f32 %v6233, %v6285
        %v6287 = vpop.f32.mrb[0].mxu0
        %v6288 = vadd.f32 %v6235, %v6287
        %v6289 = vpop.f32.mrb[0].mxu0
        %v6290 = vadd.f32 %v6237, %v6289
        %v6291 = vpop.f32.mrb[0].mxu0
        %v6292 = vadd.f32 %v6239, %v6291
        %6293 = vdwg.mxu0
        %6294 = vmatprep.subr.bf16.mxu0 %v4044
        %6295 = vmatpush1.bf16.msra.mxu0 %v4043
        %6296 = vmatprep.subr.bf16.mxu0 %v4050
        %6297 = vmatpush1.bf16.msra.mxu0 %v4049
        %6298 = vmatprep.subr.bf16.mxu0 %v4056
        %6299 = vmatpush1.bf16.msra.mxu0 %v4055
        %6300 = vmatprep.subr.bf16.mxu0 %v4062
        %6301 = vmatpush1.bf16.msra.mxu0 %v4061
        %6302 = vmatprep.subr.bf16.mxu0 %v4068
        %6303 = vmatpush1.bf16.msra.mxu0 %v4067
        %6304 = vmatprep.subr.bf16.mxu0 %v4074
        %6305 = vmatpush1.bf16.msra.mxu0 %v4073
        %6306 = vmatprep.subr.bf16.mxu0 %v4080
        %6307 = vmatpush1.bf16.msra.mxu0 %v4079
        %6308 = vmatprep.subr.bf16.mxu0 %v4086
        %6309 = vmatpush1.bf16.msra.mxu0 %v4085
        %6310 = vmatprep.subr.bf16.mxu0 %v4092
        %6311 = vmatpush1.bf16.msra.mxu0 %v4091
        %6312 = vmatprep.subr.bf16.mxu0 %v4098
        %6313 = vmatpush1.bf16.msra.mxu0 %v4097
        %6314 = vmatprep.subr.bf16.mxu0 %v4104
        %6315 = vmatpush1.bf16.msra.mxu0 %v4103
        %6316 = vmatprep.subr.bf16.mxu0 %v4110
        %6317 = vmatpush1.bf16.msra.mxu0 %v4109
        %6318 = vmatprep.subr.bf16.mxu0 %v4116
        %6319 = vmatpush1.bf16.msra.mxu0 %v4115
        %6320 = vmatprep.subr.bf16.mxu0 %v4122
        %6321 = vmatpush1.bf16.msra.mxu0 %v4121
        %6322 = vmatprep.subr.bf16.mxu0 %v4128
        %6323 = vmatpush1.bf16.msra.mxu0 %v4127
        %6324 = vmatprep.subr.bf16.mxu0 %v4134
        %6325 = vmatpush1.bf16.msra.mxu0 %v4133
        %6326 = vmatprep.mubr.bf16.mxu0 %v1390
        %6327 = vmatmul.mubr.bf16.gmra.mrb[0].mxu0 %v1389
        %v6328 = vpop.f32.mrb[0].mxu0
        %v6329 = vadd.f32 %v6276, %v6328
        %v6330 = vpop.f32.mrb[0].mxu0
        %v6331 = vadd.f32 %v6278, %v6330
        %v6332 = vpop.f32.mrb[0].mxu0
        %v6333 = vadd.f32 %v6280, %v6332
        %v6334 = vpop.f32.mrb[0].mxu0
        %v6335 = vadd.f32 %v6282, %v6334
        %6336 = vmatprep.mubr.bf16.mxu0 %v1406
        %6337 = vmatmul.mubr.bf16.gmra.mrb[0].mxu0 %v1405
        %v6338 = vpop.f32.mrb[0].mxu0
        %v6339 = vadd.f32 %v6286, %v6338
        %v6340 = vpop.f32.mrb[0].mxu0
        %v6341 = vadd.f32 %v6288, %v6340
        %v6342 = vpop.f32.mrb[0].mxu0
        %v6343 = vadd.f32 %v6290, %v6342
        %v6344 = vpop.f32.mrb[0].mxu0
        %v6345 = vadd.f32 %v6292, %v6344
        %6346 = vdwg.mxu0
        %6347 = vmatprep.subr.bf16.mxu0 %v4140
        %6348 = vmatpush1.bf16.msra.mxu0 %v4139
        %6349 = vmatprep.subr.bf16.mxu0 %v4146
        %6350 = vmatpush1.bf16.msra.mxu0 %v4145
        %6351 = vmatprep.subr.bf16.mxu0 %v4152
        %6352 = vmatpush1.bf16.msra.mxu0 %v4151
        %6353 = vmatprep.subr.bf16.mxu0 %v4158
        %6354 = vmatpush1.bf16.msra.mxu0 %v4157
        %6355 = vmatprep.subr.bf16.mxu0 %v4164
        %6356 = vmatpush1.bf16.msra.mxu0 %v4163
        %6357 = vmatprep.subr.bf16.mxu0 %v4170
        %6358 = vmatpush1.bf16.msra.mxu0 %v4169
        %6359 = vmatprep.subr.bf16.mxu0 %v4176
        %6360 = vmatpush1.bf16.msra.mxu0 %v4175
        %6361 = vmatprep.subr.bf16.mxu0 %v4182
        %6362 = vmatpush1.bf16.msra.mxu0 %v4181
        %6363 = vmatprep.subr.bf16.mxu0 %v4188
        %6364 = vmatpush1.bf16.msra.mxu0 %v4187
        %6365 = vmatprep.subr.bf16.mxu0 %v4194
        %6366 = vmatpush1.bf16.msra.mxu0 %v4193
        %6367 = vmatprep.subr.bf16.mxu0 %v4200
        %6368 = vmatpush1.bf16.msra.mxu0 %v4199
        %6369 = vmatprep.subr.bf16.mxu0 %v4206
        %6370 = vmatpush1.bf16.msra.mxu0 %v4205
        %6371 = vmatprep.subr.bf16.mxu0 %v4212
        %6372 = vmatpush1.bf16.msra.mxu0 %v4211
        %6373 = vmatprep.subr.bf16.mxu0 %v4218
        %6374 = vmatpush1.bf16.msra.mxu0 %v4217
        %6375 = vmatprep.subr.bf16.mxu0 %v4224
        %6376 = vmatpush1.bf16.msra.mxu0 %v4223
        %6377 = vmatprep.subr.bf16.mxu0 %v4230
        %6378 = vmatpush1.bf16.msra.mxu0 %v4229
        %6379 = vmatprep.mubr.bf16.mxu0 %v1392
        %6380 = vmatmul.mubr.bf16.gmra.mrb[0].mxu0 %v1391
        %v6381 = vpop.f32.mrb[0].mxu0
        %v6382 = vadd.f32 %v6329, %v6381
        %v6383 = vpop.f32.mrb[0].mxu0
        %v6384 = vadd.f32 %v6331, %v6383
        %v6385 = vpop.f32.mrb[0].mxu0
        %v6386 = vadd.f32 %v6333, %v6385
        %v6387 = vpop.f32.mrb[0].mxu0
        %v6388 = vadd.f32 %v6335, %v6387
        %6389 = vmatprep.mubr.bf16.mxu0 %v1408
        %6390 = vmatmul.mubr.bf16.gmra.mrb[0].mxu0 %v1407
        %v6391 = vpop.f32.mrb[0].mxu0
        %v6392 = vadd.f32 %v6339, %v6391
        %v6393 = vpop.f32.mrb[0].mxu0
        %v6394 = vadd.f32 %v6341, %v6393
        %v6395 = vpop.f32.mrb[0].mxu0
        %v6396 = vadd.f32 %v6343, %v6395
        %v6397 = vpop.f32.mrb[0].mxu0
        %v6398 = vadd.f32 %v6345, %v6397
        %6399 = vdwg.mxu0
        %6400 = vmatprep.subr.bf16.mxu0 %v4236
        %6401 = vmatpush1.bf16.msra.mxu0 %v4235
        %6402 = vmatprep.subr.bf16.mxu0 %v4242
        %6403 = vmatpush1.bf16.msra.mxu0 %v4241
        %6404 = vmatprep.subr.bf16.mxu0 %v4248
        %6405 = vmatpush1.bf16.msra.mxu0 %v4247
        %6406 = vmatprep.subr.bf16.mxu0 %v4254
        %6407 = vmatpush1.bf16.msra.mxu0 %v4253
        %6408 = vmatprep.subr.bf16.mxu0 %v4260
        %6409 = vmatpush1.bf16.msra.mxu0 %v4259
        %6410 = vmatprep.subr.bf16.mxu0 %v4266
        %6411 = vmatpush1.bf16.msra.mxu0 %v4265
        %6412 = vmatprep.subr.bf16.mxu0 %v4272
        %6413 = vmatpush1.bf16.msra.mxu0 %v4271
        %6414 = vmatprep.subr.bf16.mxu0 %v4278
        %6415 = vmatpush1.bf16.msra.mxu0 %v4277
        %6416 = vmatprep.subr.bf16.mxu0 %v4284
        %6417 = vmatpush1.bf16.msra.mxu0 %v4283
        %6418 = vmatprep.subr.bf16.mxu0 %v4290
        %6419 = vmatpush1.bf16.msra.mxu0 %v4289
        %6420 = vmatprep.subr.bf16.mxu0 %v4296
        %6421 = vmatpush1.bf16.msra.mxu0 %v4295
        %6422 = vmatprep.subr.bf16.mxu0 %v4302
        %6423 = vmatpush1.bf16.msra.mxu0 %v4301
        %6424 = vmatprep.subr.bf16.mxu0 %v4308
        %6425 = vmatpush1.bf16.msra.mxu0 %v4307
        %6426 = vmatprep.subr.bf16.mxu0 %v4314
        %6427 = vmatpush1.bf16.msra.mxu0 %v4313
        %6428 = vmatprep.subr.bf16.mxu0 %v4320
        %6429 = vmatpush1.bf16.msra.mxu0 %v4319
        %6430 = vmatprep.subr.bf16.mxu0 %v4326
        %6431 = vmatpush1.bf16.msra.mxu0 %v4325
        %6432 = vmatprep.mubr.bf16.mxu0 %v1394
        %6433 = vmatmul.mubr.bf16.gmra.mrb[0].mxu0 %v1393
        %v6434 = vpop.f32.mrb[0].mxu0
        %v6435 = vadd.f32 %v6382, %v6434
        %v6436 = vpop.f32.mrb[0].mxu0
        %v6437 = vadd.f32 %v6384, %v6436
        %v6438 = vpop.f32.mrb[0].mxu0
        %v6439 = vadd.f32 %v6386, %v6438
        %v6440 = vpop.f32.mrb[0].mxu0
        %v6441 = vadd.f32 %v6388, %v6440
        %6442 = vmatprep.mubr.bf16.mxu0 %v1410
        %6443 = vmatmul.mubr.bf16.gmra.mrb[0].mxu0 %v1409
        %v6444 = vpop.f32.mrb[0].mxu0
        %v6445 = vadd.f32 %v6392, %v6444
        %v6446 = vpop.f32.mrb[0].mxu0
        %v6447 = vadd.f32 %v6394, %v6446
        %v6448 = vpop.f32.mrb[0].mxu0
        %v6449 = vadd.f32 %v6396, %v6448
        %v6450 = vpop.f32.mrb[0].mxu0
        %v6451 = vadd.f32 %v6398, %v6450
        %6452 = vdwg.mxu0
        %6453 = vmatprep.subr.bf16.mxu0 %v4332
        %6454 = vmatpush1.bf16.msra.mxu0 %v4331
        %6455 = vmatprep.subr.bf16.mxu0 %v4338
        %6456 = vmatpush1.bf16.msra.mxu0 %v4337
        %6457 = vmatprep.subr.bf16.mxu0 %v4344
        %6458 = vmatpush1.bf16.msra.mxu0 %v4343
        %6459 = vmatprep.subr.bf16.mxu0 %v4350
        %6460 = vmatpush1.bf16.msra.mxu0 %v4349
        %6461 = vmatprep.subr.bf16.mxu0 %v4356
        %6462 = vmatpush1.bf16.msra.mxu0 %v4355
        %6463 = vmatprep.subr.bf16.mxu0 %v4362
        %6464 = vmatpush1.bf16.msra.mxu0 %v4361
        %6465 = vmatprep.subr.bf16.mxu0 %v4368
        %6466 = vmatpush1.bf16.msra.mxu0 %v4367
        %6467 = vmatprep.subr.bf16.mxu0 %v4374
        %6468 = vmatpush1.bf16.msra.mxu0 %v4373
        %6469 = vmatprep.subr.bf16.mxu0 %v4380
        %6470 = vmatpush1.bf16.msra.mxu0 %v4379
        %6471 = vmatprep.subr.bf16.mxu0 %v4386
        %6472 = vmatpush1.bf16.msra.mxu0 %v4385
        %6473 = vmatprep.subr.bf16.mxu0 %v4392
        %6474 = vmatpush1.bf16.msra.mxu0 %v4391
        %6475 = vmatprep.subr.bf16.mxu0 %v4398
        %6476 = vmatpush1.bf16.msra.mxu0 %v4397
        %6477 = vmatprep.subr.bf16.mxu0 %v4404
        %6478 = vmatpush1.bf16.msra.mxu0 %v4403
        %6479 = vmatprep.subr.bf16.mxu0 %v4410
        %6480 = vmatpush1.bf16.msra.mxu0 %v4409
        %6481 = vmatprep.subr.bf16.mxu0 %v4416
        %6482 = vmatpush1.bf16.msra.mxu0 %v4415
        %6483 = vmatprep.subr.bf16.mxu0 %v4422
        %6484 = vmatpush1.bf16.msra.mxu0 %v4421
        %6485 = vmatprep.mubr.bf16.mxu0 %v1396
        %6486 = vmatmul.mubr.bf16.gmra.mrb[0].mxu0 %v1395
        %v6487 = vpop.f32.mrb[0].mxu0
        %v6488 = vadd.f32 %v6435, %v6487
        %v6489 = vpop.f32.mrb[0].mxu0
        %v6490 = vadd.f32 %v6437, %v6489
        %v6491 = vpop.f32.mrb[0].mxu0
        %v6492 = vadd.f32 %v6439, %v6491
        %v6493 = vpop.f32.mrb[0].mxu0
        %v6494 = vadd.f32 %v6441, %v6493
        %6495 = vmatprep.mubr.bf16.mxu0 %v1412
        %6496 = vmatmul.mubr.bf16.gmra.mrb[0].mxu0 %v1411
        %v6497 = vpop.f32.mrb[0].mxu0
        %v6498 = vadd.f32 %v6445, %v6497
        %v6499 = vpop.f32.mrb[0].mxu0
        %v6500 = vadd.f32 %v6447, %v6499
        %v6501 = vpop.f32.mrb[0].mxu0
        %v6502 = vadd.f32 %v6449, %v6501
        %v6503 = vpop.f32.mrb[0].mxu0
        %v6504 = vadd.f32 %v6451, %v6503
        %6505 = vdwg.mxu0
        %6506 = vmatprep.subr.bf16.mxu0 %v4428
        %6507 = vmatpush1.bf16.msra.mxu0 %v4427
        %6508 = vmatprep.subr.bf16.mxu0 %v4434
        %6509 = vmatpush1.bf16.msra.mxu0 %v4433
        %6510 = vmatprep.subr.bf16.mxu0 %v4440
        %6511 = vmatpush1.bf16.msra.mxu0 %v4439
        %6512 = vmatprep.subr.bf16.mxu0 %v4446
        %6513 = vmatpush1.bf16.msra.mxu0 %v4445
        %6514 = vmatprep.subr.bf16.mxu0 %v4452
        %6515 = vmatpush1.bf16.msra.mxu0 %v4451
        %6516 = vmatprep.subr.bf16.mxu0 %v4458
        %6517 = vmatpush1.bf16.msra.mxu0 %v4457
        %6518 = vmatprep.subr.bf16.mxu0 %v4464
        %6519 = vmatpush1.bf16.msra.mxu0 %v4463
        %6520 = vmatprep.subr.bf16.mxu0 %v4470
        %6521 = vmatpush1.bf16.msra.mxu0 %v4469
        %6522 = vmatprep.subr.bf16.mxu0 %v4476
        %6523 = vmatpush1.bf16.msra.mxu0 %v4475
        %6524 = vmatprep.subr.bf16.mxu0 %v4482
        %6525 = vmatpush1.bf16.msra.mxu0 %v4481
        %6526 = vmatprep.subr.bf16.mxu0 %v4488
        %6527 = vmatpush1.bf16.msra.mxu0 %v4487
        %6528 = vmatprep.subr.bf16.mxu0 %v4494
        %6529 = vmatpush1.bf16.msra.mxu0 %v4493
        %6530 = vmatprep.subr.bf16.mxu0 %v4500
        %6531 = vmatpush1.bf16.msra.mxu0 %v4499
        %6532 = vmatprep.subr.bf16.mxu0 %v4506
        %6533 = vmatpush1.bf16.msra.mxu0 %v4505
        %6534 = vmatprep.subr.bf16.mxu0 %v4512
        %6535 = vmatpush1.bf16.msra.mxu0 %v4511
        %6536 = vmatprep.subr.bf16.mxu0 %v4518
        %6537 = vmatpush1.bf16.msra.mxu0 %v4517
        %6538 = vmatprep.mubr.bf16.mxu0 %v1398
        %6539 = vmatmul.mubr.bf16.gmra.mrb[0].mxu0 %v1397
        %v6540 = vpop.f32.mrb[0].mxu0
        %v6541 = vadd.f32 %v6488, %v6540
        %v6542 = vpop.f32.mrb[0].mxu0
        %v6543 = vadd.f32 %v6490, %v6542
        %v6544 = vpop.f32.mrb[0].mxu0
        %v6545 = vadd.f32 %v6492, %v6544
        %v6546 = vpop.f32.mrb[0].mxu0
        %v6547 = vadd.f32 %v6494, %v6546
        %6548 = vmatprep.mubr.bf16.mxu0 %v1414
        %6549 = vmatmul.mubr.bf16.gmra.mrb[0].mxu0 %v1413
        %v6550 = vpop.f32.mrb[0].mxu0
        %v6551 = vadd.f32 %v6498, %v6550
        %v6552 = vpop.f32.mrb[0].mxu0
        %v6553 = vadd.f32 %v6500, %v6552
        %v6554 = vpop.f32.mrb[0].mxu0
        %v6555 = vadd.f32 %v6502, %v6554
        %v6556 = vpop.f32.mrb[0].mxu0
        %v6557 = vadd.f32 %v6504, %v6556
        %6558 = vdwg.mxu0
        %vm6559 = vcmp.gt.f32.partialorder %v5693, 0.0
        %vm6560 = vcmp.gt.f32.partialorder %v5695, 0.0
        %vm6561 = vcmp.gt.f32.partialorder %v6117, 0.0
        %vm6562 = vcmp.gt.f32.partialorder %v6119, 0.0
        %vm6563 = vcmp.gt.f32.partialorder %v6541, 0.0
        %vm6564 = vcmp.gt.f32.partialorder %v6543, 0.0
        %vm6565 = vcmp.gt.f32.partialorder %v5697, 0.0
        %vm6566 = vcmp.gt.f32.partialorder %v5699, 0.0
        %vm6567 = vcmp.gt.f32.partialorder %v6121, 0.0
        %vm6568 = vcmp.gt.f32.partialorder %v6123, 0.0
        %vm6569 = vcmp.gt.f32.partialorder %v6545, 0.0
        %vm6570 = vcmp.gt.f32.partialorder %v6547, 0.0
        %vm6571 = vcmp.gt.f32.partialorder %v5703, 0.0
        %vm6572 = vcmp.gt.f32.partialorder %v5705, 0.0
        %vm6573 = vcmp.gt.f32.partialorder %v6127, 0.0
        %vm6574 = vcmp.gt.f32.partialorder %v6129, 0.0
        %vm6575 = vcmp.gt.f32.partialorder %v6551, 0.0
        %vm6576 = vcmp.gt.f32.partialorder %v6553, 0.0
        %vm6577 = vcmp.gt.f32.partialorder %v5707, 0.0
        %vm6578 = vcmp.gt.f32.partialorder %v5709, 0.0
        %vm6579 = vcmp.gt.f32.partialorder %v6131, 0.0
        %vm6580 = vcmp.gt.f32.partialorder %v6133, 0.0
        %vm6581 = vcmp.gt.f32.partialorder %v6555, 0.0
        %vm6582 = vcmp.gt.f32.partialorder %v6557, 0.0
        %v6583 = vmul.f32 %v5693, 0.01
        %v6584 = vmul.f32 %v5695, 0.01
        %v6585 = vmul.f32 %v6117, 0.01
        %v6586 = vmul.f32 %v6119, 0.01
        %v6587 = vmul.f32 %v6541, 0.01
        %v6588 = vmul.f32 %v6543, 0.01
        %v6589 = vmul.f32 %v5697, 0.01
        %v6590 = vmul.f32 %v5699, 0.01
        %v6591 = vmul.f32 %v6121, 0.01
        %v6592 = vmul.f32 %v6123, 0.01
        %v6593 = vmul.f32 %v6545, 0.01
        %v6594 = vmul.f32 %v6547, 0.01
        %v6595 = vmul.f32 %v5703, 0.01
        %v6596 = vmul.f32 %v5705, 0.01
        %v6597 = vmul.f32 %v6127, 0.01
        %v6598 = vmul.f32 %v6129, 0.01
        %v6599 = vmul.f32 %v6551, 0.01
        %v6600 = vmul.f32 %v6553, 0.01
        %v6601 = vmul.f32 %v5707, 0.01
        %v6602 = vmul.f32 %v5709, 0.01
        %v6603 = vmul.f32 %v6131, 0.01
        %v6604 = vmul.f32 %v6133, 0.01
        %v6605 = vmul.f32 %v6555, 0.01
        %v6606 = vmul.f32 %v6557, 0.01
        %v6607 = vsel %vm6559, %v5693, %v6583
        %v6608 = vsel %vm6560, %v5695, %v6584
        %v6609 = vsel %vm6561, %v6117, %v6585
        %v6610 = vsel %vm6562, %v6119, %v6586
        %v6611 = vsel %vm6563, %v6541, %v6587
        %v6612 = vsel %vm6564, %v6543, %v6588
        %v6613 = vsel %vm6565, %v5697, %v6589
        %v6614 = vsel %vm6566, %v5699, %v6590
        %v6615 = vsel %vm6567, %v6121, %v6591
        %v6616 = vsel %vm6568, %v6123, %v6592
        %v6617 = vsel %vm6569, %v6545, %v6593
        %v6618 = vsel %vm6570, %v6547, %v6594
        %v6619 = vsel %vm6571, %v5703, %v6595
        %v6620 = vsel %vm6572, %v5705, %v6596
        %v6621 = vsel %vm6573, %v6127, %v6597
        %v6622 = vsel %vm6574, %v6129, %v6598
        %v6623 = vsel %vm6575, %v6551, %v6599
        %v6624 = vsel %vm6576, %v6553, %v6600
        %v6625 = vsel %vm6577, %v5707, %v6601
        %v6626 = vsel %vm6578, %v5709, %v6602
        %v6627 = vsel %vm6579, %v6131, %v6603
        %v6628 = vsel %vm6580, %v6133, %v6604
        %v6629 = vsel %vm6581, %v6555, %v6605
        %v6630 = vsel %vm6582, %v6557, %v6606
        %v6631 = vpack.c.bf16 %v6613, %v6607
        %v6632 = vpack.c.bf16 %v6614, %v6608
        %v6633 = vpack.c.bf16 %v6615, %v6609
        %v6634 = vpack.c.bf16 %v6616, %v6610
        %v6635 = vpack.c.bf16 %v6617, %v6611
        %v6636 = vpack.c.bf16 %v6618, %v6612
        %v6637 = vpack.c.bf16 %v6625, %v6619
        %v6638 = vpack.c.bf16 %v6626, %v6620
        %v6639 = vpack.c.bf16 %v6627, %v6621
        %v6640 = vpack.c.bf16 %v6628, %v6622
        %v6641 = vpack.c.bf16 %v6629, %v6623
        %v6642 = vpack.c.bf16 %v6630, %v6624
        %v6643 = vld [vmem:[#allocation2] sm:$0xff]
        %v6644 = vld [vmem:[#allocation2 + $0x8] sm:$0xff]
        %v6645 = vld [vmem:[#allocation2 + $0x10] sm:$0xff]
        %v6646 = vld [vmem:[#allocation2 + $0x18] sm:$0xff]
        %v6647 = vld [vmem:[#allocation2 + $0x20] sm:$0xff]
        %v6648 = vld [vmem:[#allocation2 + $0x28] sm:$0xff]
        %v6649 = vld [vmem:[#allocation2 + $0x30] sm:$0xff]
        %v6650 = vld [vmem:[#allocation2 + $0x38] sm:$0xff]
        %v6651 = vld [vmem:[#allocation2 + $0x40] sm:$0xff]
        %v6652 = vld [vmem:[#allocation2 + $0x48] sm:$0xff]
        %v6653 = vld [vmem:[#allocation2 + $0x50] sm:$0xff]
        %v6654 = vld [vmem:[#allocation2 + $0x58] sm:$0xff]
        %v6655 = vld [vmem:[#allocation2 + $0x60] sm:$0xff]
        %v6656 = vld [vmem:[#allocation2 + $0x68] sm:$0xff]
        %v6657 = vld [vmem:[#allocation2 + $0x70] sm:$0xff]
        %v6658 = vld [vmem:[#allocation2 + $0x78] sm:$0xff]
        %v6659 = vld [vmem:[#allocation2 + $0x80] sm:$0xff]
        %v6660 = vld [vmem:[#allocation2 + $0x88] sm:$0xff]
        %v6661 = vld [vmem:[#allocation2 + $0x90] sm:$0xff]
        %v6662 = vld [vmem:[#allocation2 + $0x98] sm:$0xff]
        %v6663 = vld [vmem:[#allocation2 + $0xa0] sm:$0xff]
        %v6664 = vld [vmem:[#allocation2 + $0xa8] sm:$0xff]
        %v6665 = vld [vmem:[#allocation2 + $0xb0] sm:$0xff]
        %v6666 = vld [vmem:[#allocation2 + $0xb8] sm:$0xff]
        %v6667 = vld [vmem:[#allocation2 + $0xc0] sm:$0xff]
        %v6668 = vld [vmem:[#allocation2 + $0xc8] sm:$0xff]
        %v6669 = vld [vmem:[#allocation2 + $0xd0] sm:$0xff]
        %v6670 = vld [vmem:[#allocation2 + $0xd8] sm:$0xff]
        %v6671 = vld [vmem:[#allocation2 + $0xe0] sm:$0xff]
        %v6672 = vld [vmem:[#allocation2 + $0xe8] sm:$0xff]
        %v6673 = vld [vmem:[#allocation2 + $0xf0] sm:$0xff]
        %v6674 = vld [vmem:[#allocation2 + $0xf8] sm:$0xff]
        %v6675 = vld [vmem:[%s367] sm:$0xff]
        %v6676 = vld [vmem:[%s367 + $0x8] sm:$0xff]
        %v6677 = vld [vmem:[%s367 + $0x10] sm:$0xff]
        %v6678 = vld [vmem:[%s367 + $0x18] sm:$0xff]
        %v6679 = vld [vmem:[%s367 + $0x20] sm:$0xff]
        %v6680 = vld [vmem:[%s367 + $0x28] sm:$0xff]
        %v6681 = vld [vmem:[%s367 + $0x30] sm:$0xff]
        %v6682 = vld [vmem:[%s367 + $0x38] sm:$0xff]
        %v6683 = vld [vmem:[%s367 + $0x40] sm:$0xff]
        %v6684 = vld [vmem:[%s367 + $0x48] sm:$0xff]
        %v6685 = vld [vmem:[%s367 + $0x50] sm:$0xff]
        %v6686 = vld [vmem:[%s367 + $0x58] sm:$0xff]
        %v6687 = vld [vmem:[%s367 + $0x60] sm:$0xff]
        %v6688 = vld [vmem:[%s367 + $0x68] sm:$0xff]
        %v6689 = vld [vmem:[%s367 + $0x70] sm:$0xff]
        %v6690 = vld [vmem:[%s367 + $0x78] sm:$0xff]
        %v6691 = vld [vmem:[%s367 + $0x80] sm:$0xff]
        %v6692 = vld [vmem:[%s367 + $0x88] sm:$0xff]
        %v6693 = vld [vmem:[%s367 + $0x90] sm:$0xff]
        %v6694 = vld [vmem:[%s367 + $0x98] sm:$0xff]
        %v6695 = vld [vmem:[%s367 + $0xa0] sm:$0xff]
        %v6696 = vld [vmem:[%s367 + $0xa8] sm:$0xff]
        %v6697 = vld [vmem:[%s367 + $0xb0] sm:$0xff]
        %v6698 = vld [vmem:[%s367 + $0xb8] sm:$0xff]
        %v6699 = vld [vmem:[%s367 + $0xc0] sm:$0xff]
        %v6700 = vld [vmem:[%s367 + $0xc8] sm:$0xff]
        %v6701 = vld [vmem:[%s367 + $0xd0] sm:$0xff]
        %v6702 = vld [vmem:[%s367 + $0xd8] sm:$0xff]
        %v6703 = vld [vmem:[%s367 + $0xe0] sm:$0xff]
        %v6704 = vld [vmem:[%s367 + $0xe8] sm:$0xff]
        %v6705 = vld [vmem:[%s367 + $0xf0] sm:$0xff]
        %v6706 = vld [vmem:[%s367 + $0xf8] sm:$0xff]
        %v6707 = vld [vmem:[%s367 + $0x100] sm:$0xff]
        %v6708 = vld [vmem:[%s367 + $0x108] sm:$0xff]
        %v6709 = vld [vmem:[%s367 + $0x110] sm:$0xff]
        %v6710 = vld [vmem:[%s367 + $0x118] sm:$0xff]
        %v6711 = vld [vmem:[%s367 + $0x120] sm:$0xff]
        %v6712 = vld [vmem:[%s367 + $0x128] sm:$0xff]
        %v6713 = vld [vmem:[%s367 + $0x130] sm:$0xff]
        %v6714 = vld [vmem:[%s367 + $0x138] sm:$0xff]
        %v6715 = vld [vmem:[%s367 + $0x140] sm:$0xff]
        %v6716 = vld [vmem:[%s367 + $0x148] sm:$0xff]
        %v6717 = vld [vmem:[%s367 + $0x150] sm:$0xff]
        %v6718 = vld [vmem:[%s367 + $0x158] sm:$0xff]
        %v6719 = vld [vmem:[%s367 + $0x160] sm:$0xff]
        %v6720 = vld [vmem:[%s367 + $0x168] sm:$0xff]
        %v6721 = vld [vmem:[%s367 + $0x170] sm:$0xff]
        %v6722 = vld [vmem:[%s367 + $0x178] sm:$0xff]
        %v6723 = vld [vmem:[%s367 + $0x180] sm:$0xff]
        %v6724 = vld [vmem:[%s367 + $0x188] sm:$0xff]
        %v6725 = vld [vmem:[%s367 + $0x190] sm:$0xff]
        %v6726 = vld [vmem:[%s367 + $0x198] sm:$0xff]
        %v6727 = vld [vmem:[%s367 + $0x1a0] sm:$0xff]
        %v6728 = vld [vmem:[%s367 + $0x1a8] sm:$0xff]
        %v6729 = vld [vmem:[%s367 + $0x1b0] sm:$0xff]
        %v6730 = vld [vmem:[%s367 + $0x1b8] sm:$0xff]
        %v6731 = vld [vmem:[%s367 + $0x1c0] sm:$0xff]
        %v6732 = vld [vmem:[%s367 + $0x1c8] sm:$0xff]
        %v6733 = vld [vmem:[%s367 + $0x1d0] sm:$0xff]
        %v6734 = vld [vmem:[%s367 + $0x1d8] sm:$0xff]
        %v6735 = vld [vmem:[%s367 + $0x1e0] sm:$0xff]
        %v6736 = vld [vmem:[%s367 + $0x1e8] sm:$0xff]
        %v6737 = vld [vmem:[%s367 + $0x1f0] sm:$0xff]
        %v6738 = vld [vmem:[%s367 + $0x1f8] sm:$0xff]
        %v6739 = vld [vmem:[%s367 + $0x200] sm:$0xff]
        %v6740 = vld [vmem:[%s367 + $0x208] sm:$0xff]
        %v6741 = vld [vmem:[%s367 + $0x210] sm:$0xff]
        %v6742 = vld [vmem:[%s367 + $0x218] sm:$0xff]
        %v6743 = vld [vmem:[%s367 + $0x220] sm:$0xff]
        %v6744 = vld [vmem:[%s367 + $0x228] sm:$0xff]
        %v6745 = vld [vmem:[%s367 + $0x230] sm:$0xff]
        %v6746 = vld [vmem:[%s367 + $0x238] sm:$0xff]
        %v6747 = vld [vmem:[%s367 + $0x240] sm:$0xff]
        %v6748 = vld [vmem:[%s367 + $0x248] sm:$0xff]
        %v6749 = vld [vmem:[%s367 + $0x250] sm:$0xff]
        %v6750 = vld [vmem:[%s367 + $0x258] sm:$0xff]
        %v6751 = vld [vmem:[%s367 + $0x260] sm:$0xff]
        %v6752 = vld [vmem:[%s367 + $0x268] sm:$0xff]
        %v6753 = vld [vmem:[%s367 + $0x270] sm:$0xff]
        %v6754 = vld [vmem:[%s367 + $0x278] sm:$0xff]
        %v6755 = vld [vmem:[%s367 + $0x280] sm:$0xff]
        %v6756 = vld [vmem:[%s367 + $0x288] sm:$0xff]
        %v6757 = vld [vmem:[%s367 + $0x290] sm:$0xff]
        %v6758 = vld [vmem:[%s367 + $0x298] sm:$0xff]
        %v6759 = vld [vmem:[%s367 + $0x2a0] sm:$0xff]
        %v6760 = vld [vmem:[%s367 + $0x2a8] sm:$0xff]
        %v6761 = vld [vmem:[%s367 + $0x2b0] sm:$0xff]
        %v6762 = vld [vmem:[%s367 + $0x2b8] sm:$0xff]
        %v6763 = vld [vmem:[%s367 + $0x2c0] sm:$0xff]
        %v6764 = vld [vmem:[%s367 + $0x2c8] sm:$0xff]
        %v6765 = vld [vmem:[%s367 + $0x2d0] sm:$0xff]
        %v6766 = vld [vmem:[%s367 + $0x2d8] sm:$0xff]
        %v6767 = vld [vmem:[%s367 + $0x2e0] sm:$0xff]
        %v6768 = vld [vmem:[%s367 + $0x2e8] sm:$0xff]
        %v6769 = vld [vmem:[%s367 + $0x2f0] sm:$0xff]
        %v6770 = vld [vmem:[%s367 + $0x2f8] sm:$0xff]
        %v6771 = vld [vmem:[%s367 + $0x300] sm:$0xff]
        %v6772 = vld [vmem:[%s367 + $0x308] sm:$0xff]
        %v6773 = vld [vmem:[%s367 + $0x310] sm:$0xff]
        %v6774 = vld [vmem:[%s367 + $0x318] sm:$0xff]
        %v6775 = vld [vmem:[%s367 + $0x320] sm:$0xff]
        %v6776 = vld [vmem:[%s367 + $0x328] sm:$0xff]
        %v6777 = vld [vmem:[%s367 + $0x330] sm:$0xff]
        %v6778 = vld [vmem:[%s367 + $0x338] sm:$0xff]
        %v6779 = vld [vmem:[%s367 + $0x340] sm:$0xff]
        %v6780 = vld [vmem:[%s367 + $0x348] sm:$0xff]
        %v6781 = vld [vmem:[%s367 + $0x350] sm:$0xff]
        %v6782 = vld [vmem:[%s367 + $0x358] sm:$0xff]
        %v6783 = vld [vmem:[%s367 + $0x360] sm:$0xff]
        %v6784 = vld [vmem:[%s367 + $0x368] sm:$0xff]
        %v6785 = vld [vmem:[%s367 + $0x370] sm:$0xff]
        %v6786 = vld [vmem:[%s367 + $0x378] sm:$0xff]
        %v6787 = vld [vmem:[%s367 + $0x380] sm:$0xff]
        %v6788 = vld [vmem:[%s367 + $0x388] sm:$0xff]
        %v6789 = vld [vmem:[%s367 + $0x390] sm:$0xff]
        %v6790 = vld [vmem:[%s367 + $0x398] sm:$0xff]
        %v6791 = vld [vmem:[%s367 + $0x3a0] sm:$0xff]
        %v6792 = vld [vmem:[%s367 + $0x3a8] sm:$0xff]
        %v6793 = vld [vmem:[%s367 + $0x3b0] sm:$0xff]
        %v6794 = vld [vmem:[%s367 + $0x3b8] sm:$0xff]
        %v6795 = vld [vmem:[%s367 + $0x3c0] sm:$0xff]
        %v6796 = vld [vmem:[%s367 + $0x3c8] sm:$0xff]
        %v6797 = vld [vmem:[%s367 + $0x3d0] sm:$0xff]
        %v6798 = vld [vmem:[%s367 + $0x3d8] sm:$0xff]
        %v6799 = vld [vmem:[%s367 + $0x3e0] sm:$0xff]
        %v6800 = vld [vmem:[%s367 + $0x3e8] sm:$0xff]
        %v6801 = vld [vmem:[%s367 + $0x3f0] sm:$0xff]
        %v6802 = vld [vmem:[%s367 + $0x3f8] sm:$0xff]
        %v6803 = vld [vmem:[%s367 + $0x400] sm:$0xff]
        %v6804 = vld [vmem:[%s367 + $0x408] sm:$0xff]
        %v6805 = vld [vmem:[%s367 + $0x410] sm:$0xff]
        %v6806 = vld [vmem:[%s367 + $0x418] sm:$0xff]
        %v6807 = vld [vmem:[%s367 + $0x420] sm:$0xff]
        %v6808 = vld [vmem:[%s367 + $0x428] sm:$0xff]
        %v6809 = vld [vmem:[%s367 + $0x430] sm:$0xff]
        %v6810 = vld [vmem:[%s367 + $0x438] sm:$0xff]
        %v6811 = vld [vmem:[%s367 + $0x440] sm:$0xff]
        %v6812 = vld [vmem:[%s367 + $0x448] sm:$0xff]
        %v6813 = vld [vmem:[%s367 + $0x450] sm:$0xff]
        %v6814 = vld [vmem:[%s367 + $0x458] sm:$0xff]
        %v6815 = vld [vmem:[%s367 + $0x460] sm:$0xff]
        %v6816 = vld [vmem:[%s367 + $0x468] sm:$0xff]
        %v6817 = vld [vmem:[%s367 + $0x470] sm:$0xff]
        %v6818 = vld [vmem:[%s367 + $0x478] sm:$0xff]
        %v6819 = vld [vmem:[%s367 + $0x480] sm:$0xff]
        %v6820 = vld [vmem:[%s367 + $0x488] sm:$0xff]
        %v6821 = vld [vmem:[%s367 + $0x490] sm:$0xff]
        %v6822 = vld [vmem:[%s367 + $0x498] sm:$0xff]
        %v6823 = vld [vmem:[%s367 + $0x4a0] sm:$0xff]
        %v6824 = vld [vmem:[%s367 + $0x4a8] sm:$0xff]
        %v6825 = vld [vmem:[%s367 + $0x4b0] sm:$0xff]
        %v6826 = vld [vmem:[%s367 + $0x4b8] sm:$0xff]
        %v6827 = vld [vmem:[%s367 + $0x4c0] sm:$0xff]
        %v6828 = vld [vmem:[%s367 + $0x4c8] sm:$0xff]
        %v6829 = vld [vmem:[%s367 + $0x4d0] sm:$0xff]
        %v6830 = vld [vmem:[%s367 + $0x4d8] sm:$0xff]
        %v6831 = vld [vmem:[%s367 + $0x4e0] sm:$0xff]
        %v6832 = vld [vmem:[%s367 + $0x4e8] sm:$0xff]
        %v6833 = vld [vmem:[%s367 + $0x4f0] sm:$0xff]
        %v6834 = vld [vmem:[%s367 + $0x4f8] sm:$0xff]
        %v6835 = vld [vmem:[%s367 + $0x500] sm:$0xff]
        %v6836 = vld [vmem:[%s367 + $0x508] sm:$0xff]
        %v6837 = vld [vmem:[%s367 + $0x510] sm:$0xff]
        %v6838 = vld [vmem:[%s367 + $0x518] sm:$0xff]
        %v6839 = vld [vmem:[%s367 + $0x520] sm:$0xff]
        %v6840 = vld [vmem:[%s367 + $0x528] sm:$0xff]
        %v6841 = vld [vmem:[%s367 + $0x530] sm:$0xff]
        %v6842 = vld [vmem:[%s367 + $0x538] sm:$0xff]
        %v6843 = vld [vmem:[%s367 + $0x540] sm:$0xff]
        %v6844 = vld [vmem:[%s367 + $0x548] sm:$0xff]
        %v6845 = vld [vmem:[%s367 + $0x550] sm:$0xff]
        %v6846 = vld [vmem:[%s367 + $0x558] sm:$0xff]
        %v6847 = vld [vmem:[%s367 + $0x560] sm:$0xff]
        %v6848 = vld [vmem:[%s367 + $0x568] sm:$0xff]
        %v6849 = vld [vmem:[%s367 + $0x570] sm:$0xff]
        %v6850 = vld [vmem:[%s367 + $0x578] sm:$0xff]
        %v6851 = vld [vmem:[%s367 + $0x580] sm:$0xff]
        %v6852 = vld [vmem:[%s367 + $0x588] sm:$0xff]
        %v6853 = vld [vmem:[%s367 + $0x590] sm:$0xff]
        %v6854 = vld [vmem:[%s367 + $0x598] sm:$0xff]
        %v6855 = vld [vmem:[%s367 + $0x5a0] sm:$0xff]
        %v6856 = vld [vmem:[%s367 + $0x5a8] sm:$0xff]
        %v6857 = vld [vmem:[%s367 + $0x5b0] sm:$0xff]
        %v6858 = vld [vmem:[%s367 + $0x5b8] sm:$0xff]
        %v6859 = vld [vmem:[%s367 + $0x5c0] sm:$0xff]
        %v6860 = vld [vmem:[%s367 + $0x5c8] sm:$0xff]
        %v6861 = vld [vmem:[%s367 + $0x5d0] sm:$0xff]
        %v6862 = vld [vmem:[%s367 + $0x5d8] sm:$0xff]
        %v6863 = vld [vmem:[%s367 + $0x5e0] sm:$0xff]
        %v6864 = vld [vmem:[%s367 + $0x5e8] sm:$0xff]
        %v6865 = vld [vmem:[%s367 + $0x5f0] sm:$0xff]
        %v6866 = vld [vmem:[%s367 + $0x5f8] sm:$0xff]
        %v6867 = vld [vmem:[%s367 + $0x600] sm:$0xff]
        %v6868 = vld [vmem:[%s367 + $0x608] sm:$0xff]
        %v6869 = vld [vmem:[%s367 + $0x610] sm:$0xff]
        %v6870 = vld [vmem:[%s367 + $0x618] sm:$0xff]
        %v6871 = vld [vmem:[%s367 + $0x620] sm:$0xff]
        %v6872 = vld [vmem:[%s367 + $0x628] sm:$0xff]
        %v6873 = vld [vmem:[%s367 + $0x630] sm:$0xff]
        %v6874 = vld [vmem:[%s367 + $0x638] sm:$0xff]
        %v6875 = vld [vmem:[%s367 + $0x640] sm:$0xff]
        %v6876 = vld [vmem:[%s367 + $0x648] sm:$0xff]
        %v6877 = vld [vmem:[%s367 + $0x650] sm:$0xff]
        %v6878 = vld [vmem:[%s367 + $0x658] sm:$0xff]
        %v6879 = vld [vmem:[%s367 + $0x660] sm:$0xff]
        %v6880 = vld [vmem:[%s367 + $0x668] sm:$0xff]
        %v6881 = vld [vmem:[%s367 + $0x670] sm:$0xff]
        %v6882 = vld [vmem:[%s367 + $0x678] sm:$0xff]
        %v6883 = vld [vmem:[%s367 + $0x680] sm:$0xff]
        %v6884 = vld [vmem:[%s367 + $0x688] sm:$0xff]
        %v6885 = vld [vmem:[%s367 + $0x690] sm:$0xff]
        %v6886 = vld [vmem:[%s367 + $0x698] sm:$0xff]
        %v6887 = vld [vmem:[%s367 + $0x6a0] sm:$0xff]
        %v6888 = vld [vmem:[%s367 + $0x6a8] sm:$0xff]
        %v6889 = vld [vmem:[%s367 + $0x6b0] sm:$0xff]
        %v6890 = vld [vmem:[%s367 + $0x6b8] sm:$0xff]
        %v6891 = vld [vmem:[%s367 + $0x6c0] sm:$0xff]
        %v6892 = vld [vmem:[%s367 + $0x6c8] sm:$0xff]
        %v6893 = vld [vmem:[%s367 + $0x6d0] sm:$0xff]
        %v6894 = vld [vmem:[%s367 + $0x6d8] sm:$0xff]
        %v6895 = vld [vmem:[%s367 + $0x6e0] sm:$0xff]
        %v6896 = vld [vmem:[%s367 + $0x6e8] sm:$0xff]
        %v6897 = vld [vmem:[%s367 + $0x6f0] sm:$0xff]
        %v6898 = vld [vmem:[%s367 + $0x6f8] sm:$0xff]
        %v6899 = vld [vmem:[%s367 + $0x700] sm:$0xff]
        %v6900 = vld [vmem:[%s367 + $0x708] sm:$0xff]
        %v6901 = vld [vmem:[%s367 + $0x710] sm:$0xff]
        %v6902 = vld [vmem:[%s367 + $0x718] sm:$0xff]
        %v6903 = vld [vmem:[%s367 + $0x720] sm:$0xff]
        %v6904 = vld [vmem:[%s367 + $0x728] sm:$0xff]
        %v6905 = vld [vmem:[%s367 + $0x730] sm:$0xff]
        %v6906 = vld [vmem:[%s367 + $0x738] sm:$0xff]
        %v6907 = vld [vmem:[%s367 + $0x740] sm:$0xff]
        %v6908 = vld [vmem:[%s367 + $0x748] sm:$0xff]
        %v6909 = vld [vmem:[%s367 + $0x750] sm:$0xff]
        %v6910 = vld [vmem:[%s367 + $0x758] sm:$0xff]
        %v6911 = vld [vmem:[%s367 + $0x760] sm:$0xff]
        %v6912 = vld [vmem:[%s367 + $0x768] sm:$0xff]
        %v6913 = vld [vmem:[%s367 + $0x770] sm:$0xff]
        %v6914 = vld [vmem:[%s367 + $0x778] sm:$0xff]
        %v6915 = vld [vmem:[%s367 + $0x780] sm:$0xff]
        %v6916 = vld [vmem:[%s367 + $0x788] sm:$0xff]
        %v6917 = vld [vmem:[%s367 + $0x790] sm:$0xff]
        %v6918 = vld [vmem:[%s367 + $0x798] sm:$0xff]
        %v6919 = vld [vmem:[%s367 + $0x7a0] sm:$0xff]
        %v6920 = vld [vmem:[%s367 + $0x7a8] sm:$0xff]
        %v6921 = vld [vmem:[%s367 + $0x7b0] sm:$0xff]
        %v6922 = vld [vmem:[%s367 + $0x7b8] sm:$0xff]
        %v6923 = vld [vmem:[%s367 + $0x7c0] sm:$0xff]
        %v6924 = vld [vmem:[%s367 + $0x7c8] sm:$0xff]
        %v6925 = vld [vmem:[%s367 + $0x7d0] sm:$0xff]
        %v6926 = vld [vmem:[%s367 + $0x7d8] sm:$0xff]
        %v6927 = vld [vmem:[%s367 + $0x7e0] sm:$0xff]
        %v6928 = vld [vmem:[%s367 + $0x7e8] sm:$0xff]
        %v6929 = vld [vmem:[%s367 + $0x7f0] sm:$0xff]
        %v6930 = vld [vmem:[%s367 + $0x7f8] sm:$0xff]
        %v6931 = vld [vmem:[%s367 + $0x800] sm:$0xff]
        %v6932 = vld [vmem:[%s367 + $0x808] sm:$0xff]
        %v6933 = vld [vmem:[%s367 + $0x810] sm:$0xff]
        %v6934 = vld [vmem:[%s367 + $0x818] sm:$0xff]
        %v6935 = vld [vmem:[%s367 + $0x820] sm:$0xff]
        %v6936 = vld [vmem:[%s367 + $0x828] sm:$0xff]
        %v6937 = vld [vmem:[%s367 + $0x830] sm:$0xff]
        %v6938 = vld [vmem:[%s367 + $0x838] sm:$0xff]
        %v6939 = vld [vmem:[%s367 + $0x840] sm:$0xff]
        %v6940 = vld [vmem:[%s367 + $0x848] sm:$0xff]
        %v6941 = vld [vmem:[%s367 + $0x850] sm:$0xff]
        %v6942 = vld [vmem:[%s367 + $0x858] sm:$0xff]
        %v6943 = vld [vmem:[%s367 + $0x860] sm:$0xff]
        %v6944 = vld [vmem:[%s367 + $0x868] sm:$0xff]
        %v6945 = vld [vmem:[%s367 + $0x870] sm:$0xff]
        %v6946 = vld [vmem:[%s367 + $0x878] sm:$0xff]
        %v6947 = vld [vmem:[%s367 + $0x880] sm:$0xff]
        %v6948 = vld [vmem:[%s367 + $0x888] sm:$0xff]
        %v6949 = vld [vmem:[%s367 + $0x890] sm:$0xff]
        %v6950 = vld [vmem:[%s367 + $0x898] sm:$0xff]
        %v6951 = vld [vmem:[%s367 + $0x8a0] sm:$0xff]
        %v6952 = vld [vmem:[%s367 + $0x8a8] sm:$0xff]
        %v6953 = vld [vmem:[%s367 + $0x8b0] sm:$0xff]
        %v6954 = vld [vmem:[%s367 + $0x8b8] sm:$0xff]
        %v6955 = vld [vmem:[%s367 + $0x8c0] sm:$0xff]
        %v6956 = vld [vmem:[%s367 + $0x8c8] sm:$0xff]
        %v6957 = vld [vmem:[%s367 + $0x8d0] sm:$0xff]
        %v6958 = vld [vmem:[%s367 + $0x8d8] sm:$0xff]
        %v6959 = vld [vmem:[%s367 + $0x8e0] sm:$0xff]
        %v6960 = vld [vmem:[%s367 + $0x8e8] sm:$0xff]
        %v6961 = vld [vmem:[%s367 + $0x8f0] sm:$0xff]
        %v6962 = vld [vmem:[%s367 + $0x8f8] sm:$0xff]
        %v6963 = vld [vmem:[%s367 + $0x900] sm:$0xff]
        %v6964 = vld [vmem:[%s367 + $0x908] sm:$0xff]
        %v6965 = vld [vmem:[%s367 + $0x910] sm:$0xff]
        %v6966 = vld [vmem:[%s367 + $0x918] sm:$0xff]
        %v6967 = vld [vmem:[%s367 + $0x920] sm:$0xff]
        %v6968 = vld [vmem:[%s367 + $0x928] sm:$0xff]
        %v6969 = vld [vmem:[%s367 + $0x930] sm:$0xff]
        %v6970 = vld [vmem:[%s367 + $0x938] sm:$0xff]
        %v6971 = vld [vmem:[%s367 + $0x940] sm:$0xff]
        %v6972 = vld [vmem:[%s367 + $0x948] sm:$0xff]
        %v6973 = vld [vmem:[%s367 + $0x950] sm:$0xff]
        %v6974 = vld [vmem:[%s367 + $0x958] sm:$0xff]
        %v6975 = vld [vmem:[%s367 + $0x960] sm:$0xff]
        %v6976 = vld [vmem:[%s367 + $0x968] sm:$0xff]
        %v6977 = vld [vmem:[%s367 + $0x970] sm:$0xff]
        %v6978 = vld [vmem:[%s367 + $0x978] sm:$0xff]
        %v6979 = vld [vmem:[%s367 + $0x980] sm:$0xff]
        %v6980 = vld [vmem:[%s367 + $0x988] sm:$0xff]
        %v6981 = vld [vmem:[%s367 + $0x990] sm:$0xff]
        %v6982 = vld [vmem:[%s367 + $0x998] sm:$0xff]
        %v6983 = vld [vmem:[%s367 + $0x9a0] sm:$0xff]
        %v6984 = vld [vmem:[%s367 + $0x9a8] sm:$0xff]
        %v6985 = vld [vmem:[%s367 + $0x9b0] sm:$0xff]
        %v6986 = vld [vmem:[%s367 + $0x9b8] sm:$0xff]
        %v6987 = vld [vmem:[%s367 + $0x9c0] sm:$0xff]
        %v6988 = vld [vmem:[%s367 + $0x9c8] sm:$0xff]
        %v6989 = vld [vmem:[%s367 + $0x9d0] sm:$0xff]
        %v6990 = vld [vmem:[%s367 + $0x9d8] sm:$0xff]
        %v6991 = vld [vmem:[%s367 + $0x9e0] sm:$0xff]
        %v6992 = vld [vmem:[%s367 + $0x9e8] sm:$0xff]
        %v6993 = vld [vmem:[%s367 + $0x9f0] sm:$0xff]
        %v6994 = vld [vmem:[%s367 + $0x9f8] sm:$0xff]
        %v6995 = vld [vmem:[%s367 + $0xa00] sm:$0xff]
        %v6996 = vld [vmem:[%s367 + $0xa08] sm:$0xff]
        %v6997 = vld [vmem:[%s367 + $0xa10] sm:$0xff]
        %v6998 = vld [vmem:[%s367 + $0xa18] sm:$0xff]
        %v6999 = vld [vmem:[%s367 + $0xa20] sm:$0xff]
        %v7000 = vld [vmem:[%s367 + $0xa28] sm:$0xff]
        %v7001 = vld [vmem:[%s367 + $0xa30] sm:$0xff]
        %v7002 = vld [vmem:[%s367 + $0xa38] sm:$0xff]
        %v7003 = vld [vmem:[%s367 + $0xa40] sm:$0xff]
        %v7004 = vld [vmem:[%s367 + $0xa48] sm:$0xff]
        %v7005 = vld [vmem:[%s367 + $0xa50] sm:$0xff]
        %v7006 = vld [vmem:[%s367 + $0xa58] sm:$0xff]
        %v7007 = vld [vmem:[%s367 + $0xa60] sm:$0xff]
        %v7008 = vld [vmem:[%s367 + $0xa68] sm:$0xff]
        %v7009 = vld [vmem:[%s367 + $0xa70] sm:$0xff]
        %v7010 = vld [vmem:[%s367 + $0xa78] sm:$0xff]
        %v7011 = vld [vmem:[%s367 + $0xa80] sm:$0xff]
        %v7012 = vld [vmem:[%s367 + $0xa88] sm:$0xff]
        %v7013 = vld [vmem:[%s367 + $0xa90] sm:$0xff]
        %v7014 = vld [vmem:[%s367 + $0xa98] sm:$0xff]
        %v7015 = vld [vmem:[%s367 + $0xaa0] sm:$0xff]
        %v7016 = vld [vmem:[%s367 + $0xaa8] sm:$0xff]
        %v7017 = vld [vmem:[%s367 + $0xab0] sm:$0xff]
        %v7018 = vld [vmem:[%s367 + $0xab8] sm:$0xff]
        %v7019 = vld [vmem:[%s367 + $0xac0] sm:$0xff]
        %v7020 = vld [vmem:[%s367 + $0xac8] sm:$0xff]
        %v7021 = vld [vmem:[%s367 + $0xad0] sm:$0xff]
        %v7022 = vld [vmem:[%s367 + $0xad8] sm:$0xff]
        %v7023 = vld [vmem:[%s367 + $0xae0] sm:$0xff]
        %v7024 = vld [vmem:[%s367 + $0xae8] sm:$0xff]
        %v7025 = vld [vmem:[%s367 + $0xaf0] sm:$0xff]
        %v7026 = vld [vmem:[%s367 + $0xaf8] sm:$0xff]
        %v7027 = vld [vmem:[%s367 + $0xb00] sm:$0xff]
        %v7028 = vld [vmem:[%s367 + $0xb08] sm:$0xff]
        %v7029 = vld [vmem:[%s367 + $0xb10] sm:$0xff]
        %v7030 = vld [vmem:[%s367 + $0xb18] sm:$0xff]
        %v7031 = vld [vmem:[%s367 + $0xb20] sm:$0xff]
        %v7032 = vld [vmem:[%s367 + $0xb28] sm:$0xff]
        %v7033 = vld [vmem:[%s367 + $0xb30] sm:$0xff]
        %v7034 = vld [vmem:[%s367 + $0xb38] sm:$0xff]
        %v7035 = vld [vmem:[%s367 + $0xb40] sm:$0xff]
        %v7036 = vld [vmem:[%s367 + $0xb48] sm:$0xff]
        %v7037 = vld [vmem:[%s367 + $0xb50] sm:$0xff]
        %v7038 = vld [vmem:[%s367 + $0xb58] sm:$0xff]
        %v7039 = vld [vmem:[%s367 + $0xb60] sm:$0xff]
        %v7040 = vld [vmem:[%s367 + $0xb68] sm:$0xff]
        %v7041 = vld [vmem:[%s367 + $0xb70] sm:$0xff]
        %v7042 = vld [vmem:[%s367 + $0xb78] sm:$0xff]
        %v7043 = vld [vmem:[%s367 + $0xb80] sm:$0xff]
        %v7044 = vld [vmem:[%s367 + $0xb88] sm:$0xff]
        %v7045 = vld [vmem:[%s367 + $0xb90] sm:$0xff]
        %v7046 = vld [vmem:[%s367 + $0xb98] sm:$0xff]
        %v7047 = vld [vmem:[%s367 + $0xba0] sm:$0xff]
        %v7048 = vld [vmem:[%s367 + $0xba8] sm:$0xff]
        %v7049 = vld [vmem:[%s367 + $0xbb0] sm:$0xff]
        %v7050 = vld [vmem:[%s367 + $0xbb8] sm:$0xff]
        %v7051 = vld [vmem:[%s367 + $0xbc0] sm:$0xff]
        %v7052 = vld [vmem:[%s367 + $0xbc8] sm:$0xff]
        %v7053 = vld [vmem:[%s367 + $0xbd0] sm:$0xff]
        %v7054 = vld [vmem:[%s367 + $0xbd8] sm:$0xff]
        %v7055 = vld [vmem:[%s367 + $0xbe0] sm:$0xff]
        %v7056 = vld [vmem:[%s367 + $0xbe8] sm:$0xff]
        %v7057 = vld [vmem:[%s367 + $0xbf0] sm:$0xff]
        %v7058 = vld [vmem:[%s367 + $0xbf8] sm:$0xff]
        %v7443 = vunpack.c.l.b16 %v6675
        %v7444 = vunpack.c.h.b16 %v6675
        %v7445 = vunpack.c.l.b16 %v6676
        %v7446 = vunpack.c.h.b16 %v6676
        %v7447 = vunpack.c.l.b16 %v6677
        %v7448 = vunpack.c.h.b16 %v6677
        %v7449 = vunpack.c.l.b16 %v6678
        %v7450 = vunpack.c.h.b16 %v6678
        %v7451 = vunpack.c.l.b16 %v6679
        %v7452 = vunpack.c.h.b16 %v6679
        %v7453 = vunpack.c.l.b16 %v6680
        %v7454 = vunpack.c.h.b16 %v6680
        %v7455 = vunpack.c.l.b16 %v6681
        %v7456 = vunpack.c.h.b16 %v6681
        %v7457 = vunpack.c.l.b16 %v6682
        %v7458 = vunpack.c.h.b16 %v6682
        %v7459 = vunpack.c.l.b16 %v6683
        %v7460 = vunpack.c.h.b16 %v6683
        %v7461 = vunpack.c.l.b16 %v6684
        %v7462 = vunpack.c.h.b16 %v6684
        %v7463 = vunpack.c.l.b16 %v6685
        %v7464 = vunpack.c.h.b16 %v6685
        %v7465 = vunpack.c.l.b16 %v6686
        %v7466 = vunpack.c.h.b16 %v6686
        %v7467 = vunpack.c.l.b16 %v6687
        %v7468 = vunpack.c.h.b16 %v6687
        %v7469 = vunpack.c.l.b16 %v6688
        %v7470 = vunpack.c.h.b16 %v6688
        %v7471 = vunpack.c.l.b16 %v6689
        %v7472 = vunpack.c.h.b16 %v6689
        %v7473 = vunpack.c.l.b16 %v6690
        %v7474 = vunpack.c.h.b16 %v6690
        %v7475 = vunpack.c.l.b16 %v6691
        %v7476 = vunpack.c.h.b16 %v6691
        %v7477 = vunpack.c.l.b16 %v6692
        %v7478 = vunpack.c.h.b16 %v6692
        %v7479 = vunpack.c.l.b16 %v6693
        %v7480 = vunpack.c.h.b16 %v6693
        %v7481 = vunpack.c.l.b16 %v6694
        %v7482 = vunpack.c.h.b16 %v6694
        %v7483 = vunpack.c.l.b16 %v6695
        %v7484 = vunpack.c.h.b16 %v6695
        %v7485 = vunpack.c.l.b16 %v6696
        %v7486 = vunpack.c.h.b16 %v6696
        %v7487 = vunpack.c.l.b16 %v6697
        %v7488 = vunpack.c.h.b16 %v6697
        %v7489 = vunpack.c.l.b16 %v6698
        %v7490 = vunpack.c.h.b16 %v6698
        %v7491 = vunpack.c.l.b16 %v6699
        %v7492 = vunpack.c.h.b16 %v6699
        %v7493 = vunpack.c.l.b16 %v6700
        %v7494 = vunpack.c.h.b16 %v6700
        %v7495 = vunpack.c.l.b16 %v6701
        %v7496 = vunpack.c.h.b16 %v6701
        %v7497 = vunpack.c.l.b16 %v6702
        %v7498 = vunpack.c.h.b16 %v6702
        %v7499 = vunpack.c.l.b16 %v6703
        %v7500 = vunpack.c.h.b16 %v6703
        %v7501 = vunpack.c.l.b16 %v6704
        %v7502 = vunpack.c.h.b16 %v6704
        %v7503 = vunpack.c.l.b16 %v6705
        %v7504 = vunpack.c.h.b16 %v6705
        %v7505 = vunpack.c.l.b16 %v6706
        %v7506 = vunpack.c.h.b16 %v6706
        %v7507 = vunpack.c.l.b16 %v6707
        %v7508 = vunpack.c.h.b16 %v6707
        %v7509 = vunpack.c.l.b16 %v6708
        %v7510 = vunpack.c.h.b16 %v6708
        %v7511 = vunpack.c.l.b16 %v6709
        %v7512 = vunpack.c.h.b16 %v6709
        %v7513 = vunpack.c.l.b16 %v6710
        %v7514 = vunpack.c.h.b16 %v6710
        %v7515 = vunpack.c.l.b16 %v6711
        %v7516 = vunpack.c.h.b16 %v6711
        %v7517 = vunpack.c.l.b16 %v6712
        %v7518 = vunpack.c.h.b16 %v6712
        %v7519 = vunpack.c.l.b16 %v6713
        %v7520 = vunpack.c.h.b16 %v6713
        %v7521 = vunpack.c.l.b16 %v6714
        %v7522 = vunpack.c.h.b16 %v6714
        %v7523 = vunpack.c.l.b16 %v6715
        %v7524 = vunpack.c.h.b16 %v6715
        %v7525 = vunpack.c.l.b16 %v6716
        %v7526 = vunpack.c.h.b16 %v6716
        %v7527 = vunpack.c.l.b16 %v6717
        %v7528 = vunpack.c.h.b16 %v6717
        %v7529 = vunpack.c.l.b16 %v6718
        %v7530 = vunpack.c.h.b16 %v6718
        %v7531 = vunpack.c.l.b16 %v6719
        %v7532 = vunpack.c.h.b16 %v6719
        %v7533 = vunpack.c.l.b16 %v6720
        %v7534 = vunpack.c.h.b16 %v6720
        %v7535 = vunpack.c.l.b16 %v6721
        %v7536 = vunpack.c.h.b16 %v6721
        %v7537 = vunpack.c.l.b16 %v6722
        %v7538 = vunpack.c.h.b16 %v6722
        %v7539 = vunpack.c.l.b16 %v6723
        %v7540 = vunpack.c.h.b16 %v6723
        %v7541 = vunpack.c.l.b16 %v6724
        %v7542 = vunpack.c.h.b16 %v6724
        %v7543 = vunpack.c.l.b16 %v6725
        %v7544 = vunpack.c.h.b16 %v6725
        %v7545 = vunpack.c.l.b16 %v6726
        %v7546 = vunpack.c.h.b16 %v6726
        %v7547 = vunpack.c.l.b16 %v6727
        %v7548 = vunpack.c.h.b16 %v6727
        %v7549 = vunpack.c.l.b16 %v6728
        %v7550 = vunpack.c.h.b16 %v6728
        %v7551 = vunpack.c.l.b16 %v6729
        %v7552 = vunpack.c.h.b16 %v6729
        %v7553 = vunpack.c.l.b16 %v6730
        %v7554 = vunpack.c.h.b16 %v6730
        %v7555 = vunpack.c.l.b16 %v6731
        %v7556 = vunpack.c.h.b16 %v6731
        %v7557 = vunpack.c.l.b16 %v6732
        %v7558 = vunpack.c.h.b16 %v6732
        %v7559 = vunpack.c.l.b16 %v6733
        %v7560 = vunpack.c.h.b16 %v6733
        %v7561 = vunpack.c.l.b16 %v6734
        %v7562 = vunpack.c.h.b16 %v6734
        %v7563 = vunpack.c.l.b16 %v6735
        %v7564 = vunpack.c.h.b16 %v6735
        %v7565 = vunpack.c.l.b16 %v6736
        %v7566 = vunpack.c.h.b16 %v6736
        %v7567 = vunpack.c.l.b16 %v6737
        %v7568 = vunpack.c.h.b16 %v6737
        %v7569 = vunpack.c.l.b16 %v6738
        %v7570 = vunpack.c.h.b16 %v6738
        %v7571 = vunpack.c.l.b16 %v6739
        %v7572 = vunpack.c.h.b16 %v6739
        %v7573 = vunpack.c.l.b16 %v6740
        %v7574 = vunpack.c.h.b16 %v6740
        %v7575 = vunpack.c.l.b16 %v6741
        %v7576 = vunpack.c.h.b16 %v6741
        %v7577 = vunpack.c.l.b16 %v6742
        %v7578 = vunpack.c.h.b16 %v6742
        %v7579 = vunpack.c.l.b16 %v6743
        %v7580 = vunpack.c.h.b16 %v6743
        %v7581 = vunpack.c.l.b16 %v6744
        %v7582 = vunpack.c.h.b16 %v6744
        %v7583 = vunpack.c.l.b16 %v6745
        %v7584 = vunpack.c.h.b16 %v6745
        %v7585 = vunpack.c.l.b16 %v6746
        %v7586 = vunpack.c.h.b16 %v6746
        %v7587 = vunpack.c.l.b16 %v6747
        %v7588 = vunpack.c.h.b16 %v6747
        %v7589 = vunpack.c.l.b16 %v6748
        %v7590 = vunpack.c.h.b16 %v6748
        %v7591 = vunpack.c.l.b16 %v6749
        %v7592 = vunpack.c.h.b16 %v6749
        %v7593 = vunpack.c.l.b16 %v6750
        %v7594 = vunpack.c.h.b16 %v6750
        %v7595 = vunpack.c.l.b16 %v6751
        %v7596 = vunpack.c.h.b16 %v6751
        %v7597 = vunpack.c.l.b16 %v6752
        %v7598 = vunpack.c.h.b16 %v6752
        %v7599 = vunpack.c.l.b16 %v6753
        %v7600 = vunpack.c.h.b16 %v6753
        %v7601 = vunpack.c.l.b16 %v6754
        %v7602 = vunpack.c.h.b16 %v6754
        %v7603 = vunpack.c.l.b16 %v6755
        %v7604 = vunpack.c.h.b16 %v6755
        %v7605 = vunpack.c.l.b16 %v6756
        %v7606 = vunpack.c.h.b16 %v6756
        %v7607 = vunpack.c.l.b16 %v6757
        %v7608 = vunpack.c.h.b16 %v6757
        %v7609 = vunpack.c.l.b16 %v6758
        %v7610 = vunpack.c.h.b16 %v6758
        %v7611 = vunpack.c.l.b16 %v6759
        %v7612 = vunpack.c.h.b16 %v6759
        %v7613 = vunpack.c.l.b16 %v6760
        %v7614 = vunpack.c.h.b16 %v6760
        %v7615 = vunpack.c.l.b16 %v6761
        %v7616 = vunpack.c.h.b16 %v6761
        %v7617 = vunpack.c.l.b16 %v6762
        %v7618 = vunpack.c.h.b16 %v6762
        %v7619 = vunpack.c.l.b16 %v6763
        %v7620 = vunpack.c.h.b16 %v6763
        %v7621 = vunpack.c.l.b16 %v6764
        %v7622 = vunpack.c.h.b16 %v6764
        %v7623 = vunpack.c.l.b16 %v6765
        %v7624 = vunpack.c.h.b16 %v6765
        %v7625 = vunpack.c.l.b16 %v6766
        %v7626 = vunpack.c.h.b16 %v6766
        %v7627 = vunpack.c.l.b16 %v6767
        %v7628 = vunpack.c.h.b16 %v6767
        %v7629 = vunpack.c.l.b16 %v6768
        %v7630 = vunpack.c.h.b16 %v6768
        %v7631 = vunpack.c.l.b16 %v6769
        %v7632 = vunpack.c.h.b16 %v6769
        %v7633 = vunpack.c.l.b16 %v6770
        %v7634 = vunpack.c.h.b16 %v6770
        %v7635 = vunpack.c.l.b16 %v6771
        %v7636 = vunpack.c.h.b16 %v6771
        %v7637 = vunpack.c.l.b16 %v6772
        %v7638 = vunpack.c.h.b16 %v6772
        %v7639 = vunpack.c.l.b16 %v6773
        %v7640 = vunpack.c.h.b16 %v6773
        %v7641 = vunpack.c.l.b16 %v6774
        %v7642 = vunpack.c.h.b16 %v6774
        %v7643 = vunpack.c.l.b16 %v6775
        %v7644 = vunpack.c.h.b16 %v6775
        %v7645 = vunpack.c.l.b16 %v6776
        %v7646 = vunpack.c.h.b16 %v6776
        %v7647 = vunpack.c.l.b16 %v6777
        %v7648 = vunpack.c.h.b16 %v6777
        %v7649 = vunpack.c.l.b16 %v6778
        %v7650 = vunpack.c.h.b16 %v6778
        %v7651 = vunpack.c.l.b16 %v6779
        %v7652 = vunpack.c.h.b16 %v6779
        %v7653 = vunpack.c.l.b16 %v6780
        %v7654 = vunpack.c.h.b16 %v6780
        %v7655 = vunpack.c.l.b16 %v6781
        %v7656 = vunpack.c.h.b16 %v6781
        %v7657 = vunpack.c.l.b16 %v6782
        %v7658 = vunpack.c.h.b16 %v6782
        %v7659 = vunpack.c.l.b16 %v6783
        %v7660 = vunpack.c.h.b16 %v6783
        %v7661 = vunpack.c.l.b16 %v6784
        %v7662 = vunpack.c.h.b16 %v6784
        %v7663 = vunpack.c.l.b16 %v6785
        %v7664 = vunpack.c.h.b16 %v6785
        %v7665 = vunpack.c.l.b16 %v6786
        %v7666 = vunpack.c.h.b16 %v6786
        %v7667 = vunpack.c.l.b16 %v6787
        %v7668 = vunpack.c.h.b16 %v6787
        %v7669 = vunpack.c.l.b16 %v6788
        %v7670 = vunpack.c.h.b16 %v6788
        %v7671 = vunpack.c.l.b16 %v6789
        %v7672 = vunpack.c.h.b16 %v6789
        %v7673 = vunpack.c.l.b16 %v6790
        %v7674 = vunpack.c.h.b16 %v6790
        %v7675 = vunpack.c.l.b16 %v6791
        %v7676 = vunpack.c.h.b16 %v6791
        %v7677 = vunpack.c.l.b16 %v6792
        %v7678 = vunpack.c.h.b16 %v6792
        %v7679 = vunpack.c.l.b16 %v6793
        %v7680 = vunpack.c.h.b16 %v6793
        %v7681 = vunpack.c.l.b16 %v6794
        %v7682 = vunpack.c.h.b16 %v6794
        %v7683 = vunpack.c.l.b16 %v6795
        %v7684 = vunpack.c.h.b16 %v6795
        %v7685 = vunpack.c.l.b16 %v6796
        %v7686 = vunpack.c.h.b16 %v6796
        %v7687 = vunpack.c.l.b16 %v6797
        %v7688 = vunpack.c.h.b16 %v6797
        %v7689 = vunpack.c.l.b16 %v6798
        %v7690 = vunpack.c.h.b16 %v6798
        %v7691 = vunpack.c.l.b16 %v6799
        %v7692 = vunpack.c.h.b16 %v6799
        %v7693 = vunpack.c.l.b16 %v6800
        %v7694 = vunpack.c.h.b16 %v6800
        %v7695 = vunpack.c.l.b16 %v6801
        %v7696 = vunpack.c.h.b16 %v6801
        %v7697 = vunpack.c.l.b16 %v6802
        %v7698 = vunpack.c.h.b16 %v6802
        %v7699 = vunpack.c.l.b16 %v6803
        %v7700 = vunpack.c.h.b16 %v6803
        %v7701 = vunpack.c.l.b16 %v6804
        %v7702 = vunpack.c.h.b16 %v6804
        %v7703 = vunpack.c.l.b16 %v6805
        %v7704 = vunpack.c.h.b16 %v6805
        %v7705 = vunpack.c.l.b16 %v6806
        %v7706 = vunpack.c.h.b16 %v6806
        %v7707 = vunpack.c.l.b16 %v6807
        %v7708 = vunpack.c.h.b16 %v6807
        %v7709 = vunpack.c.l.b16 %v6808
        %v7710 = vunpack.c.h.b16 %v6808
        %v7711 = vunpack.c.l.b16 %v6809
        %v7712 = vunpack.c.h.b16 %v6809
        %v7713 = vunpack.c.l.b16 %v6810
        %v7714 = vunpack.c.h.b16 %v6810
        %v7715 = vunpack.c.l.b16 %v6811
        %v7716 = vunpack.c.h.b16 %v6811
        %v7717 = vunpack.c.l.b16 %v6812
        %v7718 = vunpack.c.h.b16 %v6812
        %v7719 = vunpack.c.l.b16 %v6813
        %v7720 = vunpack.c.h.b16 %v6813
        %v7721 = vunpack.c.l.b16 %v6814
        %v7722 = vunpack.c.h.b16 %v6814
        %v7723 = vunpack.c.l.b16 %v6815
        %v7724 = vunpack.c.h.b16 %v6815
        %v7725 = vunpack.c.l.b16 %v6816
        %v7726 = vunpack.c.h.b16 %v6816
        %v7727 = vunpack.c.l.b16 %v6817
        %v7728 = vunpack.c.h.b16 %v6817
        %v7729 = vunpack.c.l.b16 %v6818
        %v7730 = vunpack.c.h.b16 %v6818
        %v7731 = vunpack.c.l.b16 %v6819
        %v7732 = vunpack.c.h.b16 %v6819
        %v7733 = vunpack.c.l.b16 %v6820
        %v7734 = vunpack.c.h.b16 %v6820
        %v7735 = vunpack.c.l.b16 %v6821
        %v7736 = vunpack.c.h.b16 %v6821
        %v7737 = vunpack.c.l.b16 %v6822
        %v7738 = vunpack.c.h.b16 %v6822
        %v7739 = vunpack.c.l.b16 %v6823
        %v7740 = vunpack.c.h.b16 %v6823
        %v7741 = vunpack.c.l.b16 %v6824
        %v7742 = vunpack.c.h.b16 %v6824
        %v7743 = vunpack.c.l.b16 %v6825
        %v7744 = vunpack.c.h.b16 %v6825
        %v7745 = vunpack.c.l.b16 %v6826
        %v7746 = vunpack.c.h.b16 %v6826
        %v7747 = vunpack.c.l.b16 %v6827
        %v7748 = vunpack.c.h.b16 %v6827
        %v7749 = vunpack.c.l.b16 %v6828
        %v7750 = vunpack.c.h.b16 %v6828
        %v7751 = vunpack.c.l.b16 %v6829
        %v7752 = vunpack.c.h.b16 %v6829
        %v7753 = vunpack.c.l.b16 %v6830
        %v7754 = vunpack.c.h.b16 %v6830
        %v7755 = vunpack.c.l.b16 %v6831
        %v7756 = vunpack.c.h.b16 %v6831
        %v7757 = vunpack.c.l.b16 %v6832
        %v7758 = vunpack.c.h.b16 %v6832
        %v7759 = vunpack.c.l.b16 %v6833
        %v7760 = vunpack.c.h.b16 %v6833
        %v7761 = vunpack.c.l.b16 %v6834
        %v7762 = vunpack.c.h.b16 %v6834
        %v7763 = vunpack.c.l.b16 %v6835
        %v7764 = vunpack.c.h.b16 %v6835
        %v7765 = vunpack.c.l.b16 %v6836
        %v7766 = vunpack.c.h.b16 %v6836
        %v7767 = vunpack.c.l.b16 %v6837
        %v7768 = vunpack.c.h.b16 %v6837
        %v7769 = vunpack.c.l.b16 %v6838
        %v7770 = vunpack.c.h.b16 %v6838
        %v7771 = vunpack.c.l.b16 %v6839
        %v7772 = vunpack.c.h.b16 %v6839
        %v7773 = vunpack.c.l.b16 %v6840
        %v7774 = vunpack.c.h.b16 %v6840
        %v7775 = vunpack.c.l.b16 %v6841
        %v7776 = vunpack.c.h.b16 %v6841
        %v7777 = vunpack.c.l.b16 %v6842
        %v7778 = vunpack.c.h.b16 %v6842
        %v7779 = vunpack.c.l.b16 %v6843
        %v7780 = vunpack.c.h.b16 %v6843
        %v7781 = vunpack.c.l.b16 %v6844
        %v7782 = vunpack.c.h.b16 %v6844
        %v7783 = vunpack.c.l.b16 %v6845
        %v7784 = vunpack.c.h.b16 %v6845
        %v7785 = vunpack.c.l.b16 %v6846
        %v7786 = vunpack.c.h.b16 %v6846
        %v7787 = vunpack.c.l.b16 %v6847
        %v7788 = vunpack.c.h.b16 %v6847
        %v7789 = vunpack.c.l.b16 %v6848
        %v7790 = vunpack.c.h.b16 %v6848
        %v7791 = vunpack.c.l.b16 %v6849
        %v7792 = vunpack.c.h.b16 %v6849
        %v7793 = vunpack.c.l.b16 %v6850
        %v7794 = vunpack.c.h.b16 %v6850
        %v7795 = vunpack.c.l.b16 %v6851
        %v7796 = vunpack.c.h.b16 %v6851
        %v7797 = vunpack.c.l.b16 %v6852
        %v7798 = vunpack.c.h.b16 %v6852
        %v7799 = vunpack.c.l.b16 %v6853
        %v7800 = vunpack.c.h.b16 %v6853
        %v7801 = vunpack.c.l.b16 %v6854
        %v7802 = vunpack.c.h.b16 %v6854
        %v7803 = vunpack.c.l.b16 %v6855
        %v7804 = vunpack.c.h.b16 %v6855
        %v7805 = vunpack.c.l.b16 %v6856
        %v7806 = vunpack.c.h.b16 %v6856
        %v7807 = vunpack.c.l.b16 %v6857
        %v7808 = vunpack.c.h.b16 %v6857
        %v7809 = vunpack.c.l.b16 %v6858
        %v7810 = vunpack.c.h.b16 %v6858
        %v7811 = vunpack.c.l.b16 %v6859
        %v7812 = vunpack.c.h.b16 %v6859
        %v7813 = vunpack.c.l.b16 %v6860
        %v7814 = vunpack.c.h.b16 %v6860
        %v7815 = vunpack.c.l.b16 %v6861
        %v7816 = vunpack.c.h.b16 %v6861
        %v7817 = vunpack.c.l.b16 %v6862
        %v7818 = vunpack.c.h.b16 %v6862
        %v7819 = vunpack.c.l.b16 %v6863
        %v7820 = vunpack.c.h.b16 %v6863
        %v7821 = vunpack.c.l.b16 %v6864
        %v7822 = vunpack.c.h.b16 %v6864
        %v7823 = vunpack.c.l.b16 %v6865
        %v7824 = vunpack.c.h.b16 %v6865
        %v7825 = vunpack.c.l.b16 %v6866
        %v7826 = vunpack.c.h.b16 %v6866
        %v7827 = vunpack.c.l.b16 %v6867
        %v7828 = vunpack.c.h.b16 %v6867
        %v7829 = vunpack.c.l.b16 %v6868
        %v7830 = vunpack.c.h.b16 %v6868
        %v7831 = vunpack.c.l.b16 %v6869
        %v7832 = vunpack.c.h.b16 %v6869
        %v7833 = vunpack.c.l.b16 %v6870
        %v7834 = vunpack.c.h.b16 %v6870
        %v7835 = vunpack.c.l.b16 %v6871
        %v7836 = vunpack.c.h.b16 %v6871
        %v7837 = vunpack.c.l.b16 %v6872
        %v7838 = vunpack.c.h.b16 %v6872
        %v7839 = vunpack.c.l.b16 %v6873
        %v7840 = vunpack.c.h.b16 %v6873
        %v7841 = vunpack.c.l.b16 %v6874
        %v7842 = vunpack.c.h.b16 %v6874
        %v7843 = vunpack.c.l.b16 %v6875
        %v7844 = vunpack.c.h.b16 %v6875
        %v7845 = vunpack.c.l.b16 %v6876
        %v7846 = vunpack.c.h.b16 %v6876
        %v7847 = vunpack.c.l.b16 %v6877
        %v7848 = vunpack.c.h.b16 %v6877
        %v7849 = vunpack.c.l.b16 %v6878
        %v7850 = vunpack.c.h.b16 %v6878
        %v7851 = vunpack.c.l.b16 %v6879
        %v7852 = vunpack.c.h.b16 %v6879
        %v7853 = vunpack.c.l.b16 %v6880
        %v7854 = vunpack.c.h.b16 %v6880
        %v7855 = vunpack.c.l.b16 %v6881
        %v7856 = vunpack.c.h.b16 %v6881
        %v7857 = vunpack.c.l.b16 %v6882
        %v7858 = vunpack.c.h.b16 %v6882
        %v7859 = vunpack.c.l.b16 %v6883
        %v7860 = vunpack.c.h.b16 %v6883
        %v7861 = vunpack.c.l.b16 %v6884
        %v7862 = vunpack.c.h.b16 %v6884
        %v7863 = vunpack.c.l.b16 %v6885
        %v7864 = vunpack.c.h.b16 %v6885
        %v7865 = vunpack.c.l.b16 %v6886
        %v7866 = vunpack.c.h.b16 %v6886
        %v7867 = vunpack.c.l.b16 %v6887
        %v7868 = vunpack.c.h.b16 %v6887
        %v7869 = vunpack.c.l.b16 %v6888
        %v7870 = vunpack.c.h.b16 %v6888
        %v7871 = vunpack.c.l.b16 %v6889
        %v7872 = vunpack.c.h.b16 %v6889
        %v7873 = vunpack.c.l.b16 %v6890
        %v7874 = vunpack.c.h.b16 %v6890
        %v7875 = vunpack.c.l.b16 %v6891
        %v7876 = vunpack.c.h.b16 %v6891
        %v7877 = vunpack.c.l.b16 %v6892
        %v7878 = vunpack.c.h.b16 %v6892
        %v7879 = vunpack.c.l.b16 %v6893
        %v7880 = vunpack.c.h.b16 %v6893
        %v7881 = vunpack.c.l.b16 %v6894
        %v7882 = vunpack.c.h.b16 %v6894
        %v7883 = vunpack.c.l.b16 %v6895
        %v7884 = vunpack.c.h.b16 %v6895
        %v7885 = vunpack.c.l.b16 %v6896
        %v7886 = vunpack.c.h.b16 %v6896
        %v7887 = vunpack.c.l.b16 %v6897
        %v7888 = vunpack.c.h.b16 %v6897
        %v7889 = vunpack.c.l.b16 %v6898
        %v7890 = vunpack.c.h.b16 %v6898
        %v7891 = vunpack.c.l.b16 %v6899
        %v7892 = vunpack.c.h.b16 %v6899
        %v7893 = vunpack.c.l.b16 %v6900
        %v7894 = vunpack.c.h.b16 %v6900
        %v7895 = vunpack.c.l.b16 %v6901
        %v7896 = vunpack.c.h.b16 %v6901
        %v7897 = vunpack.c.l.b16 %v6902
        %v7898 = vunpack.c.h.b16 %v6902
        %v7899 = vunpack.c.l.b16 %v6903
        %v7900 = vunpack.c.h.b16 %v6903
        %v7901 = vunpack.c.l.b16 %v6904
        %v7902 = vunpack.c.h.b16 %v6904
        %v7903 = vunpack.c.l.b16 %v6905
        %v7904 = vunpack.c.h.b16 %v6905
        %v7905 = vunpack.c.l.b16 %v6906
        %v7906 = vunpack.c.h.b16 %v6906
        %v7907 = vunpack.c.l.b16 %v6907
        %v7908 = vunpack.c.h.b16 %v6907
        %v7909 = vunpack.c.l.b16 %v6908
        %v7910 = vunpack.c.h.b16 %v6908
        %v7911 = vunpack.c.l.b16 %v6909
        %v7912 = vunpack.c.h.b16 %v6909
        %v7913 = vunpack.c.l.b16 %v6910
        %v7914 = vunpack.c.h.b16 %v6910
        %v7915 = vunpack.c.l.b16 %v6911
        %v7916 = vunpack.c.h.b16 %v6911
        %v7917 = vunpack.c.l.b16 %v6912
        %v7918 = vunpack.c.h.b16 %v6912
        %v7919 = vunpack.c.l.b16 %v6913
        %v7920 = vunpack.c.h.b16 %v6913
        %v7921 = vunpack.c.l.b16 %v6914
        %v7922 = vunpack.c.h.b16 %v6914
        %v7923 = vunpack.c.l.b16 %v6915
        %v7924 = vunpack.c.h.b16 %v6915
        %v7925 = vunpack.c.l.b16 %v6916
        %v7926 = vunpack.c.h.b16 %v6916
        %v7927 = vunpack.c.l.b16 %v6917
        %v7928 = vunpack.c.h.b16 %v6917
        %v7929 = vunpack.c.l.b16 %v6918
        %v7930 = vunpack.c.h.b16 %v6918
        %v7931 = vunpack.c.l.b16 %v6919
        %v7932 = vunpack.c.h.b16 %v6919
        %v7933 = vunpack.c.l.b16 %v6920
        %v7934 = vunpack.c.h.b16 %v6920
        %v7935 = vunpack.c.l.b16 %v6921
        %v7936 = vunpack.c.h.b16 %v6921
        %v7937 = vunpack.c.l.b16 %v6922
        %v7938 = vunpack.c.h.b16 %v6922
        %v7939 = vunpack.c.l.b16 %v6923
        %v7940 = vunpack.c.h.b16 %v6923
        %v7941 = vunpack.c.l.b16 %v6924
        %v7942 = vunpack.c.h.b16 %v6924
        %v7943 = vunpack.c.l.b16 %v6925
        %v7944 = vunpack.c.h.b16 %v6925
        %v7945 = vunpack.c.l.b16 %v6926
        %v7946 = vunpack.c.h.b16 %v6926
        %v7947 = vunpack.c.l.b16 %v6927
        %v7948 = vunpack.c.h.b16 %v6927
        %v7949 = vunpack.c.l.b16 %v6928
        %v7950 = vunpack.c.h.b16 %v6928
        %v7951 = vunpack.c.l.b16 %v6929
        %v7952 = vunpack.c.h.b16 %v6929
        %v7953 = vunpack.c.l.b16 %v6930
        %v7954 = vunpack.c.h.b16 %v6930
        %v7955 = vunpack.c.l.b16 %v6931
        %v7956 = vunpack.c.h.b16 %v6931
        %v7957 = vunpack.c.l.b16 %v6932
        %v7958 = vunpack.c.h.b16 %v6932
        %v7959 = vunpack.c.l.b16 %v6933
        %v7960 = vunpack.c.h.b16 %v6933
        %v7961 = vunpack.c.l.b16 %v6934
        %v7962 = vunpack.c.h.b16 %v6934
        %v7963 = vunpack.c.l.b16 %v6935
        %v7964 = vunpack.c.h.b16 %v6935
        %v7965 = vunpack.c.l.b16 %v6936
        %v7966 = vunpack.c.h.b16 %v6936
        %v7967 = vunpack.c.l.b16 %v6937
        %v7968 = vunpack.c.h.b16 %v6937
        %v7969 = vunpack.c.l.b16 %v6938
        %v7970 = vunpack.c.h.b16 %v6938
        %v7971 = vunpack.c.l.b16 %v6939
        %v7972 = vunpack.c.h.b16 %v6939
        %v7973 = vunpack.c.l.b16 %v6940
        %v7974 = vunpack.c.h.b16 %v6940
        %v7975 = vunpack.c.l.b16 %v6941
        %v7976 = vunpack.c.h.b16 %v6941
        %v7977 = vunpack.c.l.b16 %v6942
        %v7978 = vunpack.c.h.b16 %v6942
        %v7979 = vunpack.c.l.b16 %v6943
        %v7980 = vunpack.c.h.b16 %v6943
        %v7981 = vunpack.c.l.b16 %v6944
        %v7982 = vunpack.c.h.b16 %v6944
        %v7983 = vunpack.c.l.b16 %v6945
        %v7984 = vunpack.c.h.b16 %v6945
        %v7985 = vunpack.c.l.b16 %v6946
        %v7986 = vunpack.c.h.b16 %v6946
        %v7987 = vunpack.c.l.b16 %v6947
        %v7988 = vunpack.c.h.b16 %v6947
        %v7989 = vunpack.c.l.b16 %v6948
        %v7990 = vunpack.c.h.b16 %v6948
        %v7991 = vunpack.c.l.b16 %v6949
        %v7992 = vunpack.c.h.b16 %v6949
        %v7993 = vunpack.c.l.b16 %v6950
        %v7994 = vunpack.c.h.b16 %v6950
        %v7995 = vunpack.c.l.b16 %v6951
        %v7996 = vunpack.c.h.b16 %v6951
        %v7997 = vunpack.c.l.b16 %v6952
        %v7998 = vunpack.c.h.b16 %v6952
        %v7999 = vunpack.c.l.b16 %v6953
        %v8000 = vunpack.c.h.b16 %v6953
        %v8001 = vunpack.c.l.b16 %v6954
        %v8002 = vunpack.c.h.b16 %v6954
        %v8003 = vunpack.c.l.b16 %v6955
        %v8004 = vunpack.c.h.b16 %v6955
        %v8005 = vunpack.c.l.b16 %v6956
        %v8006 = vunpack.c.h.b16 %v6956
        %v8007 = vunpack.c.l.b16 %v6957
        %v8008 = vunpack.c.h.b16 %v6957
        %v8009 = vunpack.c.l.b16 %v6958
        %v8010 = vunpack.c.h.b16 %v6958
        %v8011 = vunpack.c.l.b16 %v6959
        %v8012 = vunpack.c.h.b16 %v6959
        %v8013 = vunpack.c.l.b16 %v6960
        %v8014 = vunpack.c.h.b16 %v6960
        %v8015 = vunpack.c.l.b16 %v6961
        %v8016 = vunpack.c.h.b16 %v6961
        %v8017 = vunpack.c.l.b16 %v6962
        %v8018 = vunpack.c.h.b16 %v6962
        %v8019 = vunpack.c.l.b16 %v6963
        %v8020 = vunpack.c.h.b16 %v6963
        %v8021 = vunpack.c.l.b16 %v6964
        %v8022 = vunpack.c.h.b16 %v6964
        %v8023 = vunpack.c.l.b16 %v6965
        %v8024 = vunpack.c.h.b16 %v6965
        %v8025 = vunpack.c.l.b16 %v6966
        %v8026 = vunpack.c.h.b16 %v6966
        %v8027 = vunpack.c.l.b16 %v6967
        %v8028 = vunpack.c.h.b16 %v6967
        %v8029 = vunpack.c.l.b16 %v6968
        %v8030 = vunpack.c.h.b16 %v6968
        %v8031 = vunpack.c.l.b16 %v6969
        %v8032 = vunpack.c.h.b16 %v6969
        %v8033 = vunpack.c.l.b16 %v6970
        %v8034 = vunpack.c.h.b16 %v6970
        %v8035 = vunpack.c.l.b16 %v6971
        %v8036 = vunpack.c.h.b16 %v6971
        %v8037 = vunpack.c.l.b16 %v6972
        %v8038 = vunpack.c.h.b16 %v6972
        %v8039 = vunpack.c.l.b16 %v6973
        %v8040 = vunpack.c.h.b16 %v6973
        %v8041 = vunpack.c.l.b16 %v6974
        %v8042 = vunpack.c.h.b16 %v6974
        %v8043 = vunpack.c.l.b16 %v6975
        %v8044 = vunpack.c.h.b16 %v6975
        %v8045 = vunpack.c.l.b16 %v6976
        %v8046 = vunpack.c.h.b16 %v6976
        %v8047 = vunpack.c.l.b16 %v6977
        %v8048 = vunpack.c.h.b16 %v6977
        %v8049 = vunpack.c.l.b16 %v6978
        %v8050 = vunpack.c.h.b16 %v6978
        %v8051 = vunpack.c.l.b16 %v6979
        %v8052 = vunpack.c.h.b16 %v6979
        %v8053 = vunpack.c.l.b16 %v6980
        %v8054 = vunpack.c.h.b16 %v6980
        %v8055 = vunpack.c.l.b16 %v6981
        %v8056 = vunpack.c.h.b16 %v6981
        %v8057 = vunpack.c.l.b16 %v6982
        %v8058 = vunpack.c.h.b16 %v6982
        %v8059 = vunpack.c.l.b16 %v6983
        %v8060 = vunpack.c.h.b16 %v6983
        %v8061 = vunpack.c.l.b16 %v6984
        %v8062 = vunpack.c.h.b16 %v6984
        %v8063 = vunpack.c.l.b16 %v6985
        %v8064 = vunpack.c.h.b16 %v6985
        %v8065 = vunpack.c.l.b16 %v6986
        %v8066 = vunpack.c.h.b16 %v6986
        %v8067 = vunpack.c.l.b16 %v6987
        %v8068 = vunpack.c.h.b16 %v6987
        %v8069 = vunpack.c.l.b16 %v6988
        %v8070 = vunpack.c.h.b16 %v6988
        %v8071 = vunpack.c.l.b16 %v6989
        %v8072 = vunpack.c.h.b16 %v6989
        %v8073 = vunpack.c.l.b16 %v6990
        %v8074 = vunpack.c.h.b16 %v6990
        %v8075 = vunpack.c.l.b16 %v6991
        %v8076 = vunpack.c.h.b16 %v6991
        %v8077 = vunpack.c.l.b16 %v6992
        %v8078 = vunpack.c.h.b16 %v6992
        %v8079 = vunpack.c.l.b16 %v6993
        %v8080 = vunpack.c.h.b16 %v6993
        %v8081 = vunpack.c.l.b16 %v6994
        %v8082 = vunpack.c.h.b16 %v6994
        %v8083 = vunpack.c.l.b16 %v6995
        %v8084 = vunpack.c.h.b16 %v6995
        %v8085 = vunpack.c.l.b16 %v6996
        %v8086 = vunpack.c.h.b16 %v6996
        %v8087 = vunpack.c.l.b16 %v6997
        %v8088 = vunpack.c.h.b16 %v6997
        %v8089 = vunpack.c.l.b16 %v6998
        %v8090 = vunpack.c.h.b16 %v6998
        %v8091 = vunpack.c.l.b16 %v6999
        %v8092 = vunpack.c.h.b16 %v6999
        %v8093 = vunpack.c.l.b16 %v7000
        %v8094 = vunpack.c.h.b16 %v7000
        %v8095 = vunpack.c.l.b16 %v7001
        %v8096 = vunpack.c.h.b16 %v7001
        %v8097 = vunpack.c.l.b16 %v7002
        %v8098 = vunpack.c.h.b16 %v7002
        %v8099 = vunpack.c.l.b16 %v7003
        %v8100 = vunpack.c.h.b16 %v7003
        %v8101 = vunpack.c.l.b16 %v7004
        %v8102 = vunpack.c.h.b16 %v7004
        %v8103 = vunpack.c.l.b16 %v7005
        %v8104 = vunpack.c.h.b16 %v7005
        %v8105 = vunpack.c.l.b16 %v7006
        %v8106 = vunpack.c.h.b16 %v7006
        %v8107 = vunpack.c.l.b16 %v7007
        %v8108 = vunpack.c.h.b16 %v7007
        %v8109 = vunpack.c.l.b16 %v7008
        %v8110 = vunpack.c.h.b16 %v7008
        %v8111 = vunpack.c.l.b16 %v7009
        %v8112 = vunpack.c.h.b16 %v7009
        %v8113 = vunpack.c.l.b16 %v7010
        %v8114 = vunpack.c.h.b16 %v7010
        %v8115 = vunpack.c.l.b16 %v7011
        %v8116 = vunpack.c.h.b16 %v7011
        %v8117 = vunpack.c.l.b16 %v7012
        %v8118 = vunpack.c.h.b16 %v7012
        %v8119 = vunpack.c.l.b16 %v7013
        %v8120 = vunpack.c.h.b16 %v7013
        %v8121 = vunpack.c.l.b16 %v7014
        %v8122 = vunpack.c.h.b16 %v7014
        %v8123 = vunpack.c.l.b16 %v7015
        %v8124 = vunpack.c.h.b16 %v7015
        %v8125 = vunpack.c.l.b16 %v7016
        %v8126 = vunpack.c.h.b16 %v7016
        %v8127 = vunpack.c.l.b16 %v7017
        %v8128 = vunpack.c.h.b16 %v7017
        %v8129 = vunpack.c.l.b16 %v7018
        %v8130 = vunpack.c.h.b16 %v7018
        %v8131 = vunpack.c.l.b16 %v7019
        %v8132 = vunpack.c.h.b16 %v7019
        %v8133 = vunpack.c.l.b16 %v7020
        %v8134 = vunpack.c.h.b16 %v7020
        %v8135 = vunpack.c.l.b16 %v7021
        %v8136 = vunpack.c.h.b16 %v7021
        %v8137 = vunpack.c.l.b16 %v7022
        %v8138 = vunpack.c.h.b16 %v7022
        %v8139 = vunpack.c.l.b16 %v7023
        %v8140 = vunpack.c.h.b16 %v7023
        %v8141 = vunpack.c.l.b16 %v7024
        %v8142 = vunpack.c.h.b16 %v7024
        %v8143 = vunpack.c.l.b16 %v7025
        %v8144 = vunpack.c.h.b16 %v7025
        %v8145 = vunpack.c.l.b16 %v7026
        %v8146 = vunpack.c.h.b16 %v7026
        %v8147 = vunpack.c.l.b16 %v7027
        %v8148 = vunpack.c.h.b16 %v7027
        %v8149 = vunpack.c.l.b16 %v7028
        %v8150 = vunpack.c.h.b16 %v7028
        %v8151 = vunpack.c.l.b16 %v7029
        %v8152 = vunpack.c.h.b16 %v7029
        %v8153 = vunpack.c.l.b16 %v7030
        %v8154 = vunpack.c.h.b16 %v7030
        %v8155 = vunpack.c.l.b16 %v7031
        %v8156 = vunpack.c.h.b16 %v7031
        %v8157 = vunpack.c.l.b16 %v7032
        %v8158 = vunpack.c.h.b16 %v7032
        %v8159 = vunpack.c.l.b16 %v7033
        %v8160 = vunpack.c.h.b16 %v7033
        %v8161 = vunpack.c.l.b16 %v7034
        %v8162 = vunpack.c.h.b16 %v7034
        %v8163 = vunpack.c.l.b16 %v7035
        %v8164 = vunpack.c.h.b16 %v7035
        %v8165 = vunpack.c.l.b16 %v7036
        %v8166 = vunpack.c.h.b16 %v7036
        %v8167 = vunpack.c.l.b16 %v7037
        %v8168 = vunpack.c.h.b16 %v7037
        %v8169 = vunpack.c.l.b16 %v7038
        %v8170 = vunpack.c.h.b16 %v7038
        %v8171 = vunpack.c.l.b16 %v7039
        %v8172 = vunpack.c.h.b16 %v7039
        %v8173 = vunpack.c.l.b16 %v7040
        %v8174 = vunpack.c.h.b16 %v7040
        %v8175 = vunpack.c.l.b16 %v7041
        %v8176 = vunpack.c.h.b16 %v7041
        %v8177 = vunpack.c.l.b16 %v7042
        %v8178 = vunpack.c.h.b16 %v7042
        %v8179 = vunpack.c.l.b16 %v7043
        %v8180 = vunpack.c.h.b16 %v7043
        %v8181 = vunpack.c.l.b16 %v7044
        %v8182 = vunpack.c.h.b16 %v7044
        %v8183 = vunpack.c.l.b16 %v7045
        %v8184 = vunpack.c.h.b16 %v7045
        %v8185 = vunpack.c.l.b16 %v7046
        %v8186 = vunpack.c.h.b16 %v7046
        %v8187 = vunpack.c.l.b16 %v7047
        %v8188 = vunpack.c.h.b16 %v7047
        %v8189 = vunpack.c.l.b16 %v7048
        %v8190 = vunpack.c.h.b16 %v7048
        %v8191 = vunpack.c.l.b16 %v7049
        %v8192 = vunpack.c.h.b16 %v7049
        %v8193 = vunpack.c.l.b16 %v7050
        %v8194 = vunpack.c.h.b16 %v7050
        %v8195 = vunpack.c.l.b16 %v7051
        %v8196 = vunpack.c.h.b16 %v7051
        %v8197 = vunpack.c.l.b16 %v7052
        %v8198 = vunpack.c.h.b16 %v7052
        %v8199 = vunpack.c.l.b16 %v7053
        %v8200 = vunpack.c.h.b16 %v7053
        %v8201 = vunpack.c.l.b16 %v7054
        %v8202 = vunpack.c.h.b16 %v7054
        %v8203 = vunpack.c.l.b16 %v7055
        %v8204 = vunpack.c.h.b16 %v7055
        %v8205 = vunpack.c.l.b16 %v7056
        %v8206 = vunpack.c.h.b16 %v7056
        %v8207 = vunpack.c.l.b16 %v7057
        %v8208 = vunpack.c.h.b16 %v7057
        %v8209 = vunpack.c.l.b16 %v7058
        %v8210 = vunpack.c.h.b16 %v7058
        %v8211 = vpack.c.b16 %v7451, %v7443
        %v8212 = vpack.c.b16 %v7452, %v7444
        %v8213 = vpack.c.b16 %v7453, %v7445
        %v8214 = vpack.c.b16 %v7454, %v7446
        %v8215 = vpack.c.b16 %v7455, %v7447
        %v8216 = vpack.c.b16 %v7456, %v7448
        %v8217 = vpack.c.b16 %v7457, %v7449
        %v8218 = vpack.c.b16 %v7458, %v7450
        %v8219 = vpack.c.b16 %v7467, %v7459
        %v8220 = vpack.c.b16 %v7468, %v7460
        %v8221 = vpack.c.b16 %v7469, %v7461
        %v8222 = vpack.c.b16 %v7470, %v7462
        %v8223 = vpack.c.b16 %v7471, %v7463
        %v8224 = vpack.c.b16 %v7472, %v7464
        %v8225 = vpack.c.b16 %v7473, %v7465
        %v8226 = vpack.c.b16 %v7474, %v7466
        %v8227 = vpack.c.b16 %v7483, %v7475
        %v8228 = vpack.c.b16 %v7484, %v7476
        %v8229 = vpack.c.b16 %v7485, %v7477
        %v8230 = vpack.c.b16 %v7486, %v7478
        %v8231 = vpack.c.b16 %v7487, %v7479
        %v8232 = vpack.c.b16 %v7488, %v7480
        %v8233 = vpack.c.b16 %v7489, %v7481
        %v8234 = vpack.c.b16 %v7490, %v7482
        %v8235 = vpack.c.b16 %v7499, %v7491
        %v8236 = vpack.c.b16 %v7500, %v7492
        %v8237 = vpack.c.b16 %v7501, %v7493
        %v8238 = vpack.c.b16 %v7502, %v7494
        %v8239 = vpack.c.b16 %v7503, %v7495
        %v8240 = vpack.c.b16 %v7504, %v7496
        %v8241 = vpack.c.b16 %v7505, %v7497
        %v8242 = vpack.c.b16 %v7506, %v7498
        %v8243 = vpack.c.b16 %v7515, %v7507
        %v8244 = vpack.c.b16 %v7516, %v7508
        %v8245 = vpack.c.b16 %v7517, %v7509
        %v8246 = vpack.c.b16 %v7518, %v7510
        %v8247 = vpack.c.b16 %v7519, %v7511
        %v8248 = vpack.c.b16 %v7520, %v7512
        %v8249 = vpack.c.b16 %v7521, %v7513
        %v8250 = vpack.c.b16 %v7522, %v7514
        %v8251 = vpack.c.b16 %v7531, %v7523
        %v8252 = vpack.c.b16 %v7532, %v7524
        %v8253 = vpack.c.b16 %v7533, %v7525
        %v8254 = vpack.c.b16 %v7534, %v7526
        %v8255 = vpack.c.b16 %v7535, %v7527
        %v8256 = vpack.c.b16 %v7536, %v7528
        %v8257 = vpack.c.b16 %v7537, %v7529
        %v8258 = vpack.c.b16 %v7538, %v7530
        %v8259 = vpack.c.b16 %v7547, %v7539
        %v8260 = vpack.c.b16 %v7548, %v7540
        %v8261 = vpack.c.b16 %v7549, %v7541
        %v8262 = vpack.c.b16 %v7550, %v7542
        %v8263 = vpack.c.b16 %v7551, %v7543
        %v8264 = vpack.c.b16 %v7552, %v7544
        %v8265 = vpack.c.b16 %v7553, %v7545
        %v8266 = vpack.c.b16 %v7554, %v7546
        %v8267 = vpack.c.b16 %v7563, %v7555
        %v8268 = vpack.c.b16 %v7564, %v7556
        %v8269 = vpack.c.b16 %v7565, %v7557
        %v8270 = vpack.c.b16 %v7566, %v7558
        %v8271 = vpack.c.b16 %v7567, %v7559
        %v8272 = vpack.c.b16 %v7568, %v7560
        %v8273 = vpack.c.b16 %v7569, %v7561
        %v8274 = vpack.c.b16 %v7570, %v7562
        %v8275 = vpack.c.b16 %v7579, %v7571
        %v8276 = vpack.c.b16 %v7580, %v7572
        %v8277 = vpack.c.b16 %v7581, %v7573
        %v8278 = vpack.c.b16 %v7582, %v7574
        %v8279 = vpack.c.b16 %v7583, %v7575
        %v8280 = vpack.c.b16 %v7584, %v7576
        %v8281 = vpack.c.b16 %v7585, %v7577
        %v8282 = vpack.c.b16 %v7586, %v7578
        %v8283 = vpack.c.b16 %v7595, %v7587
        %v8284 = vpack.c.b16 %v7596, %v7588
        %v8285 = vpack.c.b16 %v7597, %v7589
        %v8286 = vpack.c.b16 %v7598, %v7590
        %v8287 = vpack.c.b16 %v7599, %v7591
        %v8288 = vpack.c.b16 %v7600, %v7592
        %v8289 = vpack.c.b16 %v7601, %v7593
        %v8290 = vpack.c.b16 %v7602, %v7594
        %v8291 = vpack.c.b16 %v7611, %v7603
        %v8292 = vpack.c.b16 %v7612, %v7604
        %v8293 = vpack.c.b16 %v7613, %v7605
        %v8294 = vpack.c.b16 %v7614, %v7606
        %v8295 = vpack.c.b16 %v7615, %v7607
        %v8296 = vpack.c.b16 %v7616, %v7608
        %v8297 = vpack.c.b16 %v7617, %v7609
        %v8298 = vpack.c.b16 %v7618, %v7610
        %v8299 = vpack.c.b16 %v7627, %v7619
        %v8300 = vpack.c.b16 %v7628, %v7620
        %v8301 = vpack.c.b16 %v7629, %v7621
        %v8302 = vpack.c.b16 %v7630, %v7622
        %v8303 = vpack.c.b16 %v7631, %v7623
        %v8304 = vpack.c.b16 %v7632, %v7624
        %v8305 = vpack.c.b16 %v7633, %v7625
        %v8306 = vpack.c.b16 %v7634, %v7626
        %v8307 = vpack.c.b16 %v7643, %v7635
        %v8308 = vpack.c.b16 %v7644, %v7636
        %v8309 = vpack.c.b16 %v7645, %v7637
        %v8310 = vpack.c.b16 %v7646, %v7638
        %v8311 = vpack.c.b16 %v7647, %v7639
        %v8312 = vpack.c.b16 %v7648, %v7640
        %v8313 = vpack.c.b16 %v7649, %v7641
        %v8314 = vpack.c.b16 %v7650, %v7642
        %v8315 = vpack.c.b16 %v7659, %v7651
        %v8316 = vpack.c.b16 %v7660, %v7652
        %v8317 = vpack.c.b16 %v7661, %v7653
        %v8318 = vpack.c.b16 %v7662, %v7654
        %v8319 = vpack.c.b16 %v7663, %v7655
        %v8320 = vpack.c.b16 %v7664, %v7656
        %v8321 = vpack.c.b16 %v7665, %v7657
        %v8322 = vpack.c.b16 %v7666, %v7658
        %v8323 = vpack.c.b16 %v7675, %v7667
        %v8324 = vpack.c.b16 %v7676, %v7668
        %v8325 = vpack.c.b16 %v7677, %v7669
        %v8326 = vpack.c.b16 %v7678, %v7670
        %v8327 = vpack.c.b16 %v7679, %v7671
        %v8328 = vpack.c.b16 %v7680, %v7672
        %v8329 = vpack.c.b16 %v7681, %v7673
        %v8330 = vpack.c.b16 %v7682, %v7674
        %v8331 = vpack.c.b16 %v7691, %v7683
        %v8332 = vpack.c.b16 %v7692, %v7684
        %v8333 = vpack.c.b16 %v7693, %v7685
        %v8334 = vpack.c.b16 %v7694, %v7686
        %v8335 = vpack.c.b16 %v7695, %v7687
        %v8336 = vpack.c.b16 %v7696, %v7688
        %v8337 = vpack.c.b16 %v7697, %v7689
        %v8338 = vpack.c.b16 %v7698, %v7690
        %v8339 = vpack.c.b16 %v7707, %v7699
        %v8340 = vpack.c.b16 %v7708, %v7700
        %v8341 = vpack.c.b16 %v7709, %v7701
        %v8342 = vpack.c.b16 %v7710, %v7702
        %v8343 = vpack.c.b16 %v7711, %v7703
        %v8344 = vpack.c.b16 %v7712, %v7704
        %v8345 = vpack.c.b16 %v7713, %v7705
        %v8346 = vpack.c.b16 %v7714, %v7706
        %v8347 = vpack.c.b16 %v7723, %v7715
        %v8348 = vpack.c.b16 %v7724, %v7716
        %v8349 = vpack.c.b16 %v7725, %v7717
        %v8350 = vpack.c.b16 %v7726, %v7718
        %v8351 = vpack.c.b16 %v7727, %v7719
        %v8352 = vpack.c.b16 %v7728, %v7720
        %v8353 = vpack.c.b16 %v7729, %v7721
        %v8354 = vpack.c.b16 %v7730, %v7722
        %v8355 = vpack.c.b16 %v7739, %v7731
        %v8356 = vpack.c.b16 %v7740, %v7732
        %v8357 = vpack.c.b16 %v7741, %v7733
        %v8358 = vpack.c.b16 %v7742, %v7734
        %v8359 = vpack.c.b16 %v7743, %v7735
        %v8360 = vpack.c.b16 %v7744, %v7736
        %v8361 = vpack.c.b16 %v7745, %v7737
        %v8362 = vpack.c.b16 %v7746, %v7738
        %v8363 = vpack.c.b16 %v7755, %v7747
        %v8364 = vpack.c.b16 %v7756, %v7748
        %v8365 = vpack.c.b16 %v7757, %v7749
        %v8366 = vpack.c.b16 %v7758, %v7750
        %v8367 = vpack.c.b16 %v7759, %v7751
        %v8368 = vpack.c.b16 %v7760, %v7752
        %v8369 = vpack.c.b16 %v7761, %v7753
        %v8370 = vpack.c.b16 %v7762, %v7754
        %v8371 = vpack.c.b16 %v7771, %v7763
        %v8372 = vpack.c.b16 %v7772, %v7764
        %v8373 = vpack.c.b16 %v7773, %v7765
        %v8374 = vpack.c.b16 %v7774, %v7766
        %v8375 = vpack.c.b16 %v7775, %v7767
        %v8376 = vpack.c.b16 %v7776, %v7768
        %v8377 = vpack.c.b16 %v7777, %v7769
        %v8378 = vpack.c.b16 %v7778, %v7770
        %v8379 = vpack.c.b16 %v7787, %v7779
        %v8380 = vpack.c.b16 %v7788, %v7780
        %v8381 = vpack.c.b16 %v7789, %v7781
        %v8382 = vpack.c.b16 %v7790, %v7782
        %v8383 = vpack.c.b16 %v7791, %v7783
        %v8384 = vpack.c.b16 %v7792, %v7784
        %v8385 = vpack.c.b16 %v7793, %v7785
        %v8386 = vpack.c.b16 %v7794, %v7786
        %v8387 = vpack.c.b16 %v7803, %v7795
        %v8388 = vpack.c.b16 %v7804, %v7796
        %v8389 = vpack.c.b16 %v7805, %v7797
        %v8390 = vpack.c.b16 %v7806, %v7798
        %v8391 = vpack.c.b16 %v7807, %v7799
        %v8392 = vpack.c.b16 %v7808, %v7800
        %v8393 = vpack.c.b16 %v7809, %v7801
        %v8394 = vpack.c.b16 %v7810, %v7802
        %v8395 = vpack.c.b16 %v7819, %v7811
        %v8396 = vpack.c.b16 %v7820, %v7812
        %v8397 = vpack.c.b16 %v7821, %v7813
        %v8398 = vpack.c.b16 %v7822, %v7814
        %v8399 = vpack.c.b16 %v7823, %v7815
        %v8400 = vpack.c.b16 %v7824, %v7816
        %v8401 = vpack.c.b16 %v7825, %v7817
        %v8402 = vpack.c.b16 %v7826, %v7818
        %v8403 = vpack.c.b16 %v7835, %v7827
        %v8404 = vpack.c.b16 %v7836, %v7828
        %v8405 = vpack.c.b16 %v7837, %v7829
        %v8406 = vpack.c.b16 %v7838, %v7830
        %v8407 = vpack.c.b16 %v7839, %v7831
        %v8408 = vpack.c.b16 %v7840, %v7832
        %v8409 = vpack.c.b16 %v7841, %v7833
        %v8410 = vpack.c.b16 %v7842, %v7834
        %v8411 = vpack.c.b16 %v7851, %v7843
        %v8412 = vpack.c.b16 %v7852, %v7844
        %v8413 = vpack.c.b16 %v7853, %v7845
        %v8414 = vpack.c.b16 %v7854, %v7846
        %v8415 = vpack.c.b16 %v7855, %v7847
        %v8416 = vpack.c.b16 %v7856, %v7848
        %v8417 = vpack.c.b16 %v7857, %v7849
        %v8418 = vpack.c.b16 %v7858, %v7850
        %v8419 = vpack.c.b16 %v7867, %v7859
        %v8420 = vpack.c.b16 %v7868, %v7860
        %v8421 = vpack.c.b16 %v7869, %v7861
        %v8422 = vpack.c.b16 %v7870, %v7862
        %v8423 = vpack.c.b16 %v7871, %v7863
        %v8424 = vpack.c.b16 %v7872, %v7864
        %v8425 = vpack.c.b16 %v7873, %v7865
        %v8426 = vpack.c.b16 %v7874, %v7866
        %v8427 = vpack.c.b16 %v7883, %v7875
        %v8428 = vpack.c.b16 %v7884, %v7876
        %v8429 = vpack.c.b16 %v7885, %v7877
        %v8430 = vpack.c.b16 %v7886, %v7878
        %v8431 = vpack.c.b16 %v7887, %v7879
        %v8432 = vpack.c.b16 %v7888, %v7880
        %v8433 = vpack.c.b16 %v7889, %v7881
        %v8434 = vpack.c.b16 %v7890, %v7882
        %v8435 = vpack.c.b16 %v7899, %v7891
        %v8436 = vpack.c.b16 %v7900, %v7892
        %v8437 = vpack.c.b16 %v7901, %v7893
        %v8438 = vpack.c.b16 %v7902, %v7894
        %v8439 = vpack.c.b16 %v7903, %v7895
        %v8440 = vpack.c.b16 %v7904, %v7896
        %v8441 = vpack.c.b16 %v7905, %v7897
        %v8442 = vpack.c.b16 %v7906, %v7898
        %v8443 = vpack.c.b16 %v7915, %v7907
        %v8444 = vpack.c.b16 %v7916, %v7908
        %v8445 = vpack.c.b16 %v7917, %v7909
        %v8446 = vpack.c.b16 %v7918, %v7910
        %v8447 = vpack.c.b16 %v7919, %v7911
        %v8448 = vpack.c.b16 %v7920, %v7912
        %v8449 = vpack.c.b16 %v7921, %v7913
        %v8450 = vpack.c.b16 %v7922, %v7914
        %v8451 = vpack.c.b16 %v7931, %v7923
        %v8452 = vpack.c.b16 %v7932, %v7924
        %v8453 = vpack.c.b16 %v7933, %v7925
        %v8454 = vpack.c.b16 %v7934, %v7926
        %v8455 = vpack.c.b16 %v7935, %v7927
        %v8456 = vpack.c.b16 %v7936, %v7928
        %v8457 = vpack.c.b16 %v7937, %v7929
        %v8458 = vpack.c.b16 %v7938, %v7930
        %v8459 = vpack.c.b16 %v7947, %v7939
        %v8460 = vpack.c.b16 %v7948, %v7940
        %v8461 = vpack.c.b16 %v7949, %v7941
        %v8462 = vpack.c.b16 %v7950, %v7942
        %v8463 = vpack.c.b16 %v7951, %v7943
        %v8464 = vpack.c.b16 %v7952, %v7944
        %v8465 = vpack.c.b16 %v7953, %v7945
        %v8466 = vpack.c.b16 %v7954, %v7946
        %v8467 = vpack.c.b16 %v7963, %v7955
        %v8468 = vpack.c.b16 %v7964, %v7956
        %v8469 = vpack.c.b16 %v7965, %v7957
        %v8470 = vpack.c.b16 %v7966, %v7958
        %v8471 = vpack.c.b16 %v7967, %v7959
        %v8472 = vpack.c.b16 %v7968, %v7960
        %v8473 = vpack.c.b16 %v7969, %v7961
        %v8474 = vpack.c.b16 %v7970, %v7962
        %v8475 = vpack.c.b16 %v7979, %v7971
        %v8476 = vpack.c.b16 %v7980, %v7972
        %v8477 = vpack.c.b16 %v7981, %v7973
        %v8478 = vpack.c.b16 %v7982, %v7974
        %v8479 = vpack.c.b16 %v7983, %v7975
        %v8480 = vpack.c.b16 %v7984, %v7976
        %v8481 = vpack.c.b16 %v7985, %v7977
        %v8482 = vpack.c.b16 %v7986, %v7978
        %v8483 = vpack.c.b16 %v7995, %v7987
        %v8484 = vpack.c.b16 %v7996, %v7988
        %v8485 = vpack.c.b16 %v7997, %v7989
        %v8486 = vpack.c.b16 %v7998, %v7990
        %v8487 = vpack.c.b16 %v7999, %v7991
        %v8488 = vpack.c.b16 %v8000, %v7992
        %v8489 = vpack.c.b16 %v8001, %v7993
        %v8490 = vpack.c.b16 %v8002, %v7994
        %v8491 = vpack.c.b16 %v8011, %v8003
        %v8492 = vpack.c.b16 %v8012, %v8004
        %v8493 = vpack.c.b16 %v8013, %v8005
        %v8494 = vpack.c.b16 %v8014, %v8006
        %v8495 = vpack.c.b16 %v8015, %v8007
        %v8496 = vpack.c.b16 %v8016, %v8008
        %v8497 = vpack.c.b16 %v8017, %v8009
        %v8498 = vpack.c.b16 %v8018, %v8010
        %v8499 = vpack.c.b16 %v8027, %v8019
        %v8500 = vpack.c.b16 %v8028, %v8020
        %v8501 = vpack.c.b16 %v8029, %v8021
        %v8502 = vpack.c.b16 %v8030, %v8022
        %v8503 = vpack.c.b16 %v8031, %v8023
        %v8504 = vpack.c.b16 %v8032, %v8024
        %v8505 = vpack.c.b16 %v8033, %v8025
        %v8506 = vpack.c.b16 %v8034, %v8026
        %v8507 = vpack.c.b16 %v8043, %v8035
        %v8508 = vpack.c.b16 %v8044, %v8036
        %v8509 = vpack.c.b16 %v8045, %v8037
        %v8510 = vpack.c.b16 %v8046, %v8038
        %v8511 = vpack.c.b16 %v8047, %v8039
        %v8512 = vpack.c.b16 %v8048, %v8040
        %v8513 = vpack.c.b16 %v8049, %v8041
        %v8514 = vpack.c.b16 %v8050, %v8042
        %v8515 = vpack.c.b16 %v8059, %v8051
        %v8516 = vpack.c.b16 %v8060, %v8052
        %v8517 = vpack.c.b16 %v8061, %v8053
        %v8518 = vpack.c.b16 %v8062, %v8054
        %v8519 = vpack.c.b16 %v8063, %v8055
        %v8520 = vpack.c.b16 %v8064, %v8056
        %v8521 = vpack.c.b16 %v8065, %v8057
        %v8522 = vpack.c.b16 %v8066, %v8058
        %v8523 = vpack.c.b16 %v8075, %v8067
        %v8524 = vpack.c.b16 %v8076, %v8068
        %v8525 = vpack.c.b16 %v8077, %v8069
        %v8526 = vpack.c.b16 %v8078, %v8070
        %v8527 = vpack.c.b16 %v8079, %v8071
        %v8528 = vpack.c.b16 %v8080, %v8072
        %v8529 = vpack.c.b16 %v8081, %v8073
        %v8530 = vpack.c.b16 %v8082, %v8074
        %v8531 = vpack.c.b16 %v8091, %v8083
        %v8532 = vpack.c.b16 %v8092, %v8084
        %v8533 = vpack.c.b16 %v8093, %v8085
        %v8534 = vpack.c.b16 %v8094, %v8086
        %v8535 = vpack.c.b16 %v8095, %v8087
        %v8536 = vpack.c.b16 %v8096, %v8088
        %v8537 = vpack.c.b16 %v8097, %v8089
        %v8538 = vpack.c.b16 %v8098, %v8090
        %v8539 = vpack.c.b16 %v8107, %v8099
        %v8540 = vpack.c.b16 %v8108, %v8100
        %v8541 = vpack.c.b16 %v8109, %v8101
        %v8542 = vpack.c.b16 %v8110, %v8102
        %v8543 = vpack.c.b16 %v8111, %v8103
        %v8544 = vpack.c.b16 %v8112, %v8104
        %v8545 = vpack.c.b16 %v8113, %v8105
        %v8546 = vpack.c.b16 %v8114, %v8106
        %v8547 = vpack.c.b16 %v8123, %v8115
        %v8548 = vpack.c.b16 %v8124, %v8116
        %v8549 = vpack.c.b16 %v8125, %v8117
        %v8550 = vpack.c.b16 %v8126, %v8118
        %v8551 = vpack.c.b16 %v8127, %v8119
        %v8552 = vpack.c.b16 %v8128, %v8120
        %v8553 = vpack.c.b16 %v8129, %v8121
        %v8554 = vpack.c.b16 %v8130, %v8122
        %v8555 = vpack.c.b16 %v8139, %v8131
        %v8556 = vpack.c.b16 %v8140, %v8132
        %v8557 = vpack.c.b16 %v8141, %v8133
        %v8558 = vpack.c.b16 %v8142, %v8134
        %v8559 = vpack.c.b16 %v8143, %v8135
        %v8560 = vpack.c.b16 %v8144, %v8136
        %v8561 = vpack.c.b16 %v8145, %v8137
        %v8562 = vpack.c.b16 %v8146, %v8138
        %v8563 = vpack.c.b16 %v8155, %v8147
        %v8564 = vpack.c.b16 %v8156, %v8148
        %v8565 = vpack.c.b16 %v8157, %v8149
        %v8566 = vpack.c.b16 %v8158, %v8150
        %v8567 = vpack.c.b16 %v8159, %v8151
        %v8568 = vpack.c.b16 %v8160, %v8152
        %v8569 = vpack.c.b16 %v8161, %v8153
        %v8570 = vpack.c.b16 %v8162, %v8154
        %v8571 = vpack.c.b16 %v8171, %v8163
        %v8572 = vpack.c.b16 %v8172, %v8164
        %v8573 = vpack.c.b16 %v8173, %v8165
        %v8574 = vpack.c.b16 %v8174, %v8166
        %v8575 = vpack.c.b16 %v8175, %v8167
        %v8576 = vpack.c.b16 %v8176, %v8168
        %v8577 = vpack.c.b16 %v8177, %v8169
        %v8578 = vpack.c.b16 %v8178, %v8170
        %v8579 = vpack.c.b16 %v8187, %v8179
        %v8580 = vpack.c.b16 %v8188, %v8180
        %v8581 = vpack.c.b16 %v8189, %v8181
        %v8582 = vpack.c.b16 %v8190, %v8182
        %v8583 = vpack.c.b16 %v8191, %v8183
        %v8584 = vpack.c.b16 %v8192, %v8184
        %v8585 = vpack.c.b16 %v8193, %v8185
        %v8586 = vpack.c.b16 %v8194, %v8186
        %v8587 = vpack.c.b16 %v8203, %v8195
        %v8588 = vpack.c.b16 %v8204, %v8196
        %v8589 = vpack.c.b16 %v8205, %v8197
        %v8590 = vpack.c.b16 %v8206, %v8198
        %v8591 = vpack.c.b16 %v8207, %v8199
        %v8592 = vpack.c.b16 %v8208, %v8200
        %v8593 = vpack.c.b16 %v8209, %v8201
        %v8594 = vpack.c.b16 %v8210, %v8202
        %8979 = vmatprep.subr.bf16.mxu0 %v8212
        %8980 = vmatpush1.bf16.msra.mxu0 %v8211
        %8981 = vmatprep.subr.bf16.mxu0 %v8220
        %8982 = vmatpush1.bf16.msra.mxu0 %v8219
        %8983 = vmatprep.subr.bf16.mxu0 %v8228
        %8984 = vmatpush1.bf16.msra.mxu0 %v8227
        %8985 = vmatprep.subr.bf16.mxu0 %v8236
        %8986 = vmatpush1.bf16.msra.mxu0 %v8235
        %8987 = vmatprep.subr.bf16.mxu0 %v8244
        %8988 = vmatpush1.bf16.msra.mxu0 %v8243
        %8989 = vmatprep.subr.bf16.mxu0 %v8252
        %8990 = vmatpush1.bf16.msra.mxu0 %v8251
        %8991 = vmatprep.subr.bf16.mxu0 %v8260
        %8992 = vmatpush1.bf16.msra.mxu0 %v8259
        %8993 = vmatprep.subr.bf16.mxu0 %v8268
        %8994 = vmatpush1.bf16.msra.mxu0 %v8267
        %8995 = vmatprep.subr.bf16.mxu0 %v8276
        %8996 = vmatpush1.bf16.msra.mxu0 %v8275
        %8997 = vmatprep.subr.bf16.mxu0 %v8284
        %8998 = vmatpush1.bf16.msra.mxu0 %v8283
        %8999 = vmatprep.subr.bf16.mxu0 %v8292
        %9000 = vmatpush1.bf16.msra.mxu0 %v8291
        %9001 = vmatprep.subr.bf16.mxu0 %v8300
        %9002 = vmatpush1.bf16.msra.mxu0 %v8299
        %9003 = vmatprep.subr.bf16.mxu0 %v8308
        %9004 = vmatpush1.bf16.msra.mxu0 %v8307
        %9005 = vmatprep.subr.bf16.mxu0 %v8316
        %9006 = vmatpush1.bf16.msra.mxu0 %v8315
        %9007 = vmatprep.subr.bf16.mxu0 %v8324
        %9008 = vmatpush1.bf16.msra.mxu0 %v8323
        %9009 = vmatprep.subr.bf16.mxu0 %v8332
        %9010 = vmatpush1.bf16.msra.mxu0 %v8331
        %9011 = vmatprep.mubr.bf16.mxu0 %v6632
        %9012 = vmatmul.mubr.bf16.gmra.mrb[0].mxu0 %v6631
        %v9013 = vpop.f32.mrb[0].mxu0
        %v9014 = vadd.f32 0.0, %v9013
        %v9015 = vpop.f32.mrb[0].mxu0
        %v9016 = vadd.f32 0.0, %v9015
        %v9017 = vpop.f32.mrb[0].mxu0
        %v9018 = vadd.f32 0.0, %v9017
        %v9019 = vpop.f32.mrb[0].mxu0
        %v9020 = vadd.f32 0.0, %v9019
        %9021 = vmatprep.mubr.bf16.mxu0 %v6638
        %9022 = vmatmul.mubr.bf16.gmra.mrb[0].mxu0 %v6637
        %v9023 = vpop.f32.mrb[0].mxu0
        %v9024 = vadd.f32 0.0, %v9023
        %v9025 = vpop.f32.mrb[0].mxu0
        %v9026 = vadd.f32 0.0, %v9025
        %v9027 = vpop.f32.mrb[0].mxu0
        %v9028 = vadd.f32 0.0, %v9027
        %v9029 = vpop.f32.mrb[0].mxu0
        %v9030 = vadd.f32 0.0, %v9029
        %9031 = vdwg.mxu0
        %9032 = vmatprep.subr.bf16.mxu0 %v8340
        %9033 = vmatpush1.bf16.msra.mxu0 %v8339
        %9034 = vmatprep.subr.bf16.mxu0 %v8348
        %9035 = vmatpush1.bf16.msra.mxu0 %v8347
        %9036 = vmatprep.subr.bf16.mxu0 %v8356
        %9037 = vmatpush1.bf16.msra.mxu0 %v8355
        %9038 = vmatprep.subr.bf16.mxu0 %v8364
        %9039 = vmatpush1.bf16.msra.mxu0 %v8363
        %9040 = vmatprep.subr.bf16.mxu0 %v8372
        %9041 = vmatpush1.bf16.msra.mxu0 %v8371
        %9042 = vmatprep.subr.bf16.mxu0 %v8380
        %9043 = vmatpush1.bf16.msra.mxu0 %v8379
        %9044 = vmatprep.subr.bf16.mxu0 %v8388
        %9045 = vmatpush1.bf16.msra.mxu0 %v8387
        %9046 = vmatprep.subr.bf16.mxu0 %v8396
        %9047 = vmatpush1.bf16.msra.mxu0 %v8395
        %9048 = vmatprep.subr.bf16.mxu0 %v8404
        %9049 = vmatpush1.bf16.msra.mxu0 %v8403
        %9050 = vmatprep.subr.bf16.mxu0 %v8412
        %9051 = vmatpush1.bf16.msra.mxu0 %v8411
        %9052 = vmatprep.subr.bf16.mxu0 %v8420
        %9053 = vmatpush1.bf16.msra.mxu0 %v8419
        %9054 = vmatprep.subr.bf16.mxu0 %v8428
        %9055 = vmatpush1.bf16.msra.mxu0 %v8427
        %9056 = vmatprep.subr.bf16.mxu0 %v8436
        %9057 = vmatpush1.bf16.msra.mxu0 %v8435
        %9058 = vmatprep.subr.bf16.mxu0 %v8444
        %9059 = vmatpush1.bf16.msra.mxu0 %v8443
        %9060 = vmatprep.subr.bf16.mxu0 %v8452
        %9061 = vmatpush1.bf16.msra.mxu0 %v8451
        %9062 = vmatprep.subr.bf16.mxu0 %v8460
        %9063 = vmatpush1.bf16.msra.mxu0 %v8459
        %9064 = vmatprep.mubr.bf16.mxu0 %v6634
        %9065 = vmatmul.mubr.bf16.gmra.mrb[0].mxu0 %v6633
        %v9066 = vpop.f32.mrb[0].mxu0
        %v9067 = vadd.f32 %v9014, %v9066
        %v9068 = vpop.f32.mrb[0].mxu0
        %v9069 = vadd.f32 %v9016, %v9068
        %v9070 = vpop.f32.mrb[0].mxu0
        %v9071 = vadd.f32 %v9018, %v9070
        %v9072 = vpop.f32.mrb[0].mxu0
        %v9073 = vadd.f32 %v9020, %v9072
        %9074 = vmatprep.mubr.bf16.mxu0 %v6640
        %9075 = vmatmul.mubr.bf16.gmra.mrb[0].mxu0 %v6639
        %v9076 = vpop.f32.mrb[0].mxu0
        %v9077 = vadd.f32 %v9024, %v9076
        %v9078 = vpop.f32.mrb[0].mxu0
        %v9079 = vadd.f32 %v9026, %v9078
        %v9080 = vpop.f32.mrb[0].mxu0
        %v9081 = vadd.f32 %v9028, %v9080
        %v9082 = vpop.f32.mrb[0].mxu0
        %v9083 = vadd.f32 %v9030, %v9082
        %9084 = vdwg.mxu0
        %9085 = vmatprep.subr.bf16.mxu0 %v8468
        %9086 = vmatpush1.bf16.msra.mxu0 %v8467
        %9087 = vmatprep.subr.bf16.mxu0 %v8476
        %9088 = vmatpush1.bf16.msra.mxu0 %v8475
        %9089 = vmatprep.subr.bf16.mxu0 %v8484
        %9090 = vmatpush1.bf16.msra.mxu0 %v8483
        %9091 = vmatprep.subr.bf16.mxu0 %v8492
        %9092 = vmatpush1.bf16.msra.mxu0 %v8491
        %9093 = vmatprep.subr.bf16.mxu0 %v8500
        %9094 = vmatpush1.bf16.msra.mxu0 %v8499
        %9095 = vmatprep.subr.bf16.mxu0 %v8508
        %9096 = vmatpush1.bf16.msra.mxu0 %v8507
        %9097 = vmatprep.subr.bf16.mxu0 %v8516
        %9098 = vmatpush1.bf16.msra.mxu0 %v8515
        %9099 = vmatprep.subr.bf16.mxu0 %v8524
        %9100 = vmatpush1.bf16.msra.mxu0 %v8523
        %9101 = vmatprep.subr.bf16.mxu0 %v8532
        %9102 = vmatpush1.bf16.msra.mxu0 %v8531
        %9103 = vmatprep.subr.bf16.mxu0 %v8540
        %9104 = vmatpush1.bf16.msra.mxu0 %v8539
        %9105 = vmatprep.subr.bf16.mxu0 %v8548
        %9106 = vmatpush1.bf16.msra.mxu0 %v8547
        %9107 = vmatprep.subr.bf16.mxu0 %v8556
        %9108 = vmatpush1.bf16.msra.mxu0 %v8555
        %9109 = vmatprep.subr.bf16.mxu0 %v8564
        %9110 = vmatpush1.bf16.msra.mxu0 %v8563
        %9111 = vmatprep.subr.bf16.mxu0 %v8572
        %9112 = vmatpush1.bf16.msra.mxu0 %v8571
        %9113 = vmatprep.subr.bf16.mxu0 %v8580
        %9114 = vmatpush1.bf16.msra.mxu0 %v8579
        %9115 = vmatprep.subr.bf16.mxu0 %v8588
        %9116 = vmatpush1.bf16.msra.mxu0 %v8587
        %9117 = vmatprep.mubr.bf16.mxu0 %v6636
        %9118 = vmatmul.mubr.bf16.gmra.mrb[0].mxu0 %v6635
        %v9119 = vpop.f32.mrb[0].mxu0
        %v9120 = vadd.f32 %v9067, %v9119
        %v9121 = vpop.f32.mrb[0].mxu0
        %v9122 = vadd.f32 %v9069, %v9121
        %v9123 = vpop.f32.mrb[0].mxu0
        %v9124 = vadd.f32 %v9071, %v9123
        %v9125 = vpop.f32.mrb[0].mxu0
        %v9126 = vadd.f32 %v9073, %v9125
        %9127 = vmatprep.mubr.bf16.mxu0 %v6642
        %9128 = vmatmul.mubr.bf16.gmra.mrb[0].mxu0 %v6641
        %v9129 = vpop.f32.mrb[0].mxu0
        %v9130 = vadd.f32 %v9077, %v9129
        %v9131 = vpop.f32.mrb[0].mxu0
        %v9132 = vadd.f32 %v9079, %v9131
        %v9133 = vpop.f32.mrb[0].mxu0
        %v9134 = vadd.f32 %v9081, %v9133
        %v9135 = vpop.f32.mrb[0].mxu0
        %v9136 = vadd.f32 %v9083, %v9135
        %9137 = vdwg.mxu0
        %9138 = vmatprep.subr.bf16.mxu0 %v8214
        %9139 = vmatpush1.bf16.msra.mxu0 %v8213
        %9140 = vmatprep.subr.bf16.mxu0 %v8222
        %9141 = vmatpush1.bf16.msra.mxu0 %v8221
        %9142 = vmatprep.subr.bf16.mxu0 %v8230
        %9143 = vmatpush1.bf16.msra.mxu0 %v8229
        %9144 = vmatprep.subr.bf16.mxu0 %v8238
        %9145 = vmatpush1.bf16.msra.mxu0 %v8237
        %9146 = vmatprep.subr.bf16.mxu0 %v8246
        %9147 = vmatpush1.bf16.msra.mxu0 %v8245
        %9148 = vmatprep.subr.bf16.mxu0 %v8254
        %9149 = vmatpush1.bf16.msra.mxu0 %v8253
        %9150 = vmatprep.subr.bf16.mxu0 %v8262
        %9151 = vmatpush1.bf16.msra.mxu0 %v8261
        %9152 = vmatprep.subr.bf16.mxu0 %v8270
        %9153 = vmatpush1.bf16.msra.mxu0 %v8269
        %9154 = vmatprep.subr.bf16.mxu0 %v8278
        %9155 = vmatpush1.bf16.msra.mxu0 %v8277
        %9156 = vmatprep.subr.bf16.mxu0 %v8286
        %9157 = vmatpush1.bf16.msra.mxu0 %v8285
        %9158 = vmatprep.subr.bf16.mxu0 %v8294
        %9159 = vmatpush1.bf16.msra.mxu0 %v8293
        %9160 = vmatprep.subr.bf16.mxu0 %v8302
        %9161 = vmatpush1.bf16.msra.mxu0 %v8301
        %9162 = vmatprep.subr.bf16.mxu0 %v8310
        %9163 = vmatpush1.bf16.msra.mxu0 %v8309
        %9164 = vmatprep.subr.bf16.mxu0 %v8318
        %9165 = vmatpush1.bf16.msra.mxu0 %v8317
        %9166 = vmatprep.subr.bf16.mxu0 %v8326
        %9167 = vmatpush1.bf16.msra.mxu0 %v8325
        %9168 = vmatprep.subr.bf16.mxu0 %v8334
        %9169 = vmatpush1.bf16.msra.mxu0 %v8333
        %9170 = vmatprep.mubr.bf16.mxu0 %v6632
        %9171 = vmatmul.mubr.bf16.gmra.mrb[0].mxu0 %v6631
        %v9172 = vpop.f32.mrb[0].mxu0
        %v9173 = vadd.f32 0.0, %v9172
        %v9174 = vpop.f32.mrb[0].mxu0
        %v9175 = vadd.f32 0.0, %v9174
        %v9176 = vpop.f32.mrb[0].mxu0
        %v9177 = vadd.f32 0.0, %v9176
        %v9178 = vpop.f32.mrb[0].mxu0
        %v9179 = vadd.f32 0.0, %v9178
        %9180 = vmatprep.mubr.bf16.mxu0 %v6638
        %9181 = vmatmul.mubr.bf16.gmra.mrb[0].mxu0 %v6637
        %v9182 = vpop.f32.mrb[0].mxu0
        %v9183 = vadd.f32 0.0, %v9182
        %v9184 = vpop.f32.mrb[0].mxu0
        %v9185 = vadd.f32 0.0, %v9184
        %v9186 = vpop.f32.mrb[0].mxu0
        %v9187 = vadd.f32 0.0, %v9186
        %v9188 = vpop.f32.mrb[0].mxu0
        %v9189 = vadd.f32 0.0, %v9188
        %9190 = vdwg.mxu0
        %9191 = vmatprep.subr.bf16.mxu0 %v8342
        %9192 = vmatpush1.bf16.msra.mxu0 %v8341
        %9193 = vmatprep.subr.bf16.mxu0 %v8350
        %9194 = vmatpush1.bf16.msra.mxu0 %v8349
        %9195 = vmatprep.subr.bf16.mxu0 %v8358
        %9196 = vmatpush1.bf16.msra.mxu0 %v8357
        %9197 = vmatprep.subr.bf16.mxu0 %v8366
        %9198 = vmatpush1.bf16.msra.mxu0 %v8365
        %9199 = vmatprep.subr.bf16.mxu0 %v8374
        %9200 = vmatpush1.bf16.msra.mxu0 %v8373
        %9201 = vmatprep.subr.bf16.mxu0 %v8382
        %9202 = vmatpush1.bf16.msra.mxu0 %v8381
        %9203 = vmatprep.subr.bf16.mxu0 %v8390
        %9204 = vmatpush1.bf16.msra.mxu0 %v8389
        %9205 = vmatprep.subr.bf16.mxu0 %v8398
        %9206 = vmatpush1.bf16.msra.mxu0 %v8397
        %9207 = vmatprep.subr.bf16.mxu0 %v8406
        %9208 = vmatpush1.bf16.msra.mxu0 %v8405
        %9209 = vmatprep.subr.bf16.mxu0 %v8414
        %9210 = vmatpush1.bf16.msra.mxu0 %v8413
        %9211 = vmatprep.subr.bf16.mxu0 %v8422
        %9212 = vmatpush1.bf16.msra.mxu0 %v8421
        %9213 = vmatprep.subr.bf16.mxu0 %v8430
        %9214 = vmatpush1.bf16.msra.mxu0 %v8429
        %9215 = vmatprep.subr.bf16.mxu0 %v8438
        %9216 = vmatpush1.bf16.msra.mxu0 %v8437
        %9217 = vmatprep.subr.bf16.mxu0 %v8446
        %9218 = vmatpush1.bf16.msra.mxu0 %v8445
        %9219 = vmatprep.subr.bf16.mxu0 %v8454
        %9220 = vmatpush1.bf16.msra.mxu0 %v8453
        %9221 = vmatprep.subr.bf16.mxu0 %v8462
        %9222 = vmatpush1.bf16.msra.mxu0 %v8461
        %9223 = vmatprep.mubr.bf16.mxu0 %v6634
        %9224 = vmatmul.mubr.bf16.gmra.mrb[0].mxu0 %v6633
        %v9225 = vpop.f32.mrb[0].mxu0
        %v9226 = vadd.f32 %v9173, %v9225
        %v9227 = vpop.f32.mrb[0].mxu0
        %v9228 = vadd.f32 %v9175, %v9227
        %v9229 = vpop.f32.mrb[0].mxu0
        %v9230 = vadd.f32 %v9177, %v9229
        %v9231 = vpop.f32.mrb[0].mxu0
        %v9232 = vadd.f32 %v9179, %v9231
        %9233 = vmatprep.mubr.bf16.mxu0 %v6640
        %9234 = vmatmul.mubr.bf16.gmra.mrb[0].mxu0 %v6639
        %v9235 = vpop.f32.mrb[0].mxu0
        %v9236 = vadd.f32 %v9183, %v9235
        %v9237 = vpop.f32.mrb[0].mxu0
        %v9238 = vadd.f32 %v9185, %v9237
        %v9239 = vpop.f32.mrb[0].mxu0
        %v9240 = vadd.f32 %v9187, %v9239
        %v9241 = vpop.f32.mrb[0].mxu0
        %v9242 = vadd.f32 %v9189, %v9241
        %9243 = vdwg.mxu0
        %9244 = vmatprep.subr.bf16.mxu0 %v8470
        %9245 = vmatpush1.bf16.msra.mxu0 %v8469
        %9246 = vmatprep.subr.bf16.mxu0 %v8478
        %9247 = vmatpush1.bf16.msra.mxu0 %v8477
        %9248 = vmatprep.subr.bf16.mxu0 %v8486
        %9249 = vmatpush1.bf16.msra.mxu0 %v8485
        %9250 = vmatprep.subr.bf16.mxu0 %v8494
        %9251 = vmatpush1.bf16.msra.mxu0 %v8493
        %9252 = vmatprep.subr.bf16.mxu0 %v8502
        %9253 = vmatpush1.bf16.msra.mxu0 %v8501
        %9254 = vmatprep.subr.bf16.mxu0 %v8510
        %9255 = vmatpush1.bf16.msra.mxu0 %v8509
        %9256 = vmatprep.subr.bf16.mxu0 %v8518
        %9257 = vmatpush1.bf16.msra.mxu0 %v8517
        %9258 = vmatprep.subr.bf16.mxu0 %v8526
        %9259 = vmatpush1.bf16.msra.mxu0 %v8525
        %9260 = vmatprep.subr.bf16.mxu0 %v8534
        %9261 = vmatpush1.bf16.msra.mxu0 %v8533
        %9262 = vmatprep.subr.bf16.mxu0 %v8542
        %9263 = vmatpush1.bf16.msra.mxu0 %v8541
        %9264 = vmatprep.subr.bf16.mxu0 %v8550
        %9265 = vmatpush1.bf16.msra.mxu0 %v8549
        %9266 = vmatprep.subr.bf16.mxu0 %v8558
        %9267 = vmatpush1.bf16.msra.mxu0 %v8557
        %9268 = vmatprep.subr.bf16.mxu0 %v8566
        %9269 = vmatpush1.bf16.msra.mxu0 %v8565
        %9270 = vmatprep.subr.bf16.mxu0 %v8574
        %9271 = vmatpush1.bf16.msra.mxu0 %v8573
        %9272 = vmatprep.subr.bf16.mxu0 %v8582
        %9273 = vmatpush1.bf16.msra.mxu0 %v8581
        %9274 = vmatprep.subr.bf16.mxu0 %v8590
        %9275 = vmatpush1.bf16.msra.mxu0 %v8589
        %9276 = vmatprep.mubr.bf16.mxu0 %v6636
        %9277 = vmatmul.mubr.bf16.gmra.mrb[0].mxu0 %v6635
        %v9278 = vpop.f32.mrb[0].mxu0
        %v9279 = vadd.f32 %v9226, %v9278
        %v9280 = vpop.f32.mrb[0].mxu0
        %v9281 = vadd.f32 %v9228, %v9280
        %v9282 = vpop.f32.mrb[0].mxu0
        %v9283 = vadd.f32 %v9230, %v9282
        %v9284 = vpop.f32.mrb[0].mxu0
        %v9285 = vadd.f32 %v9232, %v9284
        %9286 = vmatprep.mubr.bf16.mxu0 %v6642
        %9287 = vmatmul.mubr.bf16.gmra.mrb[0].mxu0 %v6641
        %v9288 = vpop.f32.mrb[0].mxu0
        %v9289 = vadd.f32 %v9236, %v9288
        %v9290 = vpop.f32.mrb[0].mxu0
        %v9291 = vadd.f32 %v9238, %v9290
        %v9292 = vpop.f32.mrb[0].mxu0
        %v9293 = vadd.f32 %v9240, %v9292
        %v9294 = vpop.f32.mrb[0].mxu0
        %v9295 = vadd.f32 %v9242, %v9294
        %9296 = vdwg.mxu0
        %9297 = vmatprep.subr.bf16.mxu0 %v8216
        %9298 = vmatpush1.bf16.msra.mxu0 %v8215
        %9299 = vmatprep.subr.bf16.mxu0 %v8224
        %9300 = vmatpush1.bf16.msra.mxu0 %v8223
        %9301 = vmatprep.subr.bf16.mxu0 %v8232
        %9302 = vmatpush1.bf16.msra.mxu0 %v8231
        %9303 = vmatprep.subr.bf16.mxu0 %v8240
        %9304 = vmatpush1.bf16.msra.mxu0 %v8239
        %9305 = vmatprep.subr.bf16.mxu0 %v8248
        %9306 = vmatpush1.bf16.msra.mxu0 %v8247
        %9307 = vmatprep.subr.bf16.mxu0 %v8256
        %9308 = vmatpush1.bf16.msra.mxu0 %v8255
        %9309 = vmatprep.subr.bf16.mxu0 %v8264
        %9310 = vmatpush1.bf16.msra.mxu0 %v8263
        %9311 = vmatprep.subr.bf16.mxu0 %v8272
        %9312 = vmatpush1.bf16.msra.mxu0 %v8271
        %9313 = vmatprep.subr.bf16.mxu0 %v8280
        %9314 = vmatpush1.bf16.msra.mxu0 %v8279
        %9315 = vmatprep.subr.bf16.mxu0 %v8288
        %9316 = vmatpush1.bf16.msra.mxu0 %v8287
        %9317 = vmatprep.subr.bf16.mxu0 %v8296
        %9318 = vmatpush1.bf16.msra.mxu0 %v8295
        %9319 = vmatprep.subr.bf16.mxu0 %v8304
        %9320 = vmatpush1.bf16.msra.mxu0 %v8303
        %9321 = vmatprep.subr.bf16.mxu0 %v8312
        %9322 = vmatpush1.bf16.msra.mxu0 %v8311
        %9323 = vmatprep.subr.bf16.mxu0 %v8320
        %9324 = vmatpush1.bf16.msra.mxu0 %v8319
        %9325 = vmatprep.subr.bf16.mxu0 %v8328
        %9326 = vmatpush1.bf16.msra.mxu0 %v8327
        %9327 = vmatprep.subr.bf16.mxu0 %v8336
        %9328 = vmatpush1.bf16.msra.mxu0 %v8335
        %9329 = vmatprep.mubr.bf16.mxu0 %v6632
        %9330 = vmatmul.mubr.bf16.gmra.mrb[0].mxu0 %v6631
        %v9331 = vpop.f32.mrb[0].mxu0
        %v9332 = vadd.f32 0.0, %v9331
        %v9333 = vpop.f32.mrb[0].mxu0
        %v9334 = vadd.f32 0.0, %v9333
        %v9335 = vpop.f32.mrb[0].mxu0
        %v9336 = vadd.f32 0.0, %v9335
        %v9337 = vpop.f32.mrb[0].mxu0
        %v9338 = vadd.f32 0.0, %v9337
        %9339 = vmatprep.mubr.bf16.mxu0 %v6638
        %9340 = vmatmul.mubr.bf16.gmra.mrb[0].mxu0 %v6637
        %v9341 = vpop.f32.mrb[0].mxu0
        %v9342 = vadd.f32 0.0, %v9341
        %v9343 = vpop.f32.mrb[0].mxu0
        %v9344 = vadd.f32 0.0, %v9343
        %v9345 = vpop.f32.mrb[0].mxu0
        %v9346 = vadd.f32 0.0, %v9345
        %v9347 = vpop.f32.mrb[0].mxu0
        %v9348 = vadd.f32 0.0, %v9347
        %9349 = vdwg.mxu0
        %9350 = vmatprep.subr.bf16.mxu0 %v8344
        %9351 = vmatpush1.bf16.msra.mxu0 %v8343
        %9352 = vmatprep.subr.bf16.mxu0 %v8352
        %9353 = vmatpush1.bf16.msra.mxu0 %v8351
        %9354 = vmatprep.subr.bf16.mxu0 %v8360
        %9355 = vmatpush1.bf16.msra.mxu0 %v8359
        %9356 = vmatprep.subr.bf16.mxu0 %v8368
        %9357 = vmatpush1.bf16.msra.mxu0 %v8367
        %9358 = vmatprep.subr.bf16.mxu0 %v8376
        %9359 = vmatpush1.bf16.msra.mxu0 %v8375
        %9360 = vmatprep.subr.bf16.mxu0 %v8384
        %9361 = vmatpush1.bf16.msra.mxu0 %v8383
        %9362 = vmatprep.subr.bf16.mxu0 %v8392
        %9363 = vmatpush1.bf16.msra.mxu0 %v8391
        %9364 = vmatprep.subr.bf16.mxu0 %v8400
        %9365 = vmatpush1.bf16.msra.mxu0 %v8399
        %9366 = vmatprep.subr.bf16.mxu0 %v8408
        %9367 = vmatpush1.bf16.msra.mxu0 %v8407
        %9368 = vmatprep.subr.bf16.mxu0 %v8416
        %9369 = vmatpush1.bf16.msra.mxu0 %v8415
        %9370 = vmatprep.subr.bf16.mxu0 %v8424
        %9371 = vmatpush1.bf16.msra.mxu0 %v8423
        %9372 = vmatprep.subr.bf16.mxu0 %v8432
        %9373 = vmatpush1.bf16.msra.mxu0 %v8431
        %9374 = vmatprep.subr.bf16.mxu0 %v8440
        %9375 = vmatpush1.bf16.msra.mxu0 %v8439
        %9376 = vmatprep.subr.bf16.mxu0 %v8448
        %9377 = vmatpush1.bf16.msra.mxu0 %v8447
        %9378 = vmatprep.subr.bf16.mxu0 %v8456
        %9379 = vmatpush1.bf16.msra.mxu0 %v8455
        %9380 = vmatprep.subr.bf16.mxu0 %v8464
        %9381 = vmatpush1.bf16.msra.mxu0 %v8463
        %9382 = vmatprep.mubr.bf16.mxu0 %v6634
        %9383 = vmatmul.mubr.bf16.gmra.mrb[0].mxu0 %v6633
        %v9384 = vpop.f32.mrb[0].mxu0
        %v9385 = vadd.f32 %v9332, %v9384
        %v9386 = vpop.f32.mrb[0].mxu0
        %v9387 = vadd.f32 %v9334, %v9386
        %v9388 = vpop.f32.mrb[0].mxu0
        %v9389 = vadd.f32 %v9336, %v9388
        %v9390 = vpop.f32.mrb[0].mxu0
        %v9391 = vadd.f32 %v9338, %v9390
        %9392 = vmatprep.mubr.bf16.mxu0 %v6640
        %9393 = vmatmul.mubr.bf16.gmra.mrb[0].mxu0 %v6639
        %v9394 = vpop.f32.mrb[0].mxu0
        %v9395 = vadd.f32 %v9342, %v9394
        %v9396 = vpop.f32.mrb[0].mxu0
        %v9397 = vadd.f32 %v9344, %v9396
        %v9398 = vpop.f32.mrb[0].mxu0
        %v9399 = vadd.f32 %v9346, %v9398
        %v9400 = vpop.f32.mrb[0].mxu0
        %v9401 = vadd.f32 %v9348, %v9400
        %9402 = vdwg.mxu0
        %9403 = vmatprep.subr.bf16.mxu0 %v8472
        %9404 = vmatpush1.bf16.msra.mxu0 %v8471
        %9405 = vmatprep.subr.bf16.mxu0 %v8480
        %9406 = vmatpush1.bf16.msra.mxu0 %v8479
        %9407 = vmatprep.subr.bf16.mxu0 %v8488
        %9408 = vmatpush1.bf16.msra.mxu0 %v8487
        %9409 = vmatprep.subr.bf16.mxu0 %v8496
        %9410 = vmatpush1.bf16.msra.mxu0 %v8495
        %9411 = vmatprep.subr.bf16.mxu0 %v8504
        %9412 = vmatpush1.bf16.msra.mxu0 %v8503
        %9413 = vmatprep.subr.bf16.mxu0 %v8512
        %9414 = vmatpush1.bf16.msra.mxu0 %v8511
        %9415 = vmatprep.subr.bf16.mxu0 %v8520
        %9416 = vmatpush1.bf16.msra.mxu0 %v8519
        %9417 = vmatprep.subr.bf16.mxu0 %v8528
        %9418 = vmatpush1.bf16.msra.mxu0 %v8527
        %9419 = vmatprep.subr.bf16.mxu0 %v8536
        %9420 = vmatpush1.bf16.msra.mxu0 %v8535
        %9421 = vmatprep.subr.bf16.mxu0 %v8544
        %9422 = vmatpush1.bf16.msra.mxu0 %v8543
        %9423 = vmatprep.subr.bf16.mxu0 %v8552
        %9424 = vmatpush1.bf16.msra.mxu0 %v8551
        %9425 = vmatprep.subr.bf16.mxu0 %v8560
        %9426 = vmatpush1.bf16.msra.mxu0 %v8559
        %9427 = vmatprep.subr.bf16.mxu0 %v8568
        %9428 = vmatpush1.bf16.msra.mxu0 %v8567
        %9429 = vmatprep.subr.bf16.mxu0 %v8576
        %9430 = vmatpush1.bf16.msra.mxu0 %v8575
        %9431 = vmatprep.subr.bf16.mxu0 %v8584
        %9432 = vmatpush1.bf16.msra.mxu0 %v8583
        %9433 = vmatprep.subr.bf16.mxu0 %v8592
        %9434 = vmatpush1.bf16.msra.mxu0 %v8591
        %9435 = vmatprep.mubr.bf16.mxu0 %v6636
        %9436 = vmatmul.mubr.bf16.gmra.mrb[0].mxu0 %v6635
        %v9437 = vpop.f32.mrb[0].mxu0
        %v9438 = vadd.f32 %v9385, %v9437
        %v9439 = vpop.f32.mrb[0].mxu0
        %v9440 = vadd.f32 %v9387, %v9439
        %v9441 = vpop.f32.mrb[0].mxu0
        %v9442 = vadd.f32 %v9389, %v9441
        %v9443 = vpop.f32.mrb[0].mxu0
        %v9444 = vadd.f32 %v9391, %v9443
        %9445 = vmatprep.mubr.bf16.mxu0 %v6642
        %9446 = vmatmul.mubr.bf16.gmra.mrb[0].mxu0 %v6641
        %v9447 = vpop.f32.mrb[0].mxu0
        %v9448 = vadd.f32 %v9395, %v9447
        %v9449 = vpop.f32.mrb[0].mxu0
        %v9450 = vadd.f32 %v9397, %v9449
        %v9451 = vpop.f32.mrb[0].mxu0
        %v9452 = vadd.f32 %v9399, %v9451
        %v9453 = vpop.f32.mrb[0].mxu0
        %v9454 = vadd.f32 %v9401, %v9453
        %9455 = vdwg.mxu0
        %9456 = vmatprep.subr.bf16.mxu0 %v8218
        %9457 = vmatpush1.bf16.msra.mxu0 %v8217
        %9458 = vmatprep.subr.bf16.mxu0 %v8226
        %9459 = vmatpush1.bf16.msra.mxu0 %v8225
        %9460 = vmatprep.subr.bf16.mxu0 %v8234
        %9461 = vmatpush1.bf16.msra.mxu0 %v8233
        %9462 = vmatprep.subr.bf16.mxu0 %v8242
        %9463 = vmatpush1.bf16.msra.mxu0 %v8241
        %9464 = vmatprep.subr.bf16.mxu0 %v8250
        %9465 = vmatpush1.bf16.msra.mxu0 %v8249
        %9466 = vmatprep.subr.bf16.mxu0 %v8258
        %9467 = vmatpush1.bf16.msra.mxu0 %v8257
        %9468 = vmatprep.subr.bf16.mxu0 %v8266
        %9469 = vmatpush1.bf16.msra.mxu0 %v8265
        %9470 = vmatprep.subr.bf16.mxu0 %v8274
        %9471 = vmatpush1.bf16.msra.mxu0 %v8273
        %9472 = vmatprep.subr.bf16.mxu0 %v8282
        %9473 = vmatpush1.bf16.msra.mxu0 %v8281
        %9474 = vmatprep.subr.bf16.mxu0 %v8290
        %9475 = vmatpush1.bf16.msra.mxu0 %v8289
        %9476 = vmatprep.subr.bf16.mxu0 %v8298
        %9477 = vmatpush1.bf16.msra.mxu0 %v8297
        %9478 = vmatprep.subr.bf16.mxu0 %v8306
        %9479 = vmatpush1.bf16.msra.mxu0 %v8305
        %9480 = vmatprep.subr.bf16.mxu0 %v8314
        %9481 = vmatpush1.bf16.msra.mxu0 %v8313
        %9482 = vmatprep.subr.bf16.mxu0 %v8322
        %9483 = vmatpush1.bf16.msra.mxu0 %v8321
        %9484 = vmatprep.subr.bf16.mxu0 %v8330
        %9485 = vmatpush1.bf16.msra.mxu0 %v8329
        %9486 = vmatprep.subr.bf16.mxu0 %v8338
        %9487 = vmatpush1.bf16.msra.mxu0 %v8337
        %9488 = vmatprep.mubr.bf16.mxu0 %v6632
        %9489 = vmatmul.mubr.bf16.gmra.mrb[0].mxu0 %v6631
        %v9490 = vpop.f32.mrb[0].mxu0
        %v9491 = vadd.f32 0.0, %v9490
        %v9492 = vpop.f32.mrb[0].mxu0
        %v9493 = vadd.f32 0.0, %v9492
        %v9494 = vpop.f32.mrb[0].mxu0
        %v9495 = vadd.f32 0.0, %v9494
        %v9496 = vpop.f32.mrb[0].mxu0
        %v9497 = vadd.f32 0.0, %v9496
        %9498 = vmatprep.mubr.bf16.mxu0 %v6638
        %9499 = vmatmul.mubr.bf16.gmra.mrb[0].mxu0 %v6637
        %v9500 = vpop.f32.mrb[0].mxu0
        %v9501 = vadd.f32 0.0, %v9500
        %v9502 = vpop.f32.mrb[0].mxu0
        %v9503 = vadd.f32 0.0, %v9502
        %v9504 = vpop.f32.mrb[0].mxu0
        %v9505 = vadd.f32 0.0, %v9504
        %v9506 = vpop.f32.mrb[0].mxu0
        %v9507 = vadd.f32 0.0, %v9506
        %9508 = vdwg.mxu0
        %9509 = vmatprep.subr.bf16.mxu0 %v8346
        %9510 = vmatpush1.bf16.msra.mxu0 %v8345
        %9511 = vmatprep.subr.bf16.mxu0 %v8354
        %9512 = vmatpush1.bf16.msra.mxu0 %v8353
        %9513 = vmatprep.subr.bf16.mxu0 %v8362
        %9514 = vmatpush1.bf16.msra.mxu0 %v8361
        %9515 = vmatprep.subr.bf16.mxu0 %v8370
        %9516 = vmatpush1.bf16.msra.mxu0 %v8369
        %9517 = vmatprep.subr.bf16.mxu0 %v8378
        %9518 = vmatpush1.bf16.msra.mxu0 %v8377
        %9519 = vmatprep.subr.bf16.mxu0 %v8386
        %9520 = vmatpush1.bf16.msra.mxu0 %v8385
        %9521 = vmatprep.subr.bf16.mxu0 %v8394
        %9522 = vmatpush1.bf16.msra.mxu0 %v8393
        %9523 = vmatprep.subr.bf16.mxu0 %v8402
        %9524 = vmatpush1.bf16.msra.mxu0 %v8401
        %9525 = vmatprep.subr.bf16.mxu0 %v8410
        %9526 = vmatpush1.bf16.msra.mxu0 %v8409
        %9527 = vmatprep.subr.bf16.mxu0 %v8418
        %9528 = vmatpush1.bf16.msra.mxu0 %v8417
        %9529 = vmatprep.subr.bf16.mxu0 %v8426
        %9530 = vmatpush1.bf16.msra.mxu0 %v8425
        %9531 = vmatprep.subr.bf16.mxu0 %v8434
        %9532 = vmatpush1.bf16.msra.mxu0 %v8433
        %9533 = vmatprep.subr.bf16.mxu0 %v8442
        %9534 = vmatpush1.bf16.msra.mxu0 %v8441
        %9535 = vmatprep.subr.bf16.mxu0 %v8450
        %9536 = vmatpush1.bf16.msra.mxu0 %v8449
        %9537 = vmatprep.subr.bf16.mxu0 %v8458
        %9538 = vmatpush1.bf16.msra.mxu0 %v8457
        %9539 = vmatprep.subr.bf16.mxu0 %v8466
        %9540 = vmatpush1.bf16.msra.mxu0 %v8465
        %9541 = vmatprep.mubr.bf16.mxu0 %v6634
        %9542 = vmatmul.mubr.bf16.gmra.mrb[0].mxu0 %v6633
        %v9543 = vpop.f32.mrb[0].mxu0
        %v9544 = vadd.f32 %v9491, %v9543
        %v9545 = vpop.f32.mrb[0].mxu0
        %v9546 = vadd.f32 %v9493, %v9545
        %v9547 = vpop.f32.mrb[0].mxu0
        %v9548 = vadd.f32 %v9495, %v9547
        %v9549 = vpop.f32.mrb[0].mxu0
        %v9550 = vadd.f32 %v9497, %v9549
        %9551 = vmatprep.mubr.bf16.mxu0 %v6640
        %9552 = vmatmul.mubr.bf16.gmra.mrb[0].mxu0 %v6639
        %v9553 = vpop.f32.mrb[0].mxu0
        %v9554 = vadd.f32 %v9501, %v9553
        %v9555 = vpop.f32.mrb[0].mxu0
        %v9556 = vadd.f32 %v9503, %v9555
        %v9557 = vpop.f32.mrb[0].mxu0
        %v9558 = vadd.f32 %v9505, %v9557
        %v9559 = vpop.f32.mrb[0].mxu0
        %v9560 = vadd.f32 %v9507, %v9559
        %9561 = vdwg.mxu0
        %9562 = vmatprep.subr.bf16.mxu0 %v8474
        %9563 = vmatpush1.bf16.msra.mxu0 %v8473
        %9564 = vmatprep.subr.bf16.mxu0 %v8482
        %9565 = vmatpush1.bf16.msra.mxu0 %v8481
        %9566 = vmatprep.subr.bf16.mxu0 %v8490
        %9567 = vmatpush1.bf16.msra.mxu0 %v8489
        %9568 = vmatprep.subr.bf16.mxu0 %v8498
        %9569 = vmatpush1.bf16.msra.mxu0 %v8497
        %9570 = vmatprep.subr.bf16.mxu0 %v8506
        %9571 = vmatpush1.bf16.msra.mxu0 %v8505
        %9572 = vmatprep.subr.bf16.mxu0 %v8514
        %9573 = vmatpush1.bf16.msra.mxu0 %v8513
        %9574 = vmatprep.subr.bf16.mxu0 %v8522
        %9575 = vmatpush1.bf16.msra.mxu0 %v8521
        %9576 = vmatprep.subr.bf16.mxu0 %v8530
        %9577 = vmatpush1.bf16.msra.mxu0 %v8529
        %9578 = vmatprep.subr.bf16.mxu0 %v8538
        %9579 = vmatpush1.bf16.msra.mxu0 %v8537
        %9580 = vmatprep.subr.bf16.mxu0 %v8546
        %9581 = vmatpush1.bf16.msra.mxu0 %v8545
        %9582 = vmatprep.subr.bf16.mxu0 %v8554
        %9583 = vmatpush1.bf16.msra.mxu0 %v8553
        %9584 = vmatprep.subr.bf16.mxu0 %v8562
        %9585 = vmatpush1.bf16.msra.mxu0 %v8561
        %9586 = vmatprep.subr.bf16.mxu0 %v8570
        %9587 = vmatpush1.bf16.msra.mxu0 %v8569
        %9588 = vmatprep.subr.bf16.mxu0 %v8578
        %9589 = vmatpush1.bf16.msra.mxu0 %v8577
        %9590 = vmatprep.subr.bf16.mxu0 %v8586
        %9591 = vmatpush1.bf16.msra.mxu0 %v8585
        %9592 = vmatprep.subr.bf16.mxu0 %v8594
        %9593 = vmatpush1.bf16.msra.mxu0 %v8593
        %9594 = vmatprep.mubr.bf16.mxu0 %v6636
        %9595 = vmatmul.mubr.bf16.gmra.mrb[0].mxu0 %v6635
        %v9596 = vpop.f32.mrb[0].mxu0
        %v9597 = vadd.f32 %v9544, %v9596
        %v9598 = vpop.f32.mrb[0].mxu0
        %v9599 = vadd.f32 %v9546, %v9598
        %v9600 = vpop.f32.mrb[0].mxu0
        %v9601 = vadd.f32 %v9548, %v9600
        %v9602 = vpop.f32.mrb[0].mxu0
        %v9603 = vadd.f32 %v9550, %v9602
        %9604 = vmatprep.mubr.bf16.mxu0 %v6642
        %9605 = vmatmul.mubr.bf16.gmra.mrb[0].mxu0 %v6641
        %v9606 = vpop.f32.mrb[0].mxu0
        %v9607 = vadd.f32 %v9554, %v9606
        %v9608 = vpop.f32.mrb[0].mxu0
        %v9609 = vadd.f32 %v9556, %v9608
        %v9610 = vpop.f32.mrb[0].mxu0
        %v9611 = vadd.f32 %v9558, %v9610
        %v9612 = vpop.f32.mrb[0].mxu0
        %v9613 = vadd.f32 %v9560, %v9612
        %9614 = vdwg.mxu0
        %v9615 = vadd.f32 %v6643, %v9120
        %v9616 = vadd.f32 %v6644, %v9122
        %v9617 = vadd.f32 %v6645, %v9279
        %v9618 = vadd.f32 %v6646, %v9281
        %v9619 = vadd.f32 %v6647, %v9438
        %v9620 = vadd.f32 %v6648, %v9440
        %v9621 = vadd.f32 %v6649, %v9597
        %v9622 = vadd.f32 %v6650, %v9599
        %v9623 = vadd.f32 %v6651, %v9124
        %v9624 = vadd.f32 %v6652, %v9126
        %v9625 = vadd.f32 %v6653, %v9283
        %v9626 = vadd.f32 %v6654, %v9285
        %v9627 = vadd.f32 %v6655, %v9442
        %v9628 = vadd.f32 %v6656, %v9444
        %v9629 = vadd.f32 %v6657, %v9601
        %v9630 = vadd.f32 %v6658, %v9603
        %v9631 = vadd.f32 %v6659, %v9130
        %v9632 = vadd.f32 %v6660, %v9132
        %v9633 = vadd.f32 %v6661, %v9289
        %v9634 = vadd.f32 %v6662, %v9291
        %v9635 = vadd.f32 %v6663, %v9448
        %v9636 = vadd.f32 %v6664, %v9450
        %v9637 = vadd.f32 %v6665, %v9607
        %v9638 = vadd.f32 %v6666, %v9609
        %v9639 = vadd.f32 %v6667, %v9134
        %v9640 = vadd.f32 %v6668, %v9136
        %v9641 = vadd.f32 %v6669, %v9293
        %v9642 = vadd.f32 %v6670, %v9295
        %v9643 = vadd.f32 %v6671, %v9452
        %v9644 = vadd.f32 %v6672, %v9454
        %v9645 = vadd.f32 %v6673, %v9611
        %v9646 = vadd.f32 %v6674, %v9613
        %9647 = vst [vmem:[#allocation2] sm:$0xff] %v9615
        %9648 = vst [vmem:[#allocation2 + $0x8] sm:$0xff] %v9616
        %9649 = vst [vmem:[#allocation2 + $0x10] sm:$0xff] %v9617
        %9650 = vst [vmem:[#allocation2 + $0x18] sm:$0xff] %v9618
        %9651 = vst [vmem:[#allocation2 + $0x20] sm:$0xff] %v9619
        %9652 = vst [vmem:[#allocation2 + $0x28] sm:$0xff] %v9620
        %9653 = vst [vmem:[#allocation2 + $0x30] sm:$0xff] %v9621
        %9654 = vst [vmem:[#allocation2 + $0x38] sm:$0xff] %v9622
        %9655 = vst [vmem:[#allocation2 + $0x40] sm:$0xff] %v9623
        %9656 = vst [vmem:[#allocation2 + $0x48] sm:$0xff] %v9624
        %9657 = vst [vmem:[#allocation2 + $0x50] sm:$0xff] %v9625
        %9658 = vst [vmem:[#allocation2 + $0x58] sm:$0xff] %v9626
        %9659 = vst [vmem:[#allocation2 + $0x60] sm:$0xff] %v9627
        %9660 = vst [vmem:[#allocation2 + $0x68] sm:$0xff] %v9628
        %9661 = vst [vmem:[#allocation2 + $0x70] sm:$0xff] %v9629
        %9662 = vst [vmem:[#allocation2 + $0x78] sm:$0xff] %v9630
        %9663 = vst [vmem:[#allocation2 + $0x80] sm:$0xff] %v9631
        %9664 = vst [vmem:[#allocation2 + $0x88] sm:$0xff] %v9632
        %9665 = vst [vmem:[#allocation2 + $0x90] sm:$0xff] %v9633
        %9666 = vst [vmem:[#allocation2 + $0x98] sm:$0xff] %v9634
        %9667 = vst [vmem:[#allocation2 + $0xa0] sm:$0xff] %v9635
        %9668 = vst [vmem:[#allocation2 + $0xa8] sm:$0xff] %v9636
        %9669 = vst [vmem:[#allocation2 + $0xb0] sm:$0xff] %v9637
        %9670 = vst [vmem:[#allocation2 + $0xb8] sm:$0xff] %v9638
        %9671 = vst [vmem:[#allocation2 + $0xc0] sm:$0xff] %v9639
        %9672 = vst [vmem:[#allocation2 + $0xc8] sm:$0xff] %v9640
        %9673 = vst [vmem:[#allocation2 + $0xd0] sm:$0xff] %v9641
        %9674 = vst [vmem:[#allocation2 + $0xd8] sm:$0xff] %v9642
        %9675 = vst [vmem:[#allocation2 + $0xe0] sm:$0xff] %v9643
        %9676 = vst [vmem:[#allocation2 + $0xe8] sm:$0xff] %v9644
        %9677 = vst [vmem:[#allocation2 + $0xf0] sm:$0xff] %v9645
        %9678 = vst [vmem:[#allocation2 + $0xf8] sm:$0xff] %v9646
        %p9679 = scmp.eq.s32.totalorder %s27, 1
        // Predicated region
        $region81: #{tpu_custom_call.1} parent=47 // pred_check
          %p9680 = pneg %p9679
        $region82: #{tpu_custom_call.1} parent=47 // pred_check_branch
          %9682 = sbr.rel (%p9680) target = $region84
        $region83: #{tpu_custom_call.1} parent=47 // pred_region
          %v9683 = vld [vmem:[#allocation2] sm:$0xff]
          %v9684 = vld [vmem:[#allocation2 + $0x8] sm:$0xff]
          %v9685 = vld [vmem:[#allocation2 + $0x10] sm:$0xff]
          %v9686 = vld [vmem:[#allocation2 + $0x18] sm:$0xff]
          %v9687 = vld [vmem:[#allocation2 + $0x20] sm:$0xff]
          %v9688 = vld [vmem:[#allocation2 + $0x28] sm:$0xff]
          %v9689 = vld [vmem:[#allocation2 + $0x30] sm:$0xff]
          %v9690 = vld [vmem:[#allocation2 + $0x38] sm:$0xff]
          %v9691 = vld [vmem:[#allocation2 + $0x40] sm:$0xff]
          %v9692 = vld [vmem:[#allocation2 + $0x48] sm:$0xff]
          %v9693 = vld [vmem:[#allocation2 + $0x50] sm:$0xff]
          %v9694 = vld [vmem:[#allocation2 + $0x58] sm:$0xff]
          %v9695 = vld [vmem:[#allocation2 + $0x60] sm:$0xff]
          %v9696 = vld [vmem:[#allocation2 + $0x68] sm:$0xff]
          %v9697 = vld [vmem:[#allocation2 + $0x70] sm:$0xff]
          %v9698 = vld [vmem:[#allocation2 + $0x78] sm:$0xff]
          %v9699 = vld [vmem:[#allocation2 + $0x80] sm:$0xff]
          %v9700 = vld [vmem:[#allocation2 + $0x88] sm:$0xff]
          %v9701 = vld [vmem:[#allocation2 + $0x90] sm:$0xff]
          %v9702 = vld [vmem:[#allocation2 + $0x98] sm:$0xff]
          %v9703 = vld [vmem:[#allocation2 + $0xa0] sm:$0xff]
          %v9704 = vld [vmem:[#allocation2 + $0xa8] sm:$0xff]
          %v9705 = vld [vmem:[#allocation2 + $0xb0] sm:$0xff]
          %v9706 = vld [vmem:[#allocation2 + $0xb8] sm:$0xff]
          %v9707 = vld [vmem:[#allocation2 + $0xc0] sm:$0xff]
          %v9708 = vld [vmem:[#allocation2 + $0xc8] sm:$0xff]
          %v9709 = vld [vmem:[#allocation2 + $0xd0] sm:$0xff]
          %v9710 = vld [vmem:[#allocation2 + $0xd8] sm:$0xff]
          %v9711 = vld [vmem:[#allocation2 + $0xe0] sm:$0xff]
          %v9712 = vld [vmem:[#allocation2 + $0xe8] sm:$0xff]
          %v9713 = vld [vmem:[#allocation2 + $0xf0] sm:$0xff]
          %v9714 = vld [vmem:[#allocation2 + $0xf8] sm:$0xff]
          %v9715 = vld [vmem:[#allocation11] sm:$0xff]
          %v9717 = vlaneseq
          %v9718 = vshrl.u32 %v9717, 7
          %v9719 = vsub.s32 0, %v9718
          %v9720 = vrot.slane %v9715, %v9719
          %v9721 = vlaneseq
          %v9722 = vshrl.u32 %v9721, 7
          %v9723 = vsub.s32 1, %v9722
          %v9724 = vrot.slane %v9715, %v9723
          %v9725 = vlaneseq
          %v9726 = vshrl.u32 %v9725, 7
          %v9727 = vsub.s32 2, %v9726
          %v9728 = vrot.slane %v9715, %v9727
          %v9729 = vlaneseq
          %v9730 = vshrl.u32 %v9729, 7
          %v9731 = vsub.s32 3, %v9730
          %v9732 = vrot.slane %v9715, %v9731
          %v9733 = vlaneseq
          %v9734 = vshrl.u32 %v9733, 7
          %v9735 = vsub.s32 4, %v9734
          %v9736 = vrot.slane %v9715, %v9735
          %v9737 = vlaneseq
          %v9738 = vshrl.u32 %v9737, 7
          %v9739 = vsub.s32 5, %v9738
          %v9740 = vrot.slane %v9715, %v9739
          %v9741 = vlaneseq
          %v9742 = vshrl.u32 %v9741, 7
          %v9743 = vsub.s32 6, %v9742
          %v9744 = vrot.slane %v9715, %v9743
          %v9745 = vlaneseq
          %v9746 = vshrl.u32 %v9745, 7
          %v9747 = vsub.s32 7, %v9746
          %v9748 = vrot.slane %v9715, %v9747
          %v9757 = vadd.f32 %v9683, %v9720
          %v9758 = vadd.f32 %v9684, %v9724
          %v9759 = vadd.f32 %v9685, %v9728
          %v9760 = vadd.f32 %v9686, %v9732
          %v9761 = vadd.f32 %v9687, %v9736
          %v9762 = vadd.f32 %v9688, %v9740
          %v9763 = vadd.f32 %v9689, %v9744
          %v9764 = vadd.f32 %v9690, %v9748
          %v9765 = vadd.f32 %v9691, %v9720
          %v9766 = vadd.f32 %v9692, %v9724
          %v9767 = vadd.f32 %v9693, %v9728
          %v9768 = vadd.f32 %v9694, %v9732
          %v9769 = vadd.f32 %v9695, %v9736
          %v9770 = vadd.f32 %v9696, %v9740
          %v9771 = vadd.f32 %v9697, %v9744
          %v9772 = vadd.f32 %v9698, %v9748
          %v9773 = vadd.f32 %v9699, %v9720
          %v9774 = vadd.f32 %v9700, %v9724
          %v9775 = vadd.f32 %v9701, %v9728
          %v9776 = vadd.f32 %v9702, %v9732
          %v9777 = vadd.f32 %v9703, %v9736
          %v9778 = vadd.f32 %v9704, %v9740
          %v9779 = vadd.f32 %v9705, %v9744
          %v9780 = vadd.f32 %v9706, %v9748
          %v9781 = vadd.f32 %v9707, %v9720
          %v9782 = vadd.f32 %v9708, %v9724
          %v9783 = vadd.f32 %v9709, %v9728
          %v9784 = vadd.f32 %v9710, %v9732
          %v9785 = vadd.f32 %v9711, %v9736
          %v9786 = vadd.f32 %v9712, %v9740
          %v9787 = vadd.f32 %v9713, %v9744
          %v9788 = vadd.f32 %v9714, %v9748
          %vm9789 = vcmp.gt.f32.partialorder %v9757, 0.0
          %vm9790 = vcmp.gt.f32.partialorder %v9758, 0.0
          %vm9791 = vcmp.gt.f32.partialorder %v9759, 0.0
          %vm9792 = vcmp.gt.f32.partialorder %v9760, 0.0
          %vm9793 = vcmp.gt.f32.partialorder %v9761, 0.0
          %vm9794 = vcmp.gt.f32.partialorder %v9762, 0.0
          %vm9795 = vcmp.gt.f32.partialorder %v9763, 0.0
          %vm9796 = vcmp.gt.f32.partialorder %v9764, 0.0
          %vm9797 = vcmp.gt.f32.partialorder %v9765, 0.0
          %vm9798 = vcmp.gt.f32.partialorder %v9766, 0.0
          %vm9799 = vcmp.gt.f32.partialorder %v9767, 0.0
          %vm9800 = vcmp.gt.f32.partialorder %v9768, 0.0
          %vm9801 = vcmp.gt.f32.partialorder %v9769, 0.0
          %vm9802 = vcmp.gt.f32.partialorder %v9770, 0.0
          %vm9803 = vcmp.gt.f32.partialorder %v9771, 0.0
          %vm9804 = vcmp.gt.f32.partialorder %v9772, 0.0
          %vm9805 = vcmp.gt.f32.partialorder %v9773, 0.0
          %vm9806 = vcmp.gt.f32.partialorder %v9774, 0.0
          %vm9807 = vcmp.gt.f32.partialorder %v9775, 0.0
          %vm9808 = vcmp.gt.f32.partialorder %v9776, 0.0
          %vm9809 = vcmp.gt.f32.partialorder %v9777, 0.0
          %vm9810 = vcmp.gt.f32.partialorder %v9778, 0.0
          %vm9811 = vcmp.gt.f32.partialorder %v9779, 0.0
          %vm9812 = vcmp.gt.f32.partialorder %v9780, 0.0
          %vm9813 = vcmp.gt.f32.partialorder %v9781, 0.0
          %vm9814 = vcmp.gt.f32.partialorder %v9782, 0.0
          %vm9815 = vcmp.gt.f32.partialorder %v9783, 0.0
          %vm9816 = vcmp.gt.f32.partialorder %v9784, 0.0
          %vm9817 = vcmp.gt.f32.partialorder %v9785, 0.0
          %vm9818 = vcmp.gt.f32.partialorder %v9786, 0.0
          %vm9819 = vcmp.gt.f32.partialorder %v9787, 0.0
          %vm9820 = vcmp.gt.f32.partialorder %v9788, 0.0
          %v9821 = vmul.f32 %v9757, 0.01
          %v9822 = vmul.f32 %v9758, 0.01
          %v9823 = vmul.f32 %v9759, 0.01
          %v9824 = vmul.f32 %v9760, 0.01
          %v9825 = vmul.f32 %v9761, 0.01
          %v9826 = vmul.f32 %v9762, 0.01
          %v9827 = vmul.f32 %v9763, 0.01
          %v9828 = vmul.f32 %v9764, 0.01
          %v9829 = vmul.f32 %v9765, 0.01
          %v9830 = vmul.f32 %v9766, 0.01
          %v9831 = vmul.f32 %v9767, 0.01
          %v9832 = vmul.f32 %v9768, 0.01
          %v9833 = vmul.f32 %v9769, 0.01
          %v9834 = vmul.f32 %v9770, 0.01
          %v9835 = vmul.f32 %v9771, 0.01
          %v9836 = vmul.f32 %v9772, 0.01
          %v9837 = vmul.f32 %v9773, 0.01
          %v9838 = vmul.f32 %v9774, 0.01
          %v9839 = vmul.f32 %v9775, 0.01
          %v9840 = vmul.f32 %v9776, 0.01
          %v9841 = vmul.f32 %v9777, 0.01
          %v9842 = vmul.f32 %v9778, 0.01
          %v9843 = vmul.f32 %v9779, 0.01
          %v9844 = vmul.f32 %v9780, 0.01
          %v9845 = vmul.f32 %v9781, 0.01
          %v9846 = vmul.f32 %v9782, 0.01
          %v9847 = vmul.f32 %v9783, 0.01
          %v9848 = vmul.f32 %v9784, 0.01
          %v9849 = vmul.f32 %v9785, 0.01
          %v9850 = vmul.f32 %v9786, 0.01
          %v9851 = vmul.f32 %v9787, 0.01
          %v9852 = vmul.f32 %v9788, 0.01
          %v9853 = vsel %vm9789, %v9757, %v9821
          %v9854 = vsel %vm9790, %v9758, %v9822
          %v9855 = vsel %vm9791, %v9759, %v9823
          %v9856 = vsel %vm9792, %v9760, %v9824
          %v9857 = vsel %vm9793, %v9761, %v9825
          %v9858 = vsel %vm9794, %v9762, %v9826
          %v9859 = vsel %vm9795, %v9763, %v9827
          %v9860 = vsel %vm9796, %v9764, %v9828
          %v9861 = vsel %vm9797, %v9765, %v9829
          %v9862 = vsel %vm9798, %v9766, %v9830
          %v9863 = vsel %vm9799, %v9767, %v9831
          %v9864 = vsel %vm9800, %v9768, %v9832
          %v9865 = vsel %vm9801, %v9769, %v9833
          %v9866 = vsel %vm9802, %v9770, %v9834
          %v9867 = vsel %vm9803, %v9771, %v9835
          %v9868 = vsel %vm9804, %v9772, %v9836
          %v9869 = vsel %vm9805, %v9773, %v9837
          %v9870 = vsel %vm9806, %v9774, %v9838
          %v9871 = vsel %vm9807, %v9775, %v9839
          %v9872 = vsel %vm9808, %v9776, %v9840
          %v9873 = vsel %vm9809, %v9777, %v9841
          %v9874 = vsel %vm9810, %v9778, %v9842
          %v9875 = vsel %vm9811, %v9779, %v9843
          %v9876 = vsel %vm9812, %v9780, %v9844
          %v9877 = vsel %vm9813, %v9781, %v9845
          %v9878 = vsel %vm9814, %v9782, %v9846
          %v9879 = vsel %vm9815, %v9783, %v9847
          %v9880 = vsel %vm9816, %v9784, %v9848
          %v9881 = vsel %vm9817, %v9785, %v9849
          %v9882 = vsel %vm9818, %v9786, %v9850
          %v9883 = vsel %vm9819, %v9787, %v9851
          %v9884 = vsel %vm9820, %v9788, %v9852
          %v9885 = vpack.c.bf16 %v9861, %v9853
          %v9886 = vpack.c.bf16 %v9862, %v9854
          %v9887 = vpack.c.bf16 %v9863, %v9855
          %v9888 = vpack.c.bf16 %v9864, %v9856
          %v9889 = vpack.c.bf16 %v9865, %v9857
          %v9890 = vpack.c.bf16 %v9866, %v9858
          %v9891 = vpack.c.bf16 %v9867, %v9859
          %v9892 = vpack.c.bf16 %v9868, %v9860
          %v9893 = vpack.c.bf16 %v9877, %v9869
          %v9894 = vpack.c.bf16 %v9878, %v9870
          %v9895 = vpack.c.bf16 %v9879, %v9871
          %v9896 = vpack.c.bf16 %v9880, %v9872
          %v9897 = vpack.c.bf16 %v9881, %v9873
          %v9898 = vpack.c.bf16 %v9882, %v9874
          %v9899 = vpack.c.bf16 %v9883, %v9875
          %v9900 = vpack.c.bf16 %v9884, %v9876
          %v9901 = vld [vmem:[#allocation12] sm:$0xf]
          %v9902 = vld [vmem:[#allocation12 + $0x4] sm:$0xf]
          %v9903 = vld [vmem:[#allocation12 + $0x8] sm:$0xf]
          %v9904 = vld [vmem:[#allocation12 + $0xc] sm:$0xf]
          %v9905 = vld [vmem:[#allocation12 + $0x10] sm:$0xf]
          %v9906 = vld [vmem:[#allocation12 + $0x14] sm:$0xf]
          %v9907 = vld [vmem:[#allocation12 + $0x18] sm:$0xf]
          %v9908 = vld [vmem:[#allocation12 + $0x1c] sm:$0xf]
          %v9909 = vld [vmem:[#allocation12 + $0x20] sm:$0xf]
          %v9910 = vld [vmem:[#allocation12 + $0x24] sm:$0xf]
          %v9911 = vld [vmem:[#allocation12 + $0x28] sm:$0xf]
          %v9912 = vld [vmem:[#allocation12 + $0x2c] sm:$0xf]
          %v9913 = vld [vmem:[#allocation12 + $0x30] sm:$0xf]
          %v9914 = vld [vmem:[#allocation12 + $0x34] sm:$0xf]
          %v9915 = vld [vmem:[#allocation12 + $0x38] sm:$0xf]
          %v9916 = vld [vmem:[#allocation12 + $0x3c] sm:$0xf]
          %v9917 = vld [vmem:[#allocation12 + $0x40] sm:$0xf]
          %v9918 = vld [vmem:[#allocation12 + $0x44] sm:$0xf]
          %v9919 = vld [vmem:[#allocation12 + $0x48] sm:$0xf]
          %v9920 = vld [vmem:[#allocation12 + $0x4c] sm:$0xf]
          %v9921 = vld [vmem:[#allocation12 + $0x50] sm:$0xf]
          %v9922 = vld [vmem:[#allocation12 + $0x54] sm:$0xf]
          %v9923 = vld [vmem:[#allocation12 + $0x58] sm:$0xf]
          %v9924 = vld [vmem:[#allocation12 + $0x5c] sm:$0xf]
          %v9925 = vld [vmem:[#allocation12 + $0x60] sm:$0xf]
          %v9926 = vld [vmem:[#allocation12 + $0x64] sm:$0xf]
          %v9927 = vld [vmem:[#allocation12 + $0x68] sm:$0xf]
          %v9928 = vld [vmem:[#allocation12 + $0x6c] sm:$0xf]
          %v9929 = vld [vmem:[#allocation12 + $0x70] sm:$0xf]
          %v9930 = vld [vmem:[#allocation12 + $0x74] sm:$0xf]
          %v9931 = vld [vmem:[#allocation12 + $0x78] sm:$0xf]
          %v9932 = vld [vmem:[#allocation12 + $0x7c] sm:$0xf]
          %v9933 = vld [vmem:[#allocation12 + $0x80] sm:$0xf]
          %v9934 = vld [vmem:[#allocation12 + $0x84] sm:$0xf]
          %v9935 = vld [vmem:[#allocation12 + $0x88] sm:$0xf]
          %v9936 = vld [vmem:[#allocation12 + $0x8c] sm:$0xf]
          %v9937 = vld [vmem:[#allocation12 + $0x90] sm:$0xf]
          %v9938 = vld [vmem:[#allocation12 + $0x94] sm:$0xf]
          %v9939 = vld [vmem:[#allocation12 + $0x98] sm:$0xf]
          %v9940 = vld [vmem:[#allocation12 + $0x9c] sm:$0xf]
          %v9941 = vld [vmem:[#allocation12 + $0xa0] sm:$0xf]
          %v9942 = vld [vmem:[#allocation12 + $0xa4] sm:$0xf]
          %v9943 = vld [vmem:[#allocation12 + $0xa8] sm:$0xf]
          %v9944 = vld [vmem:[#allocation12 + $0xac] sm:$0xf]
          %v9945 = vld [vmem:[#allocation12 + $0xb0] sm:$0xf]
          %v9946 = vld [vmem:[#allocation12 + $0xb4] sm:$0xf]
          %v9947 = vld [vmem:[#allocation12 + $0xb8] sm:$0xf]
          %v9948 = vld [vmem:[#allocation12 + $0xbc] sm:$0xf]
          %v9949 = vld [vmem:[#allocation12 + $0xc0] sm:$0xf]
          %v9950 = vld [vmem:[#allocation12 + $0xc4] sm:$0xf]
          %v9951 = vld [vmem:[#allocation12 + $0xc8] sm:$0xf]
          %v9952 = vld [vmem:[#allocation12 + $0xcc] sm:$0xf]
          %v9953 = vld [vmem:[#allocation12 + $0xd0] sm:$0xf]
          %v9954 = vld [vmem:[#allocation12 + $0xd4] sm:$0xf]
          %v9955 = vld [vmem:[#allocation12 + $0xd8] sm:$0xf]
          %v9956 = vld [vmem:[#allocation12 + $0xdc] sm:$0xf]
          %v9957 = vld [vmem:[#allocation12 + $0xe0] sm:$0xf]
          %v9958 = vld [vmem:[#allocation12 + $0xe4] sm:$0xf]
          %v9959 = vld [vmem:[#allocation12 + $0xe8] sm:$0xf]
          %v9960 = vld [vmem:[#allocation12 + $0xec] sm:$0xf]
          %v9961 = vld [vmem:[#allocation12 + $0xf0] sm:$0xf]
          %v9962 = vld [vmem:[#allocation12 + $0xf4] sm:$0xf]
          %v9963 = vld [vmem:[#allocation12 + $0xf8] sm:$0xf]
          %v9964 = vld [vmem:[#allocation12 + $0xfc] sm:$0xf]
          %v9965 = vld [vmem:[#allocation12 + $0x100] sm:$0xf]
          %v9966 = vld [vmem:[#allocation12 + $0x104] sm:$0xf]
          %v9967 = vld [vmem:[#allocation12 + $0x108] sm:$0xf]
          %v9968 = vld [vmem:[#allocation12 + $0x10c] sm:$0xf]
          %v9969 = vld [vmem:[#allocation12 + $0x110] sm:$0xf]
          %v9970 = vld [vmem:[#allocation12 + $0x114] sm:$0xf]
          %v9971 = vld [vmem:[#allocation12 + $0x118] sm:$0xf]
          %v9972 = vld [vmem:[#allocation12 + $0x11c] sm:$0xf]
          %v9973 = vld [vmem:[#allocation12 + $0x120] sm:$0xf]
          %v9974 = vld [vmem:[#allocation12 + $0x124] sm:$0xf]
          %v9975 = vld [vmem:[#allocation12 + $0x128] sm:$0xf]
          %v9976 = vld [vmem:[#allocation12 + $0x12c] sm:$0xf]
          %v9977 = vld [vmem:[#allocation12 + $0x130] sm:$0xf]
          %v9978 = vld [vmem:[#allocation12 + $0x134] sm:$0xf]
          %v9979 = vld [vmem:[#allocation12 + $0x138] sm:$0xf]
          %v9980 = vld [vmem:[#allocation12 + $0x13c] sm:$0xf]
          %v9981 = vld [vmem:[#allocation12 + $0x140] sm:$0xf]
          %v9982 = vld [vmem:[#allocation12 + $0x144] sm:$0xf]
          %v9983 = vld [vmem:[#allocation12 + $0x148] sm:$0xf]
          %v9984 = vld [vmem:[#allocation12 + $0x14c] sm:$0xf]
          %v9985 = vld [vmem:[#allocation12 + $0x150] sm:$0xf]
          %v9986 = vld [vmem:[#allocation12 + $0x154] sm:$0xf]
          %v9987 = vld [vmem:[#allocation12 + $0x158] sm:$0xf]
          %v9988 = vld [vmem:[#allocation12 + $0x15c] sm:$0xf]
          %v9989 = vld [vmem:[#allocation12 + $0x160] sm:$0xf]
          %v9990 = vld [vmem:[#allocation12 + $0x164] sm:$0xf]
          %v9991 = vld [vmem:[#allocation12 + $0x168] sm:$0xf]
          %v9992 = vld [vmem:[#allocation12 + $0x16c] sm:$0xf]
          %v9993 = vld [vmem:[#allocation12 + $0x170] sm:$0xf]
          %v9994 = vld [vmem:[#allocation12 + $0x174] sm:$0xf]
          %v9995 = vld [vmem:[#allocation12 + $0x178] sm:$0xf]
          %v9996 = vld [vmem:[#allocation12 + $0x17c] sm:$0xf]
          %v9997 = vld [vmem:[#allocation12 + $0x180] sm:$0xf]
          %v9998 = vld [vmem:[#allocation12 + $0x184] sm:$0xf]
          %v9999 = vld [vmem:[#allocation12 + $0x188] sm:$0xf]
          %v10000 = vld [vmem:[#allocation12 + $0x18c] sm:$0xf]
          %v10001 = vld [vmem:[#allocation12 + $0x190] sm:$0xf]
          %v10002 = vld [vmem:[#allocation12 + $0x194] sm:$0xf]
          %v10003 = vld [vmem:[#allocation12 + $0x198] sm:$0xf]
          %v10004 = vld [vmem:[#allocation12 + $0x19c] sm:$0xf]
          %v10005 = vld [vmem:[#allocation12 + $0x1a0] sm:$0xf]
          %v10006 = vld [vmem:[#allocation12 + $0x1a4] sm:$0xf]
          %v10007 = vld [vmem:[#allocation12 + $0x1a8] sm:$0xf]
          %v10008 = vld [vmem:[#allocation12 + $0x1ac] sm:$0xf]
          %v10009 = vld [vmem:[#allocation12 + $0x1b0] sm:$0xf]
          %v10010 = vld [vmem:[#allocation12 + $0x1b4] sm:$0xf]
          %v10011 = vld [vmem:[#allocation12 + $0x1b8] sm:$0xf]
          %v10012 = vld [vmem:[#allocation12 + $0x1bc] sm:$0xf]
          %v10013 = vld [vmem:[#allocation12 + $0x1c0] sm:$0xf]
          %v10014 = vld [vmem:[#allocation12 + $0x1c4] sm:$0xf]
          %v10015 = vld [vmem:[#allocation12 + $0x1c8] sm:$0xf]
          %v10016 = vld [vmem:[#allocation12 + $0x1cc] sm:$0xf]
          %v10017 = vld [vmem:[#allocation12 + $0x1d0] sm:$0xf]
          %v10018 = vld [vmem:[#allocation12 + $0x1d4] sm:$0xf]
          %v10019 = vld [vmem:[#allocation12 + $0x1d8] sm:$0xf]
          %v10020 = vld [vmem:[#allocation12 + $0x1dc] sm:$0xf]
          %v10021 = vld [vmem:[#allocation12 + $0x1e0] sm:$0xf]
          %v10022 = vld [vmem:[#allocation12 + $0x1e4] sm:$0xf]
          %v10023 = vld [vmem:[#allocation12 + $0x1e8] sm:$0xf]
          %v10024 = vld [vmem:[#allocation12 + $0x1ec] sm:$0xf]
          %v10025 = vld [vmem:[#allocation12 + $0x1f0] sm:$0xf]
          %v10026 = vld [vmem:[#allocation12 + $0x1f4] sm:$0xf]
          %v10027 = vld [vmem:[#allocation12 + $0x1f8] sm:$0xf]
          %v10028 = vld [vmem:[#allocation12 + $0x1fc] sm:$0xf]
          %v10029 = vld [vmem:[#allocation14] sm:$0x1]
          %v10031 = vlaneseq
          %v10032 = vshrl.u32 %v10031, 7
          %v10033 = vsub.s32 0, %v10032
          %v10034 = vrot.slane %v10029, %v10033
          %v10164 = vunpack.c.l.b16 %v9901
          %v10165 = vunpack.c.l.b16 %v9902
          %v10166 = vunpack.c.l.b16 %v9903
          %v10167 = vunpack.c.l.b16 %v9904
          %v10168 = vunpack.c.l.b16 %v9905
          %v10169 = vunpack.c.l.b16 %v9906
          %v10170 = vunpack.c.l.b16 %v9907
          %v10171 = vunpack.c.l.b16 %v9908
          %v10172 = vunpack.c.l.b16 %v9909
          %v10173 = vunpack.c.l.b16 %v9910
          %v10174 = vunpack.c.l.b16 %v9911
          %v10175 = vunpack.c.l.b16 %v9912
          %v10176 = vunpack.c.l.b16 %v9913
          %v10177 = vunpack.c.l.b16 %v9914
          %v10178 = vunpack.c.l.b16 %v9915
          %v10179 = vunpack.c.l.b16 %v9916
          %v10180 = vunpack.c.l.b16 %v9917
          %v10181 = vunpack.c.l.b16 %v9918
          %v10182 = vunpack.c.l.b16 %v9919
          %v10183 = vunpack.c.l.b16 %v9920
          %v10184 = vunpack.c.l.b16 %v9921
          %v10185 = vunpack.c.l.b16 %v9922
          %v10186 = vunpack.c.l.b16 %v9923
          %v10187 = vunpack.c.l.b16 %v9924
          %v10188 = vunpack.c.l.b16 %v9925
          %v10189 = vunpack.c.l.b16 %v9926
          %v10190 = vunpack.c.l.b16 %v9927
          %v10191 = vunpack.c.l.b16 %v9928
          %v10192 = vunpack.c.l.b16 %v9929
          %v10193 = vunpack.c.l.b16 %v9930
          %v10194 = vunpack.c.l.b16 %v9931
          %v10195 = vunpack.c.l.b16 %v9932
          %v10196 = vunpack.c.l.b16 %v9933
          %v10197 = vunpack.c.l.b16 %v9934
          %v10198 = vunpack.c.l.b16 %v9935
          %v10199 = vunpack.c.l.b16 %v9936
          %v10200 = vunpack.c.l.b16 %v9937
          %v10201 = vunpack.c.l.b16 %v9938
          %v10202 = vunpack.c.l.b16 %v9939
          %v10203 = vunpack.c.l.b16 %v9940
          %v10204 = vunpack.c.l.b16 %v9941
          %v10205 = vunpack.c.l.b16 %v9942
          %v10206 = vunpack.c.l.b16 %v9943
          %v10207 = vunpack.c.l.b16 %v9944
          %v10208 = vunpack.c.l.b16 %v9945
          %v10209 = vunpack.c.l.b16 %v9946
          %v10210 = vunpack.c.l.b16 %v9947
          %v10211 = vunpack.c.l.b16 %v9948
          %v10212 = vunpack.c.l.b16 %v9949
          %v10213 = vunpack.c.l.b16 %v9950
          %v10214 = vunpack.c.l.b16 %v9951
          %v10215 = vunpack.c.l.b16 %v9952
          %v10216 = vunpack.c.l.b16 %v9953
          %v10217 = vunpack.c.l.b16 %v9954
          %v10218 = vunpack.c.l.b16 %v9955
          %v10219 = vunpack.c.l.b16 %v9956
          %v10220 = vunpack.c.l.b16 %v9957
          %v10221 = vunpack.c.l.b16 %v9958
          %v10222 = vunpack.c.l.b16 %v9959
          %v10223 = vunpack.c.l.b16 %v9960
          %v10224 = vunpack.c.l.b16 %v9961
          %v10225 = vunpack.c.l.b16 %v9962
          %v10226 = vunpack.c.l.b16 %v9963
          %v10227 = vunpack.c.l.b16 %v9964
          %v10228 = vunpack.c.l.b16 %v9965
          %v10229 = vunpack.c.l.b16 %v9966
          %v10230 = vunpack.c.l.b16 %v9967
          %v10231 = vunpack.c.l.b16 %v9968
          %v10232 = vunpack.c.l.b16 %v9969
          %v10233 = vunpack.c.l.b16 %v9970
          %v10234 = vunpack.c.l.b16 %v9971
          %v10235 = vunpack.c.l.b16 %v9972
          %v10236 = vunpack.c.l.b16 %v9973
          %v10237 = vunpack.c.l.b16 %v9974
          %v10238 = vunpack.c.l.b16 %v9975
          %v10239 = vunpack.c.l.b16 %v9976
          %v10240 = vunpack.c.l.b16 %v9977
          %v10241 = vunpack.c.l.b16 %v9978
          %v10242 = vunpack.c.l.b16 %v9979
          %v10243 = vunpack.c.l.b16 %v9980
          %v10244 = vunpack.c.l.b16 %v9981
          %v10245 = vunpack.c.l.b16 %v9982
          %v10246 = vunpack.c.l.b16 %v9983
          %v10247 = vunpack.c.l.b16 %v9984
          %v10248 = vunpack.c.l.b16 %v9985
          %v10249 = vunpack.c.l.b16 %v9986
          %v10250 = vunpack.c.l.b16 %v9987
          %v10251 = vunpack.c.l.b16 %v9988
          %v10252 = vunpack.c.l.b16 %v9989
          %v10253 = vunpack.c.l.b16 %v9990
          %v10254 = vunpack.c.l.b16 %v9991
          %v10255 = vunpack.c.l.b16 %v9992
          %v10256 = vunpack.c.l.b16 %v9993
          %v10257 = vunpack.c.l.b16 %v9994
          %v10258 = vunpack.c.l.b16 %v9995
          %v10259 = vunpack.c.l.b16 %v9996
          %v10260 = vunpack.c.l.b16 %v9997
          %v10261 = vunpack.c.l.b16 %v9998
          %v10262 = vunpack.c.l.b16 %v9999
          %v10263 = vunpack.c.l.b16 %v10000
          %v10264 = vunpack.c.l.b16 %v10001
          %v10265 = vunpack.c.l.b16 %v10002
          %v10266 = vunpack.c.l.b16 %v10003
          %v10267 = vunpack.c.l.b16 %v10004
          %v10268 = vunpack.c.l.b16 %v10005
          %v10269 = vunpack.c.l.b16 %v10006
          %v10270 = vunpack.c.l.b16 %v10007
          %v10271 = vunpack.c.l.b16 %v10008
          %v10272 = vunpack.c.l.b16 %v10009
          %v10273 = vunpack.c.l.b16 %v10010
          %v10274 = vunpack.c.l.b16 %v10011
          %v10275 = vunpack.c.l.b16 %v10012
          %v10276 = vunpack.c.l.b16 %v10013
          %v10277 = vunpack.c.l.b16 %v10014
          %v10278 = vunpack.c.l.b16 %v10015
          %v10279 = vunpack.c.l.b16 %v10016
          %v10280 = vunpack.c.l.b16 %v10017
          %v10281 = vunpack.c.l.b16 %v10018
          %v10282 = vunpack.c.l.b16 %v10019
          %v10283 = vunpack.c.l.b16 %v10020
          %v10284 = vunpack.c.l.b16 %v10021
          %v10285 = vunpack.c.l.b16 %v10022
          %v10286 = vunpack.c.l.b16 %v10023
          %v10287 = vunpack.c.l.b16 %v10024
          %v10288 = vunpack.c.l.b16 %v10025
          %v10289 = vunpack.c.l.b16 %v10026
          %v10290 = vunpack.c.l.b16 %v10027
          %v10291 = vunpack.c.l.b16 %v10028
          %v10292 = vpack.c.b16 %v10165, %v10164
          %v10293 = vpack.c.b16 %v10167, %v10166
          %v10294 = vpack.c.b16 %v10169, %v10168
          %v10295 = vpack.c.b16 %v10171, %v10170
          %v10296 = vpack.c.b16 %v10173, %v10172
          %v10297 = vpack.c.b16 %v10175, %v10174
          %v10298 = vpack.c.b16 %v10177, %v10176
          %v10299 = vpack.c.b16 %v10179, %v10178
          %v10300 = vpack.c.b16 %v10181, %v10180
          %v10301 = vpack.c.b16 %v10183, %v10182
          %v10302 = vpack.c.b16 %v10185, %v10184
          %v10303 = vpack.c.b16 %v10187, %v10186
          %v10304 = vpack.c.b16 %v10189, %v10188
          %v10305 = vpack.c.b16 %v10191, %v10190
          %v10306 = vpack.c.b16 %v10193, %v10192
          %v10307 = vpack.c.b16 %v10195, %v10194
          %v10308 = vpack.c.b16 %v10197, %v10196
          %v10309 = vpack.c.b16 %v10199, %v10198
          %v10310 = vpack.c.b16 %v10201, %v10200
          %v10311 = vpack.c.b16 %v10203, %v10202
          %v10312 = vpack.c.b16 %v10205, %v10204
          %v10313 = vpack.c.b16 %v10207, %v10206
          %v10314 = vpack.c.b16 %v10209, %v10208
          %v10315 = vpack.c.b16 %v10211, %v10210
          %v10316 = vpack.c.b16 %v10213, %v10212
          %v10317 = vpack.c.b16 %v10215, %v10214
          %v10318 = vpack.c.b16 %v10217, %v10216
          %v10319 = vpack.c.b16 %v10219, %v10218
          %v10320 = vpack.c.b16 %v10221, %v10220
          %v10321 = vpack.c.b16 %v10223, %v10222
          %v10322 = vpack.c.b16 %v10225, %v10224
          %v10323 = vpack.c.b16 %v10227, %v10226
          %v10324 = vpack.c.b16 %v10229, %v10228
          %v10325 = vpack.c.b16 %v10231, %v10230
          %v10326 = vpack.c.b16 %v10233, %v10232
          %v10327 = vpack.c.b16 %v10235, %v10234
          %v10328 = vpack.c.b16 %v10237, %v10236
          %v10329 = vpack.c.b16 %v10239, %v10238
          %v10330 = vpack.c.b16 %v10241, %v10240
          %v10331 = vpack.c.b16 %v10243, %v10242
          %v10332 = vpack.c.b16 %v10245, %v10244
          %v10333 = vpack.c.b16 %v10247, %v10246
          %v10334 = vpack.c.b16 %v10249, %v10248
          %v10335 = vpack.c.b16 %v10251, %v10250
          %v10336 = vpack.c.b16 %v10253, %v10252
          %v10337 = vpack.c.b16 %v10255, %v10254
          %v10338 = vpack.c.b16 %v10257, %v10256
          %v10339 = vpack.c.b16 %v10259, %v10258
          %v10340 = vpack.c.b16 %v10261, %v10260
          %v10341 = vpack.c.b16 %v10263, %v10262
          %v10342 = vpack.c.b16 %v10265, %v10264
          %v10343 = vpack.c.b16 %v10267, %v10266
          %v10344 = vpack.c.b16 %v10269, %v10268
          %v10345 = vpack.c.b16 %v10271, %v10270
          %v10346 = vpack.c.b16 %v10273, %v10272
          %v10347 = vpack.c.b16 %v10275, %v10274
          %v10348 = vpack.c.b16 %v10277, %v10276
          %v10349 = vpack.c.b16 %v10279, %v10278
          %v10350 = vpack.c.b16 %v10281, %v10280
          %v10351 = vpack.c.b16 %v10283, %v10282
          %v10352 = vpack.c.b16 %v10285, %v10284
          %v10353 = vpack.c.b16 %v10287, %v10286
          %v10354 = vpack.c.b16 %v10289, %v10288
          %v10355 = vpack.c.b16 %v10291, %v10290
          %10420 = vmatprep.subr.bf16.mxu0 0
          %10421 = vmatpush1.bf16.msra.mxu0 %v10292
          %10422 = vmatprep.subr.bf16.mxu0 0
          %10423 = vmatpush1.bf16.msra.mxu0 %v10293
          %10424 = vmatprep.subr.bf16.mxu0 0
          %10425 = vmatpush1.bf16.msra.mxu0 %v10294
          %10426 = vmatprep.subr.bf16.mxu0 0
          %10427 = vmatpush1.bf16.msra.mxu0 %v10295
          %10428 = vmatprep.subr.bf16.mxu0 0
          %10429 = vmatpush1.bf16.msra.mxu0 %v10296
          %10430 = vmatprep.subr.bf16.mxu0 0
          %10431 = vmatpush1.bf16.msra.mxu0 %v10297
          %10432 = vmatprep.subr.bf16.mxu0 0
          %10433 = vmatpush1.bf16.msra.mxu0 %v10298
          %10434 = vmatprep.subr.bf16.mxu0 0
          %10435 = vmatpush1.bf16.msra.mxu0 %v10299
          %10436 = vmatprep.subr.bf16.mxu0 0
          %10437 = vmatpush1.bf16.msra.mxu0 %v10300
          %10438 = vmatprep.subr.bf16.mxu0 0
          %10439 = vmatpush1.bf16.msra.mxu0 %v10301
          %10440 = vmatprep.subr.bf16.mxu0 0
          %10441 = vmatpush1.bf16.msra.mxu0 %v10302
          %10442 = vmatprep.subr.bf16.mxu0 0
          %10443 = vmatpush1.bf16.msra.mxu0 %v10303
          %10444 = vmatprep.subr.bf16.mxu0 0
          %10445 = vmatpush1.bf16.msra.mxu0 %v10304
          %10446 = vmatprep.subr.bf16.mxu0 0
          %10447 = vmatpush1.bf16.msra.mxu0 %v10305
          %10448 = vmatprep.subr.bf16.mxu0 0
          %10449 = vmatpush1.bf16.msra.mxu0 %v10306
          %10450 = vmatprep.subr.bf16.mxu0 0
          %10451 = vmatpush1.bf16.msra.mxu0 %v10307
          %10452 = vmatprep.mubr.bf16.mxu0 %v9886
          %10453 = vmatmul.mubr.bf16.gmra.mrb[0].mxu0 %v9885
          %v10454 = vpop.f32.mrb[0].mxu0
          %v10455 = vadd.f32 %v10034, %v10454
          %v10456 = vpop.f32.mrb[0].mxu0
          %v10457 = vpop.f32.mrb[0].mxu0
          %v10458 = vadd.f32 %v10034, %v10457
          %v10459 = vpop.f32.mrb[0].mxu0
          %10460 = vmatprep.mubr.bf16.mxu0 %v9894
          %10461 = vmatmul.mubr.bf16.gmra.mrb[0].mxu0 %v9893
          %v10462 = vpop.f32.mrb[0].mxu0
          %v10463 = vadd.f32 %v10034, %v10462
          %v10464 = vpop.f32.mrb[0].mxu0
          %v10465 = vpop.f32.mrb[0].mxu0
          %v10466 = vadd.f32 %v10034, %v10465
          %v10467 = vpop.f32.mrb[0].mxu0
          %10468 = vdwg.mxu0
          %10469 = vmatprep.subr.bf16.mxu0 0
          %10470 = vmatpush1.bf16.msra.mxu0 %v10308
          %10471 = vmatprep.subr.bf16.mxu0 0
          %10472 = vmatpush1.bf16.msra.mxu0 %v10309
          %10473 = vmatprep.subr.bf16.mxu0 0
          %10474 = vmatpush1.bf16.msra.mxu0 %v10310
          %10475 = vmatprep.subr.bf16.mxu0 0
          %10476 = vmatpush1.bf16.msra.mxu0 %v10311
          %10477 = vmatprep.subr.bf16.mxu0 0
          %10478 = vmatpush1.bf16.msra.mxu0 %v10312
          %10479 = vmatprep.subr.bf16.mxu0 0
          %10480 = vmatpush1.bf16.msra.mxu0 %v10313
          %10481 = vmatprep.subr.bf16.mxu0 0
          %10482 = vmatpush1.bf16.msra.mxu0 %v10314
          %10483 = vmatprep.subr.bf16.mxu0 0
          %10484 = vmatpush1.bf16.msra.mxu0 %v10315
          %10485 = vmatprep.subr.bf16.mxu0 0
          %10486 = vmatpush1.bf16.msra.mxu0 %v10316
          %10487 = vmatprep.subr.bf16.mxu0 0
          %10488 = vmatpush1.bf16.msra.mxu0 %v10317
          %10489 = vmatprep.subr.bf16.mxu0 0
          %10490 = vmatpush1.bf16.msra.mxu0 %v10318
          %10491 = vmatprep.subr.bf16.mxu0 0
          %10492 = vmatpush1.bf16.msra.mxu0 %v10319
          %10493 = vmatprep.subr.bf16.mxu0 0
          %10494 = vmatpush1.bf16.msra.mxu0 %v10320
          %10495 = vmatprep.subr.bf16.mxu0 0
          %10496 = vmatpush1.bf16.msra.mxu0 %v10321
          %10497 = vmatprep.subr.bf16.mxu0 0
          %10498 = vmatpush1.bf16.msra.mxu0 %v10322
          %10499 = vmatprep.subr.bf16.mxu0 0
          %10500 = vmatpush1.bf16.msra.mxu0 %v10323
          %10501 = vmatprep.mubr.bf16.mxu0 %v9888
          %10502 = vmatmul.mubr.bf16.gmra.mrb[0].mxu0 %v9887
          %v10503 = vpop.f32.mrb[0].mxu0
          %v10504 = vadd.f32 %v10455, %v10503
          %v10505 = vpop.f32.mrb[0].mxu0
          %v10506 = vpop.f32.mrb[0].mxu0
          %v10507 = vadd.f32 %v10458, %v10506
          %v10508 = vpop.f32.mrb[0].mxu0
          %10509 = vmatprep.mubr.bf16.mxu0 %v9896
          %10510 = vmatmul.mubr.bf16.gmra.mrb[0].mxu0 %v9895
          %v10511 = vpop.f32.mrb[0].mxu0
          %v10512 = vadd.f32 %v10463, %v10511
          %v10513 = vpop.f32.mrb[0].mxu0
          %v10514 = vpop.f32.mrb[0].mxu0
          %v10515 = vadd.f32 %v10466, %v10514
          %v10516 = vpop.f32.mrb[0].mxu0
          %10517 = vdwg.mxu0
          %10518 = vmatprep.subr.bf16.mxu0 0
          %10519 = vmatpush1.bf16.msra.mxu0 %v10324
          %10520 = vmatprep.subr.bf16.mxu0 0
          %10521 = vmatpush1.bf16.msra.mxu0 %v10325
          %10522 = vmatprep.subr.bf16.mxu0 0
          %10523 = vmatpush1.bf16.msra.mxu0 %v10326
          %10524 = vmatprep.subr.bf16.mxu0 0
          %10525 = vmatpush1.bf16.msra.mxu0 %v10327
          %10526 = vmatprep.subr.bf16.mxu0 0
          %10527 = vmatpush1.bf16.msra.mxu0 %v10328
          %10528 = vmatprep.subr.bf16.mxu0 0
          %10529 = vmatpush1.bf16.msra.mxu0 %v10329
          %10530 = vmatprep.subr.bf16.mxu0 0
          %10531 = vmatpush1.bf16.msra.mxu0 %v10330
          %10532 = vmatprep.subr.bf16.mxu0 0
          %10533 = vmatpush1.bf16.msra.mxu0 %v10331
          %10534 = vmatprep.subr.bf16.mxu0 0
          %10535 = vmatpush1.bf16.msra.mxu0 %v10332
          %10536 = vmatprep.subr.bf16.mxu0 0
          %10537 = vmatpush1.bf16.msra.mxu0 %v10333
          %10538 = vmatprep.subr.bf16.mxu0 0
          %10539 = vmatpush1.bf16.msra.mxu0 %v10334
          %10540 = vmatprep.subr.bf16.mxu0 0
          %10541 = vmatpush1.bf16.msra.mxu0 %v10335
          %10542 = vmatprep.subr.bf16.mxu0 0
          %10543 = vmatpush1.bf16.msra.mxu0 %v10336
          %10544 = vmatprep.subr.bf16.mxu0 0
          %10545 = vmatpush1.bf16.msra.mxu0 %v10337
          %10546 = vmatprep.subr.bf16.mxu0 0
          %10547 = vmatpush1.bf16.msra.mxu0 %v10338
          %10548 = vmatprep.subr.bf16.mxu0 0
          %10549 = vmatpush1.bf16.msra.mxu0 %v10339
          %10550 = vmatprep.mubr.bf16.mxu0 %v9890
          %10551 = vmatmul.mubr.bf16.gmra.mrb[0].mxu0 %v9889
          %v10552 = vpop.f32.mrb[0].mxu0
          %v10553 = vadd.f32 %v10504, %v10552
          %v10554 = vpop.f32.mrb[0].mxu0
          %v10555 = vpop.f32.mrb[0].mxu0
          %v10556 = vadd.f32 %v10507, %v10555
          %v10557 = vpop.f32.mrb[0].mxu0
          %10558 = vmatprep.mubr.bf16.mxu0 %v9898
          %10559 = vmatmul.mubr.bf16.gmra.mrb[0].mxu0 %v9897
          %v10560 = vpop.f32.mrb[0].mxu0
          %v10561 = vadd.f32 %v10512, %v10560
          %v10562 = vpop.f32.mrb[0].mxu0
          %v10563 = vpop.f32.mrb[0].mxu0
          %v10564 = vadd.f32 %v10515, %v10563
          %v10565 = vpop.f32.mrb[0].mxu0
          %10566 = vdwg.mxu0
          %10567 = vmatprep.subr.bf16.mxu0 0
          %10568 = vmatpush1.bf16.msra.mxu0 %v10340
          %10569 = vmatprep.subr.bf16.mxu0 0
          %10570 = vmatpush1.bf16.msra.mxu0 %v10341
          %10571 = vmatprep.subr.bf16.mxu0 0
          %10572 = vmatpush1.bf16.msra.mxu0 %v10342
          %10573 = vmatprep.subr.bf16.mxu0 0
          %10574 = vmatpush1.bf16.msra.mxu0 %v10343
          %10575 = vmatprep.subr.bf16.mxu0 0
          %10576 = vmatpush1.bf16.msra.mxu0 %v10344
          %10577 = vmatprep.subr.bf16.mxu0 0
          %10578 = vmatpush1.bf16.msra.mxu0 %v10345
          %10579 = vmatprep.subr.bf16.mxu0 0
          %10580 = vmatpush1.bf16.msra.mxu0 %v10346
          %10581 = vmatprep.subr.bf16.mxu0 0
          %10582 = vmatpush1.bf16.msra.mxu0 %v10347
          %10583 = vmatprep.subr.bf16.mxu0 0
          %10584 = vmatpush1.bf16.msra.mxu0 %v10348
          %10585 = vmatprep.subr.bf16.mxu0 0
          %10586 = vmatpush1.bf16.msra.mxu0 %v10349
          %10587 = vmatprep.subr.bf16.mxu0 0
          %10588 = vmatpush1.bf16.msra.mxu0 %v10350
          %10589 = vmatprep.subr.bf16.mxu0 0
          %10590 = vmatpush1.bf16.msra.mxu0 %v10351
          %10591 = vmatprep.subr.bf16.mxu0 0
          %10592 = vmatpush1.bf16.msra.mxu0 %v10352
          %10593 = vmatprep.subr.bf16.mxu0 0
          %10594 = vmatpush1.bf16.msra.mxu0 %v10353
          %10595 = vmatprep.subr.bf16.mxu0 0
          %10596 = vmatpush1.bf16.msra.mxu0 %v10354
          %10597 = vmatprep.subr.bf16.mxu0 0
          %10598 = vmatpush1.bf16.msra.mxu0 %v10355
          %10599 = vmatprep.mubr.bf16.mxu0 %v9892
          %10600 = vmatmul.mubr.bf16.gmra.mrb[0].mxu0 %v9891
          %v10601 = vpop.f32.mrb[0].mxu0
          %v10602 = vadd.f32 %v10553, %v10601
          %v10603 = vpop.f32.mrb[0].mxu0
          %v10604 = vpop.f32.mrb[0].mxu0
          %v10605 = vadd.f32 %v10556, %v10604
          %v10606 = vpop.f32.mrb[0].mxu0
          %10607 = vmatprep.mubr.bf16.mxu0 %v9900
          %10608 = vmatmul.mubr.bf16.gmra.mrb[0].mxu0 %v9899
          %v10609 = vpop.f32.mrb[0].mxu0
          %v10610 = vadd.f32 %v10561, %v10609
          %v10611 = vpop.f32.mrb[0].mxu0
          %v10612 = vpop.f32.mrb[0].mxu0
          %v10613 = vadd.f32 %v10564, %v10612
          %v10614 = vpop.f32.mrb[0].mxu0
          %10615 = vdwg.mxu0
          %10616 = vst [vmem:[#allocation15] sm:$0xff] %v10602
          %10617 = vst [vmem:[#allocation15 + $0x8] sm:$0xff] %v10605
          %10618 = vst [vmem:[#allocation15 + $0x10] sm:$0xff] %v10610
          %10619 = vst [vmem:[#allocation15 + $0x18] sm:$0xff] %v10613
        $region84: #{tpu_custom_call.1} parent=47 // pred_fallthru
          _
        // Predicated region
        $region85: #{tpu_custom_call.1} parent=47 // pred_check
          %p10620 = pneg %p202
        $region86: #{tpu_custom_call.1} parent=47 // pred_check_branch
          %10622 = sbr.rel (%p10620) target = $region88
        $region87: #{tpu_custom_call.1} parent=47 // pred_region
          %s10624 = ssub.s32 512, 512
          %10625 = vsyncadd [#allocation5], %s10624
          %s10626 = sshll.u32 [#allocation15], 4
          %s10627 = int_to_ptr.vmem [resolvable:$true] %s10626
          %10632 = dma.vmem_to_hbm [thread:$0]  %s10627, 512, %s7, [#allocation5], 128, 128, 8
        $region88: #{tpu_custom_call.1} parent=47 // pred_fallthru
          _
        // Predicated region
        $region89: #{tpu_custom_call.1} parent=47 // pred_check
          %p10633 = pneg %p202
        $region90: #{tpu_custom_call.1} parent=47 // pred_check_branch
          %10635 = sbr.rel (%p10633) target = $region92
        $region91: #{tpu_custom_call.1} parent=47 // pred_region
          %10636 = dma.done [#allocation5], 512
        $region92: #{tpu_custom_call.1} parent=47 // pred_fallthru
          _
      $region48: #{tpu_custom_call.1} parent=5 // pred_fallthru
        _
      %p10637 = scmp.le.s32.totalorder 2, %s22
      // Predicated region
      $region93: #{tpu_custom_call.1} parent=5 // pred_check
        %p10638 = pneg %p10637
      $region94: #{tpu_custom_call.1} parent=5 // pred_check_branch
        %10640 = sbr.rel (%p10638) target = $region96
      $region95: #{tpu_custom_call.1} parent=5 // pred_region
        %s10641 = ssub.s32 %s22, 2
      $region96: #{tpu_custom_call.1} parent=5 // pred_fallthru
        _
    $region6: #{tpu_custom_call.1} parent=1 // loop_footer
      %s26 = sadd.s32 1, %s22
    $region7: #{tpu_custom_call.1} parent=1 // loop_footer_branch
      %21 = sbr.rel target = $region3
    $region8: #{tpu_custom_call.1} parent=1 // loop_exit
      _
    %10642 = vsyncpa [#allocation4], 1
    %s10643 = scalar_lea.sflag [#allocation4], 1
    %10644 = vsyncpa %s10643, 1
    %10645 = vsyncpa [#allocation7], 1
    %s10646 = scalar_lea.sflag [#allocation7], 1
    %10647 = vsyncpa %s10646, 1
    %10648 = vsyncpa [#allocation10], 1
    %s10649 = scalar_lea.sflag [#allocation10], 1
    %10650 = vsyncpa %s10649, 1
    %10651 = vsyncpa [#allocation13], 1
    %10652 = vsyncpa [#allocation5], 1
    %s10653 = scalar_lea.sflag [#allocation5], 1
    %10654 = vsyncpa %s10653, 1

</llo_original>
